<compile_context>
chip_gen: v6e
topology: v6e:2x2x1
jax: 0.10.0
libtpu: 0.0.40
codegen_flags: <defaults>
</compile_context>

<pallas_src>
import functools
import math

import jax
import jax.numpy as jnp
from jax.experimental import pallas as pl
from jax.experimental.pallas import tpu as pltpu


_SQRT_2_OVER_PI = 0.7978845608028654
_GELU_COEFF = 0.044715
_LANE = 128
_SUBLANE = 16          # bf16-friendly sublane multiple for batch tiles
_MAX_TILE_M = 256


# ----------------------------------------------------------------------------
# small helpers
# ----------------------------------------------------------------------------
def _round_up(x, m):
    return (x + m - 1) // m * m


def _cdiv(a, b):
    return (a + b - 1) // b


def _default_compute_dtype():
    """bf16 elementwise on v6e/v7x (bf16 VPU/EUP), f32 on v5e and older."""
    try:
        kind = jax.devices()[0].device_kind.lower()
    except Exception:
        return jnp.float32
    for old in ("v2", "v3", "v4", "v5"):
        if old in kind:
            return jnp.float32
    return jnp.bfloat16


def _vmem_capacity_bytes():
    try:
        return int(pltpu.get_tpu_info().vmem_capacity_bytes)
    except Exception:
        return 64 << 20        # v7x per-TC floor — conservative fallback


def _largest_tile(dim):
    for t in (512, 256, 128):
        if dim % t == 0:
            return t
    return dim


def _choose_batch_tiling(batch):
    padded = _round_up(max(batch, _SUBLANE), _SUBLANE)
    if padded > _SUBLANE:
        # >= 2 grid steps so the "parallel" batch axis shards across v7x's two
        # TensorCores and input/output DMAs actually pipeline.
        tile_m = min(_MAX_TILE_M, _round_up(_cdiv(padded, 2), _SUBLANE))
        padded = _round_up(padded, tile_m)
    else:
        tile_m = padded
    return padded, tile_m


def _estimate_fused_vmem(params, tile_m, dims_p, compute_dtype, param_buffers,
                         extra_cols=()):
    """Buffering-aware VMEM footprint estimate for the fused kernel."""
    cd_size = jnp.dtype(compute_dtype).itemsize
    p_bytes = param_buffers * sum(int(p.size) * p.dtype.itemsize for p in params)
    io_bytes = 2 * tile_m * (dims_p[0] + dims_p[-1]) * 4      # x/out tiles, 2-buffered
    extra = sum(2 * tile_m * c * cd_size for c in extra_cols)  # e.g. precomputed t0
    live = 6 * tile_m * max(dims_p) * 4                        # intermediates / spill headroom
    return p_bytes + io_bytes + extra + live


# ----------------------------------------------------------------------------
# math shared by kernel and pure-JAX reference (identical cast points)
# ----------------------------------------------------------------------------
def _gelu_tanh(x):
    # tanh-approx GELU (tanh runs on the EUP, its own VLIW slot).  Inner
    # polynomial factored to save a VALU mul.
    # TODO(synk): x*sigmoid(1.702x) is cheaper still if accuracy allows.
    x2 = x * x
    inner = x * (_SQRT_2_OVER_PI + _SQRT_2_OVER_PI * _GELU_COEFF * x2)
    return 0.5 * x * (1.0 + jnp.tanh(inner))


def _resblock(h, s1, sh1, w1, b1, s2, sh2, w2, b2, *, cd, t1=None):
    """One ResBlock, eval mode.  `t1` optionally supplies a precomputed
    Linear1(GELU(BN1(x))) (used by the K-tiled first-layer path)."""
    if t1 is None:
        a = _gelu_tanh(h * s1.astype(cd) + sh1.astype(cd))
        t1 = (jnp.dot(a.astype(jnp.bfloat16), w1.astype(jnp.bfloat16),
                      preferred_element_type=jnp.float32)
              + b1.astype(jnp.float32)).astype(cd)
    y = h + t1.astype(cd)
    a2 = _gelu_tanh(y * s2.astype(cd) + sh2.astype(cd))
    return (jnp.dot(a2.astype(jnp.bfloat16), w2.astype(jnp.bfloat16),
                    preferred_element_type=jnp.float32)
            + b2.astype(jnp.float32)).astype(cd)


# ----------------------------------------------------------------------------
# kernels
# ----------------------------------------------------------------------------
def _item_embedder_kernel(num_blocks, compute_dtype, has_t0, x_ref, *refs):
    """Fused forward of every ResBlock for one batch tile.

    refs layout: [t0 (optional)] + [per-block params] + [out_ref]
    If has_t0, block 0's Linear1 output was precomputed and its BN1/W1 params
    are not passed (its param group is only [s2, sh2, w2, b2]).
    """
    out_ref = refs[-1]
    if has_t0:
        t0_ref, params = refs[0], refs[1:-1]
    else:
        t0_ref, params = None, refs[:-1]

    cd = compute_dtype
    h = x_ref[...].astype(cd)
    idx = 0
    for blk in range(num_blocks):
        if blk == 0 and has_t0:
            s2, sh2, w2, b2 = [params[idx + j][...] for j in range(4)]
            idx += 4
            h = _resblock(h, None, None, None, None, s2, sh2, w2, b2,
                          cd=cd, t1=t0_ref[...])
        else:
            s1, sh1, w1, b1, s2, sh2, w2, b2 = [params[idx + j][...]
                                                for j in range(8)]
            idx += 8
            h = _resblock(h, s1, sh1, w1, b1, s2, sh2, w2, b2, cd=cd)
    out_ref[...] = h.astype(out_ref.dtype)


def _bn_gelu_linear_kernel(compute_dtype, x_ref, s_ref, sh_ref, w_ref, b_ref,
                           o_ref, acc_ref):
    """K/N-tiled  GELU(BN(x)) @ W + b  with f32 VMEM accumulator."""
    k = pl.program_id(2)

    @pl.when(k == 0)
    def _():
        acc_ref[...] = jnp.zeros_like(acc_ref)

    cd = compute_dtype
    a = _gelu_tanh(x_ref[...].astype(cd) * s_ref[...].astype(cd)
                   + sh_ref[...].astype(cd))
    acc_ref[...] += jnp.dot(a.astype(jnp.bfloat16), w_ref[...],
                            preferred_element_type=jnp.float32)

    @pl.when(k == pl.num_programs(2) - 1)
    def _():
        o_ref[...] = (acc_ref[...] + b_ref[...]).astype(o_ref.dtype)


# ----------------------------------------------------------------------------
# pallas_call wrappers
# ----------------------------------------------------------------------------
def _bn_gelu_linear(x_p, s1, sh1, w1, b1, *, tile_m, compute_dtype, vmem_limit):
    mp, kdim = x_p.shape
    _, ndim = w1.shape
    tk, tn = _largest_tile(kdim), _largest_tile(ndim)
    grid = (mp // tile_m, ndim // tn, kdim // tk)
    return pl.pallas_call(
        functools.partial(_bn_gelu_linear_kernel, compute_dtype),
        out_shape=jax.ShapeDtypeStruct((mp, ndim), compute_dtype),
        grid=grid,
        in_specs=[
            pl.BlockSpec((tile_m, tk), lambda i, j, k: (i, k)),
            pl.BlockSpec((1, tk), lambda i, j, k: (0, k)),
            pl.BlockSpec((1, tk), lambda i, j, k: (0, k)),
            pl.BlockSpec((tk, tn), lambda i, j, k: (k, j)),
            pl.BlockSpec((1, tn), lambda i, j, k: (0, j)),
        ],
        out_specs=pl.BlockSpec((tile_m, tn), lambda i, j, k: (i, j)),
        scratch_shapes=[pltpu.VMEM((tile_m, tn), jnp.float32)],
        compiler_params=pltpu.CompilerParams(
            dimension_semantics=("parallel", "parallel", "arbitrary"),
            vmem_limit_bytes=vmem_limit),
    )(x_p, s1, sh1, w1, b1)


def _fused_call(x_p, t0, params, *, dims_p, tile_m, compute_dtype, out_dtype,
                single_buffer_params, vmem_limit, num_blocks):
    mp = x_p.shape[0]
    grid = (mp // tile_m,)
    has_t0 = t0 is not None

    def batch_spec(ncols):
        return pl.BlockSpec((tile_m, ncols), lambda i: (i, 0))

    def resident_spec(shape):
        # Constant index_map -> block stays resident across batch tiles.
        # Single-buffered so weights are not needlessly double-buffered.
        kwargs = {}
        if single_buffer_params:
            kwargs["pipeline_mode"] = pl.Buffered(1)
        return pl.BlockSpec(shape, lambda i: (0,) * len(shape), **kwargs)

    in_specs = [batch_spec(dims_p[0])]
    args = [x_p]
    if has_t0:
        in_specs.append(batch_spec(dims_p[0]))
        args.append(t0)
    in_specs += [resident_spec(p.shape) for p in params]
    args += list(params)

    return pl.pallas_call(
        functools.partial(_item_embedder_kernel, num_blocks, compute_dtype,
                          has_t0),
        out_shape=jax.ShapeDtypeStruct((mp, dims_p[-1]), out_dtype),
        grid=grid,
        in_specs=in_specs,
        out_specs=pl.BlockSpec((tile_m, dims_p[-1]), lambda i: (i, 0)),
        compiler_params=pltpu.CompilerParams(
            dimension_semantics=("parallel",),
            vmem_limit_bytes=vmem_limit),
    )(*args)


@functools.partial(jax.jit,
                   static_argnames=("dims", "dims_p", "compute_dtype",
                                    "split_first", "single_buffer_params"))
def item_embedder_forward(x, params_p, *, dims, dims_p, compute_dtype,
                          split_first=None, single_buffer_params=False):
    batch, in_dim = x.shape
    assert in_dim == dims[0], (in_dim, dims)
    num_blocks = len(dims) - 1
    out_dtype = x.dtype

    padded_b, tile_m = _choose_batch_tiling(batch)
    x_p = x
    if padded_b != batch or dims_p[0] != in_dim:
        x_p = jnp.pad(x, ((0, padded_b - batch), (0, dims_p[0] - in_dim)))

    capacity = _vmem_capacity_bytes()
    param_buffers = 1 if single_buffer_params else 2
    est_a = _estimate_fused_vmem(params_p, tile_m, dims_p, compute_dtype,
                                 param_buffers)
    if split_first is None:
        split_first = est_a > int(0.75 * capacity)

    if split_first:
        head, tail = params_p[:4], params_p[4:]
        est = _estimate_fused_vmem(tail, tile_m, dims_p, compute_dtype,
                                   param_buffers, extra_cols=(dims_p[0],))
        vmem_limit = int(min(0.92 * capacity, max(2 * est, 48 << 20)))
        # Block-0 Linear1(GELU(BN1(x))) as a K/N-tiled matmul kernel.
        t0 = _bn_gelu_linear(x_p, *head, tile_m=tile_m,
                             compute_dtype=compute_dtype,
                             vmem_limit=vmem_limit)
        out = _fused_call(x_p, t0, tail, dims_p=dims_p, tile_m=tile_m,
                          compute_dtype=compute_dtype, out_dtype=out_dtype,
                          single_buffer_params=single_buffer_params,
                          vmem_limit=vmem_limit, num_blocks=num_blocks)
    else:
        vmem_limit = int(min(0.92 * capacity, max(2 * est_a, 48 << 20)))
        out = _fused_call(x_p, None, params_p, dims_p=dims_p, tile_m=tile_m,
                          compute_dtype=compute_dtype, out_dtype=out_dtype,
                          single_buffer_params=single_buffer_params,
                          vmem_limit=vmem_limit, num_blocks=num_blocks)

    return out[:batch, :dims[-1]]


# ----------------------------------------------------------------------------
# parameters
# ----------------------------------------------------------------------------
def init_item_embedder_params(key, dims, eps=1e-5):
    """Deterministic synthetic params for every ResBlock.

    BatchNorm folded into scale/shift from running_mean=0, running_var=1
    (PyTorch init) with non-trivial gamma/beta.  Linear weights stored
    transposed, (in, out), in bf16 for the MXU; scale/shift/bias in f32.
    """
    num_blocks = len(dims) - 1
    keys = jax.random.split(key, num_blocks)
    inv_std = 1.0 / math.sqrt(1.0 + eps)
    flat = []
    for blk in range(num_blocks):
        in_dim, out_dim = dims[blk], dims[blk + 1]
        ks = jax.random.split(keys[blk], 6)

        g1 = 1.0 + 0.1 * jax.random.normal(ks[0], (1, in_dim), jnp.float32)
        beta1 = 0.1 * jax.random.normal(ks[1], (1, in_dim), jnp.float32)
        g2 = 1.0 + 0.1 * jax.random.normal(ks[2], (1, in_dim), jnp.float32)
        beta2 = 0.1 * jax.random.normal(ks[3], (1, in_dim), jnp.float32)

        w1 = (jax.random.normal(ks[4], (in_dim, in_dim), jnp.float32)
              / math.sqrt(in_dim)).astype(jnp.bfloat16)
        b1 = jnp.zeros((1, in_dim), jnp.float32)
        w2 = (jax.random.normal(ks[5], (in_dim, out_dim), jnp.float32)
              / math.sqrt(in_dim)).astype(jnp.bfloat16)
        b2 = jnp.zeros((1, out_dim), jnp.float32)

        flat += [g1 * inv_std, beta1, w1, b1, g2 * inv_std, beta2, w2, b2]
    return tuple(flat)


def _pad_params(raw_params, dims, dims_p):
    """Zero-pad every dim to a 128-lane multiple.  Padding is exact: padded
    lanes carry zeros through BN (shift=0), GELU (gelu(0)=0) and the matmuls
    (zero weight rows/cols, zero bias)."""
    num_blocks = len(dims) - 1
    out = []
    for blk in range(num_blocks):
        din, dout = dims[blk], dims[blk + 1]
        dinp, doutp = dims_p[blk], dims_p[blk + 1]
        s1, sh1, w1, b1, s2, sh2, w2, b2 = raw_params[8 * blk: 8 * blk + 8]
        rin = ((0, 0), (0, dinp - din))
        rout = ((0, 0), (0, doutp - dout))
        out += [jnp.pad(s1, rin), jnp.pad(sh1, rin),
                jnp.pad(w1, ((0, dinp - din), (0, dinp - din))), jnp.pad(b1, rin),
                jnp.pad(s2, rin), jnp.pad(sh2, rin),
                jnp.pad(w2, ((0, dinp - din), (0, doutp - dout))), jnp.pad(b2, rout)]
    return tuple(out)


def item_embedder_reference(x, raw_params, dims, compute_dtype):
    """Pure-JAX reference with identical cast discipline to the kernel."""
    num_blocks = len(dims) - 1
    h = x.astype(compute_dtype)
    for blk in range(num_blocks):
        h = _resblock(h, *raw_params[8 * blk: 8 * blk + 8], cd=compute_dtype)
    return h.astype(jnp.float32)


# ----------------------------------------------------------------------------
# module wrapper
# ----------------------------------------------------------------------------
class ItemEmbedderPallas:
    """Pallas equivalent of ItemEmbedder: a fused Sequential of ResBlocks."""

    def __init__(self, user_num, hidden_dims, key, *, compute_dtype=None,
                 force_split_first=False):
        self.dims = tuple([user_num] + list(hidden_dims))
        self.dims_p = tuple(_round_up(d, _LANE) for d in self.dims)
        self.compute_dtype = compute_dtype or _default_compute_dtype()
        self.raw_params = init_item_embedder_params(key, self.dims)
        self.params_p = _pad_params(self.raw_params, self.dims, self.dims_p)
        self.force_split_first = force_split_first
        self._single_buffer = None        # resolved on first call

    def _forward(self, x, single_buffer):
        return item_embedder_forward(
            x, self.params_p, dims=self.dims, dims_p=self.dims_p,
            compute_dtype=self.compute_dtype,
            split_first=True if self.force_split_first else None,
            single_buffer_params=single_buffer)

    def __call__(self, x):
        if self._single_buffer is None:
            try:
                out = self._forward(x, True)
                jax.block_until_ready(out)
                self._single_buffer = True
                return out
            except Exception:
                # pl.Buffered(1) unsupported on this jax/backend combination:
                # fall back to the default double-buffered weight specs.
                self._single_buffer = False
        return self._forward(x, self._single_buffer)


# ----------------------------------------------------------------------------
# demo / self-test
# ----------------------------------------------------------------------------
if __name__ == "__main__":
    key = jax.random.PRNGKey(0)
    k_x, k_p = jax.random.split(key)

    batch = 64
    user_num = 200                          # deliberately not a lane multiple
    hidden_dims = [128, 64, 32, 64, 96]     # small stand-in for [256,128,64,128,256]

    x = jax.random.normal(k_x, (batch, user_num), jnp.float32)

    model = ItemEmbedderPallas(user_num, hidden_dims, k_p)
    out = jax.block_until_ready(model(x))

    assert out.shape == (batch, hidden_dims[-1]), out.shape
    assert bool(jnp.all(jnp.isfinite(out)))

    ref = item_embedder_reference(x, model.raw_params, model.dims,
                                  model.compute_dtype)
    tol = 1e-1 if model.compute_dtype == jnp.bfloat16 else 3e-2
    max_err = float(jnp.max(jnp.abs(out.astype(jnp.float32) - ref)))
    assert max_err < tol, f"max abs err vs reference: {max_err}"

    # Exercise the K-tiled first-layer (split) path at the same small shapes so
    # the large-user_num fallback is proven to compile and run.
    model_b = ItemEmbedderPallas(user_num, hidden_dims, k_p,
                                 force_split_first=True)
    out_b = jax.block_until_ready(model_b(x))
    split_err = float(jnp.max(jnp.abs(out_b.astype(jnp.float32)
                                      - out.astype(jnp.float32))))
    assert split_err < 1e-2, f"split-path mismatch vs fused path: {split_err}"

    print("KERNEL_OK")
</pallas_src>

<mosaic_0001>
module attributes {stable_mosaic.version = 11 : i64} {
  func.func @_item_embedder_kernel(%arg0: i32, %arg1: memref<32x256xf32, #tpu.memory_space<vmem>>, %arg2: memref<1x256xf32, #tpu.memory_space<vmem>>, %arg3: memref<1x256xf32, #tpu.memory_space<vmem>>, %arg4: memref<256x256xbf16, #tpu.memory_space<vmem>>, %arg5: memref<1x256xf32, #tpu.memory_space<vmem>>, %arg6: memref<1x256xf32, #tpu.memory_space<vmem>>, %arg7: memref<1x256xf32, #tpu.memory_space<vmem>>, %arg8: memref<256x128xbf16, #tpu.memory_space<vmem>>, %arg9: memref<1x128xf32, #tpu.memory_space<vmem>>, %arg10: memref<1x128xf32, #tpu.memory_space<vmem>>, %arg11: memref<1x128xf32, #tpu.memory_space<vmem>>, %arg12: memref<128x128xbf16, #tpu.memory_space<vmem>>, %arg13: memref<1x128xf32, #tpu.memory_space<vmem>>, %arg14: memref<1x128xf32, #tpu.memory_space<vmem>>, %arg15: memref<1x128xf32, #tpu.memory_space<vmem>>, %arg16: memref<128x128xbf16, #tpu.memory_space<vmem>>, %arg17: memref<1x128xf32, #tpu.memory_space<vmem>>, %arg18: memref<1x128xf32, #tpu.memory_space<vmem>>, %arg19: memref<1x128xf32, #tpu.memory_space<vmem>>, %arg20: memref<128x128xbf16, #tpu.memory_space<vmem>>, %arg21: memref<1x128xf32, #tpu.memory_space<vmem>>, %arg22: memref<1x128xf32, #tpu.memory_space<vmem>>, %arg23: memref<1x128xf32, #tpu.memory_space<vmem>>, %arg24: memref<128x128xbf16, #tpu.memory_space<vmem>>, %arg25: memref<1x128xf32, #tpu.memory_space<vmem>>, %arg26: memref<1x128xf32, #tpu.memory_space<vmem>>, %arg27: memref<1x128xf32, #tpu.memory_space<vmem>>, %arg28: memref<128x128xbf16, #tpu.memory_space<vmem>>, %arg29: memref<1x128xf32, #tpu.memory_space<vmem>>, %arg30: memref<1x128xf32, #tpu.memory_space<vmem>>, %arg31: memref<1x128xf32, #tpu.memory_space<vmem>>, %arg32: memref<128x128xbf16, #tpu.memory_space<vmem>>, %arg33: memref<1x128xf32, #tpu.memory_space<vmem>>, %arg34: memref<1x128xf32, #tpu.memory_space<vmem>>, %arg35: memref<1x128xf32, #tpu.memory_space<vmem>>, %arg36: memref<128x128xbf16, #tpu.memory_space<vmem>>, %arg37: memref<1x128xf32, #tpu.memory_space<vmem>>, %arg38: memref<1x128xf32, #tpu.memory_space<vmem>>, %arg39: memref<1x128xf32, #tpu.memory_space<vmem>>, %arg40: memref<128x128xbf16, #tpu.memory_space<vmem>>, %arg41: memref<1x128xf32, #tpu.memory_space<vmem>>, %arg42: memref<32x128xf32, #tpu.memory_space<vmem>>) attributes {dimension_semantics = [#tpu.dimension_semantics<parallel>], iteration_bounds = array<i64: 2>, scalar_prefetch = 0 : i64, scratch_operands = 0 : i64, tpu.core_type = #tpu.core_type<tc>, window_params = [{transform_indices = @transform_0, window_bounds = array<i64: 32, 256>}, {pipeline_mode = #tpu.pipeline_mode<synchronous>, transform_indices = @transform_1, window_bounds = array<i64: 1, 256>}, {pipeline_mode = #tpu.pipeline_mode<synchronous>, transform_indices = @transform_2, window_bounds = array<i64: 1, 256>}, {pipeline_mode = #tpu.pipeline_mode<synchronous>, transform_indices = @transform_3, window_bounds = array<i64: 256, 256>}, {pipeline_mode = #tpu.pipeline_mode<synchronous>, transform_indices = @transform_4, window_bounds = array<i64: 1, 256>}, {pipeline_mode = #tpu.pipeline_mode<synchronous>, transform_indices = @transform_5, window_bounds = array<i64: 1, 256>}, {pipeline_mode = #tpu.pipeline_mode<synchronous>, transform_indices = @transform_6, window_bounds = array<i64: 1, 256>}, {pipeline_mode = #tpu.pipeline_mode<synchronous>, transform_indices = @transform_7, window_bounds = array<i64: 256, 128>}, {pipeline_mode = #tpu.pipeline_mode<synchronous>, transform_indices = @transform_8, window_bounds = array<i64: 1, 128>}, {pipeline_mode = #tpu.pipeline_mode<synchronous>, transform_indices = @transform_9, window_bounds = array<i64: 1, 128>}, {pipeline_mode = #tpu.pipeline_mode<synchronous>, transform_indices = @transform_10, window_bounds = array<i64: 1, 128>}, {pipeline_mode = #tpu.pipeline_mode<synchronous>, transform_indices = @transform_11, window_bounds = array<i64: 128, 128>}, {pipeline_mode = #tpu.pipeline_mode<synchronous>, transform_indices = @transform_12, window_bounds = array<i64: 1, 128>}, {pipeline_mode = #tpu.pipeline_mode<synchronous>, transform_indices = @transform_13, window_bounds = array<i64: 1, 128>}, {pipeline_mode = #tpu.pipeline_mode<synchronous>, transform_indices = @transform_14, window_bounds = array<i64: 1, 128>}, {pipeline_mode = #tpu.pipeline_mode<synchronous>, transform_indices = @transform_15, window_bounds = array<i64: 128, 128>}, {pipeline_mode = #tpu.pipeline_mode<synchronous>, transform_indices = @transform_16, window_bounds = array<i64: 1, 128>}, {pipeline_mode = #tpu.pipeline_mode<synchronous>, transform_indices = @transform_17, window_bounds = array<i64: 1, 128>}, {pipeline_mode = #tpu.pipeline_mode<synchronous>, transform_indices = @transform_18, window_bounds = array<i64: 1, 128>}, {pipeline_mode = #tpu.pipeline_mode<synchronous>, transform_indices = @transform_19, window_bounds = array<i64: 128, 128>}, {pipeline_mode = #tpu.pipeline_mode<synchronous>, transform_indices = @transform_20, window_bounds = array<i64: 1, 128>}, {pipeline_mode = #tpu.pipeline_mode<synchronous>, transform_indices = @transform_21, window_bounds = array<i64: 1, 128>}, {pipeline_mode = #tpu.pipeline_mode<synchronous>, transform_indices = @transform_22, window_bounds = array<i64: 1, 128>}, {pipeline_mode = #tpu.pipeline_mode<synchronous>, transform_indices = @transform_23, window_bounds = array<i64: 128, 128>}, {pipeline_mode = #tpu.pipeline_mode<synchronous>, transform_indices = @transform_24, window_bounds = array<i64: 1, 128>}, {pipeline_mode = #tpu.pipeline_mode<synchronous>, transform_indices = @transform_25, window_bounds = array<i64: 1, 128>}, {pipeline_mode = #tpu.pipeline_mode<synchronous>, transform_indices = @transform_26, window_bounds = array<i64: 1, 128>}, {pipeline_mode = #tpu.pipeline_mode<synchronous>, transform_indices = @transform_27, window_bounds = array<i64: 128, 128>}, {pipeline_mode = #tpu.pipeline_mode<synchronous>, transform_indices = @transform_28, window_bounds = array<i64: 1, 128>}, {pipeline_mode = #tpu.pipeline_mode<synchronous>, transform_indices = @transform_29, window_bounds = array<i64: 1, 128>}, {pipeline_mode = #tpu.pipeline_mode<synchronous>, transform_indices = @transform_30, window_bounds = array<i64: 1, 128>}, {pipeline_mode = #tpu.pipeline_mode<synchronous>, transform_indices = @transform_31, window_bounds = array<i64: 128, 128>}, {pipeline_mode = #tpu.pipeline_mode<synchronous>, transform_indices = @transform_32, window_bounds = array<i64: 1, 128>}, {pipeline_mode = #tpu.pipeline_mode<synchronous>, transform_indices = @transform_33, window_bounds = array<i64: 1, 128>}, {pipeline_mode = #tpu.pipeline_mode<synchronous>, transform_indices = @transform_34, window_bounds = array<i64: 1, 128>}, {pipeline_mode = #tpu.pipeline_mode<synchronous>, transform_indices = @transform_35, window_bounds = array<i64: 128, 128>}, {pipeline_mode = #tpu.pipeline_mode<synchronous>, transform_indices = @transform_36, window_bounds = array<i64: 1, 128>}, {pipeline_mode = #tpu.pipeline_mode<synchronous>, transform_indices = @transform_37, window_bounds = array<i64: 1, 128>}, {pipeline_mode = #tpu.pipeline_mode<synchronous>, transform_indices = @transform_38, window_bounds = array<i64: 1, 128>}, {pipeline_mode = #tpu.pipeline_mode<synchronous>, transform_indices = @transform_39, window_bounds = array<i64: 128, 128>}, {pipeline_mode = #tpu.pipeline_mode<synchronous>, transform_indices = @transform_40, window_bounds = array<i64: 1, 128>}, {transform_indices = @transform_41, window_bounds = array<i64: 32, 128>}]} {
    %c0 = arith.constant 0 : index
    %c0_0 = arith.constant 0 : index
    %0 = vector.load %arg1[%c0, %c0_0] : memref<32x256xf32, #tpu.memory_space<vmem>>, vector<32x256xf32>
    %1 = arith.truncf %0 : vector<32x256xf32> to vector<32x256xbf16>
    %c0_1 = arith.constant 0 : index
    %c0_2 = arith.constant 0 : index
    %2 = vector.load %arg2[%c0_1, %c0_2] : memref<1x256xf32, #tpu.memory_space<vmem>>, vector<1x256xf32>
    %c0_3 = arith.constant 0 : index
    %c0_4 = arith.constant 0 : index
    %3 = vector.load %arg3[%c0_3, %c0_4] : memref<1x256xf32, #tpu.memory_space<vmem>>, vector<1x256xf32>
    %c0_5 = arith.constant 0 : index
    %c0_6 = arith.constant 0 : index
    %4 = vector.load %arg4[%c0_5, %c0_6] : memref<256x256xbf16, #tpu.memory_space<vmem>>, vector<256x256xbf16>
    %c0_7 = arith.constant 0 : index
    %c0_8 = arith.constant 0 : index
    %5 = vector.load %arg5[%c0_7, %c0_8] : memref<1x256xf32, #tpu.memory_space<vmem>>, vector<1x256xf32>
    %c0_9 = arith.constant 0 : index
    %c0_10 = arith.constant 0 : index
    %6 = vector.load %arg6[%c0_9, %c0_10] : memref<1x256xf32, #tpu.memory_space<vmem>>, vector<1x256xf32>
    %c0_11 = arith.constant 0 : index
    %c0_12 = arith.constant 0 : index
    %7 = vector.load %arg7[%c0_11, %c0_12] : memref<1x256xf32, #tpu.memory_space<vmem>>, vector<1x256xf32>
    %c0_13 = arith.constant 0 : index
    %c0_14 = arith.constant 0 : index
    %8 = vector.load %arg8[%c0_13, %c0_14] : memref<256x128xbf16, #tpu.memory_space<vmem>>, vector<256x128xbf16>
    %c0_15 = arith.constant 0 : index
    %c0_16 = arith.constant 0 : index
    %9 = vector.load %arg9[%c0_15, %c0_16] : memref<1x128xf32, #tpu.memory_space<vmem>>, vector<1x128xf32>
    %10 = arith.truncf %2 : vector<1x256xf32> to vector<1x256xbf16>
    %11 = vector.broadcast %10 : vector<1x256xbf16> to vector<32x256xbf16>
    %12 = arith.mulf %1, %11 : vector<32x256xbf16>
    %13 = arith.truncf %3 : vector<1x256xf32> to vector<1x256xbf16>
    %14 = vector.broadcast %13 : vector<1x256xbf16> to vector<32x256xbf16>
    %15 = arith.addf %12, %14 : vector<32x256xbf16>
    %16 = arith.mulf %15, %15 : vector<32x256xbf16>
    %cst = arith.constant 3.564450e-02 : bf16
    %17 = vector.broadcast %cst : bf16 to vector<32x256xbf16>
    %18 = arith.mulf %17, %16 : vector<32x256xbf16>
    %cst_17 = arith.constant 7.968750e-01 : bf16
    %19 = vector.broadcast %cst_17 : bf16 to vector<32x256xbf16>
    %20 = arith.addf %19, %18 : vector<32x256xbf16>
    %21 = arith.mulf %15, %20 : vector<32x256xbf16>
    %cst_18 = arith.constant 5.000000e-01 : bf16
    %22 = vector.broadcast %cst_18 : bf16 to vector<32x256xbf16>
    %23 = arith.mulf %22, %15 : vector<32x256xbf16>
    %24 = math.tanh %21 : vector<32x256xbf16>
    %cst_19 = arith.constant 1.000000e+00 : bf16
    %25 = vector.broadcast %cst_19 : bf16 to vector<32x256xbf16>
    %26 = arith.addf %25, %24 : vector<32x256xbf16>
    %27 = arith.mulf %23, %26 : vector<32x256xbf16>
    %cst_20 = arith.constant dense<0.000000e+00> : vector<32x256xf32>
    %28 = tpu.matmul %27, %4, %cst_20 {dimension_numbers = #tpu.dot_dimension_numbers<[1], [0], [0], [1], [0, 0, 1, 1], [], []>} : vector<32x256xbf16>, vector<256x256xbf16>, vector<32x256xf32> -> vector<32x256xf32>
    %29 = vector.broadcast %5 : vector<1x256xf32> to vector<32x256xf32>
    %30 = arith.addf %28, %29 : vector<32x256xf32>
    %31 = arith.truncf %30 : vector<32x256xf32> to vector<32x256xbf16>
    %32 = arith.addf %1, %31 : vector<32x256xbf16>
    %33 = arith.truncf %6 : vector<1x256xf32> to vector<1x256xbf16>
    %34 = vector.broadcast %33 : vector<1x256xbf16> to vector<32x256xbf16>
    %35 = arith.mulf %32, %34 : vector<32x256xbf16>
    %36 = arith.truncf %7 : vector<1x256xf32> to vector<1x256xbf16>
    %37 = vector.broadcast %36 : vector<1x256xbf16> to vector<32x256xbf16>
    %38 = arith.addf %35, %37 : vector<32x256xbf16>
    %39 = arith.mulf %38, %38 : vector<32x256xbf16>
    %cst_21 = arith.constant 3.564450e-02 : bf16
    %40 = vector.broadcast %cst_21 : bf16 to vector<32x256xbf16>
    %41 = arith.mulf %40, %39 : vector<32x256xbf16>
    %cst_22 = arith.constant 7.968750e-01 : bf16
    %42 = vector.broadcast %cst_22 : bf16 to vector<32x256xbf16>
    %43 = arith.addf %42, %41 : vector<32x256xbf16>
    %44 = arith.mulf %38, %43 : vector<32x256xbf16>
    %cst_23 = arith.constant 5.000000e-01 : bf16
    %45 = vector.broadcast %cst_23 : bf16 to vector<32x256xbf16>
    %46 = arith.mulf %45, %38 : vector<32x256xbf16>
    %47 = math.tanh %44 : vector<32x256xbf16>
    %cst_24 = arith.constant 1.000000e+00 : bf16
    %48 = vector.broadcast %cst_24 : bf16 to vector<32x256xbf16>
    %49 = arith.addf %48, %47 : vector<32x256xbf16>
    %50 = arith.mulf %46, %49 : vector<32x256xbf16>
    %cst_25 = arith.constant dense<0.000000e+00> : vector<32x128xf32>
    %51 = tpu.matmul %50, %8, %cst_25 {dimension_numbers = #tpu.dot_dimension_numbers<[1], [0], [0], [1], [0, 0, 1, 1], [], []>} : vector<32x256xbf16>, vector<256x128xbf16>, vector<32x128xf32> -> vector<32x128xf32>
    %52 = vector.broadcast %9 : vector<1x128xf32> to vector<32x128xf32>
    %53 = arith.addf %51, %52 : vector<32x128xf32>
    %54 = arith.truncf %53 : vector<32x128xf32> to vector<32x128xbf16>
    %c0_26 = arith.constant 0 : index
    %c0_27 = arith.constant 0 : index
    %55 = vector.load %arg10[%c0_26, %c0_27] : memref<1x128xf32, #tpu.memory_space<vmem>>, vector<1x128xf32>
    %c0_28 = arith.constant 0 : index
    %c0_29 = arith.constant 0 : index
    %56 = vector.load %arg11[%c0_28, %c0_29] : memref<1x128xf32, #tpu.memory_space<vmem>>, vector<1x128xf32>
    %c0_30 = arith.constant 0 : index
    %c0_31 = arith.constant 0 : index
    %57 = vector.load %arg12[%c0_30, %c0_31] : memref<128x128xbf16, #tpu.memory_space<vmem>>, vector<128x128xbf16>
    %c0_32 = arith.constant 0 : index
    %c0_33 = arith.constant 0 : index
    %58 = vector.load %arg13[%c0_32, %c0_33] : memref<1x128xf32, #tpu.memory_space<vmem>>, vector<1x128xf32>
    %c0_34 = arith.constant 0 : index
    %c0_35 = arith.constant 0 : index
    %59 = vector.load %arg14[%c0_34, %c0_35] : memref<1x128xf32, #tpu.memory_space<vmem>>, vector<1x128xf32>
    %c0_36 = arith.constant 0 : index
    %c0_37 = arith.constant 0 : index
    %60 = vector.load %arg15[%c0_36, %c0_37] : memref<1x128xf32, #tpu.memory_space<vmem>>, vector<1x128xf32>
    %c0_38 = arith.constant 0 : index
    %c0_39 = arith.constant 0 : index
    %61 = vector.load %arg16[%c0_38, %c0_39] : memref<128x128xbf16, #tpu.memory_space<vmem>>, vector<128x128xbf16>
    %c0_40 = arith.constant 0 : index
    %c0_41 = arith.constant 0 : index
    %62 = vector.load %arg17[%c0_40, %c0_41] : memref<1x128xf32, #tpu.memory_space<vmem>>, vector<1x128xf32>
    %63 = arith.truncf %55 : vector<1x128xf32> to vector<1x128xbf16>
    %64 = vector.broadcast %63 : vector<1x128xbf16> to vector<32x128xbf16>
    %65 = arith.mulf %54, %64 : vector<32x128xbf16>
    %66 = arith.truncf %56 : vector<1x128xf32> to vector<1x128xbf16>
    %67 = vector.broadcast %66 : vector<1x128xbf16> to vector<32x128xbf16>
    %68 = arith.addf %65, %67 : vector<32x128xbf16>
    %69 = arith.mulf %68, %68 : vector<32x128xbf16>
    %cst_42 = arith.constant 3.564450e-02 : bf16
    %70 = vector.broadcast %cst_42 : bf16 to vector<32x128xbf16>
    %71 = arith.mulf %70, %69 : vector<32x128xbf16>
    %cst_43 = arith.constant 7.968750e-01 : bf16
    %72 = vector.broadcast %cst_43 : bf16 to vector<32x128xbf16>
    %73 = arith.addf %72, %71 : vector<32x128xbf16>
    %74 = arith.mulf %68, %73 : vector<32x128xbf16>
    %cst_44 = arith.constant 5.000000e-01 : bf16
    %75 = vector.broadcast %cst_44 : bf16 to vector<32x128xbf16>
    %76 = arith.mulf %75, %68 : vector<32x128xbf16>
    %77 = math.tanh %74 : vector<32x128xbf16>
    %cst_45 = arith.constant 1.000000e+00 : bf16
    %78 = vector.broadcast %cst_45 : bf16 to vector<32x128xbf16>
    %79 = arith.addf %78, %77 : vector<32x128xbf16>
    %80 = arith.mulf %76, %79 : vector<32x128xbf16>
    %cst_46 = arith.constant dense<0.000000e+00> : vector<32x128xf32>
    %81 = tpu.matmul %80, %57, %cst_46 {dimension_numbers = #tpu.dot_dimension_numbers<[1], [0], [0], [1], [0, 0, 1, 1], [], []>} : vector<32x128xbf16>, vector<128x128xbf16>, vector<32x128xf32> -> vector<32x128xf32>
    %82 = vector.broadcast %58 : vector<1x128xf32> to vector<32x128xf32>
    %83 = arith.addf %81, %82 : vector<32x128xf32>
    %84 = arith.truncf %83 : vector<32x128xf32> to vector<32x128xbf16>
    %85 = arith.addf %54, %84 : vector<32x128xbf16>
    %86 = arith.truncf %59 : vector<1x128xf32> to vector<1x128xbf16>
    %87 = vector.broadcast %86 : vector<1x128xbf16> to vector<32x128xbf16>
    %88 = arith.mulf %85, %87 : vector<32x128xbf16>
    %89 = arith.truncf %60 : vector<1x128xf32> to vector<1x128xbf16>
    %90 = vector.broadcast %89 : vector<1x128xbf16> to vector<32x128xbf16>
    %91 = arith.addf %88, %90 : vector<32x128xbf16>
    %92 = arith.mulf %91, %91 : vector<32x128xbf16>
    %cst_47 = arith.constant 3.564450e-02 : bf16
    %93 = vector.broadcast %cst_47 : bf16 to vector<32x128xbf16>
    %94 = arith.mulf %93, %92 : vector<32x128xbf16>
    %cst_48 = arith.constant 7.968750e-01 : bf16
    %95 = vector.broadcast %cst_48 : bf16 to vector<32x128xbf16>
    %96 = arith.addf %95, %94 : vector<32x128xbf16>
    %97 = arith.mulf %91, %96 : vector<32x128xbf16>
    %cst_49 = arith.constant 5.000000e-01 : bf16
    %98 = vector.broadcast %cst_49 : bf16 to vector<32x128xbf16>
    %99 = arith.mulf %98, %91 : vector<32x128xbf16>
    %100 = math.tanh %97 : vector<32x128xbf16>
    %cst_50 = arith.constant 1.000000e+00 : bf16
    %101 = vector.broadcast %cst_50 : bf16 to vector<32x128xbf16>
    %102 = arith.addf %101, %100 : vector<32x128xbf16>
    %103 = arith.mulf %99, %102 : vector<32x128xbf16>
    %cst_51 = arith.constant dense<0.000000e+00> : vector<32x128xf32>
    %104 = tpu.matmul %103, %61, %cst_51 {dimension_numbers = #tpu.dot_dimension_numbers<[1], [0], [0], [1], [0, 0, 1, 1], [], []>} : vector<32x128xbf16>, vector<128x128xbf16>, vector<32x128xf32> -> vector<32x128xf32>
    %105 = vector.broadcast %62 : vector<1x128xf32> to vector<32x128xf32>
    %106 = arith.addf %104, %105 : vector<32x128xf32>
    %107 = arith.truncf %106 : vector<32x128xf32> to vector<32x128xbf16>
    %c0_52 = arith.constant 0 : index
    %c0_53 = arith.constant 0 : index
    %108 = vector.load %arg18[%c0_52, %c0_53] : memref<1x128xf32, #tpu.memory_space<vmem>>, vector<1x128xf32>
    %c0_54 = arith.constant 0 : index
    %c0_55 = arith.constant 0 : index
    %109 = vector.load %arg19[%c0_54, %c0_55] : memref<1x128xf32, #tpu.memory_space<vmem>>, vector<1x128xf32>
    %c0_56 = arith.constant 0 : index
    %c0_57 = arith.constant 0 : index
    %110 = vector.load %arg20[%c0_56, %c0_57] : memref<128x128xbf16, #tpu.memory_space<vmem>>, vector<128x128xbf16>
    %c0_58 = arith.constant 0 : index
    %c0_59 = arith.constant 0 : index
    %111 = vector.load %arg21[%c0_58, %c0_59] : memref<1x128xf32, #tpu.memory_space<vmem>>, vector<1x128xf32>
    %c0_60 = arith.constant 0 : index
    %c0_61 = arith.constant 0 : index
    %112 = vector.load %arg22[%c0_60, %c0_61] : memref<1x128xf32, #tpu.memory_space<vmem>>, vector<1x128xf32>
    %c0_62 = arith.constant 0 : index
    %c0_63 = arith.constant 0 : index
    %113 = vector.load %arg23[%c0_62, %c0_63] : memref<1x128xf32, #tpu.memory_space<vmem>>, vector<1x128xf32>
    %c0_64 = arith.constant 0 : index
    %c0_65 = arith.constant 0 : index
    %114 = vector.load %arg24[%c0_64, %c0_65] : memref<128x128xbf16, #tpu.memory_space<vmem>>, vector<128x128xbf16>
    %c0_66 = arith.constant 0 : index
    %c0_67 = arith.constant 0 : index
    %115 = vector.load %arg25[%c0_66, %c0_67] : memref<1x128xf32, #tpu.memory_space<vmem>>, vector<1x128xf32>
    %116 = arith.truncf %108 : vector<1x128xf32> to vector<1x128xbf16>
    %117 = vector.broadcast %116 : vector<1x128xbf16> to vector<32x128xbf16>
    %118 = arith.mulf %107, %117 : vector<32x128xbf16>
    %119 = arith.truncf %109 : vector<1x128xf32> to vector<1x128xbf16>
    %120 = vector.broadcast %119 : vector<1x128xbf16> to vector<32x128xbf16>
    %121 = arith.addf %118, %120 : vector<32x128xbf16>
    %122 = arith.mulf %121, %121 : vector<32x128xbf16>
    %cst_68 = arith.constant 3.564450e-02 : bf16
    %123 = vector.broadcast %cst_68 : bf16 to vector<32x128xbf16>
    %124 = arith.mulf %123, %122 : vector<32x128xbf16>
    %cst_69 = arith.constant 7.968750e-01 : bf16
    %125 = vector.broadcast %cst_69 : bf16 to vector<32x128xbf16>
    %126 = arith.addf %125, %124 : vector<32x128xbf16>
    %127 = arith.mulf %121, %126 : vector<32x128xbf16>
    %cst_70 = arith.constant 5.000000e-01 : bf16
    %128 = vector.broadcast %cst_70 : bf16 to vector<32x128xbf16>
    %129 = arith.mulf %128, %121 : vector<32x128xbf16>
    %130 = math.tanh %127 : vector<32x128xbf16>
    %cst_71 = arith.constant 1.000000e+00 : bf16
    %131 = vector.broadcast %cst_71 : bf16 to vector<32x128xbf16>
    %132 = arith.addf %131, %130 : vector<32x128xbf16>
    %133 = arith.mulf %129, %132 : vector<32x128xbf16>
    %cst_72 = arith.constant dense<0.000000e+00> : vector<32x128xf32>
    %134 = tpu.matmul %133, %110, %cst_72 {dimension_numbers = #tpu.dot_dimension_numbers<[1], [0], [0], [1], [0, 0, 1, 1], [], []>} : vector<32x128xbf16>, vector<128x128xbf16>, vector<32x128xf32> -> vector<32x128xf32>
    %135 = vector.broadcast %111 : vector<1x128xf32> to vector<32x128xf32>
    %136 = arith.addf %134, %135 : vector<32x128xf32>
    %137 = arith.truncf %136 : vector<32x128xf32> to vector<32x128xbf16>
    %138 = arith.addf %107, %137 : vector<32x128xbf16>
    %139 = arith.truncf %112 : vector<1x128xf32> to vector<1x128xbf16>
    %140 = vector.broadcast %139 : vector<1x128xbf16> to vector<32x128xbf16>
    %141 = arith.mulf %138, %140 : vector<32x128xbf16>
    %142 = arith.truncf %113 : vector<1x128xf32> to vector<1x128xbf16>
    %143 = vector.broadcast %142 : vector<1x128xbf16> to vector<32x128xbf16>
    %144 = arith.addf %141, %143 : vector<32x128xbf16>
    %145 = arith.mulf %144, %144 : vector<32x128xbf16>
    %cst_73 = arith.constant 3.564450e-02 : bf16
    %146 = vector.broadcast %cst_73 : bf16 to vector<32x128xbf16>
    %147 = arith.mulf %146, %145 : vector<32x128xbf16>
    %cst_74 = arith.constant 7.968750e-01 : bf16
    %148 = vector.broadcast %cst_74 : bf16 to vector<32x128xbf16>
    %149 = arith.addf %148, %147 : vector<32x128xbf16>
    %150 = arith.mulf %144, %149 : vector<32x128xbf16>
    %cst_75 = arith.constant 5.000000e-01 : bf16
    %151 = vector.broadcast %cst_75 : bf16 to vector<32x128xbf16>
    %152 = arith.mulf %151, %144 : vector<32x128xbf16>
    %153 = math.tanh %150 : vector<32x128xbf16>
    %cst_76 = arith.constant 1.000000e+00 : bf16
    %154 = vector.broadcast %cst_76 : bf16 to vector<32x128xbf16>
    %155 = arith.addf %154, %153 : vector<32x128xbf16>
    %156 = arith.mulf %152, %155 : vector<32x128xbf16>
    %cst_77 = arith.constant dense<0.000000e+00> : vector<32x128xf32>
    %157 = tpu.matmul %156, %114, %cst_77 {dimension_numbers = #tpu.dot_dimension_numbers<[1], [0], [0], [1], [0, 0, 1, 1], [], []>} : vector<32x128xbf16>, vector<128x128xbf16>, vector<32x128xf32> -> vector<32x128xf32>
    %158 = vector.broadcast %115 : vector<1x128xf32> to vector<32x128xf32>
    %159 = arith.addf %157, %158 : vector<32x128xf32>
    %160 = arith.truncf %159 : vector<32x128xf32> to vector<32x128xbf16>
    %c0_78 = arith.constant 0 : index
    %c0_79 = arith.constant 0 : index
    %161 = vector.load %arg26[%c0_78, %c0_79] : memref<1x128xf32, #tpu.memory_space<vmem>>, vector<1x128xf32>
    %c0_80 = arith.constant 0 : index
    %c0_81 = arith.constant 0 : index
    %162 = vector.load %arg27[%c0_80, %c0_81] : memref<1x128xf32, #tpu.memory_space<vmem>>, vector<1x128xf32>
    %c0_82 = arith.constant 0 : index
    %c0_83 = arith.constant 0 : index
    %163 = vector.load %arg28[%c0_82, %c0_83] : memref<128x128xbf16, #tpu.memory_space<vmem>>, vector<128x128xbf16>
    %c0_84 = arith.constant 0 : index
    %c0_85 = arith.constant 0 : index
    %164 = vector.load %arg29[%c0_84, %c0_85] : memref<1x128xf32, #tpu.memory_space<vmem>>, vector<1x128xf32>
    %c0_86 = arith.constant 0 : index
    %c0_87 = arith.constant 0 : index
    %165 = vector.load %arg30[%c0_86, %c0_87] : memref<1x128xf32, #tpu.memory_space<vmem>>, vector<1x128xf32>
    %c0_88 = arith.constant 0 : index
    %c0_89 = arith.constant 0 : index
    %166 = vector.load %arg31[%c0_88, %c0_89] : memref<1x128xf32, #tpu.memory_space<vmem>>, vector<1x128xf32>
    %c0_90 = arith.constant 0 : index
    %c0_91 = arith.constant 0 : index
    %167 = vector.load %arg32[%c0_90, %c0_91] : memref<128x128xbf16, #tpu.memory_space<vmem>>, vector<128x128xbf16>
    %c0_92 = arith.constant 0 : index
    %c0_93 = arith.constant 0 : index
    %168 = vector.load %arg33[%c0_92, %c0_93] : memref<1x128xf32, #tpu.memory_space<vmem>>, vector<1x128xf32>
    %169 = arith.truncf %161 : vector<1x128xf32> to vector<1x128xbf16>
    %170 = vector.broadcast %169 : vector<1x128xbf16> to vector<32x128xbf16>
    %171 = arith.mulf %160, %170 : vector<32x128xbf16>
    %172 = arith.truncf %162 : vector<1x128xf32> to vector<1x128xbf16>
    %173 = vector.broadcast %172 : vector<1x128xbf16> to vector<32x128xbf16>
    %174 = arith.addf %171, %173 : vector<32x128xbf16>
    %175 = arith.mulf %174, %174 : vector<32x128xbf16>
    %cst_94 = arith.constant 3.564450e-02 : bf16
    %176 = vector.broadcast %cst_94 : bf16 to vector<32x128xbf16>
    %177 = arith.mulf %176, %175 : vector<32x128xbf16>
    %cst_95 = arith.constant 7.968750e-01 : bf16
    %178 = vector.broadcast %cst_95 : bf16 to vector<32x128xbf16>
    %179 = arith.addf %178, %177 : vector<32x128xbf16>
    %180 = arith.mulf %174, %179 : vector<32x128xbf16>
    %cst_96 = arith.constant 5.000000e-01 : bf16
    %181 = vector.broadcast %cst_96 : bf16 to vector<32x128xbf16>
    %182 = arith.mulf %181, %174 : vector<32x128xbf16>
    %183 = math.tanh %180 : vector<32x128xbf16>
    %cst_97 = arith.constant 1.000000e+00 : bf16
    %184 = vector.broadcast %cst_97 : bf16 to vector<32x128xbf16>
    %185 = arith.addf %184, %183 : vector<32x128xbf16>
    %186 = arith.mulf %182, %185 : vector<32x128xbf16>
    %cst_98 = arith.constant dense<0.000000e+00> : vector<32x128xf32>
    %187 = tpu.matmul %186, %163, %cst_98 {dimension_numbers = #tpu.dot_dimension_numbers<[1], [0], [0], [1], [0, 0, 1, 1], [], []>} : vector<32x128xbf16>, vector<128x128xbf16>, vector<32x128xf32> -> vector<32x128xf32>
    %188 = vector.broadcast %164 : vector<1x128xf32> to vector<32x128xf32>
    %189 = arith.addf %187, %188 : vector<32x128xf32>
    %190 = arith.truncf %189 : vector<32x128xf32> to vector<32x128xbf16>
    %191 = arith.addf %160, %190 : vector<32x128xbf16>
    %192 = arith.truncf %165 : vector<1x128xf32> to vector<1x128xbf16>
    %193 = vector.broadcast %192 : vector<1x128xbf16> to vector<32x128xbf16>
    %194 = arith.mulf %191, %193 : vector<32x128xbf16>
    %195 = arith.truncf %166 : vector<1x128xf32> to vector<1x128xbf16>
    %196 = vector.broadcast %195 : vector<1x128xbf16> to vector<32x128xbf16>
    %197 = arith.addf %194, %196 : vector<32x128xbf16>
    %198 = arith.mulf %197, %197 : vector<32x128xbf16>
    %cst_99 = arith.constant 3.564450e-02 : bf16
    %199 = vector.broadcast %cst_99 : bf16 to vector<32x128xbf16>
    %200 = arith.mulf %199, %198 : vector<32x128xbf16>
    %cst_100 = arith.constant 7.968750e-01 : bf16
    %201 = vector.broadcast %cst_100 : bf16 to vector<32x128xbf16>
    %202 = arith.addf %201, %200 : vector<32x128xbf16>
    %203 = arith.mulf %197, %202 : vector<32x128xbf16>
    %cst_101 = arith.constant 5.000000e-01 : bf16
    %204 = vector.broadcast %cst_101 : bf16 to vector<32x128xbf16>
    %205 = arith.mulf %204, %197 : vector<32x128xbf16>
    %206 = math.tanh %203 : vector<32x128xbf16>
    %cst_102 = arith.constant 1.000000e+00 : bf16
    %207 = vector.broadcast %cst_102 : bf16 to vector<32x128xbf16>
    %208 = arith.addf %207, %206 : vector<32x128xbf16>
    %209 = arith.mulf %205, %208 : vector<32x128xbf16>
    %cst_103 = arith.constant dense<0.000000e+00> : vector<32x128xf32>
    %210 = tpu.matmul %209, %167, %cst_103 {dimension_numbers = #tpu.dot_dimension_numbers<[1], [0], [0], [1], [0, 0, 1, 1], [], []>} : vector<32x128xbf16>, vector<128x128xbf16>, vector<32x128xf32> -> vector<32x128xf32>
    %211 = vector.broadcast %168 : vector<1x128xf32> to vector<32x128xf32>
    %212 = arith.addf %210, %211 : vector<32x128xf32>
    %213 = arith.truncf %212 : vector<32x128xf32> to vector<32x128xbf16>
    %c0_104 = arith.constant 0 : index
    %c0_105 = arith.constant 0 : index
    %214 = vector.load %arg34[%c0_104, %c0_105] : memref<1x128xf32, #tpu.memory_space<vmem>>, vector<1x128xf32>
    %c0_106 = arith.constant 0 : index
    %c0_107 = arith.constant 0 : index
    %215 = vector.load %arg35[%c0_106, %c0_107] : memref<1x128xf32, #tpu.memory_space<vmem>>, vector<1x128xf32>
    %c0_108 = arith.constant 0 : index
    %c0_109 = arith.constant 0 : index
    %216 = vector.load %arg36[%c0_108, %c0_109] : memref<128x128xbf16, #tpu.memory_space<vmem>>, vector<128x128xbf16>
    %c0_110 = arith.constant 0 : index
    %c0_111 = arith.constant 0 : index
    %217 = vector.load %arg37[%c0_110, %c0_111] : memref<1x128xf32, #tpu.memory_space<vmem>>, vector<1x128xf32>
    %c0_112 = arith.constant 0 : index
    %c0_113 = arith.constant 0 : index
    %218 = vector.load %arg38[%c0_112, %c0_113] : memref<1x128xf32, #tpu.memory_space<vmem>>, vector<1x128xf32>
    %c0_114 = arith.constant 0 : index
    %c0_115 = arith.constant 0 : index
    %219 = vector.load %arg39[%c0_114, %c0_115] : memref<1x128xf32, #tpu.memory_space<vmem>>, vector<1x128xf32>
    %c0_116 = arith.constant 0 : index
    %c0_117 = arith.constant 0 : index
    %220 = vector.load %arg40[%c0_116, %c0_117] : memref<128x128xbf16, #tpu.memory_space<vmem>>, vector<128x128xbf16>
    %c0_118 = arith.constant 0 : index
    %c0_119 = arith.constant 0 : index
    %221 = vector.load %arg41[%c0_118, %c0_119] : memref<1x128xf32, #tpu.memory_space<vmem>>, vector<1x128xf32>
    %222 = arith.truncf %214 : vector<1x128xf32> to vector<1x128xbf16>
    %223 = vector.broadcast %222 : vector<1x128xbf16> to vector<32x128xbf16>
    %224 = arith.mulf %213, %223 : vector<32x128xbf16>
    %225 = arith.truncf %215 : vector<1x128xf32> to vector<1x128xbf16>
    %226 = vector.broadcast %225 : vector<1x128xbf16> to vector<32x128xbf16>
    %227 = arith.addf %224, %226 : vector<32x128xbf16>
    %228 = arith.mulf %227, %227 : vector<32x128xbf16>
    %cst_120 = arith.constant 3.564450e-02 : bf16
    %229 = vector.broadcast %cst_120 : bf16 to vector<32x128xbf16>
    %230 = arith.mulf %229, %228 : vector<32x128xbf16>
    %cst_121 = arith.constant 7.968750e-01 : bf16
    %231 = vector.broadcast %cst_121 : bf16 to vector<32x128xbf16>
    %232 = arith.addf %231, %230 : vector<32x128xbf16>
    %233 = arith.mulf %227, %232 : vector<32x128xbf16>
    %cst_122 = arith.constant 5.000000e-01 : bf16
    %234 = vector.broadcast %cst_122 : bf16 to vector<32x128xbf16>
    %235 = arith.mulf %234, %227 : vector<32x128xbf16>
    %236 = math.tanh %233 : vector<32x128xbf16>
    %cst_123 = arith.constant 1.000000e+00 : bf16
    %237 = vector.broadcast %cst_123 : bf16 to vector<32x128xbf16>
    %238 = arith.addf %237, %236 : vector<32x128xbf16>
    %239 = arith.mulf %235, %238 : vector<32x128xbf16>
    %cst_124 = arith.constant dense<0.000000e+00> : vector<32x128xf32>
    %240 = tpu.matmul %239, %216, %cst_124 {dimension_numbers = #tpu.dot_dimension_numbers<[1], [0], [0], [1], [0, 0, 1, 1], [], []>} : vector<32x128xbf16>, vector<128x128xbf16>, vector<32x128xf32> -> vector<32x128xf32>
    %241 = vector.broadcast %217 : vector<1x128xf32> to vector<32x128xf32>
    %242 = arith.addf %240, %241 : vector<32x128xf32>
    %243 = arith.truncf %242 : vector<32x128xf32> to vector<32x128xbf16>
    %244 = arith.addf %213, %243 : vector<32x128xbf16>
    %245 = arith.truncf %218 : vector<1x128xf32> to vector<1x128xbf16>
    %246 = vector.broadcast %245 : vector<1x128xbf16> to vector<32x128xbf16>
    %247 = arith.mulf %244, %246 : vector<32x128xbf16>
    %248 = arith.truncf %219 : vector<1x128xf32> to vector<1x128xbf16>
    %249 = vector.broadcast %248 : vector<1x128xbf16> to vector<32x128xbf16>
    %250 = arith.addf %247, %249 : vector<32x128xbf16>
    %251 = arith.mulf %250, %250 : vector<32x128xbf16>
    %cst_125 = arith.constant 3.564450e-02 : bf16
    %252 = vector.broadcast %cst_125 : bf16 to vector<32x128xbf16>
    %253 = arith.mulf %252, %251 : vector<32x128xbf16>
    %cst_126 = arith.constant 7.968750e-01 : bf16
    %254 = vector.broadcast %cst_126 : bf16 to vector<32x128xbf16>
    %255 = arith.addf %254, %253 : vector<32x128xbf16>
    %256 = arith.mulf %250, %255 : vector<32x128xbf16>
    %cst_127 = arith.constant 5.000000e-01 : bf16
    %257 = vector.broadcast %cst_127 : bf16 to vector<32x128xbf16>
    %258 = arith.mulf %257, %250 : vector<32x128xbf16>
    %259 = math.tanh %256 : vector<32x128xbf16>
    %cst_128 = arith.constant 1.000000e+00 : bf16
    %260 = vector.broadcast %cst_128 : bf16 to vector<32x128xbf16>
    %261 = arith.addf %260, %259 : vector<32x128xbf16>
    %262 = arith.mulf %258, %261 : vector<32x128xbf16>
    %cst_129 = arith.constant dense<0.000000e+00> : vector<32x128xf32>
    %263 = tpu.matmul %262, %220, %cst_129 {dimension_numbers = #tpu.dot_dimension_numbers<[1], [0], [0], [1], [0, 0, 1, 1], [], []>} : vector<32x128xbf16>, vector<128x128xbf16>, vector<32x128xf32> -> vector<32x128xf32>
    %264 = vector.broadcast %221 : vector<1x128xf32> to vector<32x128xf32>
    %265 = arith.addf %263, %264 : vector<32x128xf32>
    %266 = arith.truncf %265 : vector<32x128xf32> to vector<32x128xbf16>
    %267 = arith.extf %266 : vector<32x128xbf16> to vector<32x128xf32>
    %c0_130 = arith.constant 0 : index
    %c0_131 = arith.constant 0 : index
    %268 = vector.load %arg42[%c0_130, %c0_131] : memref<32x128xf32, #tpu.memory_space<vmem>>, vector<32x128xf32>
    tpu.vector_store %arg42[%c0_130, %c0_131], %267 {strides = array<i32>} : memref<32x128xf32, #tpu.memory_space<vmem>>, vector<32x128xf32>,
    return
  }
  func.func @transform_0(%arg0: i32) -> (i32, i32) {
    %c0_i32 = arith.constant 0 : i32
    %c0_i32_0 = arith.constant 0 : i32
    return %arg0, %c0_i32 : i32, i32
  }
  func.func @transform_1(%arg0: i32) -> (i32, i32) {
    %c0_i32 = arith.constant 0 : i32
    %c0_i32_0 = arith.constant 0 : i32
    %c0_i32_1 = arith.constant 0 : i32
    return %c0_i32, %c0_i32_0 : i32, i32
  }
  func.func @transform_2(%arg0: i32) -> (i32, i32) {
    %c0_i32 = arith.constant 0 : i32
    %c0_i32_0 = arith.constant 0 : i32
    %c0_i32_1 = arith.constant 0 : i32
    return %c0_i32, %c0_i32_0 : i32, i32
  }
  func.func @transform_3(%arg0: i32) -> (i32, i32) {
    %c0_i32 = arith.constant 0 : i32
    %c0_i32_0 = arith.constant 0 : i32
    %c0_i32_1 = arith.constant 0 : i32
    return %c0_i32, %c0_i32_0 : i32, i32
  }
  func.func @transform_4(%arg0: i32) -> (i32, i32) {
    %c0_i32 = arith.constant 0 : i32
    %c0_i32_0 = arith.constant 0 : i32
    %c0_i32_1 = arith.constant 0 : i32
    return %c0_i32, %c0_i32_0 : i32, i32
  }
  func.func @transform_5(%arg0: i32) -> (i32, i32) {
    %c0_i32 = arith.constant 0 : i32
    %c0_i32_0 = arith.constant 0 : i32
    %c0_i32_1 = arith.constant 0 : i32
    return %c0_i32, %c0_i32_0 : i32, i32
  }
  func.func @transform_6(%arg0: i32) -> (i32, i32) {
    %c0_i32 = arith.constant 0 : i32
    %c0_i32_0 = arith.constant 0 : i32
    %c0_i32_1 = arith.constant 0 : i32
    return %c0_i32, %c0_i32_0 : i32, i32
  }
  func.func @transform_7(%arg0: i32) -> (i32, i32) {
    %c0_i32 = arith.constant 0 : i32
    %c0_i32_0 = arith.constant 0 : i32
    %c0_i32_1 = arith.constant 0 : i32
    return %c0_i32, %c0_i32_0 : i32, i32
  }
  func.func @transform_8(%arg0: i32) -> (i32, i32) {
    %c0_i32 = arith.constant 0 : i32
    %c0_i32_0 = arith.constant 0 : i32
    %c0_i32_1 = arith.constant 0 : i32
    return %c0_i32, %c0_i32_0 : i32, i32
  }
  func.func @transform_9(%arg0: i32) -> (i32, i32) {
    %c0_i32 = arith.constant 0 : i32
    %c0_i32_0 = arith.constant 0 : i32
    %c0_i32_1 = arith.constant 0 : i32
    return %c0_i32, %c0_i32_0 : i32, i32
  }
  func.func @transform_10(%arg0: i32) -> (i32, i32) {
    %c0_i32 = arith.constant 0 : i32
    %c0_i32_0 = arith.constant 0 : i32
    %c0_i32_1 = arith.constant 0 : i32
    return %c0_i32, %c0_i32_0 : i32, i32
  }
  func.func @transform_11(%arg0: i32) -> (i32, i32) {
    %c0_i32 = arith.constant 0 : i32
    %c0_i32_0 = arith.constant 0 : i32
    %c0_i32_1 = arith.constant 0 : i32
    return %c0_i32, %c0_i32_0 : i32, i32
  }
  func.func @transform_12(%arg0: i32) -> (i32, i32) {
    %c0_i32 = arith.constant 0 : i32
    %c0_i32_0 = arith.constant 0 : i32
    %c0_i32_1 = arith.constant 0 : i32
    return %c0_i32, %c0_i32_0 : i32, i32
  }
  func.func @transform_13(%arg0: i32) -> (i32, i32) {
    %c0_i32 = arith.constant 0 : i32
    %c0_i32_0 = arith.constant 0 : i32
    %c0_i32_1 = arith.constant 0 : i32
    return %c0_i32, %c0_i32_0 : i32, i32
  }
  func.func @transform_14(%arg0: i32) -> (i32, i32) {
    %c0_i32 = arith.constant 0 : i32
    %c0_i32_0 = arith.constant 0 : i32
    %c0_i32_1 = arith.constant 0 : i32
    return %c0_i32, %c0_i32_0 : i32, i32
  }
  func.func @transform_15(%arg0: i32) -> (i32, i32) {
    %c0_i32 = arith.constant 0 : i32
    %c0_i32_0 = arith.constant 0 : i32
    %c0_i32_1 = arith.constant 0 : i32
    return %c0_i32, %c0_i32_0 : i32, i32
  }
  func.func @transform_16(%arg0: i32) -> (i32, i32) {
    %c0_i32 = arith.constant 0 : i32
    %c0_i32_0 = arith.constant 0 : i32
    %c0_i32_1 = arith.constant 0 : i32
    return %c0_i32, %c0_i32_0 : i32, i32
  }
  func.func @transform_17(%arg0: i32) -> (i32, i32) {
    %c0_i32 = arith.constant 0 : i32
    %c0_i32_0 = arith.constant 0 : i32
    %c0_i32_1 = arith.constant 0 : i32
    return %c0_i32, %c0_i32_0 : i32, i32
  }
  func.func @transform_18(%arg0: i32) -> (i32, i32) {
    %c0_i32 = arith.constant 0 : i32
    %c0_i32_0 = arith.constant 0 : i32
    %c0_i32_1 = arith.constant 0 : i32
    return %c0_i32, %c0_i32_0 : i32, i32
  }
  func.func @transform_19(%arg0: i32) -> (i32, i32) {
    %c0_i32 = arith.constant 0 : i32
    %c0_i32_0 = arith.constant 0 : i32
    %c0_i32_1 = arith.constant 0 : i32
    return %c0_i32, %c0_i32_0 : i32, i32
  }
  func.func @transform_20(%arg0: i32) -> (i32, i32) {
    %c0_i32 = arith.constant 0 : i32
    %c0_i32_0 = arith.constant 0 : i32
    %c0_i32_1 = arith.constant 0 : i32
    return %c0_i32, %c0_i32_0 : i32, i32
  }
  func.func @transform_21(%arg0: i32) -> (i32, i32) {
    %c0_i32 = arith.constant 0 : i32
    %c0_i32_0 = arith.constant 0 : i32
    %c0_i32_1 = arith.constant 0 : i32
    return %c0_i32, %c0_i32_0 : i32, i32
  }
  func.func @transform_22(%arg0: i32) -> (i32, i32) {
    %c0_i32 = arith.constant 0 : i32
    %c0_i32_0 = arith.constant 0 : i32
    %c0_i32_1 = arith.constant 0 : i32
    return %c0_i32, %c0_i32_0 : i32, i32
  }
  func.func @transform_23(%arg0: i32) -> (i32, i32) {
    %c0_i32 = arith.constant 0 : i32
    %c0_i32_0 = arith.constant 0 : i32
    %c0_i32_1 = arith.constant 0 : i32
    return %c0_i32, %c0_i32_0 : i32, i32
  }
  func.func @transform_24(%arg0: i32) -> (i32, i32) {
    %c0_i32 = arith.constant 0 : i32
    %c0_i32_0 = arith.constant 0 : i32
    %c0_i32_1 = arith.constant 0 : i32
    return %c0_i32, %c0_i32_0 : i32, i32
  }
  func.func @transform_25(%arg0: i32) -> (i32, i32) {
    %c0_i32 = arith.constant 0 : i32
    %c0_i32_0 = arith.constant 0 : i32
    %c0_i32_1 = arith.constant 0 : i32
    return %c0_i32, %c0_i32_0 : i32, i32
  }
  func.func @transform_26(%arg0: i32) -> (i32, i32) {
    %c0_i32 = arith.constant 0 : i32
    %c0_i32_0 = arith.constant 0 : i32
    %c0_i32_1 = arith.constant 0 : i32
    return %c0_i32, %c0_i32_0 : i32, i32
  }
  func.func @transform_27(%arg0: i32) -> (i32, i32) {
    %c0_i32 = arith.constant 0 : i32
    %c0_i32_0 = arith.constant 0 : i32
    %c0_i32_1 = arith.constant 0 : i32
    return %c0_i32, %c0_i32_0 : i32, i32
  }
  func.func @transform_28(%arg0: i32) -> (i32, i32) {
    %c0_i32 = arith.constant 0 : i32
    %c0_i32_0 = arith.constant 0 : i32
    %c0_i32_1 = arith.constant 0 : i32
    return %c0_i32, %c0_i32_0 : i32, i32
  }
  func.func @transform_29(%arg0: i32) -> (i32, i32) {
    %c0_i32 = arith.constant 0 : i32
    %c0_i32_0 = arith.constant 0 : i32
    %c0_i32_1 = arith.constant 0 : i32
    return %c0_i32, %c0_i32_0 : i32, i32
  }
  func.func @transform_30(%arg0: i32) -> (i32, i32) {
    %c0_i32 = arith.constant 0 : i32
    %c0_i32_0 = arith.constant 0 : i32
    %c0_i32_1 = arith.constant 0 : i32
    return %c0_i32, %c0_i32_0 : i32, i32
  }
  func.func @transform_31(%arg0: i32) -> (i32, i32) {
    %c0_i32 = arith.constant 0 : i32
    %c0_i32_0 = arith.constant 0 : i32
    %c0_i32_1 = arith.constant 0 : i32
    return %c0_i32, %c0_i32_0 : i32, i32
  }
  func.func @transform_32(%arg0: i32) -> (i32, i32) {
    %c0_i32 = arith.constant 0 : i32
    %c0_i32_0 = arith.constant 0 : i32
    %c0_i32_1 = arith.constant 0 : i32
    return %c0_i32, %c0_i32_0 : i32, i32
  }
  func.func @transform_33(%arg0: i32) -> (i32, i32) {
    %c0_i32 = arith.constant 0 : i32
    %c0_i32_0 = arith.constant 0 : i32
    %c0_i32_1 = arith.constant 0 : i32
    return %c0_i32, %c0_i32_0 : i32, i32
  }
  func.func @transform_34(%arg0: i32) -> (i32, i32) {
    %c0_i32 = arith.constant 0 : i32
    %c0_i32_0 = arith.constant 0 : i32
    %c0_i32_1 = arith.constant 0 : i32
    return %c0_i32, %c0_i32_0 : i32, i32
  }
  func.func @transform_35(%arg0: i32) -> (i32, i32) {
    %c0_i32 = arith.constant 0 : i32
    %c0_i32_0 = arith.constant 0 : i32
    %c0_i32_1 = arith.constant 0 : i32
    return %c0_i32, %c0_i32_0 : i32, i32
  }
  func.func @transform_36(%arg0: i32) -> (i32, i32) {
    %c0_i32 = arith.constant 0 : i32
    %c0_i32_0 = arith.constant 0 : i32
    %c0_i32_1 = arith.constant 0 : i32
    return %c0_i32, %c0_i32_0 : i32, i32
  }
  func.func @transform_37(%arg0: i32) -> (i32, i32) {
    %c0_i32 = arith.constant 0 : i32
    %c0_i32_0 = arith.constant 0 : i32
    %c0_i32_1 = arith.constant 0 : i32
    return %c0_i32, %c0_i32_0 : i32, i32
  }
  func.func @transform_38(%arg0: i32) -> (i32, i32) {
    %c0_i32 = arith.constant 0 : i32
    %c0_i32_0 = arith.constant 0 : i32
    %c0_i32_1 = arith.constant 0 : i32
    return %c0_i32, %c0_i32_0 : i32, i32
  }
  func.func @transform_39(%arg0: i32) -> (i32, i32) {
    %c0_i32 = arith.constant 0 : i32
    %c0_i32_0 = arith.constant 0 : i32
    %c0_i32_1 = arith.constant 0 : i32
    return %c0_i32, %c0_i32_0 : i32, i32
  }
  func.func @transform_40(%arg0: i32) -> (i32, i32) {
    %c0_i32 = arith.constant 0 : i32
    %c0_i32_0 = arith.constant 0 : i32
    %c0_i32_1 = arith.constant 0 : i32
    return %c0_i32, %c0_i32_0 : i32, i32
  }
  func.func @transform_41(%arg0: i32) -> (i32, i32) {
    %c0_i32 = arith.constant 0 : i32
    %c0_i32_0 = arith.constant 0 : i32
    return %arg0, %c0_i32 : i32, i32
  }
}

module attributes {stable_mosaic.version = 11 : i64} {
  func.func @_item_embedder_kernel(%arg0: i32, %arg1: memref<32x256xf32, #tpu.memory_space<vmem>>, %arg2: memref<1x256xf32, #tpu.memory_space<vmem>>, %arg3: memref<1x256xf32, #tpu.memory_space<vmem>>, %arg4: memref<256x256xbf16, #tpu.memory_space<vmem>>, %arg5: memref<1x256xf32, #tpu.memory_space<vmem>>, %arg6: memref<1x256xf32, #tpu.memory_space<vmem>>, %arg7: memref<1x256xf32, #tpu.memory_space<vmem>>, %arg8: memref<256x128xbf16, #tpu.memory_space<vmem>>, %arg9: memref<1x128xf32, #tpu.memory_space<vmem>>, %arg10: memref<1x128xf32, #tpu.memory_space<vmem>>, %arg11: memref<1x128xf32, #tpu.memory_space<vmem>>, %arg12: memref<128x128xbf16, #tpu.memory_space<vmem>>, %arg13: memref<1x128xf32, #tpu.memory_space<vmem>>, %arg14: memref<1x128xf32, #tpu.memory_space<vmem>>, %arg15: memref<1x128xf32, #tpu.memory_space<vmem>>, %arg16: memref<128x128xbf16, #tpu.memory_space<vmem>>, %arg17: memref<1x128xf32, #tpu.memory_space<vmem>>, %arg18: memref<1x128xf32, #tpu.memory_space<vmem>>, %arg19: memref<1x128xf32, #tpu.memory_space<vmem>>, %arg20: memref<128x128xbf16, #tpu.memory_space<vmem>>, %arg21: memref<1x128xf32, #tpu.memory_space<vmem>>, %arg22: memref<1x128xf32, #tpu.memory_space<vmem>>, %arg23: memref<1x128xf32, #tpu.memory_space<vmem>>, %arg24: memref<128x128xbf16, #tpu.memory_space<vmem>>, %arg25: memref<1x128xf32, #tpu.memory_space<vmem>>, %arg26: memref<1x128xf32, #tpu.memory_space<vmem>>, %arg27: memref<1x128xf32, #tpu.memory_space<vmem>>, %arg28: memref<128x128xbf16, #tpu.memory_space<vmem>>, %arg29: memref<1x128xf32, #tpu.memory_space<vmem>>, %arg30: memref<1x128xf32, #tpu.memory_space<vmem>>, %arg31: memref<1x128xf32, #tpu.memory_space<vmem>>, %arg32: memref<128x128xbf16, #tpu.memory_space<vmem>>, %arg33: memref<1x128xf32, #tpu.memory_space<vmem>>, %arg34: memref<1x128xf32, #tpu.memory_space<vmem>>, %arg35: memref<1x128xf32, #tpu.memory_space<vmem>>, %arg36: memref<128x128xbf16, #tpu.memory_space<vmem>>, %arg37: memref<1x128xf32, #tpu.memory_space<vmem>>, %arg38: memref<1x128xf32, #tpu.memory_space<vmem>>, %arg39: memref<1x128xf32, #tpu.memory_space<vmem>>, %arg40: memref<128x128xbf16, #tpu.memory_space<vmem>>, %arg41: memref<1x128xf32, #tpu.memory_space<vmem>>, %arg42: memref<32x128xf32, #tpu.memory_space<vmem>>) attributes {dimension_semantics = [#tpu.dimension_semantics<parallel>], iteration_bounds = array<i64: 2>, scalar_prefetch = 0 : i64, scratch_operands = 0 : i64, tpu.core_type = #tpu.core_type<tc>, window_params = [{transform_indices = @transform_0, window_bounds = array<i64: 32, 256>}, {pipeline_mode = #tpu.pipeline_mode<synchronous>, transform_indices = @transform_1, window_bounds = array<i64: 1, 256>}, {pipeline_mode = #tpu.pipeline_mode<synchronous>, transform_indices = @transform_2, window_bounds = array<i64: 1, 256>}, {pipeline_mode = #tpu.pipeline_mode<synchronous>, transform_indices = @transform_3, window_bounds = array<i64: 256, 256>}, {pipeline_mode = #tpu.pipeline_mode<synchronous>, transform_indices = @transform_4, window_bounds = array<i64: 1, 256>}, {pipeline_mode = #tpu.pipeline_mode<synchronous>, transform_indices = @transform_5, window_bounds = array<i64: 1, 256>}, {pipeline_mode = #tpu.pipeline_mode<synchronous>, transform_indices = @transform_6, window_bounds = array<i64: 1, 256>}, {pipeline_mode = #tpu.pipeline_mode<synchronous>, transform_indices = @transform_7, window_bounds = array<i64: 256, 128>}, {pipeline_mode = #tpu.pipeline_mode<synchronous>, transform_indices = @transform_8, window_bounds = array<i64: 1, 128>}, {pipeline_mode = #tpu.pipeline_mode<synchronous>, transform_indices = @transform_9, window_bounds = array<i64: 1, 128>}, {pipeline_mode = #tpu.pipeline_mode<synchronous>, transform_indices = @transform_10, window_bounds = array<i64: 1, 128>}, {pipeline_mode = #tpu.pipeline_mode<synchronous>, transform_indices = @transform_11, window_bounds = array<i64: 128, 128>}, {pipeline_mode = #tpu.pipeline_mode<synchronous>, transform_indices = @transform_12, window_bounds = array<i64: 1, 128>}, {pipeline_mode = #tpu.pipeline_mode<synchronous>, transform_indices = @transform_13, window_bounds = array<i64: 1, 128>}, {pipeline_mode = #tpu.pipeline_mode<synchronous>, transform_indices = @transform_14, window_bounds = array<i64: 1, 128>}, {pipeline_mode = #tpu.pipeline_mode<synchronous>, transform_indices = @transform_15, window_bounds = array<i64: 128, 128>}, {pipeline_mode = #tpu.pipeline_mode<synchronous>, transform_indices = @transform_16, window_bounds = array<i64: 1, 128>}, {pipeline_mode = #tpu.pipeline_mode<synchronous>, transform_indices = @transform_17, window_bounds = array<i64: 1, 128>}, {pipeline_mode = #tpu.pipeline_mode<synchronous>, transform_indices = @transform_18, window_bounds = array<i64: 1, 128>}, {pipeline_mode = #tpu.pipeline_mode<synchronous>, transform_indices = @transform_19, window_bounds = array<i64: 128, 128>}, {pipeline_mode = #tpu.pipeline_mode<synchronous>, transform_indices = @transform_20, window_bounds = array<i64: 1, 128>}, {pipeline_mode = #tpu.pipeline_mode<synchronous>, transform_indices = @transform_21, window_bounds = array<i64: 1, 128>}, {pipeline_mode = #tpu.pipeline_mode<synchronous>, transform_indices = @transform_22, window_bounds = array<i64: 1, 128>}, {pipeline_mode = #tpu.pipeline_mode<synchronous>, transform_indices = @transform_23, window_bounds = array<i64: 128, 128>}, {pipeline_mode = #tpu.pipeline_mode<synchronous>, transform_indices = @transform_24, window_bounds = array<i64: 1, 128>}, {pipeline_mode = #tpu.pipeline_mode<synchronous>, transform_indices = @transform_25, window_bounds = array<i64: 1, 128>}, {pipeline_mode = #tpu.pipeline_mode<synchronous>, transform_indices = @transform_26, window_bounds = array<i64: 1, 128>}, {pipeline_mode = #tpu.pipeline_mode<synchronous>, transform_indices = @transform_27, window_bounds = array<i64: 128, 128>}, {pipeline_mode = #tpu.pipeline_mode<synchronous>, transform_indices = @transform_28, window_bounds = array<i64: 1, 128>}, {pipeline_mode = #tpu.pipeline_mode<synchronous>, transform_indices = @transform_29, window_bounds = array<i64: 1, 128>}, {pipeline_mode = #tpu.pipeline_mode<synchronous>, transform_indices = @transform_30, window_bounds = array<i64: 1, 128>}, {pipeline_mode = #tpu.pipeline_mode<synchronous>, transform_indices = @transform_31, window_bounds = array<i64: 128, 128>}, {pipeline_mode = #tpu.pipeline_mode<synchronous>, transform_indices = @transform_32, window_bounds = array<i64: 1, 128>}, {pipeline_mode = #tpu.pipeline_mode<synchronous>, transform_indices = @transform_33, window_bounds = array<i64: 1, 128>}, {pipeline_mode = #tpu.pipeline_mode<synchronous>, transform_indices = @transform_34, window_bounds = array<i64: 1, 128>}, {pipeline_mode = #tpu.pipeline_mode<synchronous>, transform_indices = @transform_35, window_bounds = array<i64: 128, 128>}, {pipeline_mode = #tpu.pipeline_mode<synchronous>, transform_indices = @transform_36, window_bounds = array<i64: 1, 128>}, {pipeline_mode = #tpu.pipeline_mode<synchronous>, transform_indices = @transform_37, window_bounds = array<i64: 1, 128>}, {pipeline_mode = #tpu.pipeline_mode<synchronous>, transform_indices = @transform_38, window_bounds = array<i64: 1, 128>}, {pipeline_mode = #tpu.pipeline_mode<synchronous>, transform_indices = @transform_39, window_bounds = array<i64: 128, 128>}, {pipeline_mode = #tpu.pipeline_mode<synchronous>, transform_indices = @transform_40, window_bounds = array<i64: 1, 128>}, {transform_indices = @transform_41, window_bounds = array<i64: 32, 128>}]} {
    %c0 = arith.constant 0 : index
    %c0_0 = arith.constant 0 : index
    %0 = vector.load %arg1[%c0, %c0_0] : memref<32x256xf32, #tpu.memory_space<vmem>>, vector<32x256xf32>
    %1 = arith.truncf %0 : vector<32x256xf32> to vector<32x256xbf16>
    %c0_1 = arith.constant 0 : index
    %c0_2 = arith.constant 0 : index
    %2 = vector.load %arg2[%c0_1, %c0_2] : memref<1x256xf32, #tpu.memory_space<vmem>>, vector<1x256xf32>
    %c0_3 = arith.constant 0 : index
    %c0_4 = arith.constant 0 : index
    %3 = vector.load %arg3[%c0_3, %c0_4] : memref<1x256xf32, #tpu.memory_space<vmem>>, vector<1x256xf32>
    %c0_5 = arith.constant 0 : index
    %c0_6 = arith.constant 0 : index
    %4 = vector.load %arg4[%c0_5, %c0_6] : memref<256x256xbf16, #tpu.memory_space<vmem>>, vector<256x256xbf16>
    %c0_7 = arith.constant 0 : index
    %c0_8 = arith.constant 0 : index
    %5 = vector.load %arg5[%c0_7, %c0_8] : memref<1x256xf32, #tpu.memory_space<vmem>>, vector<1x256xf32>
    %c0_9 = arith.constant 0 : index
    %c0_10 = arith.constant 0 : index
    %6 = vector.load %arg6[%c0_9, %c0_10] : memref<1x256xf32, #tpu.memory_space<vmem>>, vector<1x256xf32>
    %c0_11 = arith.constant 0 : index
    %c0_12 = arith.constant 0 : index
    %7 = vector.load %arg7[%c0_11, %c0_12] : memref<1x256xf32, #tpu.memory_space<vmem>>, vector<1x256xf32>
    %c0_13 = arith.constant 0 : index
    %c0_14 = arith.constant 0 : index
    %8 = vector.load %arg8[%c0_13, %c0_14] : memref<256x128xbf16, #tpu.memory_space<vmem>>, vector<256x128xbf16>
    %c0_15 = arith.constant 0 : index
    %c0_16 = arith.constant 0 : index
    %9 = vector.load %arg9[%c0_15, %c0_16] : memref<1x128xf32, #tpu.memory_space<vmem>>, vector<1x128xf32>
    %10 = arith.truncf %2 : vector<1x256xf32> to vector<1x256xbf16>
    %11 = vector.broadcast %10 : vector<1x256xbf16> to vector<32x256xbf16>
    %12 = arith.mulf %1, %11 : vector<32x256xbf16>
    %13 = arith.truncf %3 : vector<1x256xf32> to vector<1x256xbf16>
    %14 = vector.broadcast %13 : vector<1x256xbf16> to vector<32x256xbf16>
    %15 = arith.addf %12, %14 : vector<32x256xbf16>
    %16 = arith.mulf %15, %15 : vector<32x256xbf16>
    %cst = arith.constant 3.564450e-02 : bf16
    %17 = vector.broadcast %cst : bf16 to vector<32x256xbf16>
    %18 = arith.mulf %17, %16 : vector<32x256xbf16>
    %cst_17 = arith.constant 7.968750e-01 : bf16
    %19 = vector.broadcast %cst_17 : bf16 to vector<32x256xbf16>
    %20 = arith.addf %19, %18 : vector<32x256xbf16>
    %21 = arith.mulf %15, %20 : vector<32x256xbf16>
    %cst_18 = arith.constant 5.000000e-01 : bf16
    %22 = vector.broadcast %cst_18 : bf16 to vector<32x256xbf16>
    %23 = arith.mulf %22, %15 : vector<32x256xbf16>
    %24 = math.tanh %21 : vector<32x256xbf16>
    %cst_19 = arith.constant 1.000000e+00 : bf16
    %25 = vector.broadcast %cst_19 : bf16 to vector<32x256xbf16>
    %26 = arith.addf %25, %24 : vector<32x256xbf16>
    %27 = arith.mulf %23, %26 : vector<32x256xbf16>
    %cst_20 = arith.constant dense<0.000000e+00> : vector<32x256xf32>
    %28 = tpu.matmul %27, %4, %cst_20 {dimension_numbers = #tpu.dot_dimension_numbers<[1], [0], [0], [1], [0, 0, 1, 1], [], []>} : vector<32x256xbf16>, vector<256x256xbf16>, vector<32x256xf32> -> vector<32x256xf32>
    %29 = vector.broadcast %5 : vector<1x256xf32> to vector<32x256xf32>
    %30 = arith.addf %28, %29 : vector<32x256xf32>
    %31 = arith.truncf %30 : vector<32x256xf32> to vector<32x256xbf16>
    %32 = arith.addf %1, %31 : vector<32x256xbf16>
    %33 = arith.truncf %6 : vector<1x256xf32> to vector<1x256xbf16>
    %34 = vector.broadcast %33 : vector<1x256xbf16> to vector<32x256xbf16>
    %35 = arith.mulf %32, %34 : vector<32x256xbf16>
    %36 = arith.truncf %7 : vector<1x256xf32> to vector<1x256xbf16>
    %37 = vector.broadcast %36 : vector<1x256xbf16> to vector<32x256xbf16>
    %38 = arith.addf %35, %37 : vector<32x256xbf16>
    %39 = arith.mulf %38, %38 : vector<32x256xbf16>
    %cst_21 = arith.constant 3.564450e-02 : bf16
    %40 = vector.broadcast %cst_21 : bf16 to vector<32x256xbf16>
    %41 = arith.mulf %40, %39 : vector<32x256xbf16>
    %cst_22 = arith.constant 7.968750e-01 : bf16
    %42 = vector.broadcast %cst_22 : bf16 to vector<32x256xbf16>
    %43 = arith.addf %42, %41 : vector<32x256xbf16>
    %44 = arith.mulf %38, %43 : vector<32x256xbf16>
    %cst_23 = arith.constant 5.000000e-01 : bf16
    %45 = vector.broadcast %cst_23 : bf16 to vector<32x256xbf16>
    %46 = arith.mulf %45, %38 : vector<32x256xbf16>
    %47 = math.tanh %44 : vector<32x256xbf16>
    %cst_24 = arith.constant 1.000000e+00 : bf16
    %48 = vector.broadcast %cst_24 : bf16 to vector<32x256xbf16>
    %49 = arith.addf %48, %47 : vector<32x256xbf16>
    %50 = arith.mulf %46, %49 : vector<32x256xbf16>
    %cst_25 = arith.constant dense<0.000000e+00> : vector<32x128xf32>
    %51 = tpu.matmul %50, %8, %cst_25 {dimension_numbers = #tpu.dot_dimension_numbers<[1], [0], [0], [1], [0, 0, 1, 1], [], []>} : vector<32x256xbf16>, vector<256x128xbf16>, vector<32x128xf32> -> vector<32x128xf32>
    %52 = vector.broadcast %9 : vector<1x128xf32> to vector<32x128xf32>
    %53 = arith.addf %51, %52 : vector<32x128xf32>
    %54 = arith.truncf %53 : vector<32x128xf32> to vector<32x128xbf16>
    %c0_26 = arith.constant 0 : index
    %c0_27 = arith.constant 0 : index
    %55 = vector.load %arg10[%c0_26, %c0_27] : memref<1x128xf32, #tpu.memory_space<vmem>>, vector<1x128xf32>
    %c0_28 = arith.constant 0 : index
    %c0_29 = arith.constant 0 : index
    %56 = vector.load %arg11[%c0_28, %c0_29] : memref<1x128xf32, #tpu.memory_space<vmem>>, vector<1x128xf32>
    %c0_30 = arith.constant 0 : index
    %c0_31 = arith.constant 0 : index
    %57 = vector.load %arg12[%c0_30, %c0_31] : memref<128x128xbf16, #tpu.memory_space<vmem>>, vector<128x128xbf16>
    %c0_32 = arith.constant 0 : index
    %c0_33 = arith.constant 0 : index
    %58 = vector.load %arg13[%c0_32, %c0_33] : memref<1x128xf32, #tpu.memory_space<vmem>>, vector<1x128xf32>
    %c0_34 = arith.constant 0 : index
    %c0_35 = arith.constant 0 : index
    %59 = vector.load %arg14[%c0_34, %c0_35] : memref<1x128xf32, #tpu.memory_space<vmem>>, vector<1x128xf32>
    %c0_36 = arith.constant 0 : index
    %c0_37 = arith.constant 0 : index
    %60 = vector.load %arg15[%c0_36, %c0_37] : memref<1x128xf32, #tpu.memory_space<vmem>>, vector<1x128xf32>
    %c0_38 = arith.constant 0 : index
    %c0_39 = arith.constant 0 : index
    %61 = vector.load %arg16[%c0_38, %c0_39] : memref<128x128xbf16, #tpu.memory_space<vmem>>, vector<128x128xbf16>
    %c0_40 = arith.constant 0 : index
    %c0_41 = arith.constant 0 : index
    %62 = vector.load %arg17[%c0_40, %c0_41] : memref<1x128xf32, #tpu.memory_space<vmem>>, vector<1x128xf32>
    %63 = arith.truncf %55 : vector<1x128xf32> to vector<1x128xbf16>
    %64 = vector.broadcast %63 : vector<1x128xbf16> to vector<32x128xbf16>
    %65 = arith.mulf %54, %64 : vector<32x128xbf16>
    %66 = arith.truncf %56 : vector<1x128xf32> to vector<1x128xbf16>
    %67 = vector.broadcast %66 : vector<1x128xbf16> to vector<32x128xbf16>
    %68 = arith.addf %65, %67 : vector<32x128xbf16>
    %69 = arith.mulf %68, %68 : vector<32x128xbf16>
    %cst_42 = arith.constant 3.564450e-02 : bf16
    %70 = vector.broadcast %cst_42 : bf16 to vector<32x128xbf16>
    %71 = arith.mulf %70, %69 : vector<32x128xbf16>
    %cst_43 = arith.constant 7.968750e-01 : bf16
    %72 = vector.broadcast %cst_43 : bf16 to vector<32x128xbf16>
    %73 = arith.addf %72, %71 : vector<32x128xbf16>
    %74 = arith.mulf %68, %73 : vector<32x128xbf16>
    %cst_44 = arith.constant 5.000000e-01 : bf16
    %75 = vector.broadcast %cst_44 : bf16 to vector<32x128xbf16>
    %76 = arith.mulf %75, %68 : vector<32x128xbf16>
    %77 = math.tanh %74 : vector<32x128xbf16>
    %cst_45 = arith.constant 1.000000e+00 : bf16
    %78 = vector.broadcast %cst_45 : bf16 to vector<32x128xbf16>
    %79 = arith.addf %78, %77 : vector<32x128xbf16>
    %80 = arith.mulf %76, %79 : vector<32x128xbf16>
    %cst_46 = arith.constant dense<0.000000e+00> : vector<32x128xf32>
    %81 = tpu.matmul %80, %57, %cst_46 {dimension_numbers = #tpu.dot_dimension_numbers<[1], [0], [0], [1], [0, 0, 1, 1], [], []>} : vector<32x128xbf16>, vector<128x128xbf16>, vector<32x128xf32> -> vector<32x128xf32>
    %82 = vector.broadcast %58 : vector<1x128xf32> to vector<32x128xf32>
    %83 = arith.addf %81, %82 : vector<32x128xf32>
    %84 = arith.truncf %83 : vector<32x128xf32> to vector<32x128xbf16>
    %85 = arith.addf %54, %84 : vector<32x128xbf16>
    %86 = arith.truncf %59 : vector<1x128xf32> to vector<1x128xbf16>
    %87 = vector.broadcast %86 : vector<1x128xbf16> to vector<32x128xbf16>
    %88 = arith.mulf %85, %87 : vector<32x128xbf16>
    %89 = arith.truncf %60 : vector<1x128xf32> to vector<1x128xbf16>
    %90 = vector.broadcast %89 : vector<1x128xbf16> to vector<32x128xbf16>
    %91 = arith.addf %88, %90 : vector<32x128xbf16>
    %92 = arith.mulf %91, %91 : vector<32x128xbf16>
    %cst_47 = arith.constant 3.564450e-02 : bf16
    %93 = vector.broadcast %cst_47 : bf16 to vector<32x128xbf16>
    %94 = arith.mulf %93, %92 : vector<32x128xbf16>
    %cst_48 = arith.constant 7.968750e-01 : bf16
    %95 = vector.broadcast %cst_48 : bf16 to vector<32x128xbf16>
    %96 = arith.addf %95, %94 : vector<32x128xbf16>
    %97 = arith.mulf %91, %96 : vector<32x128xbf16>
    %cst_49 = arith.constant 5.000000e-01 : bf16
    %98 = vector.broadcast %cst_49 : bf16 to vector<32x128xbf16>
    %99 = arith.mulf %98, %91 : vector<32x128xbf16>
    %100 = math.tanh %97 : vector<32x128xbf16>
    %cst_50 = arith.constant 1.000000e+00 : bf16
    %101 = vector.broadcast %cst_50 : bf16 to vector<32x128xbf16>
    %102 = arith.addf %101, %100 : vector<32x128xbf16>
    %103 = arith.mulf %99, %102 : vector<32x128xbf16>
    %cst_51 = arith.constant dense<0.000000e+00> : vector<32x128xf32>
    %104 = tpu.matmul %103, %61, %cst_51 {dimension_numbers = #tpu.dot_dimension_numbers<[1], [0], [0], [1], [0, 0, 1, 1], [], []>} : vector<32x128xbf16>, vector<128x128xbf16>, vector<32x128xf32> -> vector<32x128xf32>
    %105 = vector.broadcast %62 : vector<1x128xf32> to vector<32x128xf32>
    %106 = arith.addf %104, %105 : vector<32x128xf32>
    %107 = arith.truncf %106 : vector<32x128xf32> to vector<32x128xbf16>
    %c0_52 = arith.constant 0 : index
    %c0_53 = arith.constant 0 : index
    %108 = vector.load %arg18[%c0_52, %c0_53] : memref<1x128xf32, #tpu.memory_space<vmem>>, vector<1x128xf32>
    %c0_54 = arith.constant 0 : index
    %c0_55 = arith.constant 0 : index
    %109 = vector.load %arg19[%c0_54, %c0_55] : memref<1x128xf32, #tpu.memory_space<vmem>>, vector<1x128xf32>
    %c0_56 = arith.constant 0 : index
    %c0_57 = arith.constant 0 : index
    %110 = vector.load %arg20[%c0_56, %c0_57] : memref<128x128xbf16, #tpu.memory_space<vmem>>, vector<128x128xbf16>
    %c0_58 = arith.constant 0 : index
    %c0_59 = arith.constant 0 : index
    %111 = vector.load %arg21[%c0_58, %c0_59] : memref<1x128xf32, #tpu.memory_space<vmem>>, vector<1x128xf32>
    %c0_60 = arith.constant 0 : index
    %c0_61 = arith.constant 0 : index
    %112 = vector.load %arg22[%c0_60, %c0_61] : memref<1x128xf32, #tpu.memory_space<vmem>>, vector<1x128xf32>
    %c0_62 = arith.constant 0 : index
    %c0_63 = arith.constant 0 : index
    %113 = vector.load %arg23[%c0_62, %c0_63] : memref<1x128xf32, #tpu.memory_space<vmem>>, vector<1x128xf32>
    %c0_64 = arith.constant 0 : index
    %c0_65 = arith.constant 0 : index
    %114 = vector.load %arg24[%c0_64, %c0_65] : memref<128x128xbf16, #tpu.memory_space<vmem>>, vector<128x128xbf16>
    %c0_66 = arith.constant 0 : index
    %c0_67 = arith.constant 0 : index
    %115 = vector.load %arg25[%c0_66, %c0_67] : memref<1x128xf32, #tpu.memory_space<vmem>>, vector<1x128xf32>
    %116 = arith.truncf %108 : vector<1x128xf32> to vector<1x128xbf16>
    %117 = vector.broadcast %116 : vector<1x128xbf16> to vector<32x128xbf16>
    %118 = arith.mulf %107, %117 : vector<32x128xbf16>
    %119 = arith.truncf %109 : vector<1x128xf32> to vector<1x128xbf16>
    %120 = vector.broadcast %119 : vector<1x128xbf16> to vector<32x128xbf16>
    %121 = arith.addf %118, %120 : vector<32x128xbf16>
    %122 = arith.mulf %121, %121 : vector<32x128xbf16>
    %cst_68 = arith.constant 3.564450e-02 : bf16
    %123 = vector.broadcast %cst_68 : bf16 to vector<32x128xbf16>
    %124 = arith.mulf %123, %122 : vector<32x128xbf16>
    %cst_69 = arith.constant 7.968750e-01 : bf16
    %125 = vector.broadcast %cst_69 : bf16 to vector<32x128xbf16>
    %126 = arith.addf %125, %124 : vector<32x128xbf16>
    %127 = arith.mulf %121, %126 : vector<32x128xbf16>
    %cst_70 = arith.constant 5.000000e-01 : bf16
    %128 = vector.broadcast %cst_70 : bf16 to vector<32x128xbf16>
    %129 = arith.mulf %128, %121 : vector<32x128xbf16>
    %130 = math.tanh %127 : vector<32x128xbf16>
    %cst_71 = arith.constant 1.000000e+00 : bf16
    %131 = vector.broadcast %cst_71 : bf16 to vector<32x128xbf16>
    %132 = arith.addf %131, %130 : vector<32x128xbf16>
    %133 = arith.mulf %129, %132 : vector<32x128xbf16>
    %cst_72 = arith.constant dense<0.000000e+00> : vector<32x128xf32>
    %134 = tpu.matmul %133, %110, %cst_72 {dimension_numbers = #tpu.dot_dimension_numbers<[1], [0], [0], [1], [0, 0, 1, 1], [], []>} : vector<32x128xbf16>, vector<128x128xbf16>, vector<32x128xf32> -> vector<32x128xf32>
    %135 = vector.broadcast %111 : vector<1x128xf32> to vector<32x128xf32>
    %136 = arith.addf %134, %135 : vector<32x128xf32>
    %137 = arith.truncf %136 : vector<32x128xf32> to vector<32x128xbf16>
    %138 = arith.addf %107, %137 : vector<32x128xbf16>
    %139 = arith.truncf %112 : vector<1x128xf32> to vector<1x128xbf16>
    %140 = vector.broadcast %139 : vector<1x128xbf16> to vector<32x128xbf16>
    %141 = arith.mulf %138, %140 : vector<32x128xbf16>
    %142 = arith.truncf %113 : vector<1x128xf32> to vector<1x128xbf16>
    %143 = vector.broadcast %142 : vector<1x128xbf16> to vector<32x128xbf16>
    %144 = arith.addf %141, %143 : vector<32x128xbf16>
    %145 = arith.mulf %144, %144 : vector<32x128xbf16>
    %cst_73 = arith.constant 3.564450e-02 : bf16
    %146 = vector.broadcast %cst_73 : bf16 to vector<32x128xbf16>
    %147 = arith.mulf %146, %145 : vector<32x128xbf16>
    %cst_74 = arith.constant 7.968750e-01 : bf16
    %148 = vector.broadcast %cst_74 : bf16 to vector<32x128xbf16>
    %149 = arith.addf %148, %147 : vector<32x128xbf16>
    %150 = arith.mulf %144, %149 : vector<32x128xbf16>
    %cst_75 = arith.constant 5.000000e-01 : bf16
    %151 = vector.broadcast %cst_75 : bf16 to vector<32x128xbf16>
    %152 = arith.mulf %151, %144 : vector<32x128xbf16>
    %153 = math.tanh %150 : vector<32x128xbf16>
    %cst_76 = arith.constant 1.000000e+00 : bf16
    %154 = vector.broadcast %cst_76 : bf16 to vector<32x128xbf16>
    %155 = arith.addf %154, %153 : vector<32x128xbf16>
    %156 = arith.mulf %152, %155 : vector<32x128xbf16>
    %cst_77 = arith.constant dense<0.000000e+00> : vector<32x128xf32>
    %157 = tpu.matmul %156, %114, %cst_77 {dimension_numbers = #tpu.dot_dimension_numbers<[1], [0], [0], [1], [0, 0, 1, 1], [], []>} : vector<32x128xbf16>, vector<128x128xbf16>, vector<32x128xf32> -> vector<32x128xf32>
    %158 = vector.broadcast %115 : vector<1x128xf32> to vector<32x128xf32>
    %159 = arith.addf %157, %158 : vector<32x128xf32>
    %160 = arith.truncf %159 : vector<32x128xf32> to vector<32x128xbf16>
    %c0_78 = arith.constant 0 : index
    %c0_79 = arith.constant 0 : index
    %161 = vector.load %arg26[%c0_78, %c0_79] : memref<1x128xf32, #tpu.memory_space<vmem>>, vector<1x128xf32>
    %c0_80 = arith.constant 0 : index
    %c0_81 = arith.constant 0 : index
    %162 = vector.load %arg27[%c0_80, %c0_81] : memref<1x128xf32, #tpu.memory_space<vmem>>, vector<1x128xf32>
    %c0_82 = arith.constant 0 : index
    %c0_83 = arith.constant 0 : index
    %163 = vector.load %arg28[%c0_82, %c0_83] : memref<128x128xbf16, #tpu.memory_space<vmem>>, vector<128x128xbf16>
    %c0_84 = arith.constant 0 : index
    %c0_85 = arith.constant 0 : index
    %164 = vector.load %arg29[%c0_84, %c0_85] : memref<1x128xf32, #tpu.memory_space<vmem>>, vector<1x128xf32>
    %c0_86 = arith.constant 0 : index
    %c0_87 = arith.constant 0 : index
    %165 = vector.load %arg30[%c0_86, %c0_87] : memref<1x128xf32, #tpu.memory_space<vmem>>, vector<1x128xf32>
    %c0_88 = arith.constant 0 : index
    %c0_89 = arith.constant 0 : index
    %166 = vector.load %arg31[%c0_88, %c0_89] : memref<1x128xf32, #tpu.memory_space<vmem>>, vector<1x128xf32>
    %c0_90 = arith.constant 0 : index
    %c0_91 = arith.constant 0 : index
    %167 = vector.load %arg32[%c0_90, %c0_91] : memref<128x128xbf16, #tpu.memory_space<vmem>>, vector<128x128xbf16>
    %c0_92 = arith.constant 0 : index
    %c0_93 = arith.constant 0 : index
    %168 = vector.load %arg33[%c0_92, %c0_93] : memref<1x128xf32, #tpu.memory_space<vmem>>, vector<1x128xf32>
    %169 = arith.truncf %161 : vector<1x128xf32> to vector<1x128xbf16>
    %170 = vector.broadcast %169 : vector<1x128xbf16> to vector<32x128xbf16>
    %171 = arith.mulf %160, %170 : vector<32x128xbf16>
    %172 = arith.truncf %162 : vector<1x128xf32> to vector<1x128xbf16>
    %173 = vector.broadcast %172 : vector<1x128xbf16> to vector<32x128xbf16>
    %174 = arith.addf %171, %173 : vector<32x128xbf16>
    %175 = arith.mulf %174, %174 : vector<32x128xbf16>
    %cst_94 = arith.constant 3.564450e-02 : bf16
    %176 = vector.broadcast %cst_94 : bf16 to vector<32x128xbf16>
    %177 = arith.mulf %176, %175 : vector<32x128xbf16>
    %cst_95 = arith.constant 7.968750e-01 : bf16
    %178 = vector.broadcast %cst_95 : bf16 to vector<32x128xbf16>
    %179 = arith.addf %178, %177 : vector<32x128xbf16>
    %180 = arith.mulf %174, %179 : vector<32x128xbf16>
    %cst_96 = arith.constant 5.000000e-01 : bf16
    %181 = vector.broadcast %cst_96 : bf16 to vector<32x128xbf16>
    %182 = arith.mulf %181, %174 : vector<32x128xbf16>
    %183 = math.tanh %180 : vector<32x128xbf16>
    %cst_97 = arith.constant 1.000000e+00 : bf16
    %184 = vector.broadcast %cst_97 : bf16 to vector<32x128xbf16>
    %185 = arith.addf %184, %183 : vector<32x128xbf16>
    %186 = arith.mulf %182, %185 : vector<32x128xbf16>
    %cst_98 = arith.constant dense<0.000000e+00> : vector<32x128xf32>
    %187 = tpu.matmul %186, %163, %cst_98 {dimension_numbers = #tpu.dot_dimension_numbers<[1], [0], [0], [1], [0, 0, 1, 1], [], []>} : vector<32x128xbf16>, vector<128x128xbf16>, vector<32x128xf32> -> vector<32x128xf32>
    %188 = vector.broadcast %164 : vector<1x128xf32> to vector<32x128xf32>
    %189 = arith.addf %187, %188 : vector<32x128xf32>
    %190 = arith.truncf %189 : vector<32x128xf32> to vector<32x128xbf16>
    %191 = arith.addf %160, %190 : vector<32x128xbf16>
    %192 = arith.truncf %165 : vector<1x128xf32> to vector<1x128xbf16>
    %193 = vector.broadcast %192 : vector<1x128xbf16> to vector<32x128xbf16>
    %194 = arith.mulf %191, %193 : vector<32x128xbf16>
    %195 = arith.truncf %166 : vector<1x128xf32> to vector<1x128xbf16>
    %196 = vector.broadcast %195 : vector<1x128xbf16> to vector<32x128xbf16>
    %197 = arith.addf %194, %196 : vector<32x128xbf16>
    %198 = arith.mulf %197, %197 : vector<32x128xbf16>
    %cst_99 = arith.constant 3.564450e-02 : bf16
    %199 = vector.broadcast %cst_99 : bf16 to vector<32x128xbf16>
    %200 = arith.mulf %199, %198 : vector<32x128xbf16>
    %cst_100 = arith.constant 7.968750e-01 : bf16
    %201 = vector.broadcast %cst_100 : bf16 to vector<32x128xbf16>
    %202 = arith.addf %201, %200 : vector<32x128xbf16>
    %203 = arith.mulf %197, %202 : vector<32x128xbf16>
    %cst_101 = arith.constant 5.000000e-01 : bf16
    %204 = vector.broadcast %cst_101 : bf16 to vector<32x128xbf16>
    %205 = arith.mulf %204, %197 : vector<32x128xbf16>
    %206 = math.tanh %203 : vector<32x128xbf16>
    %cst_102 = arith.constant 1.000000e+00 : bf16
    %207 = vector.broadcast %cst_102 : bf16 to vector<32x128xbf16>
    %208 = arith.addf %207, %206 : vector<32x128xbf16>
    %209 = arith.mulf %205, %208 : vector<32x128xbf16>
    %cst_103 = arith.constant dense<0.000000e+00> : vector<32x128xf32>
    %210 = tpu.matmul %209, %167, %cst_103 {dimension_numbers = #tpu.dot_dimension_numbers<[1], [0], [0], [1], [0, 0, 1, 1], [], []>} : vector<32x128xbf16>, vector<128x128xbf16>, vector<32x128xf32> -> vector<32x128xf32>
    %211 = vector.broadcast %168 : vector<1x128xf32> to vector<32x128xf32>
    %212 = arith.addf %210, %211 : vector<32x128xf32>
    %213 = arith.truncf %212 : vector<32x128xf32> to vector<32x128xbf16>
    %c0_104 = arith.constant 0 : index
    %c0_105 = arith.constant 0 : index
    %214 = vector.load %arg34[%c0_104, %c0_105] : memref<1x128xf32, #tpu.memory_space<vmem>>, vector<1x128xf32>
    %c0_106 = arith.constant 0 : index
    %c0_107 = arith.constant 0 : index
    %215 = vector.load %arg35[%c0_106, %c0_107] : memref<1x128xf32, #tpu.memory_space<vmem>>, vector<1x128xf32>
    %c0_108 = arith.constant 0 : index
    %c0_109 = arith.constant 0 : index
    %216 = vector.load %arg36[%c0_108, %c0_109] : memref<128x128xbf16, #tpu.memory_space<vmem>>, vector<128x128xbf16>
    %c0_110 = arith.constant 0 : index
    %c0_111 = arith.constant 0 : index
    %217 = vector.load %arg37[%c0_110, %c0_111] : memref<1x128xf32, #tpu.memory_space<vmem>>, vector<1x128xf32>
    %c0_112 = arith.constant 0 : index
    %c0_113 = arith.constant 0 : index
    %218 = vector.load %arg38[%c0_112, %c0_113] : memref<1x128xf32, #tpu.memory_space<vmem>>, vector<1x128xf32>
    %c0_114 = arith.constant 0 : index
    %c0_115 = arith.constant 0 : index
    %219 = vector.load %arg39[%c0_114, %c0_115] : memref<1x128xf32, #tpu.memory_space<vmem>>, vector<1x128xf32>
    %c0_116 = arith.constant 0 : index
    %c0_117 = arith.constant 0 : index
    %220 = vector.load %arg40[%c0_116, %c0_117] : memref<128x128xbf16, #tpu.memory_space<vmem>>, vector<128x128xbf16>
    %c0_118 = arith.constant 0 : index
    %c0_119 = arith.constant 0 : index
    %221 = vector.load %arg41[%c0_118, %c0_119] : memref<1x128xf32, #tpu.memory_space<vmem>>, vector<1x128xf32>
    %222 = arith.truncf %214 : vector<1x128xf32> to vector<1x128xbf16>
    %223 = vector.broadcast %222 : vector<1x128xbf16> to vector<32x128xbf16>
    %224 = arith.mulf %213, %223 : vector<32x128xbf16>
    %225 = arith.truncf %215 : vector<1x128xf32> to vector<1x128xbf16>
    %226 = vector.broadcast %225 : vector<1x128xbf16> to vector<32x128xbf16>
    %227 = arith.addf %224, %226 : vector<32x128xbf16>
    %228 = arith.mulf %227, %227 : vector<32x128xbf16>
    %cst_120 = arith.constant 3.564450e-02 : bf16
    %229 = vector.broadcast %cst_120 : bf16 to vector<32x128xbf16>
    %230 = arith.mulf %229, %228 : vector<32x128xbf16>
    %cst_121 = arith.constant 7.968750e-01 : bf16
    %231 = vector.broadcast %cst_121 : bf16 to vector<32x128xbf16>
    %232 = arith.addf %231, %230 : vector<32x128xbf16>
    %233 = arith.mulf %227, %232 : vector<32x128xbf16>
    %cst_122 = arith.constant 5.000000e-01 : bf16
    %234 = vector.broadcast %cst_122 : bf16 to vector<32x128xbf16>
    %235 = arith.mulf %234, %227 : vector<32x128xbf16>
    %236 = math.tanh %233 : vector<32x128xbf16>
    %cst_123 = arith.constant 1.000000e+00 : bf16
    %237 = vector.broadcast %cst_123 : bf16 to vector<32x128xbf16>
    %238 = arith.addf %237, %236 : vector<32x128xbf16>
    %239 = arith.mulf %235, %238 : vector<32x128xbf16>
    %cst_124 = arith.constant dense<0.000000e+00> : vector<32x128xf32>
    %240 = tpu.matmul %239, %216, %cst_124 {dimension_numbers = #tpu.dot_dimension_numbers<[1], [0], [0], [1], [0, 0, 1, 1], [], []>} : vector<32x128xbf16>, vector<128x128xbf16>, vector<32x128xf32> -> vector<32x128xf32>
    %241 = vector.broadcast %217 : vector<1x128xf32> to vector<32x128xf32>
    %242 = arith.addf %240, %241 : vector<32x128xf32>
    %243 = arith.truncf %242 : vector<32x128xf32> to vector<32x128xbf16>
    %244 = arith.addf %213, %243 : vector<32x128xbf16>
    %245 = arith.truncf %218 : vector<1x128xf32> to vector<1x128xbf16>
    %246 = vector.broadcast %245 : vector<1x128xbf16> to vector<32x128xbf16>
    %247 = arith.mulf %244, %246 : vector<32x128xbf16>
    %248 = arith.truncf %219 : vector<1x128xf32> to vector<1x128xbf16>
    %249 = vector.broadcast %248 : vector<1x128xbf16> to vector<32x128xbf16>
    %250 = arith.addf %247, %249 : vector<32x128xbf16>
    %251 = arith.mulf %250, %250 : vector<32x128xbf16>
    %cst_125 = arith.constant 3.564450e-02 : bf16
    %252 = vector.broadcast %cst_125 : bf16 to vector<32x128xbf16>
    %253 = arith.mulf %252, %251 : vector<32x128xbf16>
    %cst_126 = arith.constant 7.968750e-01 : bf16
    %254 = vector.broadcast %cst_126 : bf16 to vector<32x128xbf16>
    %255 = arith.addf %254, %253 : vector<32x128xbf16>
    %256 = arith.mulf %250, %255 : vector<32x128xbf16>
    %cst_127 = arith.constant 5.000000e-01 : bf16
    %257 = vector.broadcast %cst_127 : bf16 to vector<32x128xbf16>
    %258 = arith.mulf %257, %250 : vector<32x128xbf16>
    %259 = math.tanh %256 : vector<32x128xbf16>
    %cst_128 = arith.constant 1.000000e+00 : bf16
    %260 = vector.broadcast %cst_128 : bf16 to vector<32x128xbf16>
    %261 = arith.addf %260, %259 : vector<32x128xbf16>
    %262 = arith.mulf %258, %261 : vector<32x128xbf16>
    %cst_129 = arith.constant dense<0.000000e+00> : vector<32x128xf32>
    %263 = tpu.matmul %262, %220, %cst_129 {dimension_numbers = #tpu.dot_dimension_numbers<[1], [0], [0], [1], [0, 0, 1, 1], [], []>} : vector<32x128xbf16>, vector<128x128xbf16>, vector<32x128xf32> -> vector<32x128xf32>
    %264 = vector.broadcast %221 : vector<1x128xf32> to vector<32x128xf32>
    %265 = arith.addf %263, %264 : vector<32x128xf32>
    %266 = arith.truncf %265 : vector<32x128xf32> to vector<32x128xbf16>
    %267 = arith.extf %266 : vector<32x128xbf16> to vector<32x128xf32>
    %c0_130 = arith.constant 0 : index
    %c0_131 = arith.constant 0 : index
    %268 = vector.load %arg42[%c0_130, %c0_131] : memref<32x128xf32, #tpu.memory_space<vmem>>, vector<32x128xf32>
    tpu.vector_store %arg42[%c0_130, %c0_131], %267 {strides = array<i32>} : memref<32x128xf32, #tpu.memory_space<vmem>>, vector<32x128xf32>,
    return
  }
  func.func @transform_0(%arg0: i32) -> (i32, i32) {
    %c0_i32 = arith.constant 0 : i32
    %c0_i32_0 = arith.constant 0 : i32
    return %arg0, %c0_i32 : i32, i32
  }
  func.func @transform_1(%arg0: i32) -> (i32, i32) {
    %c0_i32 = arith.constant 0 : i32
    %c0_i32_0 = arith.constant 0 : i32
    %c0_i32_1 = arith.constant 0 : i32
    return %c0_i32, %c0_i32_0 : i32, i32
  }
  func.func @transform_2(%arg0: i32) -> (i32, i32) {
    %c0_i32 = arith.constant 0 : i32
    %c0_i32_0 = arith.constant 0 : i32
    %c0_i32_1 = arith.constant 0 : i32
    return %c0_i32, %c0_i32_0 : i32, i32
  }
  func.func @transform_3(%arg0: i32) -> (i32, i32) {
    %c0_i32 = arith.constant 0 : i32
    %c0_i32_0 = arith.constant 0 : i32
    %c0_i32_1 = arith.constant 0 : i32
    return %c0_i32, %c0_i32_0 : i32, i32
  }
  func.func @transform_4(%arg0: i32) -> (i32, i32) {
    %c0_i32 = arith.constant 0 : i32
    %c0_i32_0 = arith.constant 0 : i32
    %c0_i32_1 = arith.constant 0 : i32
    return %c0_i32, %c0_i32_0 : i32, i32
  }
  func.func @transform_5(%arg0: i32) -> (i32, i32) {
    %c0_i32 = arith.constant 0 : i32
    %c0_i32_0 = arith.constant 0 : i32
    %c0_i32_1 = arith.constant 0 : i32
    return %c0_i32, %c0_i32_0 : i32, i32
  }
  func.func @transform_6(%arg0: i32) -> (i32, i32) {
    %c0_i32 = arith.constant 0 : i32
    %c0_i32_0 = arith.constant 0 : i32
    %c0_i32_1 = arith.constant 0 : i32
    return %c0_i32, %c0_i32_0 : i32, i32
  }
  func.func @transform_7(%arg0: i32) -> (i32, i32) {
    %c0_i32 = arith.constant 0 : i32
    %c0_i32_0 = arith.constant 0 : i32
    %c0_i32_1 = arith.constant 0 : i32
    return %c0_i32, %c0_i32_0 : i32, i32
  }
  func.func @transform_8(%arg0: i32) -> (i32, i32) {
    %c0_i32 = arith.constant 0 : i32
    %c0_i32_0 = arith.constant 0 : i32
    %c0_i32_1 = arith.constant 0 : i32
    return %c0_i32, %c0_i32_0 : i32, i32
  }
  func.func @transform_9(%arg0: i32) -> (i32, i32) {
    %c0_i32 = arith.constant 0 : i32
    %c0_i32_0 = arith.constant 0 : i32
    %c0_i32_1 = arith.constant 0 : i32
    return %c0_i32, %c0_i32_0 : i32, i32
  }
  func.func @transform_10(%arg0: i32) -> (i32, i32) {
    %c0_i32 = arith.constant 0 : i32
    %c0_i32_0 = arith.constant 0 : i32
    %c0_i32_1 = arith.constant 0 : i32
    return %c0_i32, %c0_i32_0 : i32, i32
  }
  func.func @transform_11(%arg0: i32) -> (i32, i32) {
    %c0_i32 = arith.constant 0 : i32
    %c0_i32_0 = arith.constant 0 : i32
    %c0_i32_1 = arith.constant 0 : i32
    return %c0_i32, %c0_i32_0 : i32, i32
  }
  func.func @transform_12(%arg0: i32) -> (i32, i32) {
    %c0_i32 = arith.constant 0 : i32
    %c0_i32_0 = arith.constant 0 : i32
    %c0_i32_1 = arith.constant 0 : i32
    return %c0_i32, %c0_i32_0 : i32, i32
  }
  func.func @transform_13(%arg0: i32) -> (i32, i32) {
    %c0_i32 = arith.constant 0 : i32
    %c0_i32_0 = arith.constant 0 : i32
    %c0_i32_1 = arith.constant 0 : i32
    return %c0_i32, %c0_i32_0 : i32, i32
  }
  func.func @transform_14(%arg0: i32) -> (i32, i32) {
    %c0_i32 = arith.constant 0 : i32
    %c0_i32_0 = arith.constant 0 : i32
    %c0_i32_1 = arith.constant 0 : i32
    return %c0_i32, %c0_i32_0 : i32, i32
  }
  func.func @transform_15(%arg0: i32) -> (i32, i32) {
    %c0_i32 = arith.constant 0 : i32
    %c0_i32_0 = arith.constant 0 : i32
    %c0_i32_1 = arith.constant 0 : i32
    return %c0_i32, %c0_i32_0 : i32, i32
  }
  func.func @transform_16(%arg0: i32) -> (i32, i32) {
    %c0_i32 = arith.constant 0 : i32
    %c0_i32_0 = arith.constant 0 : i32
    %c0_i32_1 = arith.constant 0 : i32
    return %c0_i32, %c0_i32_0 : i32, i32
  }
  func.func @transform_17(%arg0: i32) -> (i32, i32) {
    %c0_i32 = arith.constant 0 : i32
    %c0_i32_0 = arith.constant 0 : i32
    %c0_i32_1 = arith.constant 0 : i32
    return %c0_i32, %c0_i32_0 : i32, i32
  }
  func.func @transform_18(%arg0: i32) -> (i32, i32) {
    %c0_i32 = arith.constant 0 : i32
    %c0_i32_0 = arith.constant 0 : i32
    %c0_i32_1 = arith.constant 0 : i32
    return %c0_i32, %c0_i32_0 : i32, i32
  }
  func.func @transform_19(%arg0: i32) -> (i32, i32) {
    %c0_i32 = arith.constant 0 : i32
    %c0_i32_0 = arith.constant 0 : i32
    %c0_i32_1 = arith.constant 0 : i32
    return %c0_i32, %c0_i32_0 : i32, i32
  }
  func.func @transform_20(%arg0: i32) -> (i32, i32) {
    %c0_i32 = arith.constant 0 : i32
    %c0_i32_0 = arith.constant 0 : i32
    %c0_i32_1 = arith.constant 0 : i32
    return %c0_i32, %c0_i32_0 : i32, i32
  }
  func.func @transform_21(%arg0: i32) -> (i32, i32) {
    %c0_i32 = arith.constant 0 : i32
    %c0_i32_0 = arith.constant 0 : i32
    %c0_i32_1 = arith.constant 0 : i32
    return %c0_i32, %c0_i32_0 : i32, i32
  }
  func.func @transform_22(%arg0: i32) -> (i32, i32) {
    %c0_i32 = arith.constant 0 : i32
    %c0_i32_0 = arith.constant 0 : i32
    %c0_i32_1 = arith.constant 0 : i32
    return %c0_i32, %c0_i32_0 : i32, i32
  }
  func.func @transform_23(%arg0: i32) -> (i32, i32) {
    %c0_i32 = arith.constant 0 : i32
    %c0_i32_0 = arith.constant 0 : i32
    %c0_i32_1 = arith.constant 0 : i32
    return %c0_i32, %c0_i32_0 : i32, i32
  }
  func.func @transform_24(%arg0: i32) -> (i32, i32) {
    %c0_i32 = arith.constant 0 : i32
    %c0_i32_0 = arith.constant 0 : i32
    %c0_i32_1 = arith.constant 0 : i32
    return %c0_i32, %c0_i32_0 : i32, i32
  }
  func.func @transform_25(%arg0: i32) -> (i32, i32) {
    %c0_i32 = arith.constant 0 : i32
    %c0_i32_0 = arith.constant 0 : i32
    %c0_i32_1 = arith.constant 0 : i32
    return %c0_i32, %c0_i32_0 : i32, i32
  }
  func.func @transform_26(%arg0: i32) -> (i32, i32) {
    %c0_i32 = arith.constant 0 : i32
    %c0_i32_0 = arith.constant 0 : i32
    %c0_i32_1 = arith.constant 0 : i32
    return %c0_i32, %c0_i32_0 : i32, i32
  }
  func.func @transform_27(%arg0: i32) -> (i32, i32) {
    %c0_i32 = arith.constant 0 : i32
    %c0_i32_0 = arith.constant 0 : i32
    %c0_i32_1 = arith.constant 0 : i32
    return %c0_i32, %c0_i32_0 : i32, i32
  }
  func.func @transform_28(%arg0: i32) -> (i32, i32) {
    %c0_i32 = arith.constant 0 : i32
    %c0_i32_0 = arith.constant 0 : i32
    %c0_i32_1 = arith.constant 0 : i32
    return %c0_i32, %c0_i32_0 : i32, i32
  }
  func.func @transform_29(%arg0: i32) -> (i32, i32) {
    %c0_i32 = arith.constant 0 : i32
    %c0_i32_0 = arith.constant 0 : i32
    %c0_i32_1 = arith.constant 0 : i32
    return %c0_i32, %c0_i32_0 : i32, i32
  }
  func.func @transform_30(%arg0: i32) -> (i32, i32) {
    %c0_i32 = arith.constant 0 : i32
    %c0_i32_0 = arith.constant 0 : i32
    %c0_i32_1 = arith.constant 0 : i32
    return %c0_i32, %c0_i32_0 : i32, i32
  }
  func.func @transform_31(%arg0: i32) -> (i32, i32) {
    %c0_i32 = arith.constant 0 : i32
    %c0_i32_0 = arith.constant 0 : i32
    %c0_i32_1 = arith.constant 0 : i32
    return %c0_i32, %c0_i32_0 : i32, i32
  }
  func.func @transform_32(%arg0: i32) -> (i32, i32) {
    %c0_i32 = arith.constant 0 : i32
    %c0_i32_0 = arith.constant 0 : i32
    %c0_i32_1 = arith.constant 0 : i32
    return %c0_i32, %c0_i32_0 : i32, i32
  }
  func.func @transform_33(%arg0: i32) -> (i32, i32) {
    %c0_i32 = arith.constant 0 : i32
    %c0_i32_0 = arith.constant 0 : i32
    %c0_i32_1 = arith.constant 0 : i32
    return %c0_i32, %c0_i32_0 : i32, i32
  }
  func.func @transform_34(%arg0: i32) -> (i32, i32) {
    %c0_i32 = arith.constant 0 : i32
    %c0_i32_0 = arith.constant 0 : i32
    %c0_i32_1 = arith.constant 0 : i32
    return %c0_i32, %c0_i32_0 : i32, i32
  }
  func.func @transform_35(%arg0: i32) -> (i32, i32) {
    %c0_i32 = arith.constant 0 : i32
    %c0_i32_0 = arith.constant 0 : i32
    %c0_i32_1 = arith.constant 0 : i32
    return %c0_i32, %c0_i32_0 : i32, i32
  }
  func.func @transform_36(%arg0: i32) -> (i32, i32) {
    %c0_i32 = arith.constant 0 : i32
    %c0_i32_0 = arith.constant 0 : i32
    %c0_i32_1 = arith.constant 0 : i32
    return %c0_i32, %c0_i32_0 : i32, i32
  }
  func.func @transform_37(%arg0: i32) -> (i32, i32) {
    %c0_i32 = arith.constant 0 : i32
    %c0_i32_0 = arith.constant 0 : i32
    %c0_i32_1 = arith.constant 0 : i32
    return %c0_i32, %c0_i32_0 : i32, i32
  }
  func.func @transform_38(%arg0: i32) -> (i32, i32) {
    %c0_i32 = arith.constant 0 : i32
    %c0_i32_0 = arith.constant 0 : i32
    %c0_i32_1 = arith.constant 0 : i32
    return %c0_i32, %c0_i32_0 : i32, i32
  }
  func.func @transform_39(%arg0: i32) -> (i32, i32) {
    %c0_i32 = arith.constant 0 : i32
    %c0_i32_0 = arith.constant 0 : i32
    %c0_i32_1 = arith.constant 0 : i32
    return %c0_i32, %c0_i32_0 : i32, i32
  }
  func.func @transform_40(%arg0: i32) -> (i32, i32) {
    %c0_i32 = arith.constant 0 : i32
    %c0_i32_0 = arith.constant 0 : i32
    %c0_i32_1 = arith.constant 0 : i32
    return %c0_i32, %c0_i32_0 : i32, i32
  }
  func.func @transform_41(%arg0: i32) -> (i32, i32) {
    %c0_i32 = arith.constant 0 : i32
    %c0_i32_0 = arith.constant 0 : i32
    return %arg0, %c0_i32 : i32, i32
  }
}

</mosaic_0001>

<llo_original>
// kernel: item_embedder_forward.1
$region0: #{item_embedder_forward.1}
  #allocation0 [shape = 'u32[]', space=smem, size = 0x4, offset = 0x4, fixed_abs, tag = 'smem constant byte address 0x4 - core index']
  #allocation1 [shape = 'u32[144,128]{1,0:T(1,128)}', space=vmem, size = 0x12000, scoped, tag = 'internal scratch']
  %s0 = inlined_call_operand.smem [shape: u32[42], index: -1, kind: input, shape index: {}]
  %s1 = sld [smem:[%s0]]
  %s2 = scalar_lea.smem %s0, 1
  %s3 = sld [smem:[%s2]]
  %s4 = scalar_lea.smem %s0, 2
  %s5 = sld [smem:[%s4]]
  %s6 = scalar_lea.smem %s0, 3
  %s7 = sld [smem:[%s6]]
  %s8 = scalar_lea.smem %s0, 4
  %s9 = sld [smem:[%s8]]
  %s10 = scalar_lea.smem %s0, 5
  %s11 = sld [smem:[%s10]]
  %s12 = scalar_lea.smem %s0, 6
  %s13 = sld [smem:[%s12]]
  %s14 = scalar_lea.smem %s0, 7
  %s15 = sld [smem:[%s14]]
  %s16 = scalar_lea.smem %s0, 8
  %s17 = sld [smem:[%s16]]
  %s18 = scalar_lea.smem %s0, 9
  %s19 = sld [smem:[%s18]]
  %s20 = scalar_lea.smem %s0, 10
  %s21 = sld [smem:[%s20]]
  %s22 = scalar_lea.smem %s0, 11
  %s23 = sld [smem:[%s22]]
  %s24 = scalar_lea.smem %s0, 12
  %s25 = sld [smem:[%s24]]
  %s26 = scalar_lea.smem %s0, 13
  %s27 = sld [smem:[%s26]]
  %s28 = scalar_lea.smem %s0, 14
  %s29 = sld [smem:[%s28]]
  %s30 = scalar_lea.smem %s0, 15
  %s31 = sld [smem:[%s30]]
  %s32 = scalar_lea.smem %s0, 16
  %s33 = sld [smem:[%s32]]
  %s34 = scalar_lea.smem %s0, 17
  %s35 = sld [smem:[%s34]]
  %s36 = scalar_lea.smem %s0, 18
  %s37 = sld [smem:[%s36]]
  %s38 = scalar_lea.smem %s0, 19
  %s39 = sld [smem:[%s38]]
  %s40 = scalar_lea.smem %s0, 20
  %s41 = sld [smem:[%s40]]
  %s42 = scalar_lea.smem %s0, 21
  %s43 = sld [smem:[%s42]]
  %s44 = scalar_lea.smem %s0, 22
  %s45 = sld [smem:[%s44]]
  %s46 = scalar_lea.smem %s0, 23
  %s47 = sld [smem:[%s46]]
  %s48 = scalar_lea.smem %s0, 24
  %s49 = sld [smem:[%s48]]
  %s50 = scalar_lea.smem %s0, 25
  %s51 = sld [smem:[%s50]]
  %s52 = scalar_lea.smem %s0, 26
  %s53 = sld [smem:[%s52]]
  %s54 = scalar_lea.smem %s0, 27
  %s55 = sld [smem:[%s54]]
  %s56 = scalar_lea.smem %s0, 28
  %s57 = sld [smem:[%s56]]
  %s58 = scalar_lea.smem %s0, 29
  %s59 = sld [smem:[%s58]]
  %s60 = scalar_lea.smem %s0, 30
  %s61 = sld [smem:[%s60]]
  %s62 = scalar_lea.smem %s0, 31
  %s63 = sld [smem:[%s62]]
  %s64 = scalar_lea.smem %s0, 32
  %s65 = sld [smem:[%s64]]
  %s66 = scalar_lea.smem %s0, 33
  %s67 = sld [smem:[%s66]]
  %s68 = scalar_lea.smem %s0, 34
  %s69 = sld [smem:[%s68]]
  %s70 = scalar_lea.smem %s0, 35
  %s71 = sld [smem:[%s70]]
  %s72 = scalar_lea.smem %s0, 36
  %s73 = sld [smem:[%s72]]
  %s74 = scalar_lea.smem %s0, 37
  %s75 = sld [smem:[%s74]]
  %s76 = scalar_lea.smem %s0, 38
  %s77 = sld [smem:[%s76]]
  %s78 = scalar_lea.smem %s0, 39
  %s79 = sld [smem:[%s78]]
  %s80 = scalar_lea.smem %s0, 40
  %s81 = sld [smem:[%s80]]
  %s82 = scalar_lea.smem %s0, 41
  %s83 = sld [smem:[%s82]]
  %s84 = sld [smem:[#allocation0]]
  $region337: #{item_embedder_forward.1} parent=0
    _
  %s86 = ssub.s32 1, %s84
  %s87 = scalar_select 0, %s86, %s84
  $region1: #{item_embedder_forward.1} parent=0
    #allocation2 [shape = 'u8[1024]{0}', space=vmem, size = 0x400, scoped, tag = 'input window, operand 2, single buffered']
    #allocation3 [shape = 's32[2]{0}', space=sflag, size = 0x8, scoped, tag = 'scoped memory for item_embedder_forward.1']
    #allocation4 [shape = 's32[2]{0}', space=sflag, size = 0x8, scoped, tag = 'scoped memory for item_embedder_forward.1']
    #allocation5 [shape = 'u8[1024]{0}', space=vmem, size = 0x400, scoped, tag = 'input window, operand 4, single buffered']
    #allocation6 [shape = 's32[1]{0}', space=sflag, size = 0x4, scoped, tag = 'scoped memory for item_embedder_forward.1']
    #allocation7 [shape = 'u8[1024]{0}', space=vmem, size = 0x400, scoped, tag = 'input window, operand 5, single buffered']
    #allocation8 [shape = 'u8[1024]{0}', space=vmem, size = 0x400, scoped, tag = 'input window, operand 6, single buffered']
    #allocation9 [shape = 's32[1]{0}', space=sflag, size = 0x4, scoped, tag = 'scoped memory for item_embedder_forward.1']
    #allocation10 [shape = 'u8[65536]{0}', space=vmem, size = 0x10000, scoped, tag = 'input window, operand 7, single buffered']
    #allocation11 [shape = 'u8[512]{0}', space=vmem, size = 0x400, scoped, tag = 'input window, operand 8, single buffered']
    #allocation12 [shape = 's32[1]{0}', space=sflag, size = 0x4, scoped, tag = 'scoped memory for item_embedder_forward.1']
    #allocation13 [shape = 'u8[512]{0}', space=vmem, size = 0x400, scoped, tag = 'input window, operand 9, single buffered']
    #allocation14 [shape = 'u8[512]{0}', space=vmem, size = 0x400, scoped, tag = 'input window, operand 10, single buffered']
    #allocation15 [shape = 's32[1]{0}', space=sflag, size = 0x4, scoped, tag = 'scoped memory for item_embedder_forward.1']
    #allocation16 [shape = 'u8[32768]{0}', space=vmem, size = 0x8000, scoped, tag = 'input window, operand 11, single buffered']
    #allocation17 [shape = 'u8[512]{0}', space=vmem, size = 0x400, scoped, tag = 'input window, operand 12, single buffered']
    #allocation18 [shape = 's32[1]{0}', space=sflag, size = 0x4, scoped, tag = 'scoped memory for item_embedder_forward.1']
    #allocation19 [shape = 'u8[512]{0}', space=vmem, size = 0x400, scoped, tag = 'input window, operand 13, single buffered']
    #allocation20 [shape = 'u8[512]{0}', space=vmem, size = 0x400, scoped, tag = 'input window, operand 14, single buffered']
    #allocation21 [shape = 's32[1]{0}', space=sflag, size = 0x4, scoped, tag = 'scoped memory for item_embedder_forward.1']
    #allocation22 [shape = 'u8[32768]{0}', space=vmem, size = 0x8000, scoped, tag = 'input window, operand 15, single buffered']
    #allocation23 [shape = 'u8[512]{0}', space=vmem, size = 0x400, scoped, tag = 'input window, operand 16, single buffered']
    #allocation24 [shape = 's32[1]{0}', space=sflag, size = 0x4, scoped, tag = 'scoped memory for item_embedder_forward.1']
    #allocation25 [shape = 'u8[512]{0}', space=vmem, size = 0x400, scoped, tag = 'input window, operand 17, single buffered']
    #allocation26 [shape = 'u8[512]{0}', space=vmem, size = 0x400, scoped, tag = 'input window, operand 18, single buffered']
    #allocation27 [shape = 's32[1]{0}', space=sflag, size = 0x4, scoped, tag = 'scoped memory for item_embedder_forward.1']
    #allocation28 [shape = 'u8[32768]{0}', space=vmem, size = 0x8000, scoped, tag = 'input window, operand 19, single buffered']
    #allocation29 [shape = 'u8[512]{0}', space=vmem, size = 0x400, scoped, tag = 'input window, operand 20, single buffered']
    #allocation30 [shape = 's32[1]{0}', space=sflag, size = 0x4, scoped, tag = 'scoped memory for item_embedder_forward.1']
    #allocation31 [shape = 'u8[512]{0}', space=vmem, size = 0x400, scoped, tag = 'input window, operand 21, single buffered']
    #allocation32 [shape = 'u8[512]{0}', space=vmem, size = 0x400, scoped, tag = 'input window, operand 22, single buffered']
    #allocation33 [shape = 's32[1]{0}', space=sflag, size = 0x4, scoped, tag = 'scoped memory for item_embedder_forward.1']
    #allocation34 [shape = 'u8[32768]{0}', space=vmem, size = 0x8000, scoped, tag = 'input window, operand 23, single buffered']
    #allocation35 [shape = 'u8[512]{0}', space=vmem, size = 0x400, scoped, tag = 'input window, operand 24, single buffered']
    #allocation36 [shape = 's32[1]{0}', space=sflag, size = 0x4, scoped, tag = 'scoped memory for item_embedder_forward.1']
    #allocation37 [shape = 'u8[512]{0}', space=vmem, size = 0x400, scoped, tag = 'input window, operand 25, single buffered']
    #allocation38 [shape = 'u8[512]{0}', space=vmem, size = 0x400, scoped, tag = 'input window, operand 26, single buffered']
    #allocation39 [shape = 's32[1]{0}', space=sflag, size = 0x4, scoped, tag = 'scoped memory for item_embedder_forward.1']
    #allocation40 [shape = 'u8[32768]{0}', space=vmem, size = 0x8000, scoped, tag = 'input window, operand 27, single buffered']
    #allocation41 [shape = 'u8[512]{0}', space=vmem, size = 0x400, scoped, tag = 'input window, operand 28, single buffered']
    #allocation42 [shape = 's32[1]{0}', space=sflag, size = 0x4, scoped, tag = 'scoped memory for item_embedder_forward.1']
    #allocation43 [shape = 'u8[512]{0}', space=vmem, size = 0x400, scoped, tag = 'input window, operand 29, single buffered']
    #allocation44 [shape = 'u8[512]{0}', space=vmem, size = 0x400, scoped, tag = 'input window, operand 30, single buffered']
    #allocation45 [shape = 's32[1]{0}', space=sflag, size = 0x4, scoped, tag = 'scoped memory for item_embedder_forward.1']
    #allocation46 [shape = 'u8[32768]{0}', space=vmem, size = 0x8000, scoped, tag = 'input window, operand 31, single buffered']
    #allocation47 [shape = 'u8[512]{0}', space=vmem, size = 0x400, scoped, tag = 'input window, operand 32, single buffered']
    #allocation48 [shape = 's32[1]{0}', space=sflag, size = 0x4, scoped, tag = 'scoped memory for item_embedder_forward.1']
    #allocation49 [shape = 'u8[512]{0}', space=vmem, size = 0x400, scoped, tag = 'input window, operand 33, single buffered']
    #allocation50 [shape = 'u8[512]{0}', space=vmem, size = 0x400, scoped, tag = 'input window, operand 34, single buffered']
    #allocation51 [shape = 's32[1]{0}', space=sflag, size = 0x4, scoped, tag = 'scoped memory for item_embedder_forward.1']
    #allocation52 [shape = 'u8[32768]{0}', space=vmem, size = 0x8000, scoped, tag = 'input window, operand 35, single buffered']
    #allocation53 [shape = 'u8[512]{0}', space=vmem, size = 0x400, scoped, tag = 'input window, operand 36, single buffered']
    #allocation54 [shape = 's32[1]{0}', space=sflag, size = 0x4, scoped, tag = 'scoped memory for item_embedder_forward.1']
    #allocation55 [shape = 'u8[512]{0}', space=vmem, size = 0x400, scoped, tag = 'input window, operand 37, single buffered']
    #allocation56 [shape = 'u8[32768]{0}', space=vmem, size = 0x8000, scoped, tag = 'output window, operand 0']
    %88 = vsyncpa [#allocation3], 0
    %89 = vsyncpa [#allocation6], 0
    %90 = vsyncpa [#allocation9], 0
    %91 = vsyncpa [#allocation12], 0
    %92 = vsyncpa [#allocation15], 0
    %93 = vsyncpa [#allocation18], 0
    %94 = vsyncpa [#allocation21], 0
    %95 = vsyncpa [#allocation24], 0
    %96 = vsyncpa [#allocation27], 0
    %97 = vsyncpa [#allocation30], 0
    %98 = vsyncpa [#allocation33], 0
    %99 = vsyncpa [#allocation36], 0
    %100 = vsyncpa [#allocation39], 0
    %101 = vsyncpa [#allocation42], 0
    %102 = vsyncpa [#allocation45], 0
    %103 = vsyncpa [#allocation48], 0
    %104 = vsyncpa [#allocation51], 0
    %105 = vsyncpa [#allocation54], 0
    %106 = vsyncpa [#allocation4], 0
    %s107 = scalar_lea.sflag [#allocation4], 1
    %108 = vsyncpa %s107, 0
    loop: start=0, step=1, limit=4
    $region2: #{item_embedder_forward.1} parent=1 // loop_pre_header
      _
    $region3: #{item_embedder_forward.1} parent=1 // loop_header
      %s110 = sphi 0, %s114
      %p111 = scmp.ge.s32.totalorder %s110, 4
      %s120 = sphi 0, %s122
      %s123 = sphi 0, %s120
      %s124 = sphi 0, %s123
      %s140 = sphi 0, %s124
      %s144 = sphi 0, %s144
      %s146 = sphi 0, %s144
      %s147 = sphi 0, %s146
      %s161 = sphi 0, %s147
      %s165 = sphi 0, %s165
      %s167 = sphi 0, %s165
      %s168 = sphi 0, %s167
      %s182 = sphi 0, %s168
      %s186 = sphi 0, %s186
      %s188 = sphi 0, %s186
      %s189 = sphi 0, %s188
      %s203 = sphi 0, %s189
      %s207 = sphi 0, %s207
      %s209 = sphi 0, %s207
      %s210 = sphi 0, %s209
      %s224 = sphi 0, %s210
      %s228 = sphi 0, %s228
      %s230 = sphi 0, %s228
      %s231 = sphi 0, %s230
      %s245 = sphi 0, %s231
      %s249 = sphi 0, %s249
      %s251 = sphi 0, %s249
      %s252 = sphi 0, %s251
      %s266 = sphi 0, %s252
      %s270 = sphi 0, %s270
      %s272 = sphi 0, %s270
      %s273 = sphi 0, %s272
      %s287 = sphi 0, %s273
      %s291 = sphi 0, %s291
      %s293 = sphi 0, %s291
      %s294 = sphi 0, %s293
      %s308 = sphi 0, %s294
      %s312 = sphi 0, %s312
      %s314 = sphi 0, %s312
      %s315 = sphi 0, %s314
      %s329 = sphi 0, %s315
      %s333 = sphi 0, %s333
      %s335 = sphi 0, %s333
      %s336 = sphi 0, %s335
      %s350 = sphi 0, %s336
      %s354 = sphi 0, %s354
      %s356 = sphi 0, %s354
      %s357 = sphi 0, %s356
      %s371 = sphi 0, %s357
      %s375 = sphi 0, %s375
      %s377 = sphi 0, %s375
      %s378 = sphi 0, %s377
      %s392 = sphi 0, %s378
      %s396 = sphi 0, %s396
      %s398 = sphi 0, %s396
      %s399 = sphi 0, %s398
      %s413 = sphi 0, %s399
      %s417 = sphi 0, %s417
      %s419 = sphi 0, %s417
      %s420 = sphi 0, %s419
      %s434 = sphi 0, %s420
      %s438 = sphi 0, %s438
      %s440 = sphi 0, %s438
      %s441 = sphi 0, %s440
      %s455 = sphi 0, %s441
      %s459 = sphi 0, %s459
      %s461 = sphi 0, %s459
      %s462 = sphi 0, %s461
      %s476 = sphi 0, %s462
      %s480 = sphi 0, %s480
      %s482 = sphi 0, %s480
      %s483 = sphi 0, %s482
      %s497 = sphi 0, %s483
      %s501 = sphi 0, %s501
      %s503 = sphi 0, %s501
      %s504 = sphi 0, %s503
      %s518 = sphi 0, %s504
      %s522 = sphi 0, %s522
      %s524 = sphi 0, %s522
      %s525 = sphi 0, %s524
      %s539 = sphi 0, %s525
      %s543 = sphi 0, %s543
      %s545 = sphi 0, %s543
      %s546 = sphi 0, %s545
      %s560 = sphi 0, %s546
      %s564 = sphi 0, %s564
      %s566 = sphi 0, %s564
      %s567 = sphi 0, %s566
      %s581 = sphi 0, %s567
      %s585 = sphi 0, %s585
      %s587 = sphi 0, %s585
      %s588 = sphi 0, %s587
      %s602 = sphi 0, %s588
      %s606 = sphi 0, %s606
      %s608 = sphi 0, %s606
      %s609 = sphi 0, %s608
      %s623 = sphi 0, %s609
      %s627 = sphi 0, %s627
      %s629 = sphi 0, %s627
      %s630 = sphi 0, %s629
      %s644 = sphi 0, %s630
      %s648 = sphi 0, %s648
      %s650 = sphi 0, %s648
      %s651 = sphi 0, %s650
      %s665 = sphi 0, %s651
      %s669 = sphi 0, %s669
      %s671 = sphi 0, %s669
      %s672 = sphi 0, %s671
      %s686 = sphi 0, %s672
      %s690 = sphi 0, %s690
      %s692 = sphi 0, %s690
      %s693 = sphi 0, %s692
      %s707 = sphi 0, %s693
      %s711 = sphi 0, %s711
      %s713 = sphi 0, %s711
      %s714 = sphi 0, %s713
      %s728 = sphi 0, %s714
      %s732 = sphi 0, %s732
      %s734 = sphi 0, %s732
      %s735 = sphi 0, %s734
      %s749 = sphi 0, %s735
      %s753 = sphi 0, %s753
      %s755 = sphi 0, %s753
      %s756 = sphi 0, %s755
      %s770 = sphi 0, %s756
      %s774 = sphi 0, %s774
      %s776 = sphi 0, %s774
      %s777 = sphi 0, %s776
      %s791 = sphi 0, %s777
      %s795 = sphi 0, %s795
      %s797 = sphi 0, %s795
      %s798 = sphi 0, %s797
      %s812 = sphi 0, %s798
      %s816 = sphi 0, %s816
      %s818 = sphi 0, %s816
      %s819 = sphi 0, %s818
      %s833 = sphi 0, %s819
      %s837 = sphi 0, %s837
      %s839 = sphi 0, %s837
      %s840 = sphi 0, %s839
      %s854 = sphi 0, %s840
      %s858 = sphi 0, %s858
      %s860 = sphi 0, %s858
      %s861 = sphi 0, %s860
      %s875 = sphi 0, %s861
      %s879 = sphi 0, %s879
      %s881 = sphi 0, %s879
      %s882 = sphi 0, %s881
      %s896 = sphi 0, %s882
      %s900 = sphi 0, %s900
      %s902 = sphi 0, %s900
      %s903 = sphi 0, %s902
      %s917 = sphi 0, %s903
      %s921 = sphi 0, %s921
      %s923 = sphi 0, %s921
      %s924 = sphi 0, %s923
      %s938 = sphi 0, %s924
      %s942 = sphi 0, %s942
      %s944 = sphi 0, %s942
      %s945 = sphi 0, %s944
      %s959 = sphi 0, %s945
      %s963 = sphi 0, %s963
      %s965 = sphi 0, %s963
      %s966 = sphi 0, %s965
      %s980 = sphi 0, %s966
      %s986 = sphi 0, %s988
      %s989 = sphi 0, %s986
      %s990 = sphi 0, %s989
      %s1006 = sphi 0, %s990
    $region4: #{item_embedder_forward.1} parent=1 // loop_header_branch
      %113 = sbr.rel (%p111) target = $region8
    $region5: #{item_embedder_forward.1} parent=1 // loop_body
      %s115 = ssub.s32 %s110, 1
      %s116 = ssub.s32 %s110, 2
      %s117 = sadd.s32 %s110, 1
      %s118 = ssub.s32 %s110, %s117
      %p119 = scmp.eq.s32.totalorder %s118, 0
      %s121 = sadd.s32 %s120, 1
      %s122 = scalar_select %p119, %s120, %s121
      %p125 = pneg %p119
      %p126 = scmp.eq.s32.totalorder %s110, 1
      %p127 = por %p125, %p126
      %p128 = scmp.ne.s32.totalorder %s120, %s123
      %p129 = scmp.eq.s32.totalorder %s110, 0
      %p130 = por %p128, %p129
      %p131 = scmp.ne.s32.totalorder %s120, %s123
      %p132 = scmp.eq.s32.totalorder %s115, 1
      %p133 = por %p131, %p132
      %p134 = scmp.ne.s32.totalorder %s123, %s124
      %p135 = scmp.eq.s32.totalorder %s115, 0
      %p136 = por %p134, %p135
      %p137 = scmp.ne.s32.totalorder %s123, %s124
      %p138 = scmp.eq.s32.totalorder %s116, 1
      %p139 = por %p137, %p138
      %p141 = scmp.ne.s32.totalorder %s124, %s140
      %p142 = scmp.eq.s32.totalorder %s116, 0
      %p143 = por %p141, %p142
      %s145 = sadd.s32 %s144, 1
      %p148 = scmp.eq.s32.totalorder %s110, 1
      %p149 = scmp.ne.s32.totalorder %s144, %s146
      %p150 = scmp.eq.s32.totalorder %s110, 0
      %p151 = por %p149, %p150
      %p152 = scmp.ne.s32.totalorder %s144, %s146
      %p153 = scmp.eq.s32.totalorder %s115, 1
      %p154 = por %p152, %p153
      %p155 = scmp.ne.s32.totalorder %s146, %s147
      %p156 = scmp.eq.s32.totalorder %s115, 0
      %p157 = por %p155, %p156
      %p158 = scmp.ne.s32.totalorder %s146, %s147
      %p159 = scmp.eq.s32.totalorder %s116, 1
      %p160 = por %p158, %p159
      %p162 = scmp.ne.s32.totalorder %s147, %s161
      %p163 = scmp.eq.s32.totalorder %s116, 0
      %p164 = por %p162, %p163
      %s166 = sadd.s32 %s165, 1
      %p169 = scmp.eq.s32.totalorder %s110, 1
      %p170 = scmp.ne.s32.totalorder %s165, %s167
      %p171 = scmp.eq.s32.totalorder %s110, 0
      %p172 = por %p170, %p171
      %p173 = scmp.ne.s32.totalorder %s165, %s167
      %p174 = scmp.eq.s32.totalorder %s115, 1
      %p175 = por %p173, %p174
      %p176 = scmp.ne.s32.totalorder %s167, %s168
      %p177 = scmp.eq.s32.totalorder %s115, 0
      %p178 = por %p176, %p177
      %p179 = scmp.ne.s32.totalorder %s167, %s168
      %p180 = scmp.eq.s32.totalorder %s116, 1
      %p181 = por %p179, %p180
      %p183 = scmp.ne.s32.totalorder %s168, %s182
      %p184 = scmp.eq.s32.totalorder %s116, 0
      %p185 = por %p183, %p184
      %s187 = sadd.s32 %s186, 1
      %p190 = scmp.eq.s32.totalorder %s110, 1
      %p191 = scmp.ne.s32.totalorder %s186, %s188
      %p192 = scmp.eq.s32.totalorder %s110, 0
      %p193 = por %p191, %p192
      %p194 = scmp.ne.s32.totalorder %s186, %s188
      %p195 = scmp.eq.s32.totalorder %s115, 1
      %p196 = por %p194, %p195
      %p197 = scmp.ne.s32.totalorder %s188, %s189
      %p198 = scmp.eq.s32.totalorder %s115, 0
      %p199 = por %p197, %p198
      %p200 = scmp.ne.s32.totalorder %s188, %s189
      %p201 = scmp.eq.s32.totalorder %s116, 1
      %p202 = por %p200, %p201
      %p204 = scmp.ne.s32.totalorder %s189, %s203
      %p205 = scmp.eq.s32.totalorder %s116, 0
      %p206 = por %p204, %p205
      %s208 = sadd.s32 %s207, 1
      %p211 = scmp.eq.s32.totalorder %s110, 1
      %p212 = scmp.ne.s32.totalorder %s207, %s209
      %p213 = scmp.eq.s32.totalorder %s110, 0
      %p214 = por %p212, %p213
      %p215 = scmp.ne.s32.totalorder %s207, %s209
      %p216 = scmp.eq.s32.totalorder %s115, 1
      %p217 = por %p215, %p216
      %p218 = scmp.ne.s32.totalorder %s209, %s210
      %p219 = scmp.eq.s32.totalorder %s115, 0
      %p220 = por %p218, %p219
      %p221 = scmp.ne.s32.totalorder %s209, %s210
      %p222 = scmp.eq.s32.totalorder %s116, 1
      %p223 = por %p221, %p222
      %p225 = scmp.ne.s32.totalorder %s210, %s224
      %p226 = scmp.eq.s32.totalorder %s116, 0
      %p227 = por %p225, %p226
      %s229 = sadd.s32 %s228, 1
      %p232 = scmp.eq.s32.totalorder %s110, 1
      %p233 = scmp.ne.s32.totalorder %s228, %s230
      %p234 = scmp.eq.s32.totalorder %s110, 0
      %p235 = por %p233, %p234
      %p236 = scmp.ne.s32.totalorder %s228, %s230
      %p237 = scmp.eq.s32.totalorder %s115, 1
      %p238 = por %p236, %p237
      %p239 = scmp.ne.s32.totalorder %s230, %s231
      %p240 = scmp.eq.s32.totalorder %s115, 0
      %p241 = por %p239, %p240
      %p242 = scmp.ne.s32.totalorder %s230, %s231
      %p243 = scmp.eq.s32.totalorder %s116, 1
      %p244 = por %p242, %p243
      %p246 = scmp.ne.s32.totalorder %s231, %s245
      %p247 = scmp.eq.s32.totalorder %s116, 0
      %p248 = por %p246, %p247
      %s250 = sadd.s32 %s249, 1
      %p253 = scmp.eq.s32.totalorder %s110, 1
      %p254 = scmp.ne.s32.totalorder %s249, %s251
      %p255 = scmp.eq.s32.totalorder %s110, 0
      %p256 = por %p254, %p255
      %p257 = scmp.ne.s32.totalorder %s249, %s251
      %p258 = scmp.eq.s32.totalorder %s115, 1
      %p259 = por %p257, %p258
      %p260 = scmp.ne.s32.totalorder %s251, %s252
      %p261 = scmp.eq.s32.totalorder %s115, 0
      %p262 = por %p260, %p261
      %p263 = scmp.ne.s32.totalorder %s251, %s252
      %p264 = scmp.eq.s32.totalorder %s116, 1
      %p265 = por %p263, %p264
      %p267 = scmp.ne.s32.totalorder %s252, %s266
      %p268 = scmp.eq.s32.totalorder %s116, 0
      %p269 = por %p267, %p268
      %s271 = sadd.s32 %s270, 1
      %p274 = scmp.eq.s32.totalorder %s110, 1
      %p275 = scmp.ne.s32.totalorder %s270, %s272
      %p276 = scmp.eq.s32.totalorder %s110, 0
      %p277 = por %p275, %p276
      %p278 = scmp.ne.s32.totalorder %s270, %s272
      %p279 = scmp.eq.s32.totalorder %s115, 1
      %p280 = por %p278, %p279
      %p281 = scmp.ne.s32.totalorder %s272, %s273
      %p282 = scmp.eq.s32.totalorder %s115, 0
      %p283 = por %p281, %p282
      %p284 = scmp.ne.s32.totalorder %s272, %s273
      %p285 = scmp.eq.s32.totalorder %s116, 1
      %p286 = por %p284, %p285
      %p288 = scmp.ne.s32.totalorder %s273, %s287
      %p289 = scmp.eq.s32.totalorder %s116, 0
      %p290 = por %p288, %p289
      %s292 = sadd.s32 %s291, 1
      %p295 = scmp.eq.s32.totalorder %s110, 1
      %p296 = scmp.ne.s32.totalorder %s291, %s293
      %p297 = scmp.eq.s32.totalorder %s110, 0
      %p298 = por %p296, %p297
      %p299 = scmp.ne.s32.totalorder %s291, %s293
      %p300 = scmp.eq.s32.totalorder %s115, 1
      %p301 = por %p299, %p300
      %p302 = scmp.ne.s32.totalorder %s293, %s294
      %p303 = scmp.eq.s32.totalorder %s115, 0
      %p304 = por %p302, %p303
      %p305 = scmp.ne.s32.totalorder %s293, %s294
      %p306 = scmp.eq.s32.totalorder %s116, 1
      %p307 = por %p305, %p306
      %p309 = scmp.ne.s32.totalorder %s294, %s308
      %p310 = scmp.eq.s32.totalorder %s116, 0
      %p311 = por %p309, %p310
      %s313 = sadd.s32 %s312, 1
      %p316 = scmp.eq.s32.totalorder %s110, 1
      %p317 = scmp.ne.s32.totalorder %s312, %s314
      %p318 = scmp.eq.s32.totalorder %s110, 0
      %p319 = por %p317, %p318
      %p320 = scmp.ne.s32.totalorder %s312, %s314
      %p321 = scmp.eq.s32.totalorder %s115, 1
      %p322 = por %p320, %p321
      %p323 = scmp.ne.s32.totalorder %s314, %s315
      %p324 = scmp.eq.s32.totalorder %s115, 0
      %p325 = por %p323, %p324
      %p326 = scmp.ne.s32.totalorder %s314, %s315
      %p327 = scmp.eq.s32.totalorder %s116, 1
      %p328 = por %p326, %p327
      %p330 = scmp.ne.s32.totalorder %s315, %s329
      %p331 = scmp.eq.s32.totalorder %s116, 0
      %p332 = por %p330, %p331
      %s334 = sadd.s32 %s333, 1
      %p337 = scmp.eq.s32.totalorder %s110, 1
      %p338 = scmp.ne.s32.totalorder %s333, %s335
      %p339 = scmp.eq.s32.totalorder %s110, 0
      %p340 = por %p338, %p339
      %p341 = scmp.ne.s32.totalorder %s333, %s335
      %p342 = scmp.eq.s32.totalorder %s115, 1
      %p343 = por %p341, %p342
      %p344 = scmp.ne.s32.totalorder %s335, %s336
      %p345 = scmp.eq.s32.totalorder %s115, 0
      %p346 = por %p344, %p345
      %p347 = scmp.ne.s32.totalorder %s335, %s336
      %p348 = scmp.eq.s32.totalorder %s116, 1
      %p349 = por %p347, %p348
      %p351 = scmp.ne.s32.totalorder %s336, %s350
      %p352 = scmp.eq.s32.totalorder %s116, 0
      %p353 = por %p351, %p352
      %s355 = sadd.s32 %s354, 1
      %p358 = scmp.eq.s32.totalorder %s110, 1
      %p359 = scmp.ne.s32.totalorder %s354, %s356
      %p360 = scmp.eq.s32.totalorder %s110, 0
      %p361 = por %p359, %p360
      %p362 = scmp.ne.s32.totalorder %s354, %s356
      %p363 = scmp.eq.s32.totalorder %s115, 1
      %p364 = por %p362, %p363
      %p365 = scmp.ne.s32.totalorder %s356, %s357
      %p366 = scmp.eq.s32.totalorder %s115, 0
      %p367 = por %p365, %p366
      %p368 = scmp.ne.s32.totalorder %s356, %s357
      %p369 = scmp.eq.s32.totalorder %s116, 1
      %p370 = por %p368, %p369
      %p372 = scmp.ne.s32.totalorder %s357, %s371
      %p373 = scmp.eq.s32.totalorder %s116, 0
      %p374 = por %p372, %p373
      %s376 = sadd.s32 %s375, 1
      %p379 = scmp.eq.s32.totalorder %s110, 1
      %p380 = scmp.ne.s32.totalorder %s375, %s377
      %p381 = scmp.eq.s32.totalorder %s110, 0
      %p382 = por %p380, %p381
      %p383 = scmp.ne.s32.totalorder %s375, %s377
      %p384 = scmp.eq.s32.totalorder %s115, 1
      %p385 = por %p383, %p384
      %p386 = scmp.ne.s32.totalorder %s377, %s378
      %p387 = scmp.eq.s32.totalorder %s115, 0
      %p388 = por %p386, %p387
      %p389 = scmp.ne.s32.totalorder %s377, %s378
      %p390 = scmp.eq.s32.totalorder %s116, 1
      %p391 = por %p389, %p390
      %p393 = scmp.ne.s32.totalorder %s378, %s392
      %p394 = scmp.eq.s32.totalorder %s116, 0
      %p395 = por %p393, %p394
      %s397 = sadd.s32 %s396, 1
      %p400 = scmp.eq.s32.totalorder %s110, 1
      %p401 = scmp.ne.s32.totalorder %s396, %s398
      %p402 = scmp.eq.s32.totalorder %s110, 0
      %p403 = por %p401, %p402
      %p404 = scmp.ne.s32.totalorder %s396, %s398
      %p405 = scmp.eq.s32.totalorder %s115, 1
      %p406 = por %p404, %p405
      %p407 = scmp.ne.s32.totalorder %s398, %s399
      %p408 = scmp.eq.s32.totalorder %s115, 0
      %p409 = por %p407, %p408
      %p410 = scmp.ne.s32.totalorder %s398, %s399
      %p411 = scmp.eq.s32.totalorder %s116, 1
      %p412 = por %p410, %p411
      %p414 = scmp.ne.s32.totalorder %s399, %s413
      %p415 = scmp.eq.s32.totalorder %s116, 0
      %p416 = por %p414, %p415
      %s418 = sadd.s32 %s417, 1
      %p421 = scmp.eq.s32.totalorder %s110, 1
      %p422 = scmp.ne.s32.totalorder %s417, %s419
      %p423 = scmp.eq.s32.totalorder %s110, 0
      %p424 = por %p422, %p423
      %p425 = scmp.ne.s32.totalorder %s417, %s419
      %p426 = scmp.eq.s32.totalorder %s115, 1
      %p427 = por %p425, %p426
      %p428 = scmp.ne.s32.totalorder %s419, %s420
      %p429 = scmp.eq.s32.totalorder %s115, 0
      %p430 = por %p428, %p429
      %p431 = scmp.ne.s32.totalorder %s419, %s420
      %p432 = scmp.eq.s32.totalorder %s116, 1
      %p433 = por %p431, %p432
      %p435 = scmp.ne.s32.totalorder %s420, %s434
      %p436 = scmp.eq.s32.totalorder %s116, 0
      %p437 = por %p435, %p436
      %s439 = sadd.s32 %s438, 1
      %p442 = scmp.eq.s32.totalorder %s110, 1
      %p443 = scmp.ne.s32.totalorder %s438, %s440
      %p444 = scmp.eq.s32.totalorder %s110, 0
      %p445 = por %p443, %p444
      %p446 = scmp.ne.s32.totalorder %s438, %s440
      %p447 = scmp.eq.s32.totalorder %s115, 1
      %p448 = por %p446, %p447
      %p449 = scmp.ne.s32.totalorder %s440, %s441
      %p450 = scmp.eq.s32.totalorder %s115, 0
      %p451 = por %p449, %p450
      %p452 = scmp.ne.s32.totalorder %s440, %s441
      %p453 = scmp.eq.s32.totalorder %s116, 1
      %p454 = por %p452, %p453
      %p456 = scmp.ne.s32.totalorder %s441, %s455
      %p457 = scmp.eq.s32.totalorder %s116, 0
      %p458 = por %p456, %p457
      %s460 = sadd.s32 %s459, 1
      %p463 = scmp.eq.s32.totalorder %s110, 1
      %p464 = scmp.ne.s32.totalorder %s459, %s461
      %p465 = scmp.eq.s32.totalorder %s110, 0
      %p466 = por %p464, %p465
      %p467 = scmp.ne.s32.totalorder %s459, %s461
      %p468 = scmp.eq.s32.totalorder %s115, 1
      %p469 = por %p467, %p468
      %p470 = scmp.ne.s32.totalorder %s461, %s462
      %p471 = scmp.eq.s32.totalorder %s115, 0
      %p472 = por %p470, %p471
      %p473 = scmp.ne.s32.totalorder %s461, %s462
      %p474 = scmp.eq.s32.totalorder %s116, 1
      %p475 = por %p473, %p474
      %p477 = scmp.ne.s32.totalorder %s462, %s476
      %p478 = scmp.eq.s32.totalorder %s116, 0
      %p479 = por %p477, %p478
      %s481 = sadd.s32 %s480, 1
      %p484 = scmp.eq.s32.totalorder %s110, 1
      %p485 = scmp.ne.s32.totalorder %s480, %s482
      %p486 = scmp.eq.s32.totalorder %s110, 0
      %p487 = por %p485, %p486
      %p488 = scmp.ne.s32.totalorder %s480, %s482
      %p489 = scmp.eq.s32.totalorder %s115, 1
      %p490 = por %p488, %p489
      %p491 = scmp.ne.s32.totalorder %s482, %s483
      %p492 = scmp.eq.s32.totalorder %s115, 0
      %p493 = por %p491, %p492
      %p494 = scmp.ne.s32.totalorder %s482, %s483
      %p495 = scmp.eq.s32.totalorder %s116, 1
      %p496 = por %p494, %p495
      %p498 = scmp.ne.s32.totalorder %s483, %s497
      %p499 = scmp.eq.s32.totalorder %s116, 0
      %p500 = por %p498, %p499
      %s502 = sadd.s32 %s501, 1
      %p505 = scmp.eq.s32.totalorder %s110, 1
      %p506 = scmp.ne.s32.totalorder %s501, %s503
      %p507 = scmp.eq.s32.totalorder %s110, 0
      %p508 = por %p506, %p507
      %p509 = scmp.ne.s32.totalorder %s501, %s503
      %p510 = scmp.eq.s32.totalorder %s115, 1
      %p511 = por %p509, %p510
      %p512 = scmp.ne.s32.totalorder %s503, %s504
      %p513 = scmp.eq.s32.totalorder %s115, 0
      %p514 = por %p512, %p513
      %p515 = scmp.ne.s32.totalorder %s503, %s504
      %p516 = scmp.eq.s32.totalorder %s116, 1
      %p517 = por %p515, %p516
      %p519 = scmp.ne.s32.totalorder %s504, %s518
      %p520 = scmp.eq.s32.totalorder %s116, 0
      %p521 = por %p519, %p520
      %s523 = sadd.s32 %s522, 1
      %p526 = scmp.eq.s32.totalorder %s110, 1
      %p527 = scmp.ne.s32.totalorder %s522, %s524
      %p528 = scmp.eq.s32.totalorder %s110, 0
      %p529 = por %p527, %p528
      %p530 = scmp.ne.s32.totalorder %s522, %s524
      %p531 = scmp.eq.s32.totalorder %s115, 1
      %p532 = por %p530, %p531
      %p533 = scmp.ne.s32.totalorder %s524, %s525
      %p534 = scmp.eq.s32.totalorder %s115, 0
      %p535 = por %p533, %p534
      %p536 = scmp.ne.s32.totalorder %s524, %s525
      %p537 = scmp.eq.s32.totalorder %s116, 1
      %p538 = por %p536, %p537
      %p540 = scmp.ne.s32.totalorder %s525, %s539
      %p541 = scmp.eq.s32.totalorder %s116, 0
      %p542 = por %p540, %p541
      %s544 = sadd.s32 %s543, 1
      %p547 = scmp.eq.s32.totalorder %s110, 1
      %p548 = scmp.ne.s32.totalorder %s543, %s545
      %p549 = scmp.eq.s32.totalorder %s110, 0
      %p550 = por %p548, %p549
      %p551 = scmp.ne.s32.totalorder %s543, %s545
      %p552 = scmp.eq.s32.totalorder %s115, 1
      %p553 = por %p551, %p552
      %p554 = scmp.ne.s32.totalorder %s545, %s546
      %p555 = scmp.eq.s32.totalorder %s115, 0
      %p556 = por %p554, %p555
      %p557 = scmp.ne.s32.totalorder %s545, %s546
      %p558 = scmp.eq.s32.totalorder %s116, 1
      %p559 = por %p557, %p558
      %p561 = scmp.ne.s32.totalorder %s546, %s560
      %p562 = scmp.eq.s32.totalorder %s116, 0
      %p563 = por %p561, %p562
      %s565 = sadd.s32 %s564, 1
      %p568 = scmp.eq.s32.totalorder %s110, 1
      %p569 = scmp.ne.s32.totalorder %s564, %s566
      %p570 = scmp.eq.s32.totalorder %s110, 0
      %p571 = por %p569, %p570
      %p572 = scmp.ne.s32.totalorder %s564, %s566
      %p573 = scmp.eq.s32.totalorder %s115, 1
      %p574 = por %p572, %p573
      %p575 = scmp.ne.s32.totalorder %s566, %s567
      %p576 = scmp.eq.s32.totalorder %s115, 0
      %p577 = por %p575, %p576
      %p578 = scmp.ne.s32.totalorder %s566, %s567
      %p579 = scmp.eq.s32.totalorder %s116, 1
      %p580 = por %p578, %p579
      %p582 = scmp.ne.s32.totalorder %s567, %s581
      %p583 = scmp.eq.s32.totalorder %s116, 0
      %p584 = por %p582, %p583
      %s586 = sadd.s32 %s585, 1
      %p589 = scmp.eq.s32.totalorder %s110, 1
      %p590 = scmp.ne.s32.totalorder %s585, %s587
      %p591 = scmp.eq.s32.totalorder %s110, 0
      %p592 = por %p590, %p591
      %p593 = scmp.ne.s32.totalorder %s585, %s587
      %p594 = scmp.eq.s32.totalorder %s115, 1
      %p595 = por %p593, %p594
      %p596 = scmp.ne.s32.totalorder %s587, %s588
      %p597 = scmp.eq.s32.totalorder %s115, 0
      %p598 = por %p596, %p597
      %p599 = scmp.ne.s32.totalorder %s587, %s588
      %p600 = scmp.eq.s32.totalorder %s116, 1
      %p601 = por %p599, %p600
      %p603 = scmp.ne.s32.totalorder %s588, %s602
      %p604 = scmp.eq.s32.totalorder %s116, 0
      %p605 = por %p603, %p604
      %s607 = sadd.s32 %s606, 1
      %p610 = scmp.eq.s32.totalorder %s110, 1
      %p611 = scmp.ne.s32.totalorder %s606, %s608
      %p612 = scmp.eq.s32.totalorder %s110, 0
      %p613 = por %p611, %p612
      %p614 = scmp.ne.s32.totalorder %s606, %s608
      %p615 = scmp.eq.s32.totalorder %s115, 1
      %p616 = por %p614, %p615
      %p617 = scmp.ne.s32.totalorder %s608, %s609
      %p618 = scmp.eq.s32.totalorder %s115, 0
      %p619 = por %p617, %p618
      %p620 = scmp.ne.s32.totalorder %s608, %s609
      %p621 = scmp.eq.s32.totalorder %s116, 1
      %p622 = por %p620, %p621
      %p624 = scmp.ne.s32.totalorder %s609, %s623
      %p625 = scmp.eq.s32.totalorder %s116, 0
      %p626 = por %p624, %p625
      %s628 = sadd.s32 %s627, 1
      %p631 = scmp.eq.s32.totalorder %s110, 1
      %p632 = scmp.ne.s32.totalorder %s627, %s629
      %p633 = scmp.eq.s32.totalorder %s110, 0
      %p634 = por %p632, %p633
      %p635 = scmp.ne.s32.totalorder %s627, %s629
      %p636 = scmp.eq.s32.totalorder %s115, 1
      %p637 = por %p635, %p636
      %p638 = scmp.ne.s32.totalorder %s629, %s630
      %p639 = scmp.eq.s32.totalorder %s115, 0
      %p640 = por %p638, %p639
      %p641 = scmp.ne.s32.totalorder %s629, %s630
      %p642 = scmp.eq.s32.totalorder %s116, 1
      %p643 = por %p641, %p642
      %p645 = scmp.ne.s32.totalorder %s630, %s644
      %p646 = scmp.eq.s32.totalorder %s116, 0
      %p647 = por %p645, %p646
      %s649 = sadd.s32 %s648, 1
      %p652 = scmp.eq.s32.totalorder %s110, 1
      %p653 = scmp.ne.s32.totalorder %s648, %s650
      %p654 = scmp.eq.s32.totalorder %s110, 0
      %p655 = por %p653, %p654
      %p656 = scmp.ne.s32.totalorder %s648, %s650
      %p657 = scmp.eq.s32.totalorder %s115, 1
      %p658 = por %p656, %p657
      %p659 = scmp.ne.s32.totalorder %s650, %s651
      %p660 = scmp.eq.s32.totalorder %s115, 0
      %p661 = por %p659, %p660
      %p662 = scmp.ne.s32.totalorder %s650, %s651
      %p663 = scmp.eq.s32.totalorder %s116, 1
      %p664 = por %p662, %p663
      %p666 = scmp.ne.s32.totalorder %s651, %s665
      %p667 = scmp.eq.s32.totalorder %s116, 0
      %p668 = por %p666, %p667
      %s670 = sadd.s32 %s669, 1
      %p673 = scmp.eq.s32.totalorder %s110, 1
      %p674 = scmp.ne.s32.totalorder %s669, %s671
      %p675 = scmp.eq.s32.totalorder %s110, 0
      %p676 = por %p674, %p675
      %p677 = scmp.ne.s32.totalorder %s669, %s671
      %p678 = scmp.eq.s32.totalorder %s115, 1
      %p679 = por %p677, %p678
      %p680 = scmp.ne.s32.totalorder %s671, %s672
      %p681 = scmp.eq.s32.totalorder %s115, 0
      %p682 = por %p680, %p681
      %p683 = scmp.ne.s32.totalorder %s671, %s672
      %p684 = scmp.eq.s32.totalorder %s116, 1
      %p685 = por %p683, %p684
      %p687 = scmp.ne.s32.totalorder %s672, %s686
      %p688 = scmp.eq.s32.totalorder %s116, 0
      %p689 = por %p687, %p688
      %s691 = sadd.s32 %s690, 1
      %p694 = scmp.eq.s32.totalorder %s110, 1
      %p695 = scmp.ne.s32.totalorder %s690, %s692
      %p696 = scmp.eq.s32.totalorder %s110, 0
      %p697 = por %p695, %p696
      %p698 = scmp.ne.s32.totalorder %s690, %s692
      %p699 = scmp.eq.s32.totalorder %s115, 1
      %p700 = por %p698, %p699
      %p701 = scmp.ne.s32.totalorder %s692, %s693
      %p702 = scmp.eq.s32.totalorder %s115, 0
      %p703 = por %p701, %p702
      %p704 = scmp.ne.s32.totalorder %s692, %s693
      %p705 = scmp.eq.s32.totalorder %s116, 1
      %p706 = por %p704, %p705
      %p708 = scmp.ne.s32.totalorder %s693, %s707
      %p709 = scmp.eq.s32.totalorder %s116, 0
      %p710 = por %p708, %p709
      %s712 = sadd.s32 %s711, 1
      %p715 = scmp.eq.s32.totalorder %s110, 1
      %p716 = scmp.ne.s32.totalorder %s711, %s713
      %p717 = scmp.eq.s32.totalorder %s110, 0
      %p718 = por %p716, %p717
      %p719 = scmp.ne.s32.totalorder %s711, %s713
      %p720 = scmp.eq.s32.totalorder %s115, 1
      %p721 = por %p719, %p720
      %p722 = scmp.ne.s32.totalorder %s713, %s714
      %p723 = scmp.eq.s32.totalorder %s115, 0
      %p724 = por %p722, %p723
      %p725 = scmp.ne.s32.totalorder %s713, %s714
      %p726 = scmp.eq.s32.totalorder %s116, 1
      %p727 = por %p725, %p726
      %p729 = scmp.ne.s32.totalorder %s714, %s728
      %p730 = scmp.eq.s32.totalorder %s116, 0
      %p731 = por %p729, %p730
      %s733 = sadd.s32 %s732, 1
      %p736 = scmp.eq.s32.totalorder %s110, 1
      %p737 = scmp.ne.s32.totalorder %s732, %s734
      %p738 = scmp.eq.s32.totalorder %s110, 0
      %p739 = por %p737, %p738
      %p740 = scmp.ne.s32.totalorder %s732, %s734
      %p741 = scmp.eq.s32.totalorder %s115, 1
      %p742 = por %p740, %p741
      %p743 = scmp.ne.s32.totalorder %s734, %s735
      %p744 = scmp.eq.s32.totalorder %s115, 0
      %p745 = por %p743, %p744
      %p746 = scmp.ne.s32.totalorder %s734, %s735
      %p747 = scmp.eq.s32.totalorder %s116, 1
      %p748 = por %p746, %p747
      %p750 = scmp.ne.s32.totalorder %s735, %s749
      %p751 = scmp.eq.s32.totalorder %s116, 0
      %p752 = por %p750, %p751
      %s754 = sadd.s32 %s753, 1
      %p757 = scmp.eq.s32.totalorder %s110, 1
      %p758 = scmp.ne.s32.totalorder %s753, %s755
      %p759 = scmp.eq.s32.totalorder %s110, 0
      %p760 = por %p758, %p759
      %p761 = scmp.ne.s32.totalorder %s753, %s755
      %p762 = scmp.eq.s32.totalorder %s115, 1
      %p763 = por %p761, %p762
      %p764 = scmp.ne.s32.totalorder %s755, %s756
      %p765 = scmp.eq.s32.totalorder %s115, 0
      %p766 = por %p764, %p765
      %p767 = scmp.ne.s32.totalorder %s755, %s756
      %p768 = scmp.eq.s32.totalorder %s116, 1
      %p769 = por %p767, %p768
      %p771 = scmp.ne.s32.totalorder %s756, %s770
      %p772 = scmp.eq.s32.totalorder %s116, 0
      %p773 = por %p771, %p772
      %s775 = sadd.s32 %s774, 1
      %p778 = scmp.eq.s32.totalorder %s110, 1
      %p779 = scmp.ne.s32.totalorder %s774, %s776
      %p780 = scmp.eq.s32.totalorder %s110, 0
      %p781 = por %p779, %p780
      %p782 = scmp.ne.s32.totalorder %s774, %s776
      %p783 = scmp.eq.s32.totalorder %s115, 1
      %p784 = por %p782, %p783
      %p785 = scmp.ne.s32.totalorder %s776, %s777
      %p786 = scmp.eq.s32.totalorder %s115, 0
      %p787 = por %p785, %p786
      %p788 = scmp.ne.s32.totalorder %s776, %s777
      %p789 = scmp.eq.s32.totalorder %s116, 1
      %p790 = por %p788, %p789
      %p792 = scmp.ne.s32.totalorder %s777, %s791
      %p793 = scmp.eq.s32.totalorder %s116, 0
      %p794 = por %p792, %p793
      %s796 = sadd.s32 %s795, 1
      %p799 = scmp.eq.s32.totalorder %s110, 1
      %p800 = scmp.ne.s32.totalorder %s795, %s797
      %p801 = scmp.eq.s32.totalorder %s110, 0
      %p802 = por %p800, %p801
      %p803 = scmp.ne.s32.totalorder %s795, %s797
      %p804 = scmp.eq.s32.totalorder %s115, 1
      %p805 = por %p803, %p804
      %p806 = scmp.ne.s32.totalorder %s797, %s798
      %p807 = scmp.eq.s32.totalorder %s115, 0
      %p808 = por %p806, %p807
      %p809 = scmp.ne.s32.totalorder %s797, %s798
      %p810 = scmp.eq.s32.totalorder %s116, 1
      %p811 = por %p809, %p810
      %p813 = scmp.ne.s32.totalorder %s798, %s812
      %p814 = scmp.eq.s32.totalorder %s116, 0
      %p815 = por %p813, %p814
      %s817 = sadd.s32 %s816, 1
      %p820 = scmp.eq.s32.totalorder %s110, 1
      %p821 = scmp.ne.s32.totalorder %s816, %s818
      %p822 = scmp.eq.s32.totalorder %s110, 0
      %p823 = por %p821, %p822
      %p824 = scmp.ne.s32.totalorder %s816, %s818
      %p825 = scmp.eq.s32.totalorder %s115, 1
      %p826 = por %p824, %p825
      %p827 = scmp.ne.s32.totalorder %s818, %s819
      %p828 = scmp.eq.s32.totalorder %s115, 0
      %p829 = por %p827, %p828
      %p830 = scmp.ne.s32.totalorder %s818, %s819
      %p831 = scmp.eq.s32.totalorder %s116, 1
      %p832 = por %p830, %p831
      %p834 = scmp.ne.s32.totalorder %s819, %s833
      %p835 = scmp.eq.s32.totalorder %s116, 0
      %p836 = por %p834, %p835
      %s838 = sadd.s32 %s837, 1
      %p841 = scmp.eq.s32.totalorder %s110, 1
      %p842 = scmp.ne.s32.totalorder %s837, %s839
      %p843 = scmp.eq.s32.totalorder %s110, 0
      %p844 = por %p842, %p843
      %p845 = scmp.ne.s32.totalorder %s837, %s839
      %p846 = scmp.eq.s32.totalorder %s115, 1
      %p847 = por %p845, %p846
      %p848 = scmp.ne.s32.totalorder %s839, %s840
      %p849 = scmp.eq.s32.totalorder %s115, 0
      %p850 = por %p848, %p849
      %p851 = scmp.ne.s32.totalorder %s839, %s840
      %p852 = scmp.eq.s32.totalorder %s116, 1
      %p853 = por %p851, %p852
      %p855 = scmp.ne.s32.totalorder %s840, %s854
      %p856 = scmp.eq.s32.totalorder %s116, 0
      %p857 = por %p855, %p856
      %s859 = sadd.s32 %s858, 1
      %p862 = scmp.eq.s32.totalorder %s110, 1
      %p863 = scmp.ne.s32.totalorder %s858, %s860
      %p864 = scmp.eq.s32.totalorder %s110, 0
      %p865 = por %p863, %p864
      %p866 = scmp.ne.s32.totalorder %s858, %s860
      %p867 = scmp.eq.s32.totalorder %s115, 1
      %p868 = por %p866, %p867
      %p869 = scmp.ne.s32.totalorder %s860, %s861
      %p870 = scmp.eq.s32.totalorder %s115, 0
      %p871 = por %p869, %p870
      %p872 = scmp.ne.s32.totalorder %s860, %s861
      %p873 = scmp.eq.s32.totalorder %s116, 1
      %p874 = por %p872, %p873
      %p876 = scmp.ne.s32.totalorder %s861, %s875
      %p877 = scmp.eq.s32.totalorder %s116, 0
      %p878 = por %p876, %p877
      %s880 = sadd.s32 %s879, 1
      %p883 = scmp.eq.s32.totalorder %s110, 1
      %p884 = scmp.ne.s32.totalorder %s879, %s881
      %p885 = scmp.eq.s32.totalorder %s110, 0
      %p886 = por %p884, %p885
      %p887 = scmp.ne.s32.totalorder %s879, %s881
      %p888 = scmp.eq.s32.totalorder %s115, 1
      %p889 = por %p887, %p888
      %p890 = scmp.ne.s32.totalorder %s881, %s882
      %p891 = scmp.eq.s32.totalorder %s115, 0
      %p892 = por %p890, %p891
      %p893 = scmp.ne.s32.totalorder %s881, %s882
      %p894 = scmp.eq.s32.totalorder %s116, 1
      %p895 = por %p893, %p894
      %p897 = scmp.ne.s32.totalorder %s882, %s896
      %p898 = scmp.eq.s32.totalorder %s116, 0
      %p899 = por %p897, %p898
      %s901 = sadd.s32 %s900, 1
      %p904 = scmp.eq.s32.totalorder %s110, 1
      %p905 = scmp.ne.s32.totalorder %s900, %s902
      %p906 = scmp.eq.s32.totalorder %s110, 0
      %p907 = por %p905, %p906
      %p908 = scmp.ne.s32.totalorder %s900, %s902
      %p909 = scmp.eq.s32.totalorder %s115, 1
      %p910 = por %p908, %p909
      %p911 = scmp.ne.s32.totalorder %s902, %s903
      %p912 = scmp.eq.s32.totalorder %s115, 0
      %p913 = por %p911, %p912
      %p914 = scmp.ne.s32.totalorder %s902, %s903
      %p915 = scmp.eq.s32.totalorder %s116, 1
      %p916 = por %p914, %p915
      %p918 = scmp.ne.s32.totalorder %s903, %s917
      %p919 = scmp.eq.s32.totalorder %s116, 0
      %p920 = por %p918, %p919
      %s922 = sadd.s32 %s921, 1
      %p925 = scmp.eq.s32.totalorder %s110, 1
      %p926 = scmp.ne.s32.totalorder %s921, %s923
      %p927 = scmp.eq.s32.totalorder %s110, 0
      %p928 = por %p926, %p927
      %p929 = scmp.ne.s32.totalorder %s921, %s923
      %p930 = scmp.eq.s32.totalorder %s115, 1
      %p931 = por %p929, %p930
      %p932 = scmp.ne.s32.totalorder %s923, %s924
      %p933 = scmp.eq.s32.totalorder %s115, 0
      %p934 = por %p932, %p933
      %p935 = scmp.ne.s32.totalorder %s923, %s924
      %p936 = scmp.eq.s32.totalorder %s116, 1
      %p937 = por %p935, %p936
      %p939 = scmp.ne.s32.totalorder %s924, %s938
      %p940 = scmp.eq.s32.totalorder %s116, 0
      %p941 = por %p939, %p940
      %s943 = sadd.s32 %s942, 1
      %p946 = scmp.eq.s32.totalorder %s110, 1
      %p947 = scmp.ne.s32.totalorder %s942, %s944
      %p948 = scmp.eq.s32.totalorder %s110, 0
      %p949 = por %p947, %p948
      %p950 = scmp.ne.s32.totalorder %s942, %s944
      %p951 = scmp.eq.s32.totalorder %s115, 1
      %p952 = por %p950, %p951
      %p953 = scmp.ne.s32.totalorder %s944, %s945
      %p954 = scmp.eq.s32.totalorder %s115, 0
      %p955 = por %p953, %p954
      %p956 = scmp.ne.s32.totalorder %s944, %s945
      %p957 = scmp.eq.s32.totalorder %s116, 1
      %p958 = por %p956, %p957
      %p960 = scmp.ne.s32.totalorder %s945, %s959
      %p961 = scmp.eq.s32.totalorder %s116, 0
      %p962 = por %p960, %p961
      %s964 = sadd.s32 %s963, 1
      %p967 = scmp.eq.s32.totalorder %s110, 1
      %p968 = scmp.ne.s32.totalorder %s963, %s965
      %p969 = scmp.eq.s32.totalorder %s110, 0
      %p970 = por %p968, %p969
      %p971 = scmp.ne.s32.totalorder %s963, %s965
      %p972 = scmp.eq.s32.totalorder %s115, 1
      %p973 = por %p971, %p972
      %p974 = scmp.ne.s32.totalorder %s965, %s966
      %p975 = scmp.eq.s32.totalorder %s115, 0
      %p976 = por %p974, %p975
      %p977 = scmp.ne.s32.totalorder %s965, %s966
      %p978 = scmp.eq.s32.totalorder %s116, 1
      %p979 = por %p977, %p978
      %p981 = scmp.ne.s32.totalorder %s966, %s980
      %p982 = scmp.eq.s32.totalorder %s116, 0
      %p983 = por %p981, %p982
      %s984 = ssub.s32 %s110, %s117
      %p985 = scmp.eq.s32.totalorder %s984, 0
      %s987 = sadd.s32 %s986, 1
      %s988 = scalar_select %p985, %s986, %s987
      %p991 = pneg %p985
      %p992 = scmp.eq.s32.totalorder %s110, 1
      %p993 = por %p991, %p992
      %p994 = scmp.ne.s32.totalorder %s986, %s989
      %p995 = scmp.eq.s32.totalorder %s110, 0
      %p996 = por %p994, %p995
      %p997 = scmp.ne.s32.totalorder %s986, %s989
      %p998 = scmp.eq.s32.totalorder %s115, 1
      %p999 = por %p997, %p998
      %p1000 = scmp.ne.s32.totalorder %s989, %s990
      %p1001 = scmp.eq.s32.totalorder %s115, 0
      %p1002 = por %p1000, %p1001
      %p1003 = scmp.ne.s32.totalorder %s989, %s990
      %p1004 = scmp.eq.s32.totalorder %s116, 1
      %p1005 = por %p1003, %p1004
      %p1007 = scmp.ne.s32.totalorder %s990, %s1006
      %p1008 = scmp.eq.s32.totalorder %s116, 0
      %p1009 = por %p1007, %p1008
      %p1010 = scmp.le.s32.totalorder 1, %s110
      %p1011 = scmp.lt.s32.totalorder %s110, 3
      %p1012 = pnand %p1010, %p1011
      %p1013 = pneg %p1012
      // Predicated region
      $region9: #{item_embedder_forward.1} parent=5 // pred_check
        _
      $region10: #{item_embedder_forward.1} parent=5 // pred_check_branch
        %1015 = sbr.rel (%p1012) target = $region12
      $region11: #{item_embedder_forward.1} parent=5 // pred_region
        %s1016 = ssub.s32 %s110, 1
        // Predicated region
        $region13: #{item_embedder_forward.1} parent=11 // pred_check
          %p1017 = pneg %p157
        $region14: #{item_embedder_forward.1} parent=11 // pred_check_branch
          %1019 = sbr.rel (%p1017) target = $region16
        $region15: #{item_embedder_forward.1} parent=11 // pred_region
          _
        $region16: #{item_embedder_forward.1} parent=11 // pred_fallthru
          _
        // Predicated region
        $region17: #{item_embedder_forward.1} parent=11 // pred_check
          %p1020 = pneg %p178
        $region18: #{item_embedder_forward.1} parent=11 // pred_check_branch
          %1022 = sbr.rel (%p1020) target = $region20
        $region19: #{item_embedder_forward.1} parent=11 // pred_region
          %s1024 = ssub.s32 32, 32
          %1025 = vsyncadd [#allocation3], %s1024
          %s1027 = sshll.u32 [#allocation2], 4
          %s1028 = int_to_ptr.vmem [resolvable:$true] %s1027
          %1030 = dma.hbm_to_vmem [thread:$0]  %s5, 32, %s1028, [#allocation3]
        $region20: #{item_embedder_forward.1} parent=11 // pred_fallthru
          _
        // Predicated region
        $region21: #{item_embedder_forward.1} parent=11 // pred_check
          %p1031 = pneg %p199
        $region22: #{item_embedder_forward.1} parent=11 // pred_check_branch
          %1033 = sbr.rel (%p1031) target = $region24
        $region23: #{item_embedder_forward.1} parent=11 // pred_region
          _
        $region24: #{item_embedder_forward.1} parent=11 // pred_fallthru
          _
        // Predicated region
        $region25: #{item_embedder_forward.1} parent=11 // pred_check
          %p1034 = pneg %p220
        $region26: #{item_embedder_forward.1} parent=11 // pred_check_branch
          %1036 = sbr.rel (%p1034) target = $region28
        $region27: #{item_embedder_forward.1} parent=11 // pred_region
          %s1038 = ssub.s32 32, 32
          %1039 = vsyncadd [#allocation6], %s1038
          %s1041 = sshll.u32 [#allocation5], 4
          %s1042 = int_to_ptr.vmem [resolvable:$true] %s1041
          %1044 = dma.hbm_to_vmem [thread:$0]  %s9, 32, %s1042, [#allocation6]
        $region28: #{item_embedder_forward.1} parent=11 // pred_fallthru
          _
        // Predicated region
        $region29: #{item_embedder_forward.1} parent=11 // pred_check
          %p1045 = pneg %p241
        $region30: #{item_embedder_forward.1} parent=11 // pred_check_branch
          %1047 = sbr.rel (%p1045) target = $region32
        $region31: #{item_embedder_forward.1} parent=11 // pred_region
          %s1049 = ssub.s32 32, 32
          %1050 = vsyncadd [#allocation6], %s1049
          %s1052 = sshll.u32 [#allocation7], 4
          %s1053 = int_to_ptr.vmem [resolvable:$true] %s1052
          %1055 = dma.hbm_to_vmem [thread:$0]  %s11, 32, %s1053, [#allocation6]
        $region32: #{item_embedder_forward.1} parent=11 // pred_fallthru
          _
        // Predicated region
        $region33: #{item_embedder_forward.1} parent=11 // pred_check
          %p1056 = pneg %p262
        $region34: #{item_embedder_forward.1} parent=11 // pred_check_branch
          %1058 = sbr.rel (%p1056) target = $region36
        $region35: #{item_embedder_forward.1} parent=11 // pred_region
          %s1060 = ssub.s32 32, 32
          %1061 = vsyncadd [#allocation9], %s1060
          %s1063 = sshll.u32 [#allocation8], 4
          %s1064 = int_to_ptr.vmem [resolvable:$true] %s1063
          %1066 = dma.hbm_to_vmem [thread:$0]  %s13, 32, %s1064, [#allocation9]
        $region36: #{item_embedder_forward.1} parent=11 // pred_fallthru
          _
        // Predicated region
        $region37: #{item_embedder_forward.1} parent=11 // pred_check
          %p1067 = pneg %p283
        $region38: #{item_embedder_forward.1} parent=11 // pred_check_branch
          %1069 = sbr.rel (%p1067) target = $region40
        $region39: #{item_embedder_forward.1} parent=11 // pred_region
          %s1071 = ssub.s32 2048, 2048
          %1072 = vsyncadd [#allocation9], %s1071
          %s1073 = sshll.u32 [#allocation10], 4
          %s1074 = int_to_ptr.vmem [resolvable:$true] %s1073
          %1079 = dma.hbm_to_vmem [thread:$0]  %s15, 2048, %s1074, [#allocation9], 64, 64, 4
        $region40: #{item_embedder_forward.1} parent=11 // pred_fallthru
          _
        // Predicated region
        $region41: #{item_embedder_forward.1} parent=11 // pred_check
          %p1080 = pneg %p304
        $region42: #{item_embedder_forward.1} parent=11 // pred_check_branch
          %1082 = sbr.rel (%p1080) target = $region44
        $region43: #{item_embedder_forward.1} parent=11 // pred_region
          %s1084 = ssub.s32 16, 16
          %1085 = vsyncadd [#allocation12], %s1084
          %s1087 = sshll.u32 [#allocation11], 4
          %s1088 = int_to_ptr.vmem [resolvable:$true] %s1087
          %1090 = dma.hbm_to_vmem [thread:$0]  %s17, 16, %s1088, [#allocation12]
        $region44: #{item_embedder_forward.1} parent=11 // pred_fallthru
          _
        // Predicated region
        $region45: #{item_embedder_forward.1} parent=11 // pred_check
          %p1091 = pneg %p325
        $region46: #{item_embedder_forward.1} parent=11 // pred_check_branch
          %1093 = sbr.rel (%p1091) target = $region48
        $region47: #{item_embedder_forward.1} parent=11 // pred_region
          %s1095 = ssub.s32 16, 16
          %1096 = vsyncadd [#allocation12], %s1095
          %s1098 = sshll.u32 [#allocation13], 4
          %s1099 = int_to_ptr.vmem [resolvable:$true] %s1098
          %1101 = dma.hbm_to_vmem [thread:$0]  %s19, 16, %s1099, [#allocation12]
        $region48: #{item_embedder_forward.1} parent=11 // pred_fallthru
          _
        // Predicated region
        $region49: #{item_embedder_forward.1} parent=11 // pred_check
          %p1102 = pneg %p346
        $region50: #{item_embedder_forward.1} parent=11 // pred_check_branch
          %1104 = sbr.rel (%p1102) target = $region52
        $region51: #{item_embedder_forward.1} parent=11 // pred_region
          %s1106 = ssub.s32 16, 16
          %1107 = vsyncadd [#allocation15], %s1106
          %s1109 = sshll.u32 [#allocation14], 4
          %s1110 = int_to_ptr.vmem [resolvable:$true] %s1109
          %1112 = dma.hbm_to_vmem [thread:$0]  %s21, 16, %s1110, [#allocation15]
        $region52: #{item_embedder_forward.1} parent=11 // pred_fallthru
          _
        // Predicated region
        $region53: #{item_embedder_forward.1} parent=11 // pred_check
          %p1113 = pneg %p367
        $region54: #{item_embedder_forward.1} parent=11 // pred_check_branch
          %1115 = sbr.rel (%p1113) target = $region56
        $region55: #{item_embedder_forward.1} parent=11 // pred_region
          %s1117 = ssub.s32 1024, 1024
          %1118 = vsyncadd [#allocation15], %s1117
          %s1119 = sshll.u32 [#allocation16], 4
          %s1120 = int_to_ptr.vmem [resolvable:$true] %s1119
          %1125 = dma.hbm_to_vmem [thread:$0]  %s23, 1024, %s1120, [#allocation15], 64, 64, 4
        $region56: #{item_embedder_forward.1} parent=11 // pred_fallthru
          _
        // Predicated region
        $region57: #{item_embedder_forward.1} parent=11 // pred_check
          %p1126 = pneg %p388
        $region58: #{item_embedder_forward.1} parent=11 // pred_check_branch
          %1128 = sbr.rel (%p1126) target = $region60
        $region59: #{item_embedder_forward.1} parent=11 // pred_region
          %s1130 = ssub.s32 16, 16
          %1131 = vsyncadd [#allocation18], %s1130
          %s1133 = sshll.u32 [#allocation17], 4
          %s1134 = int_to_ptr.vmem [resolvable:$true] %s1133
          %1136 = dma.hbm_to_vmem [thread:$0]  %s25, 16, %s1134, [#allocation18]
        $region60: #{item_embedder_forward.1} parent=11 // pred_fallthru
          _
        // Predicated region
        $region61: #{item_embedder_forward.1} parent=11 // pred_check
          %p1137 = pneg %p409
        $region62: #{item_embedder_forward.1} parent=11 // pred_check_branch
          %1139 = sbr.rel (%p1137) target = $region64
        $region63: #{item_embedder_forward.1} parent=11 // pred_region
          %s1141 = ssub.s32 16, 16
          %1142 = vsyncadd [#allocation18], %s1141
          %s1144 = sshll.u32 [#allocation19], 4
          %s1145 = int_to_ptr.vmem [resolvable:$true] %s1144
          %1147 = dma.hbm_to_vmem [thread:$0]  %s27, 16, %s1145, [#allocation18]
        $region64: #{item_embedder_forward.1} parent=11 // pred_fallthru
          _
        // Predicated region
        $region65: #{item_embedder_forward.1} parent=11 // pred_check
          %p1148 = pneg %p430
        $region66: #{item_embedder_forward.1} parent=11 // pred_check_branch
          %1150 = sbr.rel (%p1148) target = $region68
        $region67: #{item_embedder_forward.1} parent=11 // pred_region
          %s1152 = ssub.s32 16, 16
          %1153 = vsyncadd [#allocation21], %s1152
          %s1155 = sshll.u32 [#allocation20], 4
          %s1156 = int_to_ptr.vmem [resolvable:$true] %s1155
          %1158 = dma.hbm_to_vmem [thread:$0]  %s29, 16, %s1156, [#allocation21]
        $region68: #{item_embedder_forward.1} parent=11 // pred_fallthru
          _
        // Predicated region
        $region69: #{item_embedder_forward.1} parent=11 // pred_check
          %p1159 = pneg %p451
        $region70: #{item_embedder_forward.1} parent=11 // pred_check_branch
          %1161 = sbr.rel (%p1159) target = $region72
        $region71: #{item_embedder_forward.1} parent=11 // pred_region
          %s1163 = ssub.s32 1024, 1024
          %1164 = vsyncadd [#allocation21], %s1163
          %s1165 = sshll.u32 [#allocation22], 4
          %s1166 = int_to_ptr.vmem [resolvable:$true] %s1165
          %1171 = dma.hbm_to_vmem [thread:$0]  %s31, 1024, %s1166, [#allocation21], 64, 64, 4
        $region72: #{item_embedder_forward.1} parent=11 // pred_fallthru
          _
        // Predicated region
        $region73: #{item_embedder_forward.1} parent=11 // pred_check
          %p1172 = pneg %p472
        $region74: #{item_embedder_forward.1} parent=11 // pred_check_branch
          %1174 = sbr.rel (%p1172) target = $region76
        $region75: #{item_embedder_forward.1} parent=11 // pred_region
          %s1176 = ssub.s32 16, 16
          %1177 = vsyncadd [#allocation24], %s1176
          %s1179 = sshll.u32 [#allocation23], 4
          %s1180 = int_to_ptr.vmem [resolvable:$true] %s1179
          %1182 = dma.hbm_to_vmem [thread:$0]  %s33, 16, %s1180, [#allocation24]
        $region76: #{item_embedder_forward.1} parent=11 // pred_fallthru
          _
        // Predicated region
        $region77: #{item_embedder_forward.1} parent=11 // pred_check
          %p1183 = pneg %p493
        $region78: #{item_embedder_forward.1} parent=11 // pred_check_branch
          %1185 = sbr.rel (%p1183) target = $region80
        $region79: #{item_embedder_forward.1} parent=11 // pred_region
          %s1187 = ssub.s32 16, 16
          %1188 = vsyncadd [#allocation24], %s1187
          %s1190 = sshll.u32 [#allocation25], 4
          %s1191 = int_to_ptr.vmem [resolvable:$true] %s1190
          %1193 = dma.hbm_to_vmem [thread:$0]  %s35, 16, %s1191, [#allocation24]
        $region80: #{item_embedder_forward.1} parent=11 // pred_fallthru
          _
        // Predicated region
        $region81: #{item_embedder_forward.1} parent=11 // pred_check
          %p1194 = pneg %p514
        $region82: #{item_embedder_forward.1} parent=11 // pred_check_branch
          %1196 = sbr.rel (%p1194) target = $region84
        $region83: #{item_embedder_forward.1} parent=11 // pred_region
          %s1198 = ssub.s32 16, 16
          %1199 = vsyncadd [#allocation27], %s1198
          %s1201 = sshll.u32 [#allocation26], 4
          %s1202 = int_to_ptr.vmem [resolvable:$true] %s1201
          %1204 = dma.hbm_to_vmem [thread:$0]  %s37, 16, %s1202, [#allocation27]
        $region84: #{item_embedder_forward.1} parent=11 // pred_fallthru
          _
        // Predicated region
        $region85: #{item_embedder_forward.1} parent=11 // pred_check
          %p1205 = pneg %p535
        $region86: #{item_embedder_forward.1} parent=11 // pred_check_branch
          %1207 = sbr.rel (%p1205) target = $region88
        $region87: #{item_embedder_forward.1} parent=11 // pred_region
          %s1209 = ssub.s32 1024, 1024
          %1210 = vsyncadd [#allocation27], %s1209
          %s1211 = sshll.u32 [#allocation28], 4
          %s1212 = int_to_ptr.vmem [resolvable:$true] %s1211
          %1217 = dma.hbm_to_vmem [thread:$0]  %s39, 1024, %s1212, [#allocation27], 64, 64, 4
        $region88: #{item_embedder_forward.1} parent=11 // pred_fallthru
          _
        // Predicated region
        $region89: #{item_embedder_forward.1} parent=11 // pred_check
          %p1218 = pneg %p556
        $region90: #{item_embedder_forward.1} parent=11 // pred_check_branch
          %1220 = sbr.rel (%p1218) target = $region92
        $region91: #{item_embedder_forward.1} parent=11 // pred_region
          %s1222 = ssub.s32 16, 16
          %1223 = vsyncadd [#allocation30], %s1222
          %s1225 = sshll.u32 [#allocation29], 4
          %s1226 = int_to_ptr.vmem [resolvable:$true] %s1225
          %1228 = dma.hbm_to_vmem [thread:$0]  %s41, 16, %s1226, [#allocation30]
        $region92: #{item_embedder_forward.1} parent=11 // pred_fallthru
          _
        // Predicated region
        $region93: #{item_embedder_forward.1} parent=11 // pred_check
          %p1229 = pneg %p577
        $region94: #{item_embedder_forward.1} parent=11 // pred_check_branch
          %1231 = sbr.rel (%p1229) target = $region96
        $region95: #{item_embedder_forward.1} parent=11 // pred_region
          %s1233 = ssub.s32 16, 16
          %1234 = vsyncadd [#allocation30], %s1233
          %s1236 = sshll.u32 [#allocation31], 4
          %s1237 = int_to_ptr.vmem [resolvable:$true] %s1236
          %1239 = dma.hbm_to_vmem [thread:$0]  %s43, 16, %s1237, [#allocation30]
        $region96: #{item_embedder_forward.1} parent=11 // pred_fallthru
          _
        // Predicated region
        $region97: #{item_embedder_forward.1} parent=11 // pred_check
          %p1240 = pneg %p598
        $region98: #{item_embedder_forward.1} parent=11 // pred_check_branch
          %1242 = sbr.rel (%p1240) target = $region100
        $region99: #{item_embedder_forward.1} parent=11 // pred_region
          %s1244 = ssub.s32 16, 16
          %1245 = vsyncadd [#allocation33], %s1244
          %s1247 = sshll.u32 [#allocation32], 4
          %s1248 = int_to_ptr.vmem [resolvable:$true] %s1247
          %1250 = dma.hbm_to_vmem [thread:$0]  %s45, 16, %s1248, [#allocation33]
        $region100: #{item_embedder_forward.1} parent=11 // pred_fallthru
          _
        // Predicated region
        $region101: #{item_embedder_forward.1} parent=11 // pred_check
          %p1251 = pneg %p619
        $region102: #{item_embedder_forward.1} parent=11 // pred_check_branch
          %1253 = sbr.rel (%p1251) target = $region104
        $region103: #{item_embedder_forward.1} parent=11 // pred_region
          %s1255 = ssub.s32 1024, 1024
          %1256 = vsyncadd [#allocation33], %s1255
          %s1257 = sshll.u32 [#allocation34], 4
          %s1258 = int_to_ptr.vmem [resolvable:$true] %s1257
          %1263 = dma.hbm_to_vmem [thread:$0]  %s47, 1024, %s1258, [#allocation33], 64, 64, 4
        $region104: #{item_embedder_forward.1} parent=11 // pred_fallthru
          _
        // Predicated region
        $region105: #{item_embedder_forward.1} parent=11 // pred_check
          %p1264 = pneg %p640
        $region106: #{item_embedder_forward.1} parent=11 // pred_check_branch
          %1266 = sbr.rel (%p1264) target = $region108
        $region107: #{item_embedder_forward.1} parent=11 // pred_region
          %s1268 = ssub.s32 16, 16
          %1269 = vsyncadd [#allocation36], %s1268
          %s1271 = sshll.u32 [#allocation35], 4
          %s1272 = int_to_ptr.vmem [resolvable:$true] %s1271
          %1274 = dma.hbm_to_vmem [thread:$0]  %s49, 16, %s1272, [#allocation36]
        $region108: #{item_embedder_forward.1} parent=11 // pred_fallthru
          _
        // Predicated region
        $region109: #{item_embedder_forward.1} parent=11 // pred_check
          %p1275 = pneg %p661
        $region110: #{item_embedder_forward.1} parent=11 // pred_check_branch
          %1277 = sbr.rel (%p1275) target = $region112
        $region111: #{item_embedder_forward.1} parent=11 // pred_region
          %s1279 = ssub.s32 16, 16
          %1280 = vsyncadd [#allocation36], %s1279
          %s1282 = sshll.u32 [#allocation37], 4
          %s1283 = int_to_ptr.vmem [resolvable:$true] %s1282
          %1285 = dma.hbm_to_vmem [thread:$0]  %s51, 16, %s1283, [#allocation36]
        $region112: #{item_embedder_forward.1} parent=11 // pred_fallthru
          _
        // Predicated region
        $region113: #{item_embedder_forward.1} parent=11 // pred_check
          %p1286 = pneg %p682
        $region114: #{item_embedder_forward.1} parent=11 // pred_check_branch
          %1288 = sbr.rel (%p1286) target = $region116
        $region115: #{item_embedder_forward.1} parent=11 // pred_region
          %s1290 = ssub.s32 16, 16
          %1291 = vsyncadd [#allocation39], %s1290
          %s1293 = sshll.u32 [#allocation38], 4
          %s1294 = int_to_ptr.vmem [resolvable:$true] %s1293
          %1296 = dma.hbm_to_vmem [thread:$0]  %s53, 16, %s1294, [#allocation39]
        $region116: #{item_embedder_forward.1} parent=11 // pred_fallthru
          _
        // Predicated region
        $region117: #{item_embedder_forward.1} parent=11 // pred_check
          %p1297 = pneg %p703
        $region118: #{item_embedder_forward.1} parent=11 // pred_check_branch
          %1299 = sbr.rel (%p1297) target = $region120
        $region119: #{item_embedder_forward.1} parent=11 // pred_region
          %s1301 = ssub.s32 1024, 1024
          %1302 = vsyncadd [#allocation39], %s1301
          %s1303 = sshll.u32 [#allocation40], 4
          %s1304 = int_to_ptr.vmem [resolvable:$true] %s1303
          %1309 = dma.hbm_to_vmem [thread:$0]  %s55, 1024, %s1304, [#allocation39], 64, 64, 4
        $region120: #{item_embedder_forward.1} parent=11 // pred_fallthru
          _
        // Predicated region
        $region121: #{item_embedder_forward.1} parent=11 // pred_check
          %p1310 = pneg %p724
        $region122: #{item_embedder_forward.1} parent=11 // pred_check_branch
          %1312 = sbr.rel (%p1310) target = $region124
        $region123: #{item_embedder_forward.1} parent=11 // pred_region
          %s1314 = ssub.s32 16, 16
          %1315 = vsyncadd [#allocation42], %s1314
          %s1317 = sshll.u32 [#allocation41], 4
          %s1318 = int_to_ptr.vmem [resolvable:$true] %s1317
          %1320 = dma.hbm_to_vmem [thread:$0]  %s57, 16, %s1318, [#allocation42]
        $region124: #{item_embedder_forward.1} parent=11 // pred_fallthru
          _
        // Predicated region
        $region125: #{item_embedder_forward.1} parent=11 // pred_check
          %p1321 = pneg %p745
        $region126: #{item_embedder_forward.1} parent=11 // pred_check_branch
          %1323 = sbr.rel (%p1321) target = $region128
        $region127: #{item_embedder_forward.1} parent=11 // pred_region
          %s1325 = ssub.s32 16, 16
          %1326 = vsyncadd [#allocation42], %s1325
          %s1328 = sshll.u32 [#allocation43], 4
          %s1329 = int_to_ptr.vmem [resolvable:$true] %s1328
          %1331 = dma.hbm_to_vmem [thread:$0]  %s59, 16, %s1329, [#allocation42]
        $region128: #{item_embedder_forward.1} parent=11 // pred_fallthru
          _
        // Predicated region
        $region129: #{item_embedder_forward.1} parent=11 // pred_check
          %p1332 = pneg %p766
        $region130: #{item_embedder_forward.1} parent=11 // pred_check_branch
          %1334 = sbr.rel (%p1332) target = $region132
        $region131: #{item_embedder_forward.1} parent=11 // pred_region
          %s1336 = ssub.s32 16, 16
          %1337 = vsyncadd [#allocation45], %s1336
          %s1339 = sshll.u32 [#allocation44], 4
          %s1340 = int_to_ptr.vmem [resolvable:$true] %s1339
          %1342 = dma.hbm_to_vmem [thread:$0]  %s61, 16, %s1340, [#allocation45]
        $region132: #{item_embedder_forward.1} parent=11 // pred_fallthru
          _
        // Predicated region
        $region133: #{item_embedder_forward.1} parent=11 // pred_check
          %p1343 = pneg %p787
        $region134: #{item_embedder_forward.1} parent=11 // pred_check_branch
          %1345 = sbr.rel (%p1343) target = $region136
        $region135: #{item_embedder_forward.1} parent=11 // pred_region
          %s1347 = ssub.s32 1024, 1024
          %1348 = vsyncadd [#allocation45], %s1347
          %s1349 = sshll.u32 [#allocation46], 4
          %s1350 = int_to_ptr.vmem [resolvable:$true] %s1349
          %1355 = dma.hbm_to_vmem [thread:$0]  %s63, 1024, %s1350, [#allocation45], 64, 64, 4
        $region136: #{item_embedder_forward.1} parent=11 // pred_fallthru
          _
        // Predicated region
        $region137: #{item_embedder_forward.1} parent=11 // pred_check
          %p1356 = pneg %p808
        $region138: #{item_embedder_forward.1} parent=11 // pred_check_branch
          %1358 = sbr.rel (%p1356) target = $region140
        $region139: #{item_embedder_forward.1} parent=11 // pred_region
          %s1360 = ssub.s32 16, 16
          %1361 = vsyncadd [#allocation48], %s1360
          %s1363 = sshll.u32 [#allocation47], 4
          %s1364 = int_to_ptr.vmem [resolvable:$true] %s1363
          %1366 = dma.hbm_to_vmem [thread:$0]  %s65, 16, %s1364, [#allocation48]
        $region140: #{item_embedder_forward.1} parent=11 // pred_fallthru
          _
        // Predicated region
        $region141: #{item_embedder_forward.1} parent=11 // pred_check
          %p1367 = pneg %p829
        $region142: #{item_embedder_forward.1} parent=11 // pred_check_branch
          %1369 = sbr.rel (%p1367) target = $region144
        $region143: #{item_embedder_forward.1} parent=11 // pred_region
          %s1371 = ssub.s32 16, 16
          %1372 = vsyncadd [#allocation48], %s1371
          %s1374 = sshll.u32 [#allocation49], 4
          %s1375 = int_to_ptr.vmem [resolvable:$true] %s1374
          %1377 = dma.hbm_to_vmem [thread:$0]  %s67, 16, %s1375, [#allocation48]
        $region144: #{item_embedder_forward.1} parent=11 // pred_fallthru
          _
        // Predicated region
        $region145: #{item_embedder_forward.1} parent=11 // pred_check
          %p1378 = pneg %p850
        $region146: #{item_embedder_forward.1} parent=11 // pred_check_branch
          %1380 = sbr.rel (%p1378) target = $region148
        $region147: #{item_embedder_forward.1} parent=11 // pred_region
          %s1382 = ssub.s32 16, 16
          %1383 = vsyncadd [#allocation51], %s1382
          %s1385 = sshll.u32 [#allocation50], 4
          %s1386 = int_to_ptr.vmem [resolvable:$true] %s1385
          %1388 = dma.hbm_to_vmem [thread:$0]  %s69, 16, %s1386, [#allocation51]
        $region148: #{item_embedder_forward.1} parent=11 // pred_fallthru
          _
        // Predicated region
        $region149: #{item_embedder_forward.1} parent=11 // pred_check
          %p1389 = pneg %p871
        $region150: #{item_embedder_forward.1} parent=11 // pred_check_branch
          %1391 = sbr.rel (%p1389) target = $region152
        $region151: #{item_embedder_forward.1} parent=11 // pred_region
          %s1393 = ssub.s32 1024, 1024
          %1394 = vsyncadd [#allocation51], %s1393
          %s1395 = sshll.u32 [#allocation52], 4
          %s1396 = int_to_ptr.vmem [resolvable:$true] %s1395
          %1401 = dma.hbm_to_vmem [thread:$0]  %s71, 1024, %s1396, [#allocation51], 64, 64, 4
        $region152: #{item_embedder_forward.1} parent=11 // pred_fallthru
          _
        // Predicated region
        $region153: #{item_embedder_forward.1} parent=11 // pred_check
          %p1402 = pneg %p892
        $region154: #{item_embedder_forward.1} parent=11 // pred_check_branch
          %1404 = sbr.rel (%p1402) target = $region156
        $region155: #{item_embedder_forward.1} parent=11 // pred_region
          %s1406 = ssub.s32 16, 16
          %1407 = vsyncadd [#allocation54], %s1406
          %s1409 = sshll.u32 [#allocation53], 4
          %s1410 = int_to_ptr.vmem [resolvable:$true] %s1409
          %1412 = dma.hbm_to_vmem [thread:$0]  %s73, 16, %s1410, [#allocation54]
        $region156: #{item_embedder_forward.1} parent=11 // pred_fallthru
          _
        // Predicated region
        $region157: #{item_embedder_forward.1} parent=11 // pred_check
          %p1413 = pneg %p913
        $region158: #{item_embedder_forward.1} parent=11 // pred_check_branch
          %1415 = sbr.rel (%p1413) target = $region160
        $region159: #{item_embedder_forward.1} parent=11 // pred_region
          %s1417 = ssub.s32 16, 16
          %1418 = vsyncadd [#allocation54], %s1417
          %s1420 = sshll.u32 [#allocation55], 4
          %s1421 = int_to_ptr.vmem [resolvable:$true] %s1420
          %1423 = dma.hbm_to_vmem [thread:$0]  %s75, 16, %s1421, [#allocation54]
        $region160: #{item_embedder_forward.1} parent=11 // pred_fallthru
          _
        // Predicated region
        $region161: #{item_embedder_forward.1} parent=11 // pred_check
          %p1424 = pneg %p934
        $region162: #{item_embedder_forward.1} parent=11 // pred_check_branch
          %1426 = sbr.rel (%p1424) target = $region164
        $region163: #{item_embedder_forward.1} parent=11 // pred_region
          _
        $region164: #{item_embedder_forward.1} parent=11 // pred_fallthru
          _
        // Predicated region
        $region165: #{item_embedder_forward.1} parent=11 // pred_check
          %p1427 = pneg %p955
        $region166: #{item_embedder_forward.1} parent=11 // pred_check_branch
          %1429 = sbr.rel (%p1427) target = $region168
        $region167: #{item_embedder_forward.1} parent=11 // pred_region
          _
        $region168: #{item_embedder_forward.1} parent=11 // pred_fallthru
          _
        // Predicated region
        $region169: #{item_embedder_forward.1} parent=11 // pred_check
          %p1430 = pneg %p976
        $region170: #{item_embedder_forward.1} parent=11 // pred_check_branch
          %1432 = sbr.rel (%p1430) target = $region172
        $region171: #{item_embedder_forward.1} parent=11 // pred_region
          _
        $region172: #{item_embedder_forward.1} parent=11 // pred_fallthru
          _
      $region12: #{item_embedder_forward.1} parent=5 // pred_fallthru
        _
      %p1433 = scmp.lt.s32.totalorder %s110, 2
      // Predicated region
      $region173: #{item_embedder_forward.1} parent=5 // pred_check
        %p1434 = pneg %p1433
      $region174: #{item_embedder_forward.1} parent=5 // pred_check_branch
        %1436 = sbr.rel (%p1434) target = $region176
      $region175: #{item_embedder_forward.1} parent=5 // pred_region
        // Predicated region
        $region177: #{item_embedder_forward.1} parent=175 // pred_check
          %p1437 = pneg %p130
        $region178: #{item_embedder_forward.1} parent=175 // pred_check_branch
          %1439 = sbr.rel (%p1437) target = $region180
        $region179: #{item_embedder_forward.1} parent=175 // pred_region
          %s1440 = smul.u32 4, %s110
          %p1441 = scmp.lt.s32.totalorder %s1440, 7
          %s1442 = scalar_select %p1441, %s1440, 7
          %s1443 = smul.addr %s1442, 2
          %s1444 = smul.addr %s1443, 8
          %s1445 = scalar_lea.vmem %s1, %s1444
          %s1446 = smul.u32 4, %s110
        $region180: #{item_embedder_forward.1} parent=175 // pred_fallthru
          _
      $region176: #{item_embedder_forward.1} parent=5 // pred_fallthru
        _
      %p1447 = scmp.le.s32.totalorder 1, %s110
      %p1448 = scmp.lt.s32.totalorder %s110, 3
      %p1449 = pnand %p1447, %p1448
      %p1450 = pneg %p1449
      // Predicated region
      $region181: #{item_embedder_forward.1} parent=5 // pred_check
        _
      $region182: #{item_embedder_forward.1} parent=5 // pred_check_branch
        %1452 = sbr.rel (%p1449) target = $region184
      $region183: #{item_embedder_forward.1} parent=5 // pred_region
        %s1453 = ssub.s32 %s110, 1
        // Predicated region
        $region185: #{item_embedder_forward.1} parent=183 // pred_check
          %p1454 = pneg %p178
        $region186: #{item_embedder_forward.1} parent=183 // pred_check_branch
          %1456 = sbr.rel (%p1454) target = $region188
        $region187: #{item_embedder_forward.1} parent=183 // pred_region
          %1457 = dma.done [#allocation3], 32
        $region188: #{item_embedder_forward.1} parent=183 // pred_fallthru
          _
        // Predicated region
        $region189: #{item_embedder_forward.1} parent=183 // pred_check
          %p1458 = pneg %p220
        $region190: #{item_embedder_forward.1} parent=183 // pred_check_branch
          %1460 = sbr.rel (%p1458) target = $region192
        $region191: #{item_embedder_forward.1} parent=183 // pred_region
          %1461 = dma.done [#allocation6], 32
        $region192: #{item_embedder_forward.1} parent=183 // pred_fallthru
          _
        // Predicated region
        $region193: #{item_embedder_forward.1} parent=183 // pred_check
          %p1462 = pneg %p241
        $region194: #{item_embedder_forward.1} parent=183 // pred_check_branch
          %1464 = sbr.rel (%p1462) target = $region196
        $region195: #{item_embedder_forward.1} parent=183 // pred_region
          %1465 = dma.done [#allocation6], 32
        $region196: #{item_embedder_forward.1} parent=183 // pred_fallthru
          _
        // Predicated region
        $region197: #{item_embedder_forward.1} parent=183 // pred_check
          %p1466 = pneg %p262
        $region198: #{item_embedder_forward.1} parent=183 // pred_check_branch
          %1468 = sbr.rel (%p1466) target = $region200
        $region199: #{item_embedder_forward.1} parent=183 // pred_region
          %1469 = dma.done [#allocation9], 32
        $region200: #{item_embedder_forward.1} parent=183 // pred_fallthru
          _
        // Predicated region
        $region201: #{item_embedder_forward.1} parent=183 // pred_check
          %p1470 = pneg %p283
        $region202: #{item_embedder_forward.1} parent=183 // pred_check_branch
          %1472 = sbr.rel (%p1470) target = $region204
        $region203: #{item_embedder_forward.1} parent=183 // pred_region
          %1473 = dma.done [#allocation9], 2048
        $region204: #{item_embedder_forward.1} parent=183 // pred_fallthru
          _
        // Predicated region
        $region205: #{item_embedder_forward.1} parent=183 // pred_check
          %p1474 = pneg %p304
        $region206: #{item_embedder_forward.1} parent=183 // pred_check_branch
          %1476 = sbr.rel (%p1474) target = $region208
        $region207: #{item_embedder_forward.1} parent=183 // pred_region
          %1477 = dma.done [#allocation12], 16
        $region208: #{item_embedder_forward.1} parent=183 // pred_fallthru
          _
        // Predicated region
        $region209: #{item_embedder_forward.1} parent=183 // pred_check
          %p1478 = pneg %p325
        $region210: #{item_embedder_forward.1} parent=183 // pred_check_branch
          %1480 = sbr.rel (%p1478) target = $region212
        $region211: #{item_embedder_forward.1} parent=183 // pred_region
          %1481 = dma.done [#allocation12], 16
        $region212: #{item_embedder_forward.1} parent=183 // pred_fallthru
          _
        // Predicated region
        $region213: #{item_embedder_forward.1} parent=183 // pred_check
          %p1482 = pneg %p346
        $region214: #{item_embedder_forward.1} parent=183 // pred_check_branch
          %1484 = sbr.rel (%p1482) target = $region216
        $region215: #{item_embedder_forward.1} parent=183 // pred_region
          %1485 = dma.done [#allocation15], 16
        $region216: #{item_embedder_forward.1} parent=183 // pred_fallthru
          _
        // Predicated region
        $region217: #{item_embedder_forward.1} parent=183 // pred_check
          %p1486 = pneg %p367
        $region218: #{item_embedder_forward.1} parent=183 // pred_check_branch
          %1488 = sbr.rel (%p1486) target = $region220
        $region219: #{item_embedder_forward.1} parent=183 // pred_region
          %1489 = dma.done [#allocation15], 1024
        $region220: #{item_embedder_forward.1} parent=183 // pred_fallthru
          _
        // Predicated region
        $region221: #{item_embedder_forward.1} parent=183 // pred_check
          %p1490 = pneg %p388
        $region222: #{item_embedder_forward.1} parent=183 // pred_check_branch
          %1492 = sbr.rel (%p1490) target = $region224
        $region223: #{item_embedder_forward.1} parent=183 // pred_region
          %1493 = dma.done [#allocation18], 16
        $region224: #{item_embedder_forward.1} parent=183 // pred_fallthru
          _
        // Predicated region
        $region225: #{item_embedder_forward.1} parent=183 // pred_check
          %p1494 = pneg %p409
        $region226: #{item_embedder_forward.1} parent=183 // pred_check_branch
          %1496 = sbr.rel (%p1494) target = $region228
        $region227: #{item_embedder_forward.1} parent=183 // pred_region
          %1497 = dma.done [#allocation18], 16
        $region228: #{item_embedder_forward.1} parent=183 // pred_fallthru
          _
        // Predicated region
        $region229: #{item_embedder_forward.1} parent=183 // pred_check
          %p1498 = pneg %p430
        $region230: #{item_embedder_forward.1} parent=183 // pred_check_branch
          %1500 = sbr.rel (%p1498) target = $region232
        $region231: #{item_embedder_forward.1} parent=183 // pred_region
          %1501 = dma.done [#allocation21], 16
        $region232: #{item_embedder_forward.1} parent=183 // pred_fallthru
          _
        // Predicated region
        $region233: #{item_embedder_forward.1} parent=183 // pred_check
          %p1502 = pneg %p451
        $region234: #{item_embedder_forward.1} parent=183 // pred_check_branch
          %1504 = sbr.rel (%p1502) target = $region236
        $region235: #{item_embedder_forward.1} parent=183 // pred_region
          %1505 = dma.done [#allocation21], 1024
        $region236: #{item_embedder_forward.1} parent=183 // pred_fallthru
          _
        // Predicated region
        $region237: #{item_embedder_forward.1} parent=183 // pred_check
          %p1506 = pneg %p472
        $region238: #{item_embedder_forward.1} parent=183 // pred_check_branch
          %1508 = sbr.rel (%p1506) target = $region240
        $region239: #{item_embedder_forward.1} parent=183 // pred_region
          %1509 = dma.done [#allocation24], 16
        $region240: #{item_embedder_forward.1} parent=183 // pred_fallthru
          _
        // Predicated region
        $region241: #{item_embedder_forward.1} parent=183 // pred_check
          %p1510 = pneg %p493
        $region242: #{item_embedder_forward.1} parent=183 // pred_check_branch
          %1512 = sbr.rel (%p1510) target = $region244
        $region243: #{item_embedder_forward.1} parent=183 // pred_region
          %1513 = dma.done [#allocation24], 16
        $region244: #{item_embedder_forward.1} parent=183 // pred_fallthru
          _
        // Predicated region
        $region245: #{item_embedder_forward.1} parent=183 // pred_check
          %p1514 = pneg %p514
        $region246: #{item_embedder_forward.1} parent=183 // pred_check_branch
          %1516 = sbr.rel (%p1514) target = $region248
        $region247: #{item_embedder_forward.1} parent=183 // pred_region
          %1517 = dma.done [#allocation27], 16
        $region248: #{item_embedder_forward.1} parent=183 // pred_fallthru
          _
        // Predicated region
        $region249: #{item_embedder_forward.1} parent=183 // pred_check
          %p1518 = pneg %p535
        $region250: #{item_embedder_forward.1} parent=183 // pred_check_branch
          %1520 = sbr.rel (%p1518) target = $region252
        $region251: #{item_embedder_forward.1} parent=183 // pred_region
          %1521 = dma.done [#allocation27], 1024
        $region252: #{item_embedder_forward.1} parent=183 // pred_fallthru
          _
        // Predicated region
        $region253: #{item_embedder_forward.1} parent=183 // pred_check
          %p1522 = pneg %p556
        $region254: #{item_embedder_forward.1} parent=183 // pred_check_branch
          %1524 = sbr.rel (%p1522) target = $region256
        $region255: #{item_embedder_forward.1} parent=183 // pred_region
          %1525 = dma.done [#allocation30], 16
        $region256: #{item_embedder_forward.1} parent=183 // pred_fallthru
          _
        // Predicated region
        $region257: #{item_embedder_forward.1} parent=183 // pred_check
          %p1526 = pneg %p577
        $region258: #{item_embedder_forward.1} parent=183 // pred_check_branch
          %1528 = sbr.rel (%p1526) target = $region260
        $region259: #{item_embedder_forward.1} parent=183 // pred_region
          %1529 = dma.done [#allocation30], 16
        $region260: #{item_embedder_forward.1} parent=183 // pred_fallthru
          _
        // Predicated region
        $region261: #{item_embedder_forward.1} parent=183 // pred_check
          %p1530 = pneg %p598
        $region262: #{item_embedder_forward.1} parent=183 // pred_check_branch
          %1532 = sbr.rel (%p1530) target = $region264
        $region263: #{item_embedder_forward.1} parent=183 // pred_region
          %1533 = dma.done [#allocation33], 16
        $region264: #{item_embedder_forward.1} parent=183 // pred_fallthru
          _
        // Predicated region
        $region265: #{item_embedder_forward.1} parent=183 // pred_check
          %p1534 = pneg %p619
        $region266: #{item_embedder_forward.1} parent=183 // pred_check_branch
          %1536 = sbr.rel (%p1534) target = $region268
        $region267: #{item_embedder_forward.1} parent=183 // pred_region
          %1537 = dma.done [#allocation33], 1024
        $region268: #{item_embedder_forward.1} parent=183 // pred_fallthru
          _
        // Predicated region
        $region269: #{item_embedder_forward.1} parent=183 // pred_check
          %p1538 = pneg %p640
        $region270: #{item_embedder_forward.1} parent=183 // pred_check_branch
          %1540 = sbr.rel (%p1538) target = $region272
        $region271: #{item_embedder_forward.1} parent=183 // pred_region
          %1541 = dma.done [#allocation36], 16
        $region272: #{item_embedder_forward.1} parent=183 // pred_fallthru
          _
        // Predicated region
        $region273: #{item_embedder_forward.1} parent=183 // pred_check
          %p1542 = pneg %p661
        $region274: #{item_embedder_forward.1} parent=183 // pred_check_branch
          %1544 = sbr.rel (%p1542) target = $region276
        $region275: #{item_embedder_forward.1} parent=183 // pred_region
          %1545 = dma.done [#allocation36], 16
        $region276: #{item_embedder_forward.1} parent=183 // pred_fallthru
          _
        // Predicated region
        $region277: #{item_embedder_forward.1} parent=183 // pred_check
          %p1546 = pneg %p682
        $region278: #{item_embedder_forward.1} parent=183 // pred_check_branch
          %1548 = sbr.rel (%p1546) target = $region280
        $region279: #{item_embedder_forward.1} parent=183 // pred_region
          %1549 = dma.done [#allocation39], 16
        $region280: #{item_embedder_forward.1} parent=183 // pred_fallthru
          _
        // Predicated region
        $region281: #{item_embedder_forward.1} parent=183 // pred_check
          %p1550 = pneg %p703
        $region282: #{item_embedder_forward.1} parent=183 // pred_check_branch
          %1552 = sbr.rel (%p1550) target = $region284
        $region283: #{item_embedder_forward.1} parent=183 // pred_region
          %1553 = dma.done [#allocation39], 1024
        $region284: #{item_embedder_forward.1} parent=183 // pred_fallthru
          _
        // Predicated region
        $region285: #{item_embedder_forward.1} parent=183 // pred_check
          %p1554 = pneg %p724
        $region286: #{item_embedder_forward.1} parent=183 // pred_check_branch
          %1556 = sbr.rel (%p1554) target = $region288
        $region287: #{item_embedder_forward.1} parent=183 // pred_region
          %1557 = dma.done [#allocation42], 16
        $region288: #{item_embedder_forward.1} parent=183 // pred_fallthru
          _
        // Predicated region
        $region289: #{item_embedder_forward.1} parent=183 // pred_check
          %p1558 = pneg %p745
        $region290: #{item_embedder_forward.1} parent=183 // pred_check_branch
          %1560 = sbr.rel (%p1558) target = $region292
        $region291: #{item_embedder_forward.1} parent=183 // pred_region
          %1561 = dma.done [#allocation42], 16
        $region292: #{item_embedder_forward.1} parent=183 // pred_fallthru
          _
        // Predicated region
        $region293: #{item_embedder_forward.1} parent=183 // pred_check
          %p1562 = pneg %p766
        $region294: #{item_embedder_forward.1} parent=183 // pred_check_branch
          %1564 = sbr.rel (%p1562) target = $region296
        $region295: #{item_embedder_forward.1} parent=183 // pred_region
          %1565 = dma.done [#allocation45], 16
        $region296: #{item_embedder_forward.1} parent=183 // pred_fallthru
          _
        // Predicated region
        $region297: #{item_embedder_forward.1} parent=183 // pred_check
          %p1566 = pneg %p787
        $region298: #{item_embedder_forward.1} parent=183 // pred_check_branch
          %1568 = sbr.rel (%p1566) target = $region300
        $region299: #{item_embedder_forward.1} parent=183 // pred_region
          %1569 = dma.done [#allocation45], 1024
        $region300: #{item_embedder_forward.1} parent=183 // pred_fallthru
          _
        // Predicated region
        $region301: #{item_embedder_forward.1} parent=183 // pred_check
          %p1570 = pneg %p808
        $region302: #{item_embedder_forward.1} parent=183 // pred_check_branch
          %1572 = sbr.rel (%p1570) target = $region304
        $region303: #{item_embedder_forward.1} parent=183 // pred_region
          %1573 = dma.done [#allocation48], 16
        $region304: #{item_embedder_forward.1} parent=183 // pred_fallthru
          _
        // Predicated region
        $region305: #{item_embedder_forward.1} parent=183 // pred_check
          %p1574 = pneg %p829
        $region306: #{item_embedder_forward.1} parent=183 // pred_check_branch
          %1576 = sbr.rel (%p1574) target = $region308
        $region307: #{item_embedder_forward.1} parent=183 // pred_region
          %1577 = dma.done [#allocation48], 16
        $region308: #{item_embedder_forward.1} parent=183 // pred_fallthru
          _
        // Predicated region
        $region309: #{item_embedder_forward.1} parent=183 // pred_check
          %p1578 = pneg %p850
        $region310: #{item_embedder_forward.1} parent=183 // pred_check_branch
          %1580 = sbr.rel (%p1578) target = $region312
        $region311: #{item_embedder_forward.1} parent=183 // pred_region
          %1581 = dma.done [#allocation51], 16
        $region312: #{item_embedder_forward.1} parent=183 // pred_fallthru
          _
        // Predicated region
        $region313: #{item_embedder_forward.1} parent=183 // pred_check
          %p1582 = pneg %p871
        $region314: #{item_embedder_forward.1} parent=183 // pred_check_branch
          %1584 = sbr.rel (%p1582) target = $region316
        $region315: #{item_embedder_forward.1} parent=183 // pred_region
          %1585 = dma.done [#allocation51], 1024
        $region316: #{item_embedder_forward.1} parent=183 // pred_fallthru
          _
        // Predicated region
        $region317: #{item_embedder_forward.1} parent=183 // pred_check
          %p1586 = pneg %p892
        $region318: #{item_embedder_forward.1} parent=183 // pred_check_branch
          %1588 = sbr.rel (%p1586) target = $region320
        $region319: #{item_embedder_forward.1} parent=183 // pred_region
          %1589 = dma.done [#allocation54], 16
        $region320: #{item_embedder_forward.1} parent=183 // pred_fallthru
          _
        // Predicated region
        $region321: #{item_embedder_forward.1} parent=183 // pred_check
          %p1590 = pneg %p913
        $region322: #{item_embedder_forward.1} parent=183 // pred_check_branch
          %1592 = sbr.rel (%p1590) target = $region324
        $region323: #{item_embedder_forward.1} parent=183 // pred_region
          %1593 = dma.done [#allocation54], 16
        $region324: #{item_embedder_forward.1} parent=183 // pred_fallthru
          _
        %s1594 = smul.u32 4, %s115
        %p1595 = scmp.lt.s32.totalorder %s1594, 7
        %s1596 = scalar_select %p1595, %s1594, 7
        %s1597 = smul.addr %s1596, 2
        %s1598 = smul.addr %s1597, 8
        %s1599 = scalar_lea.vmem %s1, %s1598
        %p1600 = pneg %p136
        %p1601 = pneg %p133
        %p1602 = pneg %p157
        %p1603 = pneg %p154
        %p1604 = pneg %p178
        %p1605 = pneg %p175
        %p1606 = pneg %p199
        %p1607 = pneg %p196
        %p1608 = pneg %p220
        %p1609 = pneg %p217
        %p1610 = pneg %p241
        %p1611 = pneg %p238
        %p1612 = pneg %p262
        %p1613 = pneg %p259
        %p1614 = pneg %p283
        %p1615 = pneg %p280
        %p1616 = pneg %p304
        %p1617 = pneg %p301
        %p1618 = pneg %p325
        %p1619 = pneg %p322
        %p1620 = pneg %p346
        %p1621 = pneg %p343
        %p1622 = pneg %p367
        %p1623 = pneg %p364
        %p1624 = pneg %p388
        %p1625 = pneg %p385
        %p1626 = pneg %p409
        %p1627 = pneg %p406
        %p1628 = pneg %p430
        %p1629 = pneg %p427
        %p1630 = pneg %p451
        %p1631 = pneg %p448
        %p1632 = pneg %p472
        %p1633 = pneg %p469
        %p1634 = pneg %p493
        %p1635 = pneg %p490
        %p1636 = pneg %p514
        %p1637 = pneg %p511
        %p1638 = pneg %p535
        %p1639 = pneg %p532
        %p1640 = pneg %p556
        %p1641 = pneg %p553
        %p1642 = pneg %p577
        %p1643 = pneg %p574
        %p1644 = pneg %p598
        %p1645 = pneg %p595
        %p1646 = pneg %p619
        %p1647 = pneg %p616
        %p1648 = pneg %p640
        %p1649 = pneg %p637
        %p1650 = pneg %p661
        %p1651 = pneg %p658
        %p1652 = pneg %p682
        %p1653 = pneg %p679
        %p1654 = pneg %p703
        %p1655 = pneg %p700
        %p1656 = pneg %p724
        %p1657 = pneg %p721
        %p1658 = pneg %p745
        %p1659 = pneg %p742
        %p1660 = pneg %p766
        %p1661 = pneg %p763
        %p1662 = pneg %p787
        %p1663 = pneg %p784
        %p1664 = pneg %p808
        %p1665 = pneg %p805
        %p1666 = pneg %p829
        %p1667 = pneg %p826
        %p1668 = pneg %p850
        %p1669 = pneg %p847
        %p1670 = pneg %p871
        %p1671 = pneg %p868
        %p1672 = pneg %p892
        %p1673 = pneg %p889
        %p1674 = pneg %p913
        %p1675 = pneg %p910
        %p1676 = pneg %p934
        %p1677 = pneg %p931
        %p1678 = pneg %p955
        %p1679 = pneg %p952
        %p1680 = pneg %p976
        %p1681 = pneg %p973
        %p1682 = pneg %p1002
        %p1683 = pneg %p999
        %s1684 = sand.u32 %s989, 1
        %s1685 = scalar_lea.sflag [#allocation4], %s1684
        %s1686 = sand.u32 %s989, 1
        %s1687 = smul.addr %s1686, 32
        %s1688 = scalar_lea.vmem [#allocation56], %s1687
        %s1689 = smul.u32 4, %s115
        %p1690 = scmp.lt.s32.totalorder %s1689, 7
        %s1691 = scalar_select %p1690, %s1689, 7
        %s1692 = smul.addr %s1691, 2
        %s1693 = smul.addr %s1692, 8
        %s1694 = scalar_lea.vmem %s1, %s1693
        %s1695 = smul.u32 4, %s115
        %s1696 = smul.u32 4, %s115
        %v1702 = vld [vmem:[%s1694] sm:$0xff]
        %v1703 = vld [vmem:[%s1694 + $0x8] sm:$0xff]
        %v1704 = vld [vmem:[%s1694 + $0x10] sm:$0xff]
        %v1705 = vld [vmem:[%s1694 + $0x18] sm:$0xff]
        %v1706 = vld [vmem:[%s1694 + $0x20] sm:$0xff]
        %v1707 = vld [vmem:[%s1694 + $0x28] sm:$0xff]
        %v1708 = vld [vmem:[%s1694 + $0x30] sm:$0xff]
        %v1709 = vld [vmem:[%s1694 + $0x38] sm:$0xff]
        %v1710 = vpack.c.bf16 %v1704, %v1702
        %v1711 = vpack.c.bf16 %v1705, %v1703
        %v1712 = vpack.c.bf16 %v1708, %v1706
        %v1713 = vpack.c.bf16 %v1709, %v1707
        %v1714 = vld [vmem:[%s3] sm:$0x3]
        %v1715 = vld [vmem:[#allocation2] sm:$0x3]
        %v1716 = vld [vmem:[%s7] sm:$0xff]
        %v1717 = vld [vmem:[%s7 + $0x8] sm:$0xff]
        %v1718 = vld [vmem:[%s7 + $0x10] sm:$0xff]
        %v1719 = vld [vmem:[%s7 + $0x18] sm:$0xff]
        %v1720 = vld [vmem:[%s7 + $0x20] sm:$0xff]
        %v1721 = vld [vmem:[%s7 + $0x28] sm:$0xff]
        %v1722 = vld [vmem:[%s7 + $0x30] sm:$0xff]
        %v1723 = vld [vmem:[%s7 + $0x38] sm:$0xff]
        %v1724 = vld [vmem:[%s7 + $0x40] sm:$0xff]
        %v1725 = vld [vmem:[%s7 + $0x48] sm:$0xff]
        %v1726 = vld [vmem:[%s7 + $0x50] sm:$0xff]
        %v1727 = vld [vmem:[%s7 + $0x58] sm:$0xff]
        %v1728 = vld [vmem:[%s7 + $0x60] sm:$0xff]
        %v1729 = vld [vmem:[%s7 + $0x68] sm:$0xff]
        %v1730 = vld [vmem:[%s7 + $0x70] sm:$0xff]
        %v1731 = vld [vmem:[%s7 + $0x78] sm:$0xff]
        %v1732 = vld [vmem:[%s7 + $0x80] sm:$0xff]
        %v1733 = vld [vmem:[%s7 + $0x88] sm:$0xff]
        %v1734 = vld [vmem:[%s7 + $0x90] sm:$0xff]
        %v1735 = vld [vmem:[%s7 + $0x98] sm:$0xff]
        %v1736 = vld [vmem:[%s7 + $0xa0] sm:$0xff]
        %v1737 = vld [vmem:[%s7 + $0xa8] sm:$0xff]
        %v1738 = vld [vmem:[%s7 + $0xb0] sm:$0xff]
        %v1739 = vld [vmem:[%s7 + $0xb8] sm:$0xff]
        %v1740 = vld [vmem:[%s7 + $0xc0] sm:$0xff]
        %v1741 = vld [vmem:[%s7 + $0xc8] sm:$0xff]
        %v1742 = vld [vmem:[%s7 + $0xd0] sm:$0xff]
        %v1743 = vld [vmem:[%s7 + $0xd8] sm:$0xff]
        %v1744 = vld [vmem:[%s7 + $0xe0] sm:$0xff]
        %v1745 = vld [vmem:[%s7 + $0xe8] sm:$0xff]
        %v1746 = vld [vmem:[%s7 + $0xf0] sm:$0xff]
        %v1747 = vld [vmem:[%s7 + $0xf8] sm:$0xff]
        %v1748 = vld [vmem:[#allocation5] sm:$0x3]
        %v1749 = vld [vmem:[#allocation7] sm:$0x3]
        %v1750 = vld [vmem:[#allocation8] sm:$0x3]
        %v1751 = vld [vmem:[#allocation10] sm:$0xf]
        %v1752 = vld [vmem:[#allocation10 + $0x4] sm:$0xf]
        %v1753 = vld [vmem:[#allocation10 + $0x8] sm:$0xf]
        %v1754 = vld [vmem:[#allocation10 + $0xc] sm:$0xf]
        %v1755 = vld [vmem:[#allocation10 + $0x10] sm:$0xf]
        %v1756 = vld [vmem:[#allocation10 + $0x14] sm:$0xf]
        %v1757 = vld [vmem:[#allocation10 + $0x18] sm:$0xf]
        %v1758 = vld [vmem:[#allocation10 + $0x1c] sm:$0xf]
        %v1759 = vld [vmem:[#allocation10 + $0x20] sm:$0xf]
        %v1760 = vld [vmem:[#allocation10 + $0x24] sm:$0xf]
        %v1761 = vld [vmem:[#allocation10 + $0x28] sm:$0xf]
        %v1762 = vld [vmem:[#allocation10 + $0x2c] sm:$0xf]
        %v1763 = vld [vmem:[#allocation10 + $0x30] sm:$0xf]
        %v1764 = vld [vmem:[#allocation10 + $0x34] sm:$0xf]
        %v1765 = vld [vmem:[#allocation10 + $0x38] sm:$0xf]
        %v1766 = vld [vmem:[#allocation10 + $0x3c] sm:$0xf]
        %v1767 = vld [vmem:[#allocation10 + $0x40] sm:$0xf]
        %v1768 = vld [vmem:[#allocation10 + $0x44] sm:$0xf]
        %v1769 = vld [vmem:[#allocation10 + $0x48] sm:$0xf]
        %v1770 = vld [vmem:[#allocation10 + $0x4c] sm:$0xf]
        %v1771 = vld [vmem:[#allocation10 + $0x50] sm:$0xf]
        %v1772 = vld [vmem:[#allocation10 + $0x54] sm:$0xf]
        %v1773 = vld [vmem:[#allocation10 + $0x58] sm:$0xf]
        %v1774 = vld [vmem:[#allocation10 + $0x5c] sm:$0xf]
        %v1775 = vld [vmem:[#allocation10 + $0x60] sm:$0xf]
        %v1776 = vld [vmem:[#allocation10 + $0x64] sm:$0xf]
        %v1777 = vld [vmem:[#allocation10 + $0x68] sm:$0xf]
        %v1778 = vld [vmem:[#allocation10 + $0x6c] sm:$0xf]
        %v1779 = vld [vmem:[#allocation10 + $0x70] sm:$0xf]
        %v1780 = vld [vmem:[#allocation10 + $0x74] sm:$0xf]
        %v1781 = vld [vmem:[#allocation10 + $0x78] sm:$0xf]
        %v1782 = vld [vmem:[#allocation10 + $0x7c] sm:$0xf]
        %v1783 = vld [vmem:[#allocation11] sm:$0x1]
        %v1785 = vlaneseq
        %v1786 = vshrl.u32 %v1785, 7
        %v1787 = vsub.s32 0, %v1786
        %v1788 = vrot.slane %v1714, %v1787
        %v1789 = vlaneseq
        %v1790 = vshrl.u32 %v1789, 7
        %v1791 = vsub.s32 1, %v1790
        %v1792 = vrot.slane %v1714, %v1791
        %v1795 = vpack.c.bf16 %v1788, %v1788
        %v1796 = vpack.c.bf16 %v1792, %v1792
        %v1798 = vpack.i.b16 %v1795, %v1795
        %v1800 = vlaneseq
        %v1801 = vshrl.u32 %v1800, 7
        %v1802 = vsub.s32 0, %v1801
        %v1803 = vrot.slane %v1798, %v1802
        %v1805 = vpack.i.b16 %v1796, %v1796
        %v1807 = vlaneseq
        %v1808 = vshrl.u32 %v1807, 7
        %v1809 = vsub.s32 0, %v1808
        %v1810 = vrot.slane %v1805, %v1809
        %v1811 = vmul.bf16 %v1710, %v1803
        %v1812 = vmul.bf16 %v1711, %v1810
        %v1813 = vmul.bf16 %v1712, %v1803
        %v1814 = vmul.bf16 %v1713, %v1810
        %v1816 = vlaneseq
        %v1817 = vshrl.u32 %v1816, 7
        %v1818 = vsub.s32 0, %v1817
        %v1819 = vrot.slane %v1715, %v1818
        %v1820 = vlaneseq
        %v1821 = vshrl.u32 %v1820, 7
        %v1822 = vsub.s32 1, %v1821
        %v1823 = vrot.slane %v1715, %v1822
        %v1826 = vpack.c.bf16 %v1819, %v1819
        %v1827 = vpack.c.bf16 %v1823, %v1823
        %v1829 = vpack.i.b16 %v1826, %v1826
        %v1831 = vlaneseq
        %v1832 = vshrl.u32 %v1831, 7
        %v1833 = vsub.s32 0, %v1832
        %v1834 = vrot.slane %v1829, %v1833
        %v1836 = vpack.i.b16 %v1827, %v1827
        %v1838 = vlaneseq
        %v1839 = vshrl.u32 %v1838, 7
        %v1840 = vsub.s32 0, %v1839
        %v1841 = vrot.slane %v1836, %v1840
        %v1842 = vadd.bf16 %v1811, %v1834
        %v1843 = vadd.bf16 %v1812, %v1841
        %v1844 = vadd.bf16 %v1813, %v1834
        %v1845 = vadd.bf16 %v1814, %v1841
        %v1846 = vmul.bf16 %v1842, %v1842
        %v1847 = vmul.bf16 %v1843, %v1843
        %v1848 = vmul.bf16 %v1844, %v1844
        %v1849 = vmul.bf16 %v1845, %v1845
        %v1850 = vmul.bf16 %v1846, 1024605458
        %v1851 = vmul.bf16 %v1847, 1024605458
        %v1852 = vmul.bf16 %v1848, 1024605458
        %v1853 = vmul.bf16 %v1849, 1024605458
        %v1854 = vadd.bf16 %v1850, 1061961548
        %v1855 = vadd.bf16 %v1851, 1061961548
        %v1856 = vadd.bf16 %v1852, 1061961548
        %v1857 = vadd.bf16 %v1853, 1061961548
        %v1858 = vmul.bf16 %v1842, %v1854
        %v1859 = vmul.bf16 %v1843, %v1855
        %v1860 = vmul.bf16 %v1844, %v1856
        %v1861 = vmul.bf16 %v1845, %v1857
        %v1862 = vmul.bf16 %v1842, 1056980736
        %v1863 = vmul.bf16 %v1843, 1056980736
        %v1864 = vmul.bf16 %v1844, 1056980736
        %v1865 = vmul.bf16 %v1845, 1056980736
        %v1866 = vtanh.bf16.pop %v1858
        %v1867 = vtanh.bf16.pop %v1859
        %v1868 = vtanh.bf16.pop %v1860
        %v1869 = vtanh.bf16.pop %v1861
        %v1870 = vadd.bf16 %v1866, 1065369472
        %v1871 = vadd.bf16 %v1867, 1065369472
        %v1872 = vadd.bf16 %v1868, 1065369472
        %v1873 = vadd.bf16 %v1869, 1065369472
        %v1874 = vmul.bf16 %v1862, %v1870
        %v1875 = vmul.bf16 %v1863, %v1871
        %v1876 = vmul.bf16 %v1864, %v1872
        %v1877 = vmul.bf16 %v1865, %v1873
        %v1879 = vlaneseq
        %v1880 = vshrl.u32 %v1879, 7
        %v1881 = vsub.s32 0, %v1880
        %v1882 = vrot.slane %v1748, %v1881
        %v1883 = vlaneseq
        %v1884 = vshrl.u32 %v1883, 7
        %v1885 = vsub.s32 1, %v1884
        %v1886 = vrot.slane %v1748, %v1885
        %v1921 = vunpack.c.l.b16 %v1716
        %v1922 = vunpack.c.h.b16 %v1716
        %v1923 = vunpack.c.l.b16 %v1717
        %v1924 = vunpack.c.h.b16 %v1717
        %v1925 = vunpack.c.l.b16 %v1718
        %v1926 = vunpack.c.h.b16 %v1718
        %v1927 = vunpack.c.l.b16 %v1719
        %v1928 = vunpack.c.h.b16 %v1719
        %v1929 = vunpack.c.l.b16 %v1720
        %v1930 = vunpack.c.h.b16 %v1720
        %v1931 = vunpack.c.l.b16 %v1721
        %v1932 = vunpack.c.h.b16 %v1721
        %v1933 = vunpack.c.l.b16 %v1722
        %v1934 = vunpack.c.h.b16 %v1722
        %v1935 = vunpack.c.l.b16 %v1723
        %v1936 = vunpack.c.h.b16 %v1723
        %v1937 = vunpack.c.l.b16 %v1724
        %v1938 = vunpack.c.h.b16 %v1724
        %v1939 = vunpack.c.l.b16 %v1725
        %v1940 = vunpack.c.h.b16 %v1725
        %v1941 = vunpack.c.l.b16 %v1726
        %v1942 = vunpack.c.h.b16 %v1726
        %v1943 = vunpack.c.l.b16 %v1727
        %v1944 = vunpack.c.h.b16 %v1727
        %v1945 = vunpack.c.l.b16 %v1728
        %v1946 = vunpack.c.h.b16 %v1728
        %v1947 = vunpack.c.l.b16 %v1729
        %v1948 = vunpack.c.h.b16 %v1729
        %v1949 = vunpack.c.l.b16 %v1730
        %v1950 = vunpack.c.h.b16 %v1730
        %v1951 = vunpack.c.l.b16 %v1731
        %v1952 = vunpack.c.h.b16 %v1731
        %v1953 = vunpack.c.l.b16 %v1732
        %v1954 = vunpack.c.h.b16 %v1732
        %v1955 = vunpack.c.l.b16 %v1733
        %v1956 = vunpack.c.h.b16 %v1733
        %v1957 = vunpack.c.l.b16 %v1734
        %v1958 = vunpack.c.h.b16 %v1734
        %v1959 = vunpack.c.l.b16 %v1735
        %v1960 = vunpack.c.h.b16 %v1735
        %v1961 = vunpack.c.l.b16 %v1736
        %v1962 = vunpack.c.h.b16 %v1736
        %v1963 = vunpack.c.l.b16 %v1737
        %v1964 = vunpack.c.h.b16 %v1737
        %v1965 = vunpack.c.l.b16 %v1738
        %v1966 = vunpack.c.h.b16 %v1738
        %v1967 = vunpack.c.l.b16 %v1739
        %v1968 = vunpack.c.h.b16 %v1739
        %v1969 = vunpack.c.l.b16 %v1740
        %v1970 = vunpack.c.h.b16 %v1740
        %v1971 = vunpack.c.l.b16 %v1741
        %v1972 = vunpack.c.h.b16 %v1741
        %v1973 = vunpack.c.l.b16 %v1742
        %v1974 = vunpack.c.h.b16 %v1742
        %v1975 = vunpack.c.l.b16 %v1743
        %v1976 = vunpack.c.h.b16 %v1743
        %v1977 = vunpack.c.l.b16 %v1744
        %v1978 = vunpack.c.h.b16 %v1744
        %v1979 = vunpack.c.l.b16 %v1745
        %v1980 = vunpack.c.h.b16 %v1745
        %v1981 = vunpack.c.l.b16 %v1746
        %v1982 = vunpack.c.h.b16 %v1746
        %v1983 = vunpack.c.l.b16 %v1747
        %v1984 = vunpack.c.h.b16 %v1747
        %v1985 = vpack.c.b16 %v1923, %v1921
        %v1986 = vpack.c.b16 %v1924, %v1922
        %v1987 = vpack.c.b16 %v1927, %v1925
        %v1988 = vpack.c.b16 %v1928, %v1926
        %v1989 = vpack.c.b16 %v1931, %v1929
        %v1990 = vpack.c.b16 %v1932, %v1930
        %v1991 = vpack.c.b16 %v1935, %v1933
        %v1992 = vpack.c.b16 %v1936, %v1934
        %v1993 = vpack.c.b16 %v1939, %v1937
        %v1994 = vpack.c.b16 %v1940, %v1938
        %v1995 = vpack.c.b16 %v1943, %v1941
        %v1996 = vpack.c.b16 %v1944, %v1942
        %v1997 = vpack.c.b16 %v1947, %v1945
        %v1998 = vpack.c.b16 %v1948, %v1946
        %v1999 = vpack.c.b16 %v1951, %v1949
        %v2000 = vpack.c.b16 %v1952, %v1950
        %v2001 = vpack.c.b16 %v1955, %v1953
        %v2002 = vpack.c.b16 %v1956, %v1954
        %v2003 = vpack.c.b16 %v1959, %v1957
        %v2004 = vpack.c.b16 %v1960, %v1958
        %v2005 = vpack.c.b16 %v1963, %v1961
        %v2006 = vpack.c.b16 %v1964, %v1962
        %v2007 = vpack.c.b16 %v1967, %v1965
        %v2008 = vpack.c.b16 %v1968, %v1966
        %v2009 = vpack.c.b16 %v1971, %v1969
        %v2010 = vpack.c.b16 %v1972, %v1970
        %v2011 = vpack.c.b16 %v1975, %v1973
        %v2012 = vpack.c.b16 %v1976, %v1974
        %v2013 = vpack.c.b16 %v1979, %v1977
        %v2014 = vpack.c.b16 %v1980, %v1978
        %v2015 = vpack.c.b16 %v1983, %v1981
        %v2016 = vpack.c.b16 %v1984, %v1982
        %2049 = vmatprep.subr.bf16.mxu0 %v2000
        %2050 = vmatpush1.bf16.msra.mxu0 %v1999
        %2051 = vmatprep.subr.bf16.mxu0 %v1998
        %2052 = vmatpush1.bf16.msra.mxu0 %v1997
        %2053 = vmatprep.subr.bf16.mxu0 %v1996
        %2054 = vmatpush1.bf16.msra.mxu0 %v1995
        %2055 = vmatprep.subr.bf16.mxu0 %v1994
        %2056 = vmatpush1.bf16.msra.mxu0 %v1993
        %2057 = vmatprep.subr.bf16.mxu0 %v1992
        %2058 = vmatpush1.bf16.msra.mxu0 %v1991
        %2059 = vmatprep.subr.bf16.mxu0 %v1990
        %2060 = vmatpush1.bf16.msra.mxu0 %v1989
        %2061 = vmatprep.subr.bf16.mxu0 %v1988
        %2062 = vmatpush1.bf16.msra.mxu0 %v1987
        %2063 = vmatprep.subr.bf16.mxu0 %v1986
        %2064 = vmatpush1.bf16.msra.mxu0 %v1985
        %2065 = vmatprep.subr.bf16.mxu0 %v2016
        %2066 = vmatpush2.bf16.msra.mxu0 %v2015
        %2067 = vmatprep.subr.bf16.mxu0 %v2014
        %2068 = vmatpush2.bf16.msra.mxu0 %v2013
        %2069 = vmatprep.subr.bf16.mxu0 %v2012
        %2070 = vmatpush2.bf16.msra.mxu0 %v2011
        %2071 = vmatprep.subr.bf16.mxu0 %v2010
        %2072 = vmatpush2.bf16.msra.mxu0 %v2009
        %2073 = vmatprep.subr.bf16.mxu0 %v2008
        %2074 = vmatpush2.bf16.msra.mxu0 %v2007
        %2075 = vmatprep.subr.bf16.mxu0 %v2006
        %2076 = vmatpush2.bf16.msra.mxu0 %v2005
        %2077 = vmatprep.subr.bf16.mxu0 %v2004
        %2078 = vmatpush2.bf16.msra.mxu0 %v2003
        %2079 = vmatprep.subr.bf16.mxu0 %v2002
        %2080 = vmatpush2.bf16.msra.mxu0 %v2001
        %2081 = vmatprep.mubr.bf16.mxu0 %v1875
        %2082 = vmatmul.mubr.bf16.gmra.mxu0 %v1874
        %v2083 = vpop.f32.mrf.mxu0
        %v2084 = vadd.f32 %v1882, %v2083
        %v2085 = vpop.f32.mrf.mxu0
        %v2086 = vadd.f32 %v1886, %v2085
        %v2087 = vpop.f32.mrf.mxu0
        %v2088 = vadd.f32 %v1882, %v2087
        %v2089 = vpop.f32.mrf.mxu0
        %v2090 = vadd.f32 %v1886, %v2089
        %2091 = vmatprep.mubr.bf16.mxu0 %v1877
        %2092 = vmatmul.mubr.bf16.gmra.mxu0 %v1876
        %v2093 = vpop.f32.mrf.mxu0
        %v2094 = vadd.f32 %v1882, %v2093
        %v2095 = vpop.f32.mrf.mxu0
        %v2096 = vadd.f32 %v1886, %v2095
        %v2097 = vpop.f32.mrf.mxu0
        %v2098 = vadd.f32 %v1882, %v2097
        %v2099 = vpop.f32.mrf.mxu0
        %v2100 = vadd.f32 %v1886, %v2099
        %2101 = vdwg.mxu0
        %v2102 = vpack.c.bf16 %v2088, %v2084
        %v2103 = vpack.c.bf16 %v2090, %v2086
        %v2104 = vpack.c.bf16 %v2098, %v2094
        %v2105 = vpack.c.bf16 %v2100, %v2096
        %v2106 = vadd.bf16 %v1710, %v2102
        %v2107 = vadd.bf16 %v1711, %v2103
        %v2108 = vadd.bf16 %v1712, %v2104
        %v2109 = vadd.bf16 %v1713, %v2105
        %v2111 = vlaneseq
        %v2112 = vshrl.u32 %v2111, 7
        %v2113 = vsub.s32 0, %v2112
        %v2114 = vrot.slane %v1749, %v2113
        %v2115 = vlaneseq
        %v2116 = vshrl.u32 %v2115, 7
        %v2117 = vsub.s32 1, %v2116
        %v2118 = vrot.slane %v1749, %v2117
        %v2121 = vpack.c.bf16 %v2114, %v2114
        %v2122 = vpack.c.bf16 %v2118, %v2118
        %v2124 = vpack.i.b16 %v2121, %v2121
        %v2126 = vlaneseq
        %v2127 = vshrl.u32 %v2126, 7
        %v2128 = vsub.s32 0, %v2127
        %v2129 = vrot.slane %v2124, %v2128
        %v2131 = vpack.i.b16 %v2122, %v2122
        %v2133 = vlaneseq
        %v2134 = vshrl.u32 %v2133, 7
        %v2135 = vsub.s32 0, %v2134
        %v2136 = vrot.slane %v2131, %v2135
        %v2137 = vmul.bf16 %v2106, %v2129
        %v2138 = vmul.bf16 %v2107, %v2136
        %v2139 = vmul.bf16 %v2108, %v2129
        %v2140 = vmul.bf16 %v2109, %v2136
        %v2142 = vlaneseq
        %v2143 = vshrl.u32 %v2142, 7
        %v2144 = vsub.s32 0, %v2143
        %v2145 = vrot.slane %v1750, %v2144
        %v2146 = vlaneseq
        %v2147 = vshrl.u32 %v2146, 7
        %v2148 = vsub.s32 1, %v2147
        %v2149 = vrot.slane %v1750, %v2148
        %v2152 = vpack.c.bf16 %v2145, %v2145
        %v2153 = vpack.c.bf16 %v2149, %v2149
        %v2155 = vpack.i.b16 %v2152, %v2152
        %v2157 = vlaneseq
        %v2158 = vshrl.u32 %v2157, 7
        %v2159 = vsub.s32 0, %v2158
        %v2160 = vrot.slane %v2155, %v2159
        %v2162 = vpack.i.b16 %v2153, %v2153
        %v2164 = vlaneseq
        %v2165 = vshrl.u32 %v2164, 7
        %v2166 = vsub.s32 0, %v2165
        %v2167 = vrot.slane %v2162, %v2166
        %v2168 = vadd.bf16 %v2137, %v2160
        %v2169 = vadd.bf16 %v2138, %v2167
        %v2170 = vadd.bf16 %v2139, %v2160
        %v2171 = vadd.bf16 %v2140, %v2167
        %v2172 = vmul.bf16 %v2168, %v2168
        %v2173 = vmul.bf16 %v2169, %v2169
        %v2174 = vmul.bf16 %v2170, %v2170
        %v2175 = vmul.bf16 %v2171, %v2171
        %v2176 = vmul.bf16 %v2172, 1024605458
        %v2177 = vmul.bf16 %v2173, 1024605458
        %v2178 = vmul.bf16 %v2174, 1024605458
        %v2179 = vmul.bf16 %v2175, 1024605458
        %v2180 = vadd.bf16 %v2176, 1061961548
        %v2181 = vadd.bf16 %v2177, 1061961548
        %v2182 = vadd.bf16 %v2178, 1061961548
        %v2183 = vadd.bf16 %v2179, 1061961548
        %v2184 = vmul.bf16 %v2168, %v2180
        %v2185 = vmul.bf16 %v2169, %v2181
        %v2186 = vmul.bf16 %v2170, %v2182
        %v2187 = vmul.bf16 %v2171, %v2183
        %v2188 = vmul.bf16 %v2168, 1056980736
        %v2189 = vmul.bf16 %v2169, 1056980736
        %v2190 = vmul.bf16 %v2170, 1056980736
        %v2191 = vmul.bf16 %v2171, 1056980736
        %v2192 = vtanh.bf16.pop %v2184
        %v2193 = vtanh.bf16.pop %v2185
        %v2194 = vtanh.bf16.pop %v2186
        %v2195 = vtanh.bf16.pop %v2187
        %v2196 = vadd.bf16 %v2192, 1065369472
        %v2197 = vadd.bf16 %v2193, 1065369472
        %v2198 = vadd.bf16 %v2194, 1065369472
        %v2199 = vadd.bf16 %v2195, 1065369472
        %v2200 = vmul.bf16 %v2188, %v2196
        %v2201 = vmul.bf16 %v2189, %v2197
        %v2202 = vmul.bf16 %v2190, %v2198
        %v2203 = vmul.bf16 %v2191, %v2199
        %v2205 = vlaneseq
        %v2206 = vshrl.u32 %v2205, 7
        %v2207 = vsub.s32 0, %v2206
        %v2208 = vrot.slane %v1783, %v2207
        %v2242 = vunpack.c.l.b16 %v1751
        %v2243 = vunpack.c.l.b16 %v1752
        %v2244 = vunpack.c.l.b16 %v1753
        %v2245 = vunpack.c.l.b16 %v1754
        %v2246 = vunpack.c.l.b16 %v1755
        %v2247 = vunpack.c.l.b16 %v1756
        %v2248 = vunpack.c.l.b16 %v1757
        %v2249 = vunpack.c.l.b16 %v1758
        %v2250 = vunpack.c.l.b16 %v1759
        %v2251 = vunpack.c.l.b16 %v1760
        %v2252 = vunpack.c.l.b16 %v1761
        %v2253 = vunpack.c.l.b16 %v1762
        %v2254 = vunpack.c.l.b16 %v1763
        %v2255 = vunpack.c.l.b16 %v1764
        %v2256 = vunpack.c.l.b16 %v1765
        %v2257 = vunpack.c.l.b16 %v1766
        %v2258 = vunpack.c.l.b16 %v1767
        %v2259 = vunpack.c.l.b16 %v1768
        %v2260 = vunpack.c.l.b16 %v1769
        %v2261 = vunpack.c.l.b16 %v1770
        %v2262 = vunpack.c.l.b16 %v1771
        %v2263 = vunpack.c.l.b16 %v1772
        %v2264 = vunpack.c.l.b16 %v1773
        %v2265 = vunpack.c.l.b16 %v1774
        %v2266 = vunpack.c.l.b16 %v1775
        %v2267 = vunpack.c.l.b16 %v1776
        %v2268 = vunpack.c.l.b16 %v1777
        %v2269 = vunpack.c.l.b16 %v1778
        %v2270 = vunpack.c.l.b16 %v1779
        %v2271 = vunpack.c.l.b16 %v1780
        %v2272 = vunpack.c.l.b16 %v1781
        %v2273 = vunpack.c.l.b16 %v1782
        %v2274 = vpack.c.b16 %v2243, %v2242
        %v2275 = vpack.c.b16 %v2245, %v2244
        %v2276 = vpack.c.b16 %v2247, %v2246
        %v2277 = vpack.c.b16 %v2249, %v2248
        %v2278 = vpack.c.b16 %v2251, %v2250
        %v2279 = vpack.c.b16 %v2253, %v2252
        %v2280 = vpack.c.b16 %v2255, %v2254
        %v2281 = vpack.c.b16 %v2257, %v2256
        %v2282 = vpack.c.b16 %v2259, %v2258
        %v2283 = vpack.c.b16 %v2261, %v2260
        %v2284 = vpack.c.b16 %v2263, %v2262
        %v2285 = vpack.c.b16 %v2265, %v2264
        %v2286 = vpack.c.b16 %v2267, %v2266
        %v2287 = vpack.c.b16 %v2269, %v2268
        %v2288 = vpack.c.b16 %v2271, %v2270
        %v2289 = vpack.c.b16 %v2273, %v2272
        %2306 = vmatprep.subr.bf16.mxu0 0
        %2307 = vmatpush1.bf16.msra.mxu0 %v2281
        %2308 = vmatprep.subr.bf16.mxu0 0
        %2309 = vmatpush1.bf16.msra.mxu0 %v2280
        %2310 = vmatprep.subr.bf16.mxu0 0
        %2311 = vmatpush1.bf16.msra.mxu0 %v2279
        %2312 = vmatprep.subr.bf16.mxu0 0
        %2313 = vmatpush1.bf16.msra.mxu0 %v2278
        %2314 = vmatprep.subr.bf16.mxu0 0
        %2315 = vmatpush1.bf16.msra.mxu0 %v2277
        %2316 = vmatprep.subr.bf16.mxu0 0
        %2317 = vmatpush1.bf16.msra.mxu0 %v2276
        %2318 = vmatprep.subr.bf16.mxu0 0
        %2319 = vmatpush1.bf16.msra.mxu0 %v2275
        %2320 = vmatprep.subr.bf16.mxu0 0
        %2321 = vmatpush1.bf16.msra.mxu0 %v2274
        %2322 = vmatprep.subr.bf16.mxu0 0
        %2323 = vmatpush2.bf16.msra.mxu0 %v2289
        %2324 = vmatprep.subr.bf16.mxu0 0
        %2325 = vmatpush2.bf16.msra.mxu0 %v2288
        %2326 = vmatprep.subr.bf16.mxu0 0
        %2327 = vmatpush2.bf16.msra.mxu0 %v2287
        %2328 = vmatprep.subr.bf16.mxu0 0
        %2329 = vmatpush2.bf16.msra.mxu0 %v2286
        %2330 = vmatprep.subr.bf16.mxu0 0
        %2331 = vmatpush2.bf16.msra.mxu0 %v2285
        %2332 = vmatprep.subr.bf16.mxu0 0
        %2333 = vmatpush2.bf16.msra.mxu0 %v2284
        %2334 = vmatprep.subr.bf16.mxu0 0
        %2335 = vmatpush2.bf16.msra.mxu0 %v2283
        %2336 = vmatprep.subr.bf16.mxu0 0
        %2337 = vmatpush2.bf16.msra.mxu0 %v2282
        %2338 = vmatprep.mubr.bf16.mxu0 %v2201
        %2339 = vmatmul.mubr.bf16.gmra.mxu0 %v2200
        %v2340 = vpop.f32.mrf.mxu0
        %v2341 = vadd.f32 %v2208, %v2340
        %v2342 = vpop.f32.mrf.mxu0
        %v2343 = vpop.f32.mrf.mxu0
        %v2344 = vadd.f32 %v2208, %v2343
        %v2345 = vpop.f32.mrf.mxu0
        %2346 = vmatprep.mubr.bf16.mxu0 %v2203
        %2347 = vmatmul.mubr.bf16.gmra.mxu0 %v2202
        %v2348 = vpop.f32.mrf.mxu0
        %v2349 = vadd.f32 %v2208, %v2348
        %v2350 = vpop.f32.mrf.mxu0
        %v2351 = vpop.f32.mrf.mxu0
        %v2352 = vadd.f32 %v2208, %v2351
        %v2353 = vpop.f32.mrf.mxu0
        %2354 = vdwg.mxu0
        %v2355 = vpack.c.bf16 %v2344, %v2341
        %v2356 = vpack.c.bf16 %v2352, %v2349
        %v2357 = vld [vmem:[#allocation13] sm:$0x1]
        %v2358 = vld [vmem:[#allocation14] sm:$0x1]
        %v2359 = vld [vmem:[#allocation16] sm:$0xf]
        %v2360 = vld [vmem:[#allocation16 + $0x4] sm:$0xf]
        %v2361 = vld [vmem:[#allocation16 + $0x8] sm:$0xf]
        %v2362 = vld [vmem:[#allocation16 + $0xc] sm:$0xf]
        %v2363 = vld [vmem:[#allocation16 + $0x10] sm:$0xf]
        %v2364 = vld [vmem:[#allocation16 + $0x14] sm:$0xf]
        %v2365 = vld [vmem:[#allocation16 + $0x18] sm:$0xf]
        %v2366 = vld [vmem:[#allocation16 + $0x1c] sm:$0xf]
        %v2367 = vld [vmem:[#allocation16 + $0x20] sm:$0xf]
        %v2368 = vld [vmem:[#allocation16 + $0x24] sm:$0xf]
        %v2369 = vld [vmem:[#allocation16 + $0x28] sm:$0xf]
        %v2370 = vld [vmem:[#allocation16 + $0x2c] sm:$0xf]
        %v2371 = vld [vmem:[#allocation16 + $0x30] sm:$0xf]
        %v2372 = vld [vmem:[#allocation16 + $0x34] sm:$0xf]
        %v2373 = vld [vmem:[#allocation16 + $0x38] sm:$0xf]
        %v2374 = vld [vmem:[#allocation16 + $0x3c] sm:$0xf]
        %v2375 = vld [vmem:[#allocation17] sm:$0x1]
        %v2376 = vld [vmem:[#allocation19] sm:$0x1]
        %v2377 = vld [vmem:[#allocation20] sm:$0x1]
        %v2378 = vld [vmem:[#allocation22] sm:$0xf]
        %v2379 = vld [vmem:[#allocation22 + $0x4] sm:$0xf]
        %v2380 = vld [vmem:[#allocation22 + $0x8] sm:$0xf]
        %v2381 = vld [vmem:[#allocation22 + $0xc] sm:$0xf]
        %v2382 = vld [vmem:[#allocation22 + $0x10] sm:$0xf]
        %v2383 = vld [vmem:[#allocation22 + $0x14] sm:$0xf]
        %v2384 = vld [vmem:[#allocation22 + $0x18] sm:$0xf]
        %v2385 = vld [vmem:[#allocation22 + $0x1c] sm:$0xf]
        %v2386 = vld [vmem:[#allocation22 + $0x20] sm:$0xf]
        %v2387 = vld [vmem:[#allocation22 + $0x24] sm:$0xf]
        %v2388 = vld [vmem:[#allocation22 + $0x28] sm:$0xf]
        %v2389 = vld [vmem:[#allocation22 + $0x2c] sm:$0xf]
        %v2390 = vld [vmem:[#allocation22 + $0x30] sm:$0xf]
        %v2391 = vld [vmem:[#allocation22 + $0x34] sm:$0xf]
        %v2392 = vld [vmem:[#allocation22 + $0x38] sm:$0xf]
        %v2393 = vld [vmem:[#allocation22 + $0x3c] sm:$0xf]
        %v2394 = vld [vmem:[#allocation23] sm:$0x1]
        %v2395 = vpack.c.bf16 %v2357, %v2357
        %v2397 = vpack.i.b16 %v2395, %v2395
        %v2399 = vlaneseq
        %v2400 = vshrl.u32 %v2399, 7
        %v2401 = vsub.s32 0, %v2400
        %v2402 = vrot.slane %v2397, %v2401
        %v2403 = vmul.bf16 %v2355, %v2402
        %v2404 = vmul.bf16 %v2356, %v2402
        %v2405 = vpack.c.bf16 %v2358, %v2358
        %v2407 = vpack.i.b16 %v2405, %v2405
        %v2409 = vlaneseq
        %v2410 = vshrl.u32 %v2409, 7
        %v2411 = vsub.s32 0, %v2410
        %v2412 = vrot.slane %v2407, %v2411
        %v2413 = vadd.bf16 %v2403, %v2412
        %v2414 = vadd.bf16 %v2404, %v2412
        %v2415 = vmul.bf16 %v2413, %v2413
        %v2416 = vmul.bf16 %v2414, %v2414
        %v2417 = vmul.bf16 %v2415, 1024605458
        %v2418 = vmul.bf16 %v2416, 1024605458
        %v2419 = vadd.bf16 %v2417, 1061961548
        %v2420 = vadd.bf16 %v2418, 1061961548
        %v2421 = vmul.bf16 %v2413, %v2419
        %v2422 = vmul.bf16 %v2414, %v2420
        %v2423 = vmul.bf16 %v2413, 1056980736
        %v2424 = vmul.bf16 %v2414, 1056980736
        %v2425 = vtanh.bf16.pop %v2421
        %v2426 = vtanh.bf16.pop %v2422
        %v2427 = vadd.bf16 %v2425, 1065369472
        %v2428 = vadd.bf16 %v2426, 1065369472
        %v2429 = vmul.bf16 %v2423, %v2427
        %v2430 = vmul.bf16 %v2424, %v2428
        %v2432 = vlaneseq
        %v2433 = vshrl.u32 %v2432, 7
        %v2434 = vsub.s32 0, %v2433
        %v2435 = vrot.slane %v2375, %v2434
        %v2453 = vunpack.c.l.b16 %v2359
        %v2454 = vunpack.c.l.b16 %v2360
        %v2455 = vunpack.c.l.b16 %v2361
        %v2456 = vunpack.c.l.b16 %v2362
        %v2457 = vunpack.c.l.b16 %v2363
        %v2458 = vunpack.c.l.b16 %v2364
        %v2459 = vunpack.c.l.b16 %v2365
        %v2460 = vunpack.c.l.b16 %v2366
        %v2461 = vunpack.c.l.b16 %v2367
        %v2462 = vunpack.c.l.b16 %v2368
        %v2463 = vunpack.c.l.b16 %v2369
        %v2464 = vunpack.c.l.b16 %v2370
        %v2465 = vunpack.c.l.b16 %v2371
        %v2466 = vunpack.c.l.b16 %v2372
        %v2467 = vunpack.c.l.b16 %v2373
        %v2468 = vunpack.c.l.b16 %v2374
        %v2469 = vpack.c.b16 %v2454, %v2453
        %v2470 = vpack.c.b16 %v2456, %v2455
        %v2471 = vpack.c.b16 %v2458, %v2457
        %v2472 = vpack.c.b16 %v2460, %v2459
        %v2473 = vpack.c.b16 %v2462, %v2461
        %v2474 = vpack.c.b16 %v2464, %v2463
        %v2475 = vpack.c.b16 %v2466, %v2465
        %v2476 = vpack.c.b16 %v2468, %v2467
        %2485 = vmatprep.subr.bf16.mxu0 0
        %2486 = vmatpush1.bf16.msra.mxu0 %v2476
        %2487 = vmatprep.subr.bf16.mxu0 0
        %2488 = vmatpush1.bf16.msra.mxu0 %v2475
        %2489 = vmatprep.subr.bf16.mxu0 0
        %2490 = vmatpush1.bf16.msra.mxu0 %v2474
        %2491 = vmatprep.subr.bf16.mxu0 0
        %2492 = vmatpush1.bf16.msra.mxu0 %v2473
        %2493 = vmatprep.subr.bf16.mxu0 0
        %2494 = vmatpush1.bf16.msra.mxu0 %v2472
        %2495 = vmatprep.subr.bf16.mxu0 0
        %2496 = vmatpush1.bf16.msra.mxu0 %v2471
        %2497 = vmatprep.subr.bf16.mxu0 0
        %2498 = vmatpush1.bf16.msra.mxu0 %v2470
        %2499 = vmatprep.subr.bf16.mxu0 0
        %2500 = vmatpush1.bf16.msra.mxu0 %v2469
        %2501 = vmatprep.subr.bf16.mxu0 0
        %2502 = vmatpush2.bf16.msra.mxu0 0
        %2503 = vmatprep.subr.bf16.mxu0 0
        %2504 = vmatpush2.bf16.msra.mxu0 0
        %2505 = vmatprep.subr.bf16.mxu0 0
        %2506 = vmatpush2.bf16.msra.mxu0 0
        %2507 = vmatprep.subr.bf16.mxu0 0
        %2508 = vmatpush2.bf16.msra.mxu0 0
        %2509 = vmatprep.subr.bf16.mxu0 0
        %2510 = vmatpush2.bf16.msra.mxu0 0
        %2511 = vmatprep.subr.bf16.mxu0 0
        %2512 = vmatpush2.bf16.msra.mxu0 0
        %2513 = vmatprep.subr.bf16.mxu0 0
        %2514 = vmatpush2.bf16.msra.mxu0 0
        %2515 = vmatprep.subr.bf16.mxu0 0
        %2516 = vmatpush2.bf16.msra.mxu0 0
        %2517 = vmatprep.mubr.bf16.mxu0 0
        %2518 = vmatmul.mubr.bf16.gmra.mxu0 %v2429
        %v2519 = vpop.f32.mrf.mxu0
        %v2520 = vadd.f32 %v2435, %v2519
        %v2521 = vpop.f32.mrf.mxu0
        %v2522 = vpop.f32.mrf.mxu0
        %v2523 = vadd.f32 %v2435, %v2522
        %v2524 = vpop.f32.mrf.mxu0
        %2525 = vmatprep.mubr.bf16.mxu0 0
        %2526 = vmatmul.mubr.bf16.gmra.mxu0 %v2430
        %v2527 = vpop.f32.mrf.mxu0
        %v2528 = vadd.f32 %v2435, %v2527
        %v2529 = vpop.f32.mrf.mxu0
        %v2530 = vpop.f32.mrf.mxu0
        %v2531 = vadd.f32 %v2435, %v2530
        %v2532 = vpop.f32.mrf.mxu0
        %2533 = vdwg.mxu0
        %v2534 = vpack.c.bf16 %v2523, %v2520
        %v2535 = vpack.c.bf16 %v2531, %v2528
        %v2536 = vadd.bf16 %v2355, %v2534
        %v2537 = vadd.bf16 %v2356, %v2535
        %v2538 = vpack.c.bf16 %v2376, %v2376
        %v2540 = vpack.i.b16 %v2538, %v2538
        %v2542 = vlaneseq
        %v2543 = vshrl.u32 %v2542, 7
        %v2544 = vsub.s32 0, %v2543
        %v2545 = vrot.slane %v2540, %v2544
        %v2546 = vmul.bf16 %v2536, %v2545
        %v2547 = vmul.bf16 %v2537, %v2545
        %v2548 = vpack.c.bf16 %v2377, %v2377
        %v2550 = vpack.i.b16 %v2548, %v2548
        %v2552 = vlaneseq
        %v2553 = vshrl.u32 %v2552, 7
        %v2554 = vsub.s32 0, %v2553
        %v2555 = vrot.slane %v2550, %v2554
        %v2556 = vadd.bf16 %v2546, %v2555
        %v2557 = vadd.bf16 %v2547, %v2555
        %v2558 = vmul.bf16 %v2556, %v2556
        %v2559 = vmul.bf16 %v2557, %v2557
        %v2560 = vmul.bf16 %v2558, 1024605458
        %v2561 = vmul.bf16 %v2559, 1024605458
        %v2562 = vadd.bf16 %v2560, 1061961548
        %v2563 = vadd.bf16 %v2561, 1061961548
        %v2564 = vmul.bf16 %v2556, %v2562
        %v2565 = vmul.bf16 %v2557, %v2563
        %v2566 = vmul.bf16 %v2556, 1056980736
        %v2567 = vmul.bf16 %v2557, 1056980736
        %v2568 = vtanh.bf16.pop %v2564
        %v2569 = vtanh.bf16.pop %v2565
        %v2570 = vadd.bf16 %v2568, 1065369472
        %v2571 = vadd.bf16 %v2569, 1065369472
        %v2572 = vmul.bf16 %v2566, %v2570
        %v2573 = vmul.bf16 %v2567, %v2571
        %v2575 = vlaneseq
        %v2576 = vshrl.u32 %v2575, 7
        %v2577 = vsub.s32 0, %v2576
        %v2578 = vrot.slane %v2394, %v2577
        %v2596 = vunpack.c.l.b16 %v2378
        %v2597 = vunpack.c.l.b16 %v2379
        %v2598 = vunpack.c.l.b16 %v2380
        %v2599 = vunpack.c.l.b16 %v2381
        %v2600 = vunpack.c.l.b16 %v2382
        %v2601 = vunpack.c.l.b16 %v2383
        %v2602 = vunpack.c.l.b16 %v2384
        %v2603 = vunpack.c.l.b16 %v2385
        %v2604 = vunpack.c.l.b16 %v2386
        %v2605 = vunpack.c.l.b16 %v2387
        %v2606 = vunpack.c.l.b16 %v2388
        %v2607 = vunpack.c.l.b16 %v2389
        %v2608 = vunpack.c.l.b16 %v2390
        %v2609 = vunpack.c.l.b16 %v2391
        %v2610 = vunpack.c.l.b16 %v2392
        %v2611 = vunpack.c.l.b16 %v2393
        %v2612 = vpack.c.b16 %v2597, %v2596
        %v2613 = vpack.c.b16 %v2599, %v2598
        %v2614 = vpack.c.b16 %v2601, %v2600
        %v2615 = vpack.c.b16 %v2603, %v2602
        %v2616 = vpack.c.b16 %v2605, %v2604
        %v2617 = vpack.c.b16 %v2607, %v2606
        %v2618 = vpack.c.b16 %v2609, %v2608
        %v2619 = vpack.c.b16 %v2611, %v2610
        %2628 = vmatprep.subr.bf16.mxu0 0
        %2629 = vmatpush1.bf16.msra.mxu0 %v2619
        %2630 = vmatprep.subr.bf16.mxu0 0
        %2631 = vmatpush1.bf16.msra.mxu0 %v2618
        %2632 = vmatprep.subr.bf16.mxu0 0
        %2633 = vmatpush1.bf16.msra.mxu0 %v2617
        %2634 = vmatprep.subr.bf16.mxu0 0
        %2635 = vmatpush1.bf16.msra.mxu0 %v2616
        %2636 = vmatprep.subr.bf16.mxu0 0
        %2637 = vmatpush1.bf16.msra.mxu0 %v2615
        %2638 = vmatprep.subr.bf16.mxu0 0
        %2639 = vmatpush1.bf16.msra.mxu0 %v2614
        %2640 = vmatprep.subr.bf16.mxu0 0
        %2641 = vmatpush1.bf16.msra.mxu0 %v2613
        %2642 = vmatprep.subr.bf16.mxu0 0
        %2643 = vmatpush1.bf16.msra.mxu0 %v2612
        %2644 = vmatprep.subr.bf16.mxu0 0
        %2645 = vmatpush2.bf16.msra.mxu0 0
        %2646 = vmatprep.subr.bf16.mxu0 0
        %2647 = vmatpush2.bf16.msra.mxu0 0
        %2648 = vmatprep.subr.bf16.mxu0 0
        %2649 = vmatpush2.bf16.msra.mxu0 0
        %2650 = vmatprep.subr.bf16.mxu0 0
        %2651 = vmatpush2.bf16.msra.mxu0 0
        %2652 = vmatprep.subr.bf16.mxu0 0
        %2653 = vmatpush2.bf16.msra.mxu0 0
        %2654 = vmatprep.subr.bf16.mxu0 0
        %2655 = vmatpush2.bf16.msra.mxu0 0
        %2656 = vmatprep.subr.bf16.mxu0 0
        %2657 = vmatpush2.bf16.msra.mxu0 0
        %2658 = vmatprep.subr.bf16.mxu0 0
        %2659 = vmatpush2.bf16.msra.mxu0 0
        %2660 = vmatprep.mubr.bf16.mxu0 0
        %2661 = vmatmul.mubr.bf16.gmra.mxu0 %v2572
        %v2662 = vpop.f32.mrf.mxu0
        %v2663 = vadd.f32 %v2578, %v2662
        %v2664 = vpop.f32.mrf.mxu0
        %v2665 = vpop.f32.mrf.mxu0
        %v2666 = vadd.f32 %v2578, %v2665
        %v2667 = vpop.f32.mrf.mxu0
        %2668 = vmatprep.mubr.bf16.mxu0 0
        %2669 = vmatmul.mubr.bf16.gmra.mxu0 %v2573
        %v2670 = vpop.f32.mrf.mxu0
        %v2671 = vadd.f32 %v2578, %v2670
        %v2672 = vpop.f32.mrf.mxu0
        %v2673 = vpop.f32.mrf.mxu0
        %v2674 = vadd.f32 %v2578, %v2673
        %v2675 = vpop.f32.mrf.mxu0
        %2676 = vdwg.mxu0
        %v2677 = vpack.c.bf16 %v2666, %v2663
        %v2678 = vpack.c.bf16 %v2674, %v2671
        %v2679 = vld [vmem:[#allocation25] sm:$0x1]
        %v2680 = vld [vmem:[#allocation26] sm:$0x1]
        %v2681 = vld [vmem:[#allocation28] sm:$0xf]
        %v2682 = vld [vmem:[#allocation28 + $0x4] sm:$0xf]
        %v2683 = vld [vmem:[#allocation28 + $0x8] sm:$0xf]
        %v2684 = vld [vmem:[#allocation28 + $0xc] sm:$0xf]
        %v2685 = vld [vmem:[#allocation28 + $0x10] sm:$0xf]
        %v2686 = vld [vmem:[#allocation28 + $0x14] sm:$0xf]
        %v2687 = vld [vmem:[#allocation28 + $0x18] sm:$0xf]
        %v2688 = vld [vmem:[#allocation28 + $0x1c] sm:$0xf]
        %v2689 = vld [vmem:[#allocation28 + $0x20] sm:$0xf]
        %v2690 = vld [vmem:[#allocation28 + $0x24] sm:$0xf]
        %v2691 = vld [vmem:[#allocation28 + $0x28] sm:$0xf]
        %v2692 = vld [vmem:[#allocation28 + $0x2c] sm:$0xf]
        %v2693 = vld [vmem:[#allocation28 + $0x30] sm:$0xf]
        %v2694 = vld [vmem:[#allocation28 + $0x34] sm:$0xf]
        %v2695 = vld [vmem:[#allocation28 + $0x38] sm:$0xf]
        %v2696 = vld [vmem:[#allocation28 + $0x3c] sm:$0xf]
        %v2697 = vld [vmem:[#allocation29] sm:$0x1]
        %v2698 = vld [vmem:[#allocation31] sm:$0x1]
        %v2699 = vld [vmem:[#allocation32] sm:$0x1]
        %v2700 = vld [vmem:[#allocation34] sm:$0xf]
        %v2701 = vld [vmem:[#allocation34 + $0x4] sm:$0xf]
        %v2702 = vld [vmem:[#allocation34 + $0x8] sm:$0xf]
        %v2703 = vld [vmem:[#allocation34 + $0xc] sm:$0xf]
        %v2704 = vld [vmem:[#allocation34 + $0x10] sm:$0xf]
        %v2705 = vld [vmem:[#allocation34 + $0x14] sm:$0xf]
        %v2706 = vld [vmem:[#allocation34 + $0x18] sm:$0xf]
        %v2707 = vld [vmem:[#allocation34 + $0x1c] sm:$0xf]
        %v2708 = vld [vmem:[#allocation34 + $0x20] sm:$0xf]
        %v2709 = vld [vmem:[#allocation34 + $0x24] sm:$0xf]
        %v2710 = vld [vmem:[#allocation34 + $0x28] sm:$0xf]
        %v2711 = vld [vmem:[#allocation34 + $0x2c] sm:$0xf]
        %v2712 = vld [vmem:[#allocation34 + $0x30] sm:$0xf]
        %v2713 = vld [vmem:[#allocation34 + $0x34] sm:$0xf]
        %v2714 = vld [vmem:[#allocation34 + $0x38] sm:$0xf]
        %v2715 = vld [vmem:[#allocation34 + $0x3c] sm:$0xf]
        %v2716 = vld [vmem:[#allocation35] sm:$0x1]
        %v2717 = vpack.c.bf16 %v2679, %v2679
        %v2719 = vpack.i.b16 %v2717, %v2717
        %v2721 = vlaneseq
        %v2722 = vshrl.u32 %v2721, 7
        %v2723 = vsub.s32 0, %v2722
        %v2724 = vrot.slane %v2719, %v2723
        %v2725 = vmul.bf16 %v2677, %v2724
        %v2726 = vmul.bf16 %v2678, %v2724
        %v2727 = vpack.c.bf16 %v2680, %v2680
        %v2729 = vpack.i.b16 %v2727, %v2727
        %v2731 = vlaneseq
        %v2732 = vshrl.u32 %v2731, 7
        %v2733 = vsub.s32 0, %v2732
        %v2734 = vrot.slane %v2729, %v2733
        %v2735 = vadd.bf16 %v2725, %v2734
        %v2736 = vadd.bf16 %v2726, %v2734
        %v2737 = vmul.bf16 %v2735, %v2735
        %v2738 = vmul.bf16 %v2736, %v2736
        %v2739 = vmul.bf16 %v2737, 1024605458
        %v2740 = vmul.bf16 %v2738, 1024605458
        %v2741 = vadd.bf16 %v2739, 1061961548
        %v2742 = vadd.bf16 %v2740, 1061961548
        %v2743 = vmul.bf16 %v2735, %v2741
        %v2744 = vmul.bf16 %v2736, %v2742
        %v2745 = vmul.bf16 %v2735, 1056980736
        %v2746 = vmul.bf16 %v2736, 1056980736
        %v2747 = vtanh.bf16.pop %v2743
        %v2748 = vtanh.bf16.pop %v2744
        %v2749 = vadd.bf16 %v2747, 1065369472
        %v2750 = vadd.bf16 %v2748, 1065369472
        %v2751 = vmul.bf16 %v2745, %v2749
        %v2752 = vmul.bf16 %v2746, %v2750
        %v2754 = vlaneseq
        %v2755 = vshrl.u32 %v2754, 7
        %v2756 = vsub.s32 0, %v2755
        %v2757 = vrot.slane %v2697, %v2756
        %v2775 = vunpack.c.l.b16 %v2681
        %v2776 = vunpack.c.l.b16 %v2682
        %v2777 = vunpack.c.l.b16 %v2683
        %v2778 = vunpack.c.l.b16 %v2684
        %v2779 = vunpack.c.l.b16 %v2685
        %v2780 = vunpack.c.l.b16 %v2686
        %v2781 = vunpack.c.l.b16 %v2687
        %v2782 = vunpack.c.l.b16 %v2688
        %v2783 = vunpack.c.l.b16 %v2689
        %v2784 = vunpack.c.l.b16 %v2690
        %v2785 = vunpack.c.l.b16 %v2691
        %v2786 = vunpack.c.l.b16 %v2692
        %v2787 = vunpack.c.l.b16 %v2693
        %v2788 = vunpack.c.l.b16 %v2694
        %v2789 = vunpack.c.l.b16 %v2695
        %v2790 = vunpack.c.l.b16 %v2696
        %v2791 = vpack.c.b16 %v2776, %v2775
        %v2792 = vpack.c.b16 %v2778, %v2777
        %v2793 = vpack.c.b16 %v2780, %v2779
        %v2794 = vpack.c.b16 %v2782, %v2781
        %v2795 = vpack.c.b16 %v2784, %v2783
        %v2796 = vpack.c.b16 %v2786, %v2785
        %v2797 = vpack.c.b16 %v2788, %v2787
        %v2798 = vpack.c.b16 %v2790, %v2789
        %2807 = vmatprep.subr.bf16.mxu0 0
        %2808 = vmatpush1.bf16.msra.mxu0 %v2798
        %2809 = vmatprep.subr.bf16.mxu0 0
        %2810 = vmatpush1.bf16.msra.mxu0 %v2797
        %2811 = vmatprep.subr.bf16.mxu0 0
        %2812 = vmatpush1.bf16.msra.mxu0 %v2796
        %2813 = vmatprep.subr.bf16.mxu0 0
        %2814 = vmatpush1.bf16.msra.mxu0 %v2795
        %2815 = vmatprep.subr.bf16.mxu0 0
        %2816 = vmatpush1.bf16.msra.mxu0 %v2794
        %2817 = vmatprep.subr.bf16.mxu0 0
        %2818 = vmatpush1.bf16.msra.mxu0 %v2793
        %2819 = vmatprep.subr.bf16.mxu0 0
        %2820 = vmatpush1.bf16.msra.mxu0 %v2792
        %2821 = vmatprep.subr.bf16.mxu0 0
        %2822 = vmatpush1.bf16.msra.mxu0 %v2791
        %2823 = vmatprep.subr.bf16.mxu0 0
        %2824 = vmatpush2.bf16.msra.mxu0 0
        %2825 = vmatprep.subr.bf16.mxu0 0
        %2826 = vmatpush2.bf16.msra.mxu0 0
        %2827 = vmatprep.subr.bf16.mxu0 0
        %2828 = vmatpush2.bf16.msra.mxu0 0
        %2829 = vmatprep.subr.bf16.mxu0 0
        %2830 = vmatpush2.bf16.msra.mxu0 0
        %2831 = vmatprep.subr.bf16.mxu0 0
        %2832 = vmatpush2.bf16.msra.mxu0 0
        %2833 = vmatprep.subr.bf16.mxu0 0
        %2834 = vmatpush2.bf16.msra.mxu0 0
        %2835 = vmatprep.subr.bf16.mxu0 0
        %2836 = vmatpush2.bf16.msra.mxu0 0
        %2837 = vmatprep.subr.bf16.mxu0 0
        %2838 = vmatpush2.bf16.msra.mxu0 0
        %2839 = vmatprep.mubr.bf16.mxu0 0
        %2840 = vmatmul.mubr.bf16.gmra.mxu0 %v2751
        %v2841 = vpop.f32.mrf.mxu0
        %v2842 = vadd.f32 %v2757, %v2841
        %v2843 = vpop.f32.mrf.mxu0
        %v2844 = vpop.f32.mrf.mxu0
        %v2845 = vadd.f32 %v2757, %v2844
        %v2846 = vpop.f32.mrf.mxu0
        %2847 = vmatprep.mubr.bf16.mxu0 0
        %2848 = vmatmul.mubr.bf16.gmra.mxu0 %v2752
        %v2849 = vpop.f32.mrf.mxu0
        %v2850 = vadd.f32 %v2757, %v2849
        %v2851 = vpop.f32.mrf.mxu0
        %v2852 = vpop.f32.mrf.mxu0
        %v2853 = vadd.f32 %v2757, %v2852
        %v2854 = vpop.f32.mrf.mxu0
        %2855 = vdwg.mxu0
        %v2856 = vpack.c.bf16 %v2845, %v2842
        %v2857 = vpack.c.bf16 %v2853, %v2850
        %v2858 = vadd.bf16 %v2677, %v2856
        %v2859 = vadd.bf16 %v2678, %v2857
        %v2860 = vpack.c.bf16 %v2698, %v2698
        %v2862 = vpack.i.b16 %v2860, %v2860
        %v2864 = vlaneseq
        %v2865 = vshrl.u32 %v2864, 7
        %v2866 = vsub.s32 0, %v2865
        %v2867 = vrot.slane %v2862, %v2866
        %v2868 = vmul.bf16 %v2858, %v2867
        %v2869 = vmul.bf16 %v2859, %v2867
        %v2870 = vpack.c.bf16 %v2699, %v2699
        %v2872 = vpack.i.b16 %v2870, %v2870
        %v2874 = vlaneseq
        %v2875 = vshrl.u32 %v2874, 7
        %v2876 = vsub.s32 0, %v2875
        %v2877 = vrot.slane %v2872, %v2876
        %v2878 = vadd.bf16 %v2868, %v2877
        %v2879 = vadd.bf16 %v2869, %v2877
        %v2880 = vmul.bf16 %v2878, %v2878
        %v2881 = vmul.bf16 %v2879, %v2879
        %v2882 = vmul.bf16 %v2880, 1024605458
        %v2883 = vmul.bf16 %v2881, 1024605458
        %v2884 = vadd.bf16 %v2882, 1061961548
        %v2885 = vadd.bf16 %v2883, 1061961548
        %v2886 = vmul.bf16 %v2878, %v2884
        %v2887 = vmul.bf16 %v2879, %v2885
        %v2888 = vmul.bf16 %v2878, 1056980736
        %v2889 = vmul.bf16 %v2879, 1056980736
        %v2890 = vtanh.bf16.pop %v2886
        %v2891 = vtanh.bf16.pop %v2887
        %v2892 = vadd.bf16 %v2890, 1065369472
        %v2893 = vadd.bf16 %v2891, 1065369472
        %v2894 = vmul.bf16 %v2888, %v2892
        %v2895 = vmul.bf16 %v2889, %v2893
        %v2897 = vlaneseq
        %v2898 = vshrl.u32 %v2897, 7
        %v2899 = vsub.s32 0, %v2898
        %v2900 = vrot.slane %v2716, %v2899
        %v2918 = vunpack.c.l.b16 %v2700
        %v2919 = vunpack.c.l.b16 %v2701
        %v2920 = vunpack.c.l.b16 %v2702
        %v2921 = vunpack.c.l.b16 %v2703
        %v2922 = vunpack.c.l.b16 %v2704
        %v2923 = vunpack.c.l.b16 %v2705
        %v2924 = vunpack.c.l.b16 %v2706
        %v2925 = vunpack.c.l.b16 %v2707
        %v2926 = vunpack.c.l.b16 %v2708
        %v2927 = vunpack.c.l.b16 %v2709
        %v2928 = vunpack.c.l.b16 %v2710
        %v2929 = vunpack.c.l.b16 %v2711
        %v2930 = vunpack.c.l.b16 %v2712
        %v2931 = vunpack.c.l.b16 %v2713
        %v2932 = vunpack.c.l.b16 %v2714
        %v2933 = vunpack.c.l.b16 %v2715
        %v2934 = vpack.c.b16 %v2919, %v2918
        %v2935 = vpack.c.b16 %v2921, %v2920
        %v2936 = vpack.c.b16 %v2923, %v2922
        %v2937 = vpack.c.b16 %v2925, %v2924
        %v2938 = vpack.c.b16 %v2927, %v2926
        %v2939 = vpack.c.b16 %v2929, %v2928
        %v2940 = vpack.c.b16 %v2931, %v2930
        %v2941 = vpack.c.b16 %v2933, %v2932
        %2950 = vmatprep.subr.bf16.mxu0 0
        %2951 = vmatpush1.bf16.msra.mxu0 %v2941
        %2952 = vmatprep.subr.bf16.mxu0 0
        %2953 = vmatpush1.bf16.msra.mxu0 %v2940
        %2954 = vmatprep.subr.bf16.mxu0 0
        %2955 = vmatpush1.bf16.msra.mxu0 %v2939
        %2956 = vmatprep.subr.bf16.mxu0 0
        %2957 = vmatpush1.bf16.msra.mxu0 %v2938
        %2958 = vmatprep.subr.bf16.mxu0 0
        %2959 = vmatpush1.bf16.msra.mxu0 %v2937
        %2960 = vmatprep.subr.bf16.mxu0 0
        %2961 = vmatpush1.bf16.msra.mxu0 %v2936
        %2962 = vmatprep.subr.bf16.mxu0 0
        %2963 = vmatpush1.bf16.msra.mxu0 %v2935
        %2964 = vmatprep.subr.bf16.mxu0 0
        %2965 = vmatpush1.bf16.msra.mxu0 %v2934
        %2966 = vmatprep.subr.bf16.mxu0 0
        %2967 = vmatpush2.bf16.msra.mxu0 0
        %2968 = vmatprep.subr.bf16.mxu0 0
        %2969 = vmatpush2.bf16.msra.mxu0 0
        %2970 = vmatprep.subr.bf16.mxu0 0
        %2971 = vmatpush2.bf16.msra.mxu0 0
        %2972 = vmatprep.subr.bf16.mxu0 0
        %2973 = vmatpush2.bf16.msra.mxu0 0
        %2974 = vmatprep.subr.bf16.mxu0 0
        %2975 = vmatpush2.bf16.msra.mxu0 0
        %2976 = vmatprep.subr.bf16.mxu0 0
        %2977 = vmatpush2.bf16.msra.mxu0 0
        %2978 = vmatprep.subr.bf16.mxu0 0
        %2979 = vmatpush2.bf16.msra.mxu0 0
        %2980 = vmatprep.subr.bf16.mxu0 0
        %2981 = vmatpush2.bf16.msra.mxu0 0
        %2982 = vmatprep.mubr.bf16.mxu0 0
        %2983 = vmatmul.mubr.bf16.gmra.mxu0 %v2894
        %v2984 = vpop.f32.mrf.mxu0
        %v2985 = vadd.f32 %v2900, %v2984
        %v2986 = vpop.f32.mrf.mxu0
        %v2987 = vpop.f32.mrf.mxu0
        %v2988 = vadd.f32 %v2900, %v2987
        %v2989 = vpop.f32.mrf.mxu0
        %2990 = vmatprep.mubr.bf16.mxu0 0
        %2991 = vmatmul.mubr.bf16.gmra.mxu0 %v2895
        %v2992 = vpop.f32.mrf.mxu0
        %v2993 = vadd.f32 %v2900, %v2992
        %v2994 = vpop.f32.mrf.mxu0
        %v2995 = vpop.f32.mrf.mxu0
        %v2996 = vadd.f32 %v2900, %v2995
        %v2997 = vpop.f32.mrf.mxu0
        %2998 = vdwg.mxu0
        %v2999 = vpack.c.bf16 %v2988, %v2985
        %v3000 = vpack.c.bf16 %v2996, %v2993
        %v3001 = vld [vmem:[#allocation37] sm:$0x1]
        %v3002 = vld [vmem:[#allocation38] sm:$0x1]
        %v3003 = vld [vmem:[#allocation40] sm:$0xf]
        %v3004 = vld [vmem:[#allocation40 + $0x4] sm:$0xf]
        %v3005 = vld [vmem:[#allocation40 + $0x8] sm:$0xf]
        %v3006 = vld [vmem:[#allocation40 + $0xc] sm:$0xf]
        %v3007 = vld [vmem:[#allocation40 + $0x10] sm:$0xf]
        %v3008 = vld [vmem:[#allocation40 + $0x14] sm:$0xf]
        %v3009 = vld [vmem:[#allocation40 + $0x18] sm:$0xf]
        %v3010 = vld [vmem:[#allocation40 + $0x1c] sm:$0xf]
        %v3011 = vld [vmem:[#allocation40 + $0x20] sm:$0xf]
        %v3012 = vld [vmem:[#allocation40 + $0x24] sm:$0xf]
        %v3013 = vld [vmem:[#allocation40 + $0x28] sm:$0xf]
        %v3014 = vld [vmem:[#allocation40 + $0x2c] sm:$0xf]
        %v3015 = vld [vmem:[#allocation40 + $0x30] sm:$0xf]
        %v3016 = vld [vmem:[#allocation40 + $0x34] sm:$0xf]
        %v3017 = vld [vmem:[#allocation40 + $0x38] sm:$0xf]
        %v3018 = vld [vmem:[#allocation40 + $0x3c] sm:$0xf]
        %v3019 = vld [vmem:[#allocation41] sm:$0x1]
        %v3020 = vld [vmem:[#allocation43] sm:$0x1]
        %v3021 = vld [vmem:[#allocation44] sm:$0x1]
        %v3022 = vld [vmem:[#allocation46] sm:$0xf]
        %v3023 = vld [vmem:[#allocation46 + $0x4] sm:$0xf]
        %v3024 = vld [vmem:[#allocation46 + $0x8] sm:$0xf]
        %v3025 = vld [vmem:[#allocation46 + $0xc] sm:$0xf]
        %v3026 = vld [vmem:[#allocation46 + $0x10] sm:$0xf]
        %v3027 = vld [vmem:[#allocation46 + $0x14] sm:$0xf]
        %v3028 = vld [vmem:[#allocation46 + $0x18] sm:$0xf]
        %v3029 = vld [vmem:[#allocation46 + $0x1c] sm:$0xf]
        %v3030 = vld [vmem:[#allocation46 + $0x20] sm:$0xf]
        %v3031 = vld [vmem:[#allocation46 + $0x24] sm:$0xf]
        %v3032 = vld [vmem:[#allocation46 + $0x28] sm:$0xf]
        %v3033 = vld [vmem:[#allocation46 + $0x2c] sm:$0xf]
        %v3034 = vld [vmem:[#allocation46 + $0x30] sm:$0xf]
        %v3035 = vld [vmem:[#allocation46 + $0x34] sm:$0xf]
        %v3036 = vld [vmem:[#allocation46 + $0x38] sm:$0xf]
        %v3037 = vld [vmem:[#allocation46 + $0x3c] sm:$0xf]
        %v3038 = vld [vmem:[#allocation47] sm:$0x1]
        %v3039 = vpack.c.bf16 %v3001, %v3001
        %v3041 = vpack.i.b16 %v3039, %v3039
        %v3043 = vlaneseq
        %v3044 = vshrl.u32 %v3043, 7
        %v3045 = vsub.s32 0, %v3044
        %v3046 = vrot.slane %v3041, %v3045
        %v3047 = vmul.bf16 %v2999, %v3046
        %v3048 = vmul.bf16 %v3000, %v3046
        %v3049 = vpack.c.bf16 %v3002, %v3002
        %v3051 = vpack.i.b16 %v3049, %v3049
        %v3053 = vlaneseq
        %v3054 = vshrl.u32 %v3053, 7
        %v3055 = vsub.s32 0, %v3054
        %v3056 = vrot.slane %v3051, %v3055
        %v3057 = vadd.bf16 %v3047, %v3056
        %v3058 = vadd.bf16 %v3048, %v3056
        %v3059 = vmul.bf16 %v3057, %v3057
        %v3060 = vmul.bf16 %v3058, %v3058
        %v3061 = vmul.bf16 %v3059, 1024605458
        %v3062 = vmul.bf16 %v3060, 1024605458
        %v3063 = vadd.bf16 %v3061, 1061961548
        %v3064 = vadd.bf16 %v3062, 1061961548
        %v3065 = vmul.bf16 %v3057, %v3063
        %v3066 = vmul.bf16 %v3058, %v3064
        %v3067 = vmul.bf16 %v3057, 1056980736
        %v3068 = vmul.bf16 %v3058, 1056980736
        %v3069 = vtanh.bf16.pop %v3065
        %v3070 = vtanh.bf16.pop %v3066
        %v3071 = vadd.bf16 %v3069, 1065369472
        %v3072 = vadd.bf16 %v3070, 1065369472
        %v3073 = vmul.bf16 %v3067, %v3071
        %v3074 = vmul.bf16 %v3068, %v3072
        %v3076 = vlaneseq
        %v3077 = vshrl.u32 %v3076, 7
        %v3078 = vsub.s32 0, %v3077
        %v3079 = vrot.slane %v3019, %v3078
        %v3097 = vunpack.c.l.b16 %v3003
        %v3098 = vunpack.c.l.b16 %v3004
        %v3099 = vunpack.c.l.b16 %v3005
        %v3100 = vunpack.c.l.b16 %v3006
        %v3101 = vunpack.c.l.b16 %v3007
        %v3102 = vunpack.c.l.b16 %v3008
        %v3103 = vunpack.c.l.b16 %v3009
        %v3104 = vunpack.c.l.b16 %v3010
        %v3105 = vunpack.c.l.b16 %v3011
        %v3106 = vunpack.c.l.b16 %v3012
        %v3107 = vunpack.c.l.b16 %v3013
        %v3108 = vunpack.c.l.b16 %v3014
        %v3109 = vunpack.c.l.b16 %v3015
        %v3110 = vunpack.c.l.b16 %v3016
        %v3111 = vunpack.c.l.b16 %v3017
        %v3112 = vunpack.c.l.b16 %v3018
        %v3113 = vpack.c.b16 %v3098, %v3097
        %v3114 = vpack.c.b16 %v3100, %v3099
        %v3115 = vpack.c.b16 %v3102, %v3101
        %v3116 = vpack.c.b16 %v3104, %v3103
        %v3117 = vpack.c.b16 %v3106, %v3105
        %v3118 = vpack.c.b16 %v3108, %v3107
        %v3119 = vpack.c.b16 %v3110, %v3109
        %v3120 = vpack.c.b16 %v3112, %v3111
        %3129 = vmatprep.subr.bf16.mxu0 0
        %3130 = vmatpush1.bf16.msra.mxu0 %v3120
        %3131 = vmatprep.subr.bf16.mxu0 0
        %3132 = vmatpush1.bf16.msra.mxu0 %v3119
        %3133 = vmatprep.subr.bf16.mxu0 0
        %3134 = vmatpush1.bf16.msra.mxu0 %v3118
        %3135 = vmatprep.subr.bf16.mxu0 0
        %3136 = vmatpush1.bf16.msra.mxu0 %v3117
        %3137 = vmatprep.subr.bf16.mxu0 0
        %3138 = vmatpush1.bf16.msra.mxu0 %v3116
        %3139 = vmatprep.subr.bf16.mxu0 0
        %3140 = vmatpush1.bf16.msra.mxu0 %v3115
        %3141 = vmatprep.subr.bf16.mxu0 0
        %3142 = vmatpush1.bf16.msra.mxu0 %v3114
        %3143 = vmatprep.subr.bf16.mxu0 0
        %3144 = vmatpush1.bf16.msra.mxu0 %v3113
        %3145 = vmatprep.subr.bf16.mxu0 0
        %3146 = vmatpush2.bf16.msra.mxu0 0
        %3147 = vmatprep.subr.bf16.mxu0 0
        %3148 = vmatpush2.bf16.msra.mxu0 0
        %3149 = vmatprep.subr.bf16.mxu0 0
        %3150 = vmatpush2.bf16.msra.mxu0 0
        %3151 = vmatprep.subr.bf16.mxu0 0
        %3152 = vmatpush2.bf16.msra.mxu0 0
        %3153 = vmatprep.subr.bf16.mxu0 0
        %3154 = vmatpush2.bf16.msra.mxu0 0
        %3155 = vmatprep.subr.bf16.mxu0 0
        %3156 = vmatpush2.bf16.msra.mxu0 0
        %3157 = vmatprep.subr.bf16.mxu0 0
        %3158 = vmatpush2.bf16.msra.mxu0 0
        %3159 = vmatprep.subr.bf16.mxu0 0
        %3160 = vmatpush2.bf16.msra.mxu0 0
        %3161 = vmatprep.mubr.bf16.mxu0 0
        %3162 = vmatmul.mubr.bf16.gmra.mxu0 %v3073
        %v3163 = vpop.f32.mrf.mxu0
        %v3164 = vadd.f32 %v3079, %v3163
        %v3165 = vpop.f32.mrf.mxu0
        %v3166 = vpop.f32.mrf.mxu0
        %v3167 = vadd.f32 %v3079, %v3166
        %v3168 = vpop.f32.mrf.mxu0
        %3169 = vmatprep.mubr.bf16.mxu0 0
        %3170 = vmatmul.mubr.bf16.gmra.mxu0 %v3074
        %v3171 = vpop.f32.mrf.mxu0
        %v3172 = vadd.f32 %v3079, %v3171
        %v3173 = vpop.f32.mrf.mxu0
        %v3174 = vpop.f32.mrf.mxu0
        %v3175 = vadd.f32 %v3079, %v3174
        %v3176 = vpop.f32.mrf.mxu0
        %3177 = vdwg.mxu0
        %v3178 = vpack.c.bf16 %v3167, %v3164
        %v3179 = vpack.c.bf16 %v3175, %v3172
        %v3180 = vadd.bf16 %v2999, %v3178
        %v3181 = vadd.bf16 %v3000, %v3179
        %v3182 = vpack.c.bf16 %v3020, %v3020
        %v3184 = vpack.i.b16 %v3182, %v3182
        %v3186 = vlaneseq
        %v3187 = vshrl.u32 %v3186, 7
        %v3188 = vsub.s32 0, %v3187
        %v3189 = vrot.slane %v3184, %v3188
        %v3190 = vmul.bf16 %v3180, %v3189
        %v3191 = vmul.bf16 %v3181, %v3189
        %v3192 = vpack.c.bf16 %v3021, %v3021
        %v3194 = vpack.i.b16 %v3192, %v3192
        %v3196 = vlaneseq
        %v3197 = vshrl.u32 %v3196, 7
        %v3198 = vsub.s32 0, %v3197
        %v3199 = vrot.slane %v3194, %v3198
        %v3200 = vadd.bf16 %v3190, %v3199
        %v3201 = vadd.bf16 %v3191, %v3199
        %v3202 = vmul.bf16 %v3200, %v3200
        %v3203 = vmul.bf16 %v3201, %v3201
        %v3204 = vmul.bf16 %v3202, 1024605458
        %v3205 = vmul.bf16 %v3203, 1024605458
        %v3206 = vadd.bf16 %v3204, 1061961548
        %v3207 = vadd.bf16 %v3205, 1061961548
        %v3208 = vmul.bf16 %v3200, %v3206
        %v3209 = vmul.bf16 %v3201, %v3207
        %v3210 = vmul.bf16 %v3200, 1056980736
        %v3211 = vmul.bf16 %v3201, 1056980736
        %v3212 = vtanh.bf16.pop %v3208
        %v3213 = vtanh.bf16.pop %v3209
        %v3214 = vadd.bf16 %v3212, 1065369472
        %v3215 = vadd.bf16 %v3213, 1065369472
        %v3216 = vmul.bf16 %v3210, %v3214
        %v3217 = vmul.bf16 %v3211, %v3215
        %v3219 = vlaneseq
        %v3220 = vshrl.u32 %v3219, 7
        %v3221 = vsub.s32 0, %v3220
        %v3222 = vrot.slane %v3038, %v3221
        %v3240 = vunpack.c.l.b16 %v3022
        %v3241 = vunpack.c.l.b16 %v3023
        %v3242 = vunpack.c.l.b16 %v3024
        %v3243 = vunpack.c.l.b16 %v3025
        %v3244 = vunpack.c.l.b16 %v3026
        %v3245 = vunpack.c.l.b16 %v3027
        %v3246 = vunpack.c.l.b16 %v3028
        %v3247 = vunpack.c.l.b16 %v3029
        %v3248 = vunpack.c.l.b16 %v3030
        %v3249 = vunpack.c.l.b16 %v3031
        %v3250 = vunpack.c.l.b16 %v3032
        %v3251 = vunpack.c.l.b16 %v3033
        %v3252 = vunpack.c.l.b16 %v3034
        %v3253 = vunpack.c.l.b16 %v3035
        %v3254 = vunpack.c.l.b16 %v3036
        %v3255 = vunpack.c.l.b16 %v3037
        %v3256 = vpack.c.b16 %v3241, %v3240
        %v3257 = vpack.c.b16 %v3243, %v3242
        %v3258 = vpack.c.b16 %v3245, %v3244
        %v3259 = vpack.c.b16 %v3247, %v3246
        %v3260 = vpack.c.b16 %v3249, %v3248
        %v3261 = vpack.c.b16 %v3251, %v3250
        %v3262 = vpack.c.b16 %v3253, %v3252
        %v3263 = vpack.c.b16 %v3255, %v3254
        %3272 = vmatprep.subr.bf16.mxu0 0
        %3273 = vmatpush1.bf16.msra.mxu0 %v3263
        %3274 = vmatprep.subr.bf16.mxu0 0
        %3275 = vmatpush1.bf16.msra.mxu0 %v3262
        %3276 = vmatprep.subr.bf16.mxu0 0
        %3277 = vmatpush1.bf16.msra.mxu0 %v3261
        %3278 = vmatprep.subr.bf16.mxu0 0
        %3279 = vmatpush1.bf16.msra.mxu0 %v3260
        %3280 = vmatprep.subr.bf16.mxu0 0
        %3281 = vmatpush1.bf16.msra.mxu0 %v3259
        %3282 = vmatprep.subr.bf16.mxu0 0
        %3283 = vmatpush1.bf16.msra.mxu0 %v3258
        %3284 = vmatprep.subr.bf16.mxu0 0
        %3285 = vmatpush1.bf16.msra.mxu0 %v3257
        %3286 = vmatprep.subr.bf16.mxu0 0
        %3287 = vmatpush1.bf16.msra.mxu0 %v3256
        %3288 = vmatprep.subr.bf16.mxu0 0
        %3289 = vmatpush2.bf16.msra.mxu0 0
        %3290 = vmatprep.subr.bf16.mxu0 0
        %3291 = vmatpush2.bf16.msra.mxu0 0
        %3292 = vmatprep.subr.bf16.mxu0 0
        %3293 = vmatpush2.bf16.msra.mxu0 0
        %3294 = vmatprep.subr.bf16.mxu0 0
        %3295 = vmatpush2.bf16.msra.mxu0 0
        %3296 = vmatprep.subr.bf16.mxu0 0
        %3297 = vmatpush2.bf16.msra.mxu0 0
        %3298 = vmatprep.subr.bf16.mxu0 0
        %3299 = vmatpush2.bf16.msra.mxu0 0
        %3300 = vmatprep.subr.bf16.mxu0 0
        %3301 = vmatpush2.bf16.msra.mxu0 0
        %3302 = vmatprep.subr.bf16.mxu0 0
        %3303 = vmatpush2.bf16.msra.mxu0 0
        %3304 = vmatprep.mubr.bf16.mxu0 0
        %3305 = vmatmul.mubr.bf16.gmra.mxu0 %v3216
        %v3306 = vpop.f32.mrf.mxu0
        %v3307 = vadd.f32 %v3222, %v3306
        %v3308 = vpop.f32.mrf.mxu0
        %v3309 = vpop.f32.mrf.mxu0
        %v3310 = vadd.f32 %v3222, %v3309
        %v3311 = vpop.f32.mrf.mxu0
        %3312 = vmatprep.mubr.bf16.mxu0 0
        %3313 = vmatmul.mubr.bf16.gmra.mxu0 %v3217
        %v3314 = vpop.f32.mrf.mxu0
        %v3315 = vadd.f32 %v3222, %v3314
        %v3316 = vpop.f32.mrf.mxu0
        %v3317 = vpop.f32.mrf.mxu0
        %v3318 = vadd.f32 %v3222, %v3317
        %v3319 = vpop.f32.mrf.mxu0
        %3320 = vdwg.mxu0
        %v3321 = vpack.c.bf16 %v3310, %v3307
        %v3322 = vpack.c.bf16 %v3318, %v3315
        %v3323 = vld [vmem:[#allocation49] sm:$0x1]
        %v3324 = vld [vmem:[#allocation50] sm:$0x1]
        %v3325 = vld [vmem:[#allocation52] sm:$0xf]
        %v3326 = vld [vmem:[#allocation52 + $0x4] sm:$0xf]
        %v3327 = vld [vmem:[#allocation52 + $0x8] sm:$0xf]
        %v3328 = vld [vmem:[#allocation52 + $0xc] sm:$0xf]
        %v3329 = vld [vmem:[#allocation52 + $0x10] sm:$0xf]
        %v3330 = vld [vmem:[#allocation52 + $0x14] sm:$0xf]
        %v3331 = vld [vmem:[#allocation52 + $0x18] sm:$0xf]
        %v3332 = vld [vmem:[#allocation52 + $0x1c] sm:$0xf]
        %v3333 = vld [vmem:[#allocation52 + $0x20] sm:$0xf]
        %v3334 = vld [vmem:[#allocation52 + $0x24] sm:$0xf]
        %v3335 = vld [vmem:[#allocation52 + $0x28] sm:$0xf]
        %v3336 = vld [vmem:[#allocation52 + $0x2c] sm:$0xf]
        %v3337 = vld [vmem:[#allocation52 + $0x30] sm:$0xf]
        %v3338 = vld [vmem:[#allocation52 + $0x34] sm:$0xf]
        %v3339 = vld [vmem:[#allocation52 + $0x38] sm:$0xf]
        %v3340 = vld [vmem:[#allocation52 + $0x3c] sm:$0xf]
        %v3341 = vld [vmem:[#allocation53] sm:$0x1]
        %v3342 = vld [vmem:[#allocation55] sm:$0x1]
        %v3343 = vld [vmem:[%s77] sm:$0x1]
        %v3344 = vld [vmem:[%s79] sm:$0xf]
        %v3345 = vld [vmem:[%s79 + $0x4] sm:$0xf]
        %v3346 = vld [vmem:[%s79 + $0x8] sm:$0xf]
        %v3347 = vld [vmem:[%s79 + $0xc] sm:$0xf]
        %v3348 = vld [vmem:[%s79 + $0x10] sm:$0xf]
        %v3349 = vld [vmem:[%s79 + $0x14] sm:$0xf]
        %v3350 = vld [vmem:[%s79 + $0x18] sm:$0xf]
        %v3351 = vld [vmem:[%s79 + $0x1c] sm:$0xf]
        %v3352 = vld [vmem:[%s79 + $0x20] sm:$0xf]
        %v3353 = vld [vmem:[%s79 + $0x24] sm:$0xf]
        %v3354 = vld [vmem:[%s79 + $0x28] sm:$0xf]
        %v3355 = vld [vmem:[%s79 + $0x2c] sm:$0xf]
        %v3356 = vld [vmem:[%s79 + $0x30] sm:$0xf]
        %v3357 = vld [vmem:[%s79 + $0x34] sm:$0xf]
        %v3358 = vld [vmem:[%s79 + $0x38] sm:$0xf]
        %v3359 = vld [vmem:[%s79 + $0x3c] sm:$0xf]
        %v3360 = vld [vmem:[%s81] sm:$0x1]
        %v3361 = vpack.c.bf16 %v3323, %v3323
        %v3363 = vpack.i.b16 %v3361, %v3361
        %v3365 = vlaneseq
        %v3366 = vshrl.u32 %v3365, 7
        %v3367 = vsub.s32 0, %v3366
        %v3368 = vrot.slane %v3363, %v3367
        %v3369 = vmul.bf16 %v3321, %v3368
        %v3370 = vmul.bf16 %v3322, %v3368
        %v3371 = vpack.c.bf16 %v3324, %v3324
        %v3373 = vpack.i.b16 %v3371, %v3371
        %v3375 = vlaneseq
        %v3376 = vshrl.u32 %v3375, 7
        %v3377 = vsub.s32 0, %v3376
        %v3378 = vrot.slane %v3373, %v3377
        %v3379 = vadd.bf16 %v3369, %v3378
        %v3380 = vadd.bf16 %v3370, %v3378
        %v3381 = vmul.bf16 %v3379, %v3379
        %v3382 = vmul.bf16 %v3380, %v3380
        %v3383 = vmul.bf16 %v3381, 1024605458
        %v3384 = vmul.bf16 %v3382, 1024605458
        %v3385 = vadd.bf16 %v3383, 1061961548
        %v3386 = vadd.bf16 %v3384, 1061961548
        %v3387 = vmul.bf16 %v3379, %v3385
        %v3388 = vmul.bf16 %v3380, %v3386
        %v3389 = vmul.bf16 %v3379, 1056980736
        %v3390 = vmul.bf16 %v3380, 1056980736
        %v3391 = vtanh.bf16.pop %v3387
        %v3392 = vtanh.bf16.pop %v3388
        %v3393 = vadd.bf16 %v3391, 1065369472
        %v3394 = vadd.bf16 %v3392, 1065369472
        %v3395 = vmul.bf16 %v3389, %v3393
        %v3396 = vmul.bf16 %v3390, %v3394
        %v3398 = vlaneseq
        %v3399 = vshrl.u32 %v3398, 7
        %v3400 = vsub.s32 0, %v3399
        %v3401 = vrot.slane %v3341, %v3400
        %v3419 = vunpack.c.l.b16 %v3325
        %v3420 = vunpack.c.l.b16 %v3326
        %v3421 = vunpack.c.l.b16 %v3327
        %v3422 = vunpack.c.l.b16 %v3328
        %v3423 = vunpack.c.l.b16 %v3329
        %v3424 = vunpack.c.l.b16 %v3330
        %v3425 = vunpack.c.l.b16 %v3331
        %v3426 = vunpack.c.l.b16 %v3332
        %v3427 = vunpack.c.l.b16 %v3333
        %v3428 = vunpack.c.l.b16 %v3334
        %v3429 = vunpack.c.l.b16 %v3335
        %v3430 = vunpack.c.l.b16 %v3336
        %v3431 = vunpack.c.l.b16 %v3337
        %v3432 = vunpack.c.l.b16 %v3338
        %v3433 = vunpack.c.l.b16 %v3339
        %v3434 = vunpack.c.l.b16 %v3340
        %v3435 = vpack.c.b16 %v3420, %v3419
        %v3436 = vpack.c.b16 %v3422, %v3421
        %v3437 = vpack.c.b16 %v3424, %v3423
        %v3438 = vpack.c.b16 %v3426, %v3425
        %v3439 = vpack.c.b16 %v3428, %v3427
        %v3440 = vpack.c.b16 %v3430, %v3429
        %v3441 = vpack.c.b16 %v3432, %v3431
        %v3442 = vpack.c.b16 %v3434, %v3433
        %3451 = vmatprep.subr.bf16.mxu0 0
        %3452 = vmatpush1.bf16.msra.mxu0 %v3442
        %3453 = vmatprep.subr.bf16.mxu0 0
        %3454 = vmatpush1.bf16.msra.mxu0 %v3441
        %3455 = vmatprep.subr.bf16.mxu0 0
        %3456 = vmatpush1.bf16.msra.mxu0 %v3440
        %3457 = vmatprep.subr.bf16.mxu0 0
        %3458 = vmatpush1.bf16.msra.mxu0 %v3439
        %3459 = vmatprep.subr.bf16.mxu0 0
        %3460 = vmatpush1.bf16.msra.mxu0 %v3438
        %3461 = vmatprep.subr.bf16.mxu0 0
        %3462 = vmatpush1.bf16.msra.mxu0 %v3437
        %3463 = vmatprep.subr.bf16.mxu0 0
        %3464 = vmatpush1.bf16.msra.mxu0 %v3436
        %3465 = vmatprep.subr.bf16.mxu0 0
        %3466 = vmatpush1.bf16.msra.mxu0 %v3435
        %3467 = vmatprep.subr.bf16.mxu0 0
        %3468 = vmatpush2.bf16.msra.mxu0 0
        %3469 = vmatprep.subr.bf16.mxu0 0
        %3470 = vmatpush2.bf16.msra.mxu0 0
        %3471 = vmatprep.subr.bf16.mxu0 0
        %3472 = vmatpush2.bf16.msra.mxu0 0
        %3473 = vmatprep.subr.bf16.mxu0 0
        %3474 = vmatpush2.bf16.msra.mxu0 0
        %3475 = vmatprep.subr.bf16.mxu0 0
        %3476 = vmatpush2.bf16.msra.mxu0 0
        %3477 = vmatprep.subr.bf16.mxu0 0
        %3478 = vmatpush2.bf16.msra.mxu0 0
        %3479 = vmatprep.subr.bf16.mxu0 0
        %3480 = vmatpush2.bf16.msra.mxu0 0
        %3481 = vmatprep.subr.bf16.mxu0 0
        %3482 = vmatpush2.bf16.msra.mxu0 0
        %3483 = vmatprep.mubr.bf16.mxu0 0
        %3484 = vmatmul.mubr.bf16.gmra.mxu0 %v3395
        %v3485 = vpop.f32.mrf.mxu0
        %v3486 = vadd.f32 %v3401, %v3485
        %v3487 = vpop.f32.mrf.mxu0
        %v3488 = vpop.f32.mrf.mxu0
        %v3489 = vadd.f32 %v3401, %v3488
        %v3490 = vpop.f32.mrf.mxu0
        %3491 = vmatprep.mubr.bf16.mxu0 0
        %3492 = vmatmul.mubr.bf16.gmra.mxu0 %v3396
        %v3493 = vpop.f32.mrf.mxu0
        %v3494 = vadd.f32 %v3401, %v3493
        %v3495 = vpop.f32.mrf.mxu0
        %v3496 = vpop.f32.mrf.mxu0
        %v3497 = vadd.f32 %v3401, %v3496
        %v3498 = vpop.f32.mrf.mxu0
        %3499 = vdwg.mxu0
        %v3500 = vpack.c.bf16 %v3489, %v3486
        %v3501 = vpack.c.bf16 %v3497, %v3494
        %v3502 = vadd.bf16 %v3321, %v3500
        %v3503 = vadd.bf16 %v3322, %v3501
        %v3504 = vpack.c.bf16 %v3342, %v3342
        %v3506 = vpack.i.b16 %v3504, %v3504
        %v3508 = vlaneseq
        %v3509 = vshrl.u32 %v3508, 7
        %v3510 = vsub.s32 0, %v3509
        %v3511 = vrot.slane %v3506, %v3510
        %v3512 = vmul.bf16 %v3502, %v3511
        %v3513 = vmul.bf16 %v3503, %v3511
        %v3514 = vpack.c.bf16 %v3343, %v3343
        %v3516 = vpack.i.b16 %v3514, %v3514
        %v3518 = vlaneseq
        %v3519 = vshrl.u32 %v3518, 7
        %v3520 = vsub.s32 0, %v3519
        %v3521 = vrot.slane %v3516, %v3520
        %v3522 = vadd.bf16 %v3512, %v3521
        %v3523 = vadd.bf16 %v3513, %v3521
        %v3524 = vmul.bf16 %v3522, %v3522
        %v3525 = vmul.bf16 %v3523, %v3523
        %v3526 = vmul.bf16 %v3524, 1024605458
        %v3527 = vmul.bf16 %v3525, 1024605458
        %v3528 = vadd.bf16 %v3526, 1061961548
        %v3529 = vadd.bf16 %v3527, 1061961548
        %v3530 = vmul.bf16 %v3522, %v3528
        %v3531 = vmul.bf16 %v3523, %v3529
        %v3532 = vmul.bf16 %v3522, 1056980736
        %v3533 = vmul.bf16 %v3523, 1056980736
        %v3534 = vtanh.bf16.pop %v3530
        %v3535 = vtanh.bf16.pop %v3531
        %v3536 = vadd.bf16 %v3534, 1065369472
        %v3537 = vadd.bf16 %v3535, 1065369472
        %v3538 = vmul.bf16 %v3532, %v3536
        %v3539 = vmul.bf16 %v3533, %v3537
        %v3541 = vlaneseq
        %v3542 = vshrl.u32 %v3541, 7
        %v3543 = vsub.s32 0, %v3542
        %v3544 = vrot.slane %v3360, %v3543
        %v3562 = vunpack.c.l.b16 %v3344
        %v3563 = vunpack.c.l.b16 %v3345
        %v3564 = vunpack.c.l.b16 %v3346
        %v3565 = vunpack.c.l.b16 %v3347
        %v3566 = vunpack.c.l.b16 %v3348
        %v3567 = vunpack.c.l.b16 %v3349
        %v3568 = vunpack.c.l.b16 %v3350
        %v3569 = vunpack.c.l.b16 %v3351
        %v3570 = vunpack.c.l.b16 %v3352
        %v3571 = vunpack.c.l.b16 %v3353
        %v3572 = vunpack.c.l.b16 %v3354
        %v3573 = vunpack.c.l.b16 %v3355
        %v3574 = vunpack.c.l.b16 %v3356
        %v3575 = vunpack.c.l.b16 %v3357
        %v3576 = vunpack.c.l.b16 %v3358
        %v3577 = vunpack.c.l.b16 %v3359
        %v3578 = vpack.c.b16 %v3563, %v3562
        %v3579 = vpack.c.b16 %v3565, %v3564
        %v3580 = vpack.c.b16 %v3567, %v3566
        %v3581 = vpack.c.b16 %v3569, %v3568
        %v3582 = vpack.c.b16 %v3571, %v3570
        %v3583 = vpack.c.b16 %v3573, %v3572
        %v3584 = vpack.c.b16 %v3575, %v3574
        %v3585 = vpack.c.b16 %v3577, %v3576
        %3594 = vmatprep.subr.bf16.mxu0 0
        %3595 = vmatpush1.bf16.msra.mxu0 %v3585
        %3596 = vmatprep.subr.bf16.mxu0 0
        %3597 = vmatpush1.bf16.msra.mxu0 %v3584
        %3598 = vmatprep.subr.bf16.mxu0 0
        %3599 = vmatpush1.bf16.msra.mxu0 %v3583
        %3600 = vmatprep.subr.bf16.mxu0 0
        %3601 = vmatpush1.bf16.msra.mxu0 %v3582
        %3602 = vmatprep.subr.bf16.mxu0 0
        %3603 = vmatpush1.bf16.msra.mxu0 %v3581
        %3604 = vmatprep.subr.bf16.mxu0 0
        %3605 = vmatpush1.bf16.msra.mxu0 %v3580
        %3606 = vmatprep.subr.bf16.mxu0 0
        %3607 = vmatpush1.bf16.msra.mxu0 %v3579
        %3608 = vmatprep.subr.bf16.mxu0 0
        %3609 = vmatpush1.bf16.msra.mxu0 %v3578
        %3610 = vmatprep.subr.bf16.mxu0 0
        %3611 = vmatpush2.bf16.msra.mxu0 0
        %3612 = vmatprep.subr.bf16.mxu0 0
        %3613 = vmatpush2.bf16.msra.mxu0 0
        %3614 = vmatprep.subr.bf16.mxu0 0
        %3615 = vmatpush2.bf16.msra.mxu0 0
        %3616 = vmatprep.subr.bf16.mxu0 0
        %3617 = vmatpush2.bf16.msra.mxu0 0
        %3618 = vmatprep.subr.bf16.mxu0 0
        %3619 = vmatpush2.bf16.msra.mxu0 0
        %3620 = vmatprep.subr.bf16.mxu0 0
        %3621 = vmatpush2.bf16.msra.mxu0 0
        %3622 = vmatprep.subr.bf16.mxu0 0
        %3623 = vmatpush2.bf16.msra.mxu0 0
        %3624 = vmatprep.subr.bf16.mxu0 0
        %3625 = vmatpush2.bf16.msra.mxu0 0
        %3626 = vmatprep.mubr.bf16.mxu0 0
        %3627 = vmatmul.mubr.bf16.gmra.mxu0 %v3538
        %v3628 = vpop.f32.mrf.mxu0
        %v3629 = vadd.f32 %v3544, %v3628
        %v3630 = vpop.f32.mrf.mxu0
        %v3631 = vpop.f32.mrf.mxu0
        %v3632 = vadd.f32 %v3544, %v3631
        %v3633 = vpop.f32.mrf.mxu0
        %3634 = vmatprep.mubr.bf16.mxu0 0
        %3635 = vmatmul.mubr.bf16.gmra.mxu0 %v3539
        %v3636 = vpop.f32.mrf.mxu0
        %v3637 = vadd.f32 %v3544, %v3636
        %v3638 = vpop.f32.mrf.mxu0
        %v3639 = vpop.f32.mrf.mxu0
        %v3640 = vadd.f32 %v3544, %v3639
        %v3641 = vpop.f32.mrf.mxu0
        %3642 = vdwg.mxu0
        %v3643 = vpack.c.bf16 %v3632, %v3629
        %v3644 = vpack.c.bf16 %v3640, %v3637
        %v3645 = vunpack.c.l.bf16 %v3643
        %v3646 = vunpack.c.h.bf16 %v3643
        %v3647 = vunpack.c.l.bf16 %v3644
        %v3648 = vunpack.c.h.bf16 %v3644
        %3649 = vst [vmem:[%s1688] sm:$0xff] %v3645
        %3650 = vst [vmem:[%s1688 + $0x8] sm:$0xff] %v3646
        %3651 = vst [vmem:[%s1688 + $0x10] sm:$0xff] %v3647
        %3652 = vst [vmem:[%s1688 + $0x18] sm:$0xff] %v3648
        %s3653 = sand.u32 %s989, 1
        %s3654 = scalar_lea.sflag [#allocation4], %s3653
        %s3655 = sand.u32 %s989, 1
        %s3656 = smul.addr %s3655, 32
        %s3657 = scalar_lea.vmem [#allocation56], %s3656
        // Predicated region
        $region325: #{item_embedder_forward.1} parent=183 // pred_check
          %p3658 = pneg %p999
        $region326: #{item_embedder_forward.1} parent=183 // pred_check_branch
          %3660 = sbr.rel (%p3658) target = $region328
        $region327: #{item_embedder_forward.1} parent=183 // pred_region
          %s3661 = smul.u32 4, %s115
          %s3663 = ssub.s32 512, 512
          %3664 = vsyncadd %s3654, %s3663
          %s3665 = smul.addr %s3661, 128
          %s3666 = scalar_lea.hbm %s83, %s3665
          %s3667 = sshll.u32 %s3657, 4
          %s3668 = int_to_ptr.vmem [resolvable:$true] %s3667
          %3673 = dma.vmem_to_hbm [thread:$0]  %s3668, 512, %s3666, %s3654, 128, 128, 8
        $region328: #{item_embedder_forward.1} parent=183 // pred_fallthru
          _
      $region184: #{item_embedder_forward.1} parent=5 // pred_fallthru
        _
      %p3674 = scmp.le.s32.totalorder 2, %s110
      // Predicated region
      $region329: #{item_embedder_forward.1} parent=5 // pred_check
        %p3675 = pneg %p3674
      $region330: #{item_embedder_forward.1} parent=5 // pred_check_branch
        %3677 = sbr.rel (%p3675) target = $region332
      $region331: #{item_embedder_forward.1} parent=5 // pred_region
        %s3678 = ssub.s32 %s110, 2
        // Predicated region
        $region333: #{item_embedder_forward.1} parent=331 // pred_check
          %p3679 = pneg %p1005
        $region334: #{item_embedder_forward.1} parent=331 // pred_check_branch
          %3681 = sbr.rel (%p3679) target = $region336
        $region335: #{item_embedder_forward.1} parent=331 // pred_region
          %s3682 = sand.u32 %s990, 1
          %s3683 = scalar_lea.sflag [#allocation4], %s3682
          %s3684 = sand.u32 %s990, 1
          %s3685 = smul.addr %s3684, 32
          %s3686 = scalar_lea.vmem [#allocation56], %s3685
          %3687 = dma.done %s3683, 512
        $region336: #{item_embedder_forward.1} parent=331 // pred_fallthru
          _
      $region332: #{item_embedder_forward.1} parent=5 // pred_fallthru
        _
    $region6: #{item_embedder_forward.1} parent=1 // loop_footer
      %s114 = sadd.s32 1, %s110
    $region7: #{item_embedder_forward.1} parent=1 // loop_footer_branch
      %109 = sbr.rel target = $region3
    $region8: #{item_embedder_forward.1} parent=1 // loop_exit
      _
    %3688 = vsyncpa [#allocation3], 1
    %s3689 = scalar_lea.sflag [#allocation3], 1
    %3690 = vsyncpa %s3689, 1
    %3691 = vsyncpa [#allocation6], 1
    %3692 = vsyncpa [#allocation9], 1
    %3693 = vsyncpa [#allocation12], 1
    %3694 = vsyncpa [#allocation15], 1
    %3695 = vsyncpa [#allocation18], 1
    %3696 = vsyncpa [#allocation21], 1
    %3697 = vsyncpa [#allocation24], 1
    %3698 = vsyncpa [#allocation27], 1
    %3699 = vsyncpa [#allocation30], 1
    %3700 = vsyncpa [#allocation33], 1
    %3701 = vsyncpa [#allocation36], 1
    %3702 = vsyncpa [#allocation39], 1
    %3703 = vsyncpa [#allocation42], 1
    %3704 = vsyncpa [#allocation45], 1
    %3705 = vsyncpa [#allocation48], 1
    %3706 = vsyncpa [#allocation51], 1
    %3707 = vsyncpa [#allocation54], 1
    %3708 = vsyncpa [#allocation4], 1
    %s3709 = scalar_lea.sflag [#allocation4], 1
    %3710 = vsyncpa %s3709, 1

// kernel: item_embedder_forward.1
$region0: #{item_embedder_forward.1}
  #allocation0 [shape = 'u32[]', space=smem, size = 0x4, offset = 0x4, fixed_abs, tag = 'smem constant byte address 0x4 - core index']
  #allocation1 [shape = 'u32[144,128]{1,0:T(1,128)}', space=vmem, size = 0x12000, scoped, tag = 'internal scratch']
  %s0 = inlined_call_operand.smem [shape: u32[42], index: -1, kind: input, shape index: {}]
  %s1 = sld [smem:[%s0]]
  %s2 = scalar_lea.smem %s0, 1
  %s3 = sld [smem:[%s2]]
  %s4 = scalar_lea.smem %s0, 2
  %s5 = sld [smem:[%s4]]
  %s6 = scalar_lea.smem %s0, 3
  %s7 = sld [smem:[%s6]]
  %s8 = scalar_lea.smem %s0, 4
  %s9 = sld [smem:[%s8]]
  %s10 = scalar_lea.smem %s0, 5
  %s11 = sld [smem:[%s10]]
  %s12 = scalar_lea.smem %s0, 6
  %s13 = sld [smem:[%s12]]
  %s14 = scalar_lea.smem %s0, 7
  %s15 = sld [smem:[%s14]]
  %s16 = scalar_lea.smem %s0, 8
  %s17 = sld [smem:[%s16]]
  %s18 = scalar_lea.smem %s0, 9
  %s19 = sld [smem:[%s18]]
  %s20 = scalar_lea.smem %s0, 10
  %s21 = sld [smem:[%s20]]
  %s22 = scalar_lea.smem %s0, 11
  %s23 = sld [smem:[%s22]]
  %s24 = scalar_lea.smem %s0, 12
  %s25 = sld [smem:[%s24]]
  %s26 = scalar_lea.smem %s0, 13
  %s27 = sld [smem:[%s26]]
  %s28 = scalar_lea.smem %s0, 14
  %s29 = sld [smem:[%s28]]
  %s30 = scalar_lea.smem %s0, 15
  %s31 = sld [smem:[%s30]]
  %s32 = scalar_lea.smem %s0, 16
  %s33 = sld [smem:[%s32]]
  %s34 = scalar_lea.smem %s0, 17
  %s35 = sld [smem:[%s34]]
  %s36 = scalar_lea.smem %s0, 18
  %s37 = sld [smem:[%s36]]
  %s38 = scalar_lea.smem %s0, 19
  %s39 = sld [smem:[%s38]]
  %s40 = scalar_lea.smem %s0, 20
  %s41 = sld [smem:[%s40]]
  %s42 = scalar_lea.smem %s0, 21
  %s43 = sld [smem:[%s42]]
  %s44 = scalar_lea.smem %s0, 22
  %s45 = sld [smem:[%s44]]
  %s46 = scalar_lea.smem %s0, 23
  %s47 = sld [smem:[%s46]]
  %s48 = scalar_lea.smem %s0, 24
  %s49 = sld [smem:[%s48]]
  %s50 = scalar_lea.smem %s0, 25
  %s51 = sld [smem:[%s50]]
  %s52 = scalar_lea.smem %s0, 26
  %s53 = sld [smem:[%s52]]
  %s54 = scalar_lea.smem %s0, 27
  %s55 = sld [smem:[%s54]]
  %s56 = scalar_lea.smem %s0, 28
  %s57 = sld [smem:[%s56]]
  %s58 = scalar_lea.smem %s0, 29
  %s59 = sld [smem:[%s58]]
  %s60 = scalar_lea.smem %s0, 30
  %s61 = sld [smem:[%s60]]
  %s62 = scalar_lea.smem %s0, 31
  %s63 = sld [smem:[%s62]]
  %s64 = scalar_lea.smem %s0, 32
  %s65 = sld [smem:[%s64]]
  %s66 = scalar_lea.smem %s0, 33
  %s67 = sld [smem:[%s66]]
  %s68 = scalar_lea.smem %s0, 34
  %s69 = sld [smem:[%s68]]
  %s70 = scalar_lea.smem %s0, 35
  %s71 = sld [smem:[%s70]]
  %s72 = scalar_lea.smem %s0, 36
  %s73 = sld [smem:[%s72]]
  %s74 = scalar_lea.smem %s0, 37
  %s75 = sld [smem:[%s74]]
  %s76 = scalar_lea.smem %s0, 38
  %s77 = sld [smem:[%s76]]
  %s78 = scalar_lea.smem %s0, 39
  %s79 = sld [smem:[%s78]]
  %s80 = scalar_lea.smem %s0, 40
  %s81 = sld [smem:[%s80]]
  %s82 = scalar_lea.smem %s0, 41
  %s83 = sld [smem:[%s82]]
  %s84 = sld [smem:[#allocation0]]
  $region337: #{item_embedder_forward.1} parent=0
    _
  %s86 = ssub.s32 1, %s84
  %s87 = scalar_select 0, %s86, %s84
  $region1: #{item_embedder_forward.1} parent=0
    #allocation2 [shape = 'u8[1024]{0}', space=vmem, size = 0x400, scoped, tag = 'input window, operand 2, single buffered']
    #allocation3 [shape = 's32[2]{0}', space=sflag, size = 0x8, scoped, tag = 'scoped memory for item_embedder_forward.1']
    #allocation4 [shape = 's32[2]{0}', space=sflag, size = 0x8, scoped, tag = 'scoped memory for item_embedder_forward.1']
    #allocation5 [shape = 'u8[1024]{0}', space=vmem, size = 0x400, scoped, tag = 'input window, operand 4, single buffered']
    #allocation6 [shape = 's32[1]{0}', space=sflag, size = 0x4, scoped, tag = 'scoped memory for item_embedder_forward.1']
    #allocation7 [shape = 'u8[1024]{0}', space=vmem, size = 0x400, scoped, tag = 'input window, operand 5, single buffered']
    #allocation8 [shape = 'u8[1024]{0}', space=vmem, size = 0x400, scoped, tag = 'input window, operand 6, single buffered']
    #allocation9 [shape = 's32[1]{0}', space=sflag, size = 0x4, scoped, tag = 'scoped memory for item_embedder_forward.1']
    #allocation10 [shape = 'u8[65536]{0}', space=vmem, size = 0x10000, scoped, tag = 'input window, operand 7, single buffered']
    #allocation11 [shape = 'u8[512]{0}', space=vmem, size = 0x400, scoped, tag = 'input window, operand 8, single buffered']
    #allocation12 [shape = 's32[1]{0}', space=sflag, size = 0x4, scoped, tag = 'scoped memory for item_embedder_forward.1']
    #allocation13 [shape = 'u8[512]{0}', space=vmem, size = 0x400, scoped, tag = 'input window, operand 9, single buffered']
    #allocation14 [shape = 'u8[512]{0}', space=vmem, size = 0x400, scoped, tag = 'input window, operand 10, single buffered']
    #allocation15 [shape = 's32[1]{0}', space=sflag, size = 0x4, scoped, tag = 'scoped memory for item_embedder_forward.1']
    #allocation16 [shape = 'u8[32768]{0}', space=vmem, size = 0x8000, scoped, tag = 'input window, operand 11, single buffered']
    #allocation17 [shape = 'u8[512]{0}', space=vmem, size = 0x400, scoped, tag = 'input window, operand 12, single buffered']
    #allocation18 [shape = 's32[1]{0}', space=sflag, size = 0x4, scoped, tag = 'scoped memory for item_embedder_forward.1']
    #allocation19 [shape = 'u8[512]{0}', space=vmem, size = 0x400, scoped, tag = 'input window, operand 13, single buffered']
    #allocation20 [shape = 'u8[512]{0}', space=vmem, size = 0x400, scoped, tag = 'input window, operand 14, single buffered']
    #allocation21 [shape = 's32[1]{0}', space=sflag, size = 0x4, scoped, tag = 'scoped memory for item_embedder_forward.1']
    #allocation22 [shape = 'u8[32768]{0}', space=vmem, size = 0x8000, scoped, tag = 'input window, operand 15, single buffered']
    #allocation23 [shape = 'u8[512]{0}', space=vmem, size = 0x400, scoped, tag = 'input window, operand 16, single buffered']
    #allocation24 [shape = 's32[1]{0}', space=sflag, size = 0x4, scoped, tag = 'scoped memory for item_embedder_forward.1']
    #allocation25 [shape = 'u8[512]{0}', space=vmem, size = 0x400, scoped, tag = 'input window, operand 17, single buffered']
    #allocation26 [shape = 'u8[512]{0}', space=vmem, size = 0x400, scoped, tag = 'input window, operand 18, single buffered']
    #allocation27 [shape = 's32[1]{0}', space=sflag, size = 0x4, scoped, tag = 'scoped memory for item_embedder_forward.1']
    #allocation28 [shape = 'u8[32768]{0}', space=vmem, size = 0x8000, scoped, tag = 'input window, operand 19, single buffered']
    #allocation29 [shape = 'u8[512]{0}', space=vmem, size = 0x400, scoped, tag = 'input window, operand 20, single buffered']
    #allocation30 [shape = 's32[1]{0}', space=sflag, size = 0x4, scoped, tag = 'scoped memory for item_embedder_forward.1']
    #allocation31 [shape = 'u8[512]{0}', space=vmem, size = 0x400, scoped, tag = 'input window, operand 21, single buffered']
    #allocation32 [shape = 'u8[512]{0}', space=vmem, size = 0x400, scoped, tag = 'input window, operand 22, single buffered']
    #allocation33 [shape = 's32[1]{0}', space=sflag, size = 0x4, scoped, tag = 'scoped memory for item_embedder_forward.1']
    #allocation34 [shape = 'u8[32768]{0}', space=vmem, size = 0x8000, scoped, tag = 'input window, operand 23, single buffered']
    #allocation35 [shape = 'u8[512]{0}', space=vmem, size = 0x400, scoped, tag = 'input window, operand 24, single buffered']
    #allocation36 [shape = 's32[1]{0}', space=sflag, size = 0x4, scoped, tag = 'scoped memory for item_embedder_forward.1']
    #allocation37 [shape = 'u8[512]{0}', space=vmem, size = 0x400, scoped, tag = 'input window, operand 25, single buffered']
    #allocation38 [shape = 'u8[512]{0}', space=vmem, size = 0x400, scoped, tag = 'input window, operand 26, single buffered']
    #allocation39 [shape = 's32[1]{0}', space=sflag, size = 0x4, scoped, tag = 'scoped memory for item_embedder_forward.1']
    #allocation40 [shape = 'u8[32768]{0}', space=vmem, size = 0x8000, scoped, tag = 'input window, operand 27, single buffered']
    #allocation41 [shape = 'u8[512]{0}', space=vmem, size = 0x400, scoped, tag = 'input window, operand 28, single buffered']
    #allocation42 [shape = 's32[1]{0}', space=sflag, size = 0x4, scoped, tag = 'scoped memory for item_embedder_forward.1']
    #allocation43 [shape = 'u8[512]{0}', space=vmem, size = 0x400, scoped, tag = 'input window, operand 29, single buffered']
    #allocation44 [shape = 'u8[512]{0}', space=vmem, size = 0x400, scoped, tag = 'input window, operand 30, single buffered']
    #allocation45 [shape = 's32[1]{0}', space=sflag, size = 0x4, scoped, tag = 'scoped memory for item_embedder_forward.1']
    #allocation46 [shape = 'u8[32768]{0}', space=vmem, size = 0x8000, scoped, tag = 'input window, operand 31, single buffered']
    #allocation47 [shape = 'u8[512]{0}', space=vmem, size = 0x400, scoped, tag = 'input window, operand 32, single buffered']
    #allocation48 [shape = 's32[1]{0}', space=sflag, size = 0x4, scoped, tag = 'scoped memory for item_embedder_forward.1']
    #allocation49 [shape = 'u8[512]{0}', space=vmem, size = 0x400, scoped, tag = 'input window, operand 33, single buffered']
    #allocation50 [shape = 'u8[512]{0}', space=vmem, size = 0x400, scoped, tag = 'input window, operand 34, single buffered']
    #allocation51 [shape = 's32[1]{0}', space=sflag, size = 0x4, scoped, tag = 'scoped memory for item_embedder_forward.1']
    #allocation52 [shape = 'u8[32768]{0}', space=vmem, size = 0x8000, scoped, tag = 'input window, operand 35, single buffered']
    #allocation53 [shape = 'u8[512]{0}', space=vmem, size = 0x400, scoped, tag = 'input window, operand 36, single buffered']
    #allocation54 [shape = 's32[1]{0}', space=sflag, size = 0x4, scoped, tag = 'scoped memory for item_embedder_forward.1']
    #allocation55 [shape = 'u8[512]{0}', space=vmem, size = 0x400, scoped, tag = 'input window, operand 37, single buffered']
    #allocation56 [shape = 'u8[32768]{0}', space=vmem, size = 0x8000, scoped, tag = 'output window, operand 0']
    %88 = vsyncpa [#allocation3], 0
    %89 = vsyncpa [#allocation6], 0
    %90 = vsyncpa [#allocation9], 0
    %91 = vsyncpa [#allocation12], 0
    %92 = vsyncpa [#allocation15], 0
    %93 = vsyncpa [#allocation18], 0
    %94 = vsyncpa [#allocation21], 0
    %95 = vsyncpa [#allocation24], 0
    %96 = vsyncpa [#allocation27], 0
    %97 = vsyncpa [#allocation30], 0
    %98 = vsyncpa [#allocation33], 0
    %99 = vsyncpa [#allocation36], 0
    %100 = vsyncpa [#allocation39], 0
    %101 = vsyncpa [#allocation42], 0
    %102 = vsyncpa [#allocation45], 0
    %103 = vsyncpa [#allocation48], 0
    %104 = vsyncpa [#allocation51], 0
    %105 = vsyncpa [#allocation54], 0
    %106 = vsyncpa [#allocation4], 0
    %s107 = scalar_lea.sflag [#allocation4], 1
    %108 = vsyncpa %s107, 0
    loop: start=0, step=1, limit=4
    $region2: #{item_embedder_forward.1} parent=1 // loop_pre_header
      _
    $region3: #{item_embedder_forward.1} parent=1 // loop_header
      %s110 = sphi 0, %s114
      %p111 = scmp.ge.s32.totalorder %s110, 4
      %s120 = sphi 0, %s122
      %s123 = sphi 0, %s120
      %s124 = sphi 0, %s123
      %s140 = sphi 0, %s124
      %s144 = sphi 0, %s144
      %s146 = sphi 0, %s144
      %s147 = sphi 0, %s146
      %s161 = sphi 0, %s147
      %s165 = sphi 0, %s165
      %s167 = sphi 0, %s165
      %s168 = sphi 0, %s167
      %s182 = sphi 0, %s168
      %s186 = sphi 0, %s186
      %s188 = sphi 0, %s186
      %s189 = sphi 0, %s188
      %s203 = sphi 0, %s189
      %s207 = sphi 0, %s207
      %s209 = sphi 0, %s207
      %s210 = sphi 0, %s209
      %s224 = sphi 0, %s210
      %s228 = sphi 0, %s228
      %s230 = sphi 0, %s228
      %s231 = sphi 0, %s230
      %s245 = sphi 0, %s231
      %s249 = sphi 0, %s249
      %s251 = sphi 0, %s249
      %s252 = sphi 0, %s251
      %s266 = sphi 0, %s252
      %s270 = sphi 0, %s270
      %s272 = sphi 0, %s270
      %s273 = sphi 0, %s272
      %s287 = sphi 0, %s273
      %s291 = sphi 0, %s291
      %s293 = sphi 0, %s291
      %s294 = sphi 0, %s293
      %s308 = sphi 0, %s294
      %s312 = sphi 0, %s312
      %s314 = sphi 0, %s312
      %s315 = sphi 0, %s314
      %s329 = sphi 0, %s315
      %s333 = sphi 0, %s333
      %s335 = sphi 0, %s333
      %s336 = sphi 0, %s335
      %s350 = sphi 0, %s336
      %s354 = sphi 0, %s354
      %s356 = sphi 0, %s354
      %s357 = sphi 0, %s356
      %s371 = sphi 0, %s357
      %s375 = sphi 0, %s375
      %s377 = sphi 0, %s375
      %s378 = sphi 0, %s377
      %s392 = sphi 0, %s378
      %s396 = sphi 0, %s396
      %s398 = sphi 0, %s396
      %s399 = sphi 0, %s398
      %s413 = sphi 0, %s399
      %s417 = sphi 0, %s417
      %s419 = sphi 0, %s417
      %s420 = sphi 0, %s419
      %s434 = sphi 0, %s420
      %s438 = sphi 0, %s438
      %s440 = sphi 0, %s438
      %s441 = sphi 0, %s440
      %s455 = sphi 0, %s441
      %s459 = sphi 0, %s459
      %s461 = sphi 0, %s459
      %s462 = sphi 0, %s461
      %s476 = sphi 0, %s462
      %s480 = sphi 0, %s480
      %s482 = sphi 0, %s480
      %s483 = sphi 0, %s482
      %s497 = sphi 0, %s483
      %s501 = sphi 0, %s501
      %s503 = sphi 0, %s501
      %s504 = sphi 0, %s503
      %s518 = sphi 0, %s504
      %s522 = sphi 0, %s522
      %s524 = sphi 0, %s522
      %s525 = sphi 0, %s524
      %s539 = sphi 0, %s525
      %s543 = sphi 0, %s543
      %s545 = sphi 0, %s543
      %s546 = sphi 0, %s545
      %s560 = sphi 0, %s546
      %s564 = sphi 0, %s564
      %s566 = sphi 0, %s564
      %s567 = sphi 0, %s566
      %s581 = sphi 0, %s567
      %s585 = sphi 0, %s585
      %s587 = sphi 0, %s585
      %s588 = sphi 0, %s587
      %s602 = sphi 0, %s588
      %s606 = sphi 0, %s606
      %s608 = sphi 0, %s606
      %s609 = sphi 0, %s608
      %s623 = sphi 0, %s609
      %s627 = sphi 0, %s627
      %s629 = sphi 0, %s627
      %s630 = sphi 0, %s629
      %s644 = sphi 0, %s630
      %s648 = sphi 0, %s648
      %s650 = sphi 0, %s648
      %s651 = sphi 0, %s650
      %s665 = sphi 0, %s651
      %s669 = sphi 0, %s669
      %s671 = sphi 0, %s669
      %s672 = sphi 0, %s671
      %s686 = sphi 0, %s672
      %s690 = sphi 0, %s690
      %s692 = sphi 0, %s690
      %s693 = sphi 0, %s692
      %s707 = sphi 0, %s693
      %s711 = sphi 0, %s711
      %s713 = sphi 0, %s711
      %s714 = sphi 0, %s713
      %s728 = sphi 0, %s714
      %s732 = sphi 0, %s732
      %s734 = sphi 0, %s732
      %s735 = sphi 0, %s734
      %s749 = sphi 0, %s735
      %s753 = sphi 0, %s753
      %s755 = sphi 0, %s753
      %s756 = sphi 0, %s755
      %s770 = sphi 0, %s756
      %s774 = sphi 0, %s774
      %s776 = sphi 0, %s774
      %s777 = sphi 0, %s776
      %s791 = sphi 0, %s777
      %s795 = sphi 0, %s795
      %s797 = sphi 0, %s795
      %s798 = sphi 0, %s797
      %s812 = sphi 0, %s798
      %s816 = sphi 0, %s816
      %s818 = sphi 0, %s816
      %s819 = sphi 0, %s818
      %s833 = sphi 0, %s819
      %s837 = sphi 0, %s837
      %s839 = sphi 0, %s837
      %s840 = sphi 0, %s839
      %s854 = sphi 0, %s840
      %s858 = sphi 0, %s858
      %s860 = sphi 0, %s858
      %s861 = sphi 0, %s860
      %s875 = sphi 0, %s861
      %s879 = sphi 0, %s879
      %s881 = sphi 0, %s879
      %s882 = sphi 0, %s881
      %s896 = sphi 0, %s882
      %s900 = sphi 0, %s900
      %s902 = sphi 0, %s900
      %s903 = sphi 0, %s902
      %s917 = sphi 0, %s903
      %s921 = sphi 0, %s921
      %s923 = sphi 0, %s921
      %s924 = sphi 0, %s923
      %s938 = sphi 0, %s924
      %s942 = sphi 0, %s942
      %s944 = sphi 0, %s942
      %s945 = sphi 0, %s944
      %s959 = sphi 0, %s945
      %s963 = sphi 0, %s963
      %s965 = sphi 0, %s963
      %s966 = sphi 0, %s965
      %s980 = sphi 0, %s966
      %s986 = sphi 0, %s988
      %s989 = sphi 0, %s986
      %s990 = sphi 0, %s989
      %s1006 = sphi 0, %s990
    $region4: #{item_embedder_forward.1} parent=1 // loop_header_branch
      %113 = sbr.rel (%p111) target = $region8
    $region5: #{item_embedder_forward.1} parent=1 // loop_body
      %s115 = ssub.s32 %s110, 1
      %s116 = ssub.s32 %s110, 2
      %s117 = sadd.s32 %s110, 1
      %s118 = ssub.s32 %s110, %s117
      %p119 = scmp.eq.s32.totalorder %s118, 0
      %s121 = sadd.s32 %s120, 1
      %s122 = scalar_select %p119, %s120, %s121
      %p125 = pneg %p119
      %p126 = scmp.eq.s32.totalorder %s110, 1
      %p127 = por %p125, %p126
      %p128 = scmp.ne.s32.totalorder %s120, %s123
      %p129 = scmp.eq.s32.totalorder %s110, 0
      %p130 = por %p128, %p129
      %p131 = scmp.ne.s32.totalorder %s120, %s123
      %p132 = scmp.eq.s32.totalorder %s115, 1
      %p133 = por %p131, %p132
      %p134 = scmp.ne.s32.totalorder %s123, %s124
      %p135 = scmp.eq.s32.totalorder %s115, 0
      %p136 = por %p134, %p135
      %p137 = scmp.ne.s32.totalorder %s123, %s124
      %p138 = scmp.eq.s32.totalorder %s116, 1
      %p139 = por %p137, %p138
      %p141 = scmp.ne.s32.totalorder %s124, %s140
      %p142 = scmp.eq.s32.totalorder %s116, 0
      %p143 = por %p141, %p142
      %s145 = sadd.s32 %s144, 1
      %p148 = scmp.eq.s32.totalorder %s110, 1
      %p149 = scmp.ne.s32.totalorder %s144, %s146
      %p150 = scmp.eq.s32.totalorder %s110, 0
      %p151 = por %p149, %p150
      %p152 = scmp.ne.s32.totalorder %s144, %s146
      %p153 = scmp.eq.s32.totalorder %s115, 1
      %p154 = por %p152, %p153
      %p155 = scmp.ne.s32.totalorder %s146, %s147
      %p156 = scmp.eq.s32.totalorder %s115, 0
      %p157 = por %p155, %p156
      %p158 = scmp.ne.s32.totalorder %s146, %s147
      %p159 = scmp.eq.s32.totalorder %s116, 1
      %p160 = por %p158, %p159
      %p162 = scmp.ne.s32.totalorder %s147, %s161
      %p163 = scmp.eq.s32.totalorder %s116, 0
      %p164 = por %p162, %p163
      %s166 = sadd.s32 %s165, 1
      %p169 = scmp.eq.s32.totalorder %s110, 1
      %p170 = scmp.ne.s32.totalorder %s165, %s167
      %p171 = scmp.eq.s32.totalorder %s110, 0
      %p172 = por %p170, %p171
      %p173 = scmp.ne.s32.totalorder %s165, %s167
      %p174 = scmp.eq.s32.totalorder %s115, 1
      %p175 = por %p173, %p174
      %p176 = scmp.ne.s32.totalorder %s167, %s168
      %p177 = scmp.eq.s32.totalorder %s115, 0
      %p178 = por %p176, %p177
      %p179 = scmp.ne.s32.totalorder %s167, %s168
      %p180 = scmp.eq.s32.totalorder %s116, 1
      %p181 = por %p179, %p180
      %p183 = scmp.ne.s32.totalorder %s168, %s182
      %p184 = scmp.eq.s32.totalorder %s116, 0
      %p185 = por %p183, %p184
      %s187 = sadd.s32 %s186, 1
      %p190 = scmp.eq.s32.totalorder %s110, 1
      %p191 = scmp.ne.s32.totalorder %s186, %s188
      %p192 = scmp.eq.s32.totalorder %s110, 0
      %p193 = por %p191, %p192
      %p194 = scmp.ne.s32.totalorder %s186, %s188
      %p195 = scmp.eq.s32.totalorder %s115, 1
      %p196 = por %p194, %p195
      %p197 = scmp.ne.s32.totalorder %s188, %s189
      %p198 = scmp.eq.s32.totalorder %s115, 0
      %p199 = por %p197, %p198
      %p200 = scmp.ne.s32.totalorder %s188, %s189
      %p201 = scmp.eq.s32.totalorder %s116, 1
      %p202 = por %p200, %p201
      %p204 = scmp.ne.s32.totalorder %s189, %s203
      %p205 = scmp.eq.s32.totalorder %s116, 0
      %p206 = por %p204, %p205
      %s208 = sadd.s32 %s207, 1
      %p211 = scmp.eq.s32.totalorder %s110, 1
      %p212 = scmp.ne.s32.totalorder %s207, %s209
      %p213 = scmp.eq.s32.totalorder %s110, 0
      %p214 = por %p212, %p213
      %p215 = scmp.ne.s32.totalorder %s207, %s209
      %p216 = scmp.eq.s32.totalorder %s115, 1
      %p217 = por %p215, %p216
      %p218 = scmp.ne.s32.totalorder %s209, %s210
      %p219 = scmp.eq.s32.totalorder %s115, 0
      %p220 = por %p218, %p219
      %p221 = scmp.ne.s32.totalorder %s209, %s210
      %p222 = scmp.eq.s32.totalorder %s116, 1
      %p223 = por %p221, %p222
      %p225 = scmp.ne.s32.totalorder %s210, %s224
      %p226 = scmp.eq.s32.totalorder %s116, 0
      %p227 = por %p225, %p226
      %s229 = sadd.s32 %s228, 1
      %p232 = scmp.eq.s32.totalorder %s110, 1
      %p233 = scmp.ne.s32.totalorder %s228, %s230
      %p234 = scmp.eq.s32.totalorder %s110, 0
      %p235 = por %p233, %p234
      %p236 = scmp.ne.s32.totalorder %s228, %s230
      %p237 = scmp.eq.s32.totalorder %s115, 1
      %p238 = por %p236, %p237
      %p239 = scmp.ne.s32.totalorder %s230, %s231
      %p240 = scmp.eq.s32.totalorder %s115, 0
      %p241 = por %p239, %p240
      %p242 = scmp.ne.s32.totalorder %s230, %s231
      %p243 = scmp.eq.s32.totalorder %s116, 1
      %p244 = por %p242, %p243
      %p246 = scmp.ne.s32.totalorder %s231, %s245
      %p247 = scmp.eq.s32.totalorder %s116, 0
      %p248 = por %p246, %p247
      %s250 = sadd.s32 %s249, 1
      %p253 = scmp.eq.s32.totalorder %s110, 1
      %p254 = scmp.ne.s32.totalorder %s249, %s251
      %p255 = scmp.eq.s32.totalorder %s110, 0
      %p256 = por %p254, %p255
      %p257 = scmp.ne.s32.totalorder %s249, %s251
      %p258 = scmp.eq.s32.totalorder %s115, 1
      %p259 = por %p257, %p258
      %p260 = scmp.ne.s32.totalorder %s251, %s252
      %p261 = scmp.eq.s32.totalorder %s115, 0
      %p262 = por %p260, %p261
      %p263 = scmp.ne.s32.totalorder %s251, %s252
      %p264 = scmp.eq.s32.totalorder %s116, 1
      %p265 = por %p263, %p264
      %p267 = scmp.ne.s32.totalorder %s252, %s266
      %p268 = scmp.eq.s32.totalorder %s116, 0
      %p269 = por %p267, %p268
      %s271 = sadd.s32 %s270, 1
      %p274 = scmp.eq.s32.totalorder %s110, 1
      %p275 = scmp.ne.s32.totalorder %s270, %s272
      %p276 = scmp.eq.s32.totalorder %s110, 0
      %p277 = por %p275, %p276
      %p278 = scmp.ne.s32.totalorder %s270, %s272
      %p279 = scmp.eq.s32.totalorder %s115, 1
      %p280 = por %p278, %p279
      %p281 = scmp.ne.s32.totalorder %s272, %s273
      %p282 = scmp.eq.s32.totalorder %s115, 0
      %p283 = por %p281, %p282
      %p284 = scmp.ne.s32.totalorder %s272, %s273
      %p285 = scmp.eq.s32.totalorder %s116, 1
      %p286 = por %p284, %p285
      %p288 = scmp.ne.s32.totalorder %s273, %s287
      %p289 = scmp.eq.s32.totalorder %s116, 0
      %p290 = por %p288, %p289
      %s292 = sadd.s32 %s291, 1
      %p295 = scmp.eq.s32.totalorder %s110, 1
      %p296 = scmp.ne.s32.totalorder %s291, %s293
      %p297 = scmp.eq.s32.totalorder %s110, 0
      %p298 = por %p296, %p297
      %p299 = scmp.ne.s32.totalorder %s291, %s293
      %p300 = scmp.eq.s32.totalorder %s115, 1
      %p301 = por %p299, %p300
      %p302 = scmp.ne.s32.totalorder %s293, %s294
      %p303 = scmp.eq.s32.totalorder %s115, 0
      %p304 = por %p302, %p303
      %p305 = scmp.ne.s32.totalorder %s293, %s294
      %p306 = scmp.eq.s32.totalorder %s116, 1
      %p307 = por %p305, %p306
      %p309 = scmp.ne.s32.totalorder %s294, %s308
      %p310 = scmp.eq.s32.totalorder %s116, 0
      %p311 = por %p309, %p310
      %s313 = sadd.s32 %s312, 1
      %p316 = scmp.eq.s32.totalorder %s110, 1
      %p317 = scmp.ne.s32.totalorder %s312, %s314
      %p318 = scmp.eq.s32.totalorder %s110, 0
      %p319 = por %p317, %p318
      %p320 = scmp.ne.s32.totalorder %s312, %s314
      %p321 = scmp.eq.s32.totalorder %s115, 1
      %p322 = por %p320, %p321
      %p323 = scmp.ne.s32.totalorder %s314, %s315
      %p324 = scmp.eq.s32.totalorder %s115, 0
      %p325 = por %p323, %p324
      %p326 = scmp.ne.s32.totalorder %s314, %s315
      %p327 = scmp.eq.s32.totalorder %s116, 1
      %p328 = por %p326, %p327
      %p330 = scmp.ne.s32.totalorder %s315, %s329
      %p331 = scmp.eq.s32.totalorder %s116, 0
      %p332 = por %p330, %p331
      %s334 = sadd.s32 %s333, 1
      %p337 = scmp.eq.s32.totalorder %s110, 1
      %p338 = scmp.ne.s32.totalorder %s333, %s335
      %p339 = scmp.eq.s32.totalorder %s110, 0
      %p340 = por %p338, %p339
      %p341 = scmp.ne.s32.totalorder %s333, %s335
      %p342 = scmp.eq.s32.totalorder %s115, 1
      %p343 = por %p341, %p342
      %p344 = scmp.ne.s32.totalorder %s335, %s336
      %p345 = scmp.eq.s32.totalorder %s115, 0
      %p346 = por %p344, %p345
      %p347 = scmp.ne.s32.totalorder %s335, %s336
      %p348 = scmp.eq.s32.totalorder %s116, 1
      %p349 = por %p347, %p348
      %p351 = scmp.ne.s32.totalorder %s336, %s350
      %p352 = scmp.eq.s32.totalorder %s116, 0
      %p353 = por %p351, %p352
      %s355 = sadd.s32 %s354, 1
      %p358 = scmp.eq.s32.totalorder %s110, 1
      %p359 = scmp.ne.s32.totalorder %s354, %s356
      %p360 = scmp.eq.s32.totalorder %s110, 0
      %p361 = por %p359, %p360
      %p362 = scmp.ne.s32.totalorder %s354, %s356
      %p363 = scmp.eq.s32.totalorder %s115, 1
      %p364 = por %p362, %p363
      %p365 = scmp.ne.s32.totalorder %s356, %s357
      %p366 = scmp.eq.s32.totalorder %s115, 0
      %p367 = por %p365, %p366
      %p368 = scmp.ne.s32.totalorder %s356, %s357
      %p369 = scmp.eq.s32.totalorder %s116, 1
      %p370 = por %p368, %p369
      %p372 = scmp.ne.s32.totalorder %s357, %s371
      %p373 = scmp.eq.s32.totalorder %s116, 0
      %p374 = por %p372, %p373
      %s376 = sadd.s32 %s375, 1
      %p379 = scmp.eq.s32.totalorder %s110, 1
      %p380 = scmp.ne.s32.totalorder %s375, %s377
      %p381 = scmp.eq.s32.totalorder %s110, 0
      %p382 = por %p380, %p381
      %p383 = scmp.ne.s32.totalorder %s375, %s377
      %p384 = scmp.eq.s32.totalorder %s115, 1
      %p385 = por %p383, %p384
      %p386 = scmp.ne.s32.totalorder %s377, %s378
      %p387 = scmp.eq.s32.totalorder %s115, 0
      %p388 = por %p386, %p387
      %p389 = scmp.ne.s32.totalorder %s377, %s378
      %p390 = scmp.eq.s32.totalorder %s116, 1
      %p391 = por %p389, %p390
      %p393 = scmp.ne.s32.totalorder %s378, %s392
      %p394 = scmp.eq.s32.totalorder %s116, 0
      %p395 = por %p393, %p394
      %s397 = sadd.s32 %s396, 1
      %p400 = scmp.eq.s32.totalorder %s110, 1
      %p401 = scmp.ne.s32.totalorder %s396, %s398
      %p402 = scmp.eq.s32.totalorder %s110, 0
      %p403 = por %p401, %p402
      %p404 = scmp.ne.s32.totalorder %s396, %s398
      %p405 = scmp.eq.s32.totalorder %s115, 1
      %p406 = por %p404, %p405
      %p407 = scmp.ne.s32.totalorder %s398, %s399
      %p408 = scmp.eq.s32.totalorder %s115, 0
      %p409 = por %p407, %p408
      %p410 = scmp.ne.s32.totalorder %s398, %s399
      %p411 = scmp.eq.s32.totalorder %s116, 1
      %p412 = por %p410, %p411
      %p414 = scmp.ne.s32.totalorder %s399, %s413
      %p415 = scmp.eq.s32.totalorder %s116, 0
      %p416 = por %p414, %p415
      %s418 = sadd.s32 %s417, 1
      %p421 = scmp.eq.s32.totalorder %s110, 1
      %p422 = scmp.ne.s32.totalorder %s417, %s419
      %p423 = scmp.eq.s32.totalorder %s110, 0
      %p424 = por %p422, %p423
      %p425 = scmp.ne.s32.totalorder %s417, %s419
      %p426 = scmp.eq.s32.totalorder %s115, 1
      %p427 = por %p425, %p426
      %p428 = scmp.ne.s32.totalorder %s419, %s420
      %p429 = scmp.eq.s32.totalorder %s115, 0
      %p430 = por %p428, %p429
      %p431 = scmp.ne.s32.totalorder %s419, %s420
      %p432 = scmp.eq.s32.totalorder %s116, 1
      %p433 = por %p431, %p432
      %p435 = scmp.ne.s32.totalorder %s420, %s434
      %p436 = scmp.eq.s32.totalorder %s116, 0
      %p437 = por %p435, %p436
      %s439 = sadd.s32 %s438, 1
      %p442 = scmp.eq.s32.totalorder %s110, 1
      %p443 = scmp.ne.s32.totalorder %s438, %s440
      %p444 = scmp.eq.s32.totalorder %s110, 0
      %p445 = por %p443, %p444
      %p446 = scmp.ne.s32.totalorder %s438, %s440
      %p447 = scmp.eq.s32.totalorder %s115, 1
      %p448 = por %p446, %p447
      %p449 = scmp.ne.s32.totalorder %s440, %s441
      %p450 = scmp.eq.s32.totalorder %s115, 0
      %p451 = por %p449, %p450
      %p452 = scmp.ne.s32.totalorder %s440, %s441
      %p453 = scmp.eq.s32.totalorder %s116, 1
      %p454 = por %p452, %p453
      %p456 = scmp.ne.s32.totalorder %s441, %s455
      %p457 = scmp.eq.s32.totalorder %s116, 0
      %p458 = por %p456, %p457
      %s460 = sadd.s32 %s459, 1
      %p463 = scmp.eq.s32.totalorder %s110, 1
      %p464 = scmp.ne.s32.totalorder %s459, %s461
      %p465 = scmp.eq.s32.totalorder %s110, 0
      %p466 = por %p464, %p465
      %p467 = scmp.ne.s32.totalorder %s459, %s461
      %p468 = scmp.eq.s32.totalorder %s115, 1
      %p469 = por %p467, %p468
      %p470 = scmp.ne.s32.totalorder %s461, %s462
      %p471 = scmp.eq.s32.totalorder %s115, 0
      %p472 = por %p470, %p471
      %p473 = scmp.ne.s32.totalorder %s461, %s462
      %p474 = scmp.eq.s32.totalorder %s116, 1
      %p475 = por %p473, %p474
      %p477 = scmp.ne.s32.totalorder %s462, %s476
      %p478 = scmp.eq.s32.totalorder %s116, 0
      %p479 = por %p477, %p478
      %s481 = sadd.s32 %s480, 1
      %p484 = scmp.eq.s32.totalorder %s110, 1
      %p485 = scmp.ne.s32.totalorder %s480, %s482
      %p486 = scmp.eq.s32.totalorder %s110, 0
      %p487 = por %p485, %p486
      %p488 = scmp.ne.s32.totalorder %s480, %s482
      %p489 = scmp.eq.s32.totalorder %s115, 1
      %p490 = por %p488, %p489
      %p491 = scmp.ne.s32.totalorder %s482, %s483
      %p492 = scmp.eq.s32.totalorder %s115, 0
      %p493 = por %p491, %p492
      %p494 = scmp.ne.s32.totalorder %s482, %s483
      %p495 = scmp.eq.s32.totalorder %s116, 1
      %p496 = por %p494, %p495
      %p498 = scmp.ne.s32.totalorder %s483, %s497
      %p499 = scmp.eq.s32.totalorder %s116, 0
      %p500 = por %p498, %p499
      %s502 = sadd.s32 %s501, 1
      %p505 = scmp.eq.s32.totalorder %s110, 1
      %p506 = scmp.ne.s32.totalorder %s501, %s503
      %p507 = scmp.eq.s32.totalorder %s110, 0
      %p508 = por %p506, %p507
      %p509 = scmp.ne.s32.totalorder %s501, %s503
      %p510 = scmp.eq.s32.totalorder %s115, 1
      %p511 = por %p509, %p510
      %p512 = scmp.ne.s32.totalorder %s503, %s504
      %p513 = scmp.eq.s32.totalorder %s115, 0
      %p514 = por %p512, %p513
      %p515 = scmp.ne.s32.totalorder %s503, %s504
      %p516 = scmp.eq.s32.totalorder %s116, 1
      %p517 = por %p515, %p516
      %p519 = scmp.ne.s32.totalorder %s504, %s518
      %p520 = scmp.eq.s32.totalorder %s116, 0
      %p521 = por %p519, %p520
      %s523 = sadd.s32 %s522, 1
      %p526 = scmp.eq.s32.totalorder %s110, 1
      %p527 = scmp.ne.s32.totalorder %s522, %s524
      %p528 = scmp.eq.s32.totalorder %s110, 0
      %p529 = por %p527, %p528
      %p530 = scmp.ne.s32.totalorder %s522, %s524
      %p531 = scmp.eq.s32.totalorder %s115, 1
      %p532 = por %p530, %p531
      %p533 = scmp.ne.s32.totalorder %s524, %s525
      %p534 = scmp.eq.s32.totalorder %s115, 0
      %p535 = por %p533, %p534
      %p536 = scmp.ne.s32.totalorder %s524, %s525
      %p537 = scmp.eq.s32.totalorder %s116, 1
      %p538 = por %p536, %p537
      %p540 = scmp.ne.s32.totalorder %s525, %s539
      %p541 = scmp.eq.s32.totalorder %s116, 0
      %p542 = por %p540, %p541
      %s544 = sadd.s32 %s543, 1
      %p547 = scmp.eq.s32.totalorder %s110, 1
      %p548 = scmp.ne.s32.totalorder %s543, %s545
      %p549 = scmp.eq.s32.totalorder %s110, 0
      %p550 = por %p548, %p549
      %p551 = scmp.ne.s32.totalorder %s543, %s545
      %p552 = scmp.eq.s32.totalorder %s115, 1
      %p553 = por %p551, %p552
      %p554 = scmp.ne.s32.totalorder %s545, %s546
      %p555 = scmp.eq.s32.totalorder %s115, 0
      %p556 = por %p554, %p555
      %p557 = scmp.ne.s32.totalorder %s545, %s546
      %p558 = scmp.eq.s32.totalorder %s116, 1
      %p559 = por %p557, %p558
      %p561 = scmp.ne.s32.totalorder %s546, %s560
      %p562 = scmp.eq.s32.totalorder %s116, 0
      %p563 = por %p561, %p562
      %s565 = sadd.s32 %s564, 1
      %p568 = scmp.eq.s32.totalorder %s110, 1
      %p569 = scmp.ne.s32.totalorder %s564, %s566
      %p570 = scmp.eq.s32.totalorder %s110, 0
      %p571 = por %p569, %p570
      %p572 = scmp.ne.s32.totalorder %s564, %s566
      %p573 = scmp.eq.s32.totalorder %s115, 1
      %p574 = por %p572, %p573
      %p575 = scmp.ne.s32.totalorder %s566, %s567
      %p576 = scmp.eq.s32.totalorder %s115, 0
      %p577 = por %p575, %p576
      %p578 = scmp.ne.s32.totalorder %s566, %s567
      %p579 = scmp.eq.s32.totalorder %s116, 1
      %p580 = por %p578, %p579
      %p582 = scmp.ne.s32.totalorder %s567, %s581
      %p583 = scmp.eq.s32.totalorder %s116, 0
      %p584 = por %p582, %p583
      %s586 = sadd.s32 %s585, 1
      %p589 = scmp.eq.s32.totalorder %s110, 1
      %p590 = scmp.ne.s32.totalorder %s585, %s587
      %p591 = scmp.eq.s32.totalorder %s110, 0
      %p592 = por %p590, %p591
      %p593 = scmp.ne.s32.totalorder %s585, %s587
      %p594 = scmp.eq.s32.totalorder %s115, 1
      %p595 = por %p593, %p594
      %p596 = scmp.ne.s32.totalorder %s587, %s588
      %p597 = scmp.eq.s32.totalorder %s115, 0
      %p598 = por %p596, %p597
      %p599 = scmp.ne.s32.totalorder %s587, %s588
      %p600 = scmp.eq.s32.totalorder %s116, 1
      %p601 = por %p599, %p600
      %p603 = scmp.ne.s32.totalorder %s588, %s602
      %p604 = scmp.eq.s32.totalorder %s116, 0
      %p605 = por %p603, %p604
      %s607 = sadd.s32 %s606, 1
      %p610 = scmp.eq.s32.totalorder %s110, 1
      %p611 = scmp.ne.s32.totalorder %s606, %s608
      %p612 = scmp.eq.s32.totalorder %s110, 0
      %p613 = por %p611, %p612
      %p614 = scmp.ne.s32.totalorder %s606, %s608
      %p615 = scmp.eq.s32.totalorder %s115, 1
      %p616 = por %p614, %p615
      %p617 = scmp.ne.s32.totalorder %s608, %s609
      %p618 = scmp.eq.s32.totalorder %s115, 0
      %p619 = por %p617, %p618
      %p620 = scmp.ne.s32.totalorder %s608, %s609
      %p621 = scmp.eq.s32.totalorder %s116, 1
      %p622 = por %p620, %p621
      %p624 = scmp.ne.s32.totalorder %s609, %s623
      %p625 = scmp.eq.s32.totalorder %s116, 0
      %p626 = por %p624, %p625
      %s628 = sadd.s32 %s627, 1
      %p631 = scmp.eq.s32.totalorder %s110, 1
      %p632 = scmp.ne.s32.totalorder %s627, %s629
      %p633 = scmp.eq.s32.totalorder %s110, 0
      %p634 = por %p632, %p633
      %p635 = scmp.ne.s32.totalorder %s627, %s629
      %p636 = scmp.eq.s32.totalorder %s115, 1
      %p637 = por %p635, %p636
      %p638 = scmp.ne.s32.totalorder %s629, %s630
      %p639 = scmp.eq.s32.totalorder %s115, 0
      %p640 = por %p638, %p639
      %p641 = scmp.ne.s32.totalorder %s629, %s630
      %p642 = scmp.eq.s32.totalorder %s116, 1
      %p643 = por %p641, %p642
      %p645 = scmp.ne.s32.totalorder %s630, %s644
      %p646 = scmp.eq.s32.totalorder %s116, 0
      %p647 = por %p645, %p646
      %s649 = sadd.s32 %s648, 1
      %p652 = scmp.eq.s32.totalorder %s110, 1
      %p653 = scmp.ne.s32.totalorder %s648, %s650
      %p654 = scmp.eq.s32.totalorder %s110, 0
      %p655 = por %p653, %p654
      %p656 = scmp.ne.s32.totalorder %s648, %s650
      %p657 = scmp.eq.s32.totalorder %s115, 1
      %p658 = por %p656, %p657
      %p659 = scmp.ne.s32.totalorder %s650, %s651
      %p660 = scmp.eq.s32.totalorder %s115, 0
      %p661 = por %p659, %p660
      %p662 = scmp.ne.s32.totalorder %s650, %s651
      %p663 = scmp.eq.s32.totalorder %s116, 1
      %p664 = por %p662, %p663
      %p666 = scmp.ne.s32.totalorder %s651, %s665
      %p667 = scmp.eq.s32.totalorder %s116, 0
      %p668 = por %p666, %p667
      %s670 = sadd.s32 %s669, 1
      %p673 = scmp.eq.s32.totalorder %s110, 1
      %p674 = scmp.ne.s32.totalorder %s669, %s671
      %p675 = scmp.eq.s32.totalorder %s110, 0
      %p676 = por %p674, %p675
      %p677 = scmp.ne.s32.totalorder %s669, %s671
      %p678 = scmp.eq.s32.totalorder %s115, 1
      %p679 = por %p677, %p678
      %p680 = scmp.ne.s32.totalorder %s671, %s672
      %p681 = scmp.eq.s32.totalorder %s115, 0
      %p682 = por %p680, %p681
      %p683 = scmp.ne.s32.totalorder %s671, %s672
      %p684 = scmp.eq.s32.totalorder %s116, 1
      %p685 = por %p683, %p684
      %p687 = scmp.ne.s32.totalorder %s672, %s686
      %p688 = scmp.eq.s32.totalorder %s116, 0
      %p689 = por %p687, %p688
      %s691 = sadd.s32 %s690, 1
      %p694 = scmp.eq.s32.totalorder %s110, 1
      %p695 = scmp.ne.s32.totalorder %s690, %s692
      %p696 = scmp.eq.s32.totalorder %s110, 0
      %p697 = por %p695, %p696
      %p698 = scmp.ne.s32.totalorder %s690, %s692
      %p699 = scmp.eq.s32.totalorder %s115, 1
      %p700 = por %p698, %p699
      %p701 = scmp.ne.s32.totalorder %s692, %s693
      %p702 = scmp.eq.s32.totalorder %s115, 0
      %p703 = por %p701, %p702
      %p704 = scmp.ne.s32.totalorder %s692, %s693
      %p705 = scmp.eq.s32.totalorder %s116, 1
      %p706 = por %p704, %p705
      %p708 = scmp.ne.s32.totalorder %s693, %s707
      %p709 = scmp.eq.s32.totalorder %s116, 0
      %p710 = por %p708, %p709
      %s712 = sadd.s32 %s711, 1
      %p715 = scmp.eq.s32.totalorder %s110, 1
      %p716 = scmp.ne.s32.totalorder %s711, %s713
      %p717 = scmp.eq.s32.totalorder %s110, 0
      %p718 = por %p716, %p717
      %p719 = scmp.ne.s32.totalorder %s711, %s713
      %p720 = scmp.eq.s32.totalorder %s115, 1
      %p721 = por %p719, %p720
      %p722 = scmp.ne.s32.totalorder %s713, %s714
      %p723 = scmp.eq.s32.totalorder %s115, 0
      %p724 = por %p722, %p723
      %p725 = scmp.ne.s32.totalorder %s713, %s714
      %p726 = scmp.eq.s32.totalorder %s116, 1
      %p727 = por %p725, %p726
      %p729 = scmp.ne.s32.totalorder %s714, %s728
      %p730 = scmp.eq.s32.totalorder %s116, 0
      %p731 = por %p729, %p730
      %s733 = sadd.s32 %s732, 1
      %p736 = scmp.eq.s32.totalorder %s110, 1
      %p737 = scmp.ne.s32.totalorder %s732, %s734
      %p738 = scmp.eq.s32.totalorder %s110, 0
      %p739 = por %p737, %p738
      %p740 = scmp.ne.s32.totalorder %s732, %s734
      %p741 = scmp.eq.s32.totalorder %s115, 1
      %p742 = por %p740, %p741
      %p743 = scmp.ne.s32.totalorder %s734, %s735
      %p744 = scmp.eq.s32.totalorder %s115, 0
      %p745 = por %p743, %p744
      %p746 = scmp.ne.s32.totalorder %s734, %s735
      %p747 = scmp.eq.s32.totalorder %s116, 1
      %p748 = por %p746, %p747
      %p750 = scmp.ne.s32.totalorder %s735, %s749
      %p751 = scmp.eq.s32.totalorder %s116, 0
      %p752 = por %p750, %p751
      %s754 = sadd.s32 %s753, 1
      %p757 = scmp.eq.s32.totalorder %s110, 1
      %p758 = scmp.ne.s32.totalorder %s753, %s755
      %p759 = scmp.eq.s32.totalorder %s110, 0
      %p760 = por %p758, %p759
      %p761 = scmp.ne.s32.totalorder %s753, %s755
      %p762 = scmp.eq.s32.totalorder %s115, 1
      %p763 = por %p761, %p762
      %p764 = scmp.ne.s32.totalorder %s755, %s756
      %p765 = scmp.eq.s32.totalorder %s115, 0
      %p766 = por %p764, %p765
      %p767 = scmp.ne.s32.totalorder %s755, %s756
      %p768 = scmp.eq.s32.totalorder %s116, 1
      %p769 = por %p767, %p768
      %p771 = scmp.ne.s32.totalorder %s756, %s770
      %p772 = scmp.eq.s32.totalorder %s116, 0
      %p773 = por %p771, %p772
      %s775 = sadd.s32 %s774, 1
      %p778 = scmp.eq.s32.totalorder %s110, 1
      %p779 = scmp.ne.s32.totalorder %s774, %s776
      %p780 = scmp.eq.s32.totalorder %s110, 0
      %p781 = por %p779, %p780
      %p782 = scmp.ne.s32.totalorder %s774, %s776
      %p783 = scmp.eq.s32.totalorder %s115, 1
      %p784 = por %p782, %p783
      %p785 = scmp.ne.s32.totalorder %s776, %s777
      %p786 = scmp.eq.s32.totalorder %s115, 0
      %p787 = por %p785, %p786
      %p788 = scmp.ne.s32.totalorder %s776, %s777
      %p789 = scmp.eq.s32.totalorder %s116, 1
      %p790 = por %p788, %p789
      %p792 = scmp.ne.s32.totalorder %s777, %s791
      %p793 = scmp.eq.s32.totalorder %s116, 0
      %p794 = por %p792, %p793
      %s796 = sadd.s32 %s795, 1
      %p799 = scmp.eq.s32.totalorder %s110, 1
      %p800 = scmp.ne.s32.totalorder %s795, %s797
      %p801 = scmp.eq.s32.totalorder %s110, 0
      %p802 = por %p800, %p801
      %p803 = scmp.ne.s32.totalorder %s795, %s797
      %p804 = scmp.eq.s32.totalorder %s115, 1
      %p805 = por %p803, %p804
      %p806 = scmp.ne.s32.totalorder %s797, %s798
      %p807 = scmp.eq.s32.totalorder %s115, 0
      %p808 = por %p806, %p807
      %p809 = scmp.ne.s32.totalorder %s797, %s798
      %p810 = scmp.eq.s32.totalorder %s116, 1
      %p811 = por %p809, %p810
      %p813 = scmp.ne.s32.totalorder %s798, %s812
      %p814 = scmp.eq.s32.totalorder %s116, 0
      %p815 = por %p813, %p814
      %s817 = sadd.s32 %s816, 1
      %p820 = scmp.eq.s32.totalorder %s110, 1
      %p821 = scmp.ne.s32.totalorder %s816, %s818
      %p822 = scmp.eq.s32.totalorder %s110, 0
      %p823 = por %p821, %p822
      %p824 = scmp.ne.s32.totalorder %s816, %s818
      %p825 = scmp.eq.s32.totalorder %s115, 1
      %p826 = por %p824, %p825
      %p827 = scmp.ne.s32.totalorder %s818, %s819
      %p828 = scmp.eq.s32.totalorder %s115, 0
      %p829 = por %p827, %p828
      %p830 = scmp.ne.s32.totalorder %s818, %s819
      %p831 = scmp.eq.s32.totalorder %s116, 1
      %p832 = por %p830, %p831
      %p834 = scmp.ne.s32.totalorder %s819, %s833
      %p835 = scmp.eq.s32.totalorder %s116, 0
      %p836 = por %p834, %p835
      %s838 = sadd.s32 %s837, 1
      %p841 = scmp.eq.s32.totalorder %s110, 1
      %p842 = scmp.ne.s32.totalorder %s837, %s839
      %p843 = scmp.eq.s32.totalorder %s110, 0
      %p844 = por %p842, %p843
      %p845 = scmp.ne.s32.totalorder %s837, %s839
      %p846 = scmp.eq.s32.totalorder %s115, 1
      %p847 = por %p845, %p846
      %p848 = scmp.ne.s32.totalorder %s839, %s840
      %p849 = scmp.eq.s32.totalorder %s115, 0
      %p850 = por %p848, %p849
      %p851 = scmp.ne.s32.totalorder %s839, %s840
      %p852 = scmp.eq.s32.totalorder %s116, 1
      %p853 = por %p851, %p852
      %p855 = scmp.ne.s32.totalorder %s840, %s854
      %p856 = scmp.eq.s32.totalorder %s116, 0
      %p857 = por %p855, %p856
      %s859 = sadd.s32 %s858, 1
      %p862 = scmp.eq.s32.totalorder %s110, 1
      %p863 = scmp.ne.s32.totalorder %s858, %s860
      %p864 = scmp.eq.s32.totalorder %s110, 0
      %p865 = por %p863, %p864
      %p866 = scmp.ne.s32.totalorder %s858, %s860
      %p867 = scmp.eq.s32.totalorder %s115, 1
      %p868 = por %p866, %p867
      %p869 = scmp.ne.s32.totalorder %s860, %s861
      %p870 = scmp.eq.s32.totalorder %s115, 0
      %p871 = por %p869, %p870
      %p872 = scmp.ne.s32.totalorder %s860, %s861
      %p873 = scmp.eq.s32.totalorder %s116, 1
      %p874 = por %p872, %p873
      %p876 = scmp.ne.s32.totalorder %s861, %s875
      %p877 = scmp.eq.s32.totalorder %s116, 0
      %p878 = por %p876, %p877
      %s880 = sadd.s32 %s879, 1
      %p883 = scmp.eq.s32.totalorder %s110, 1
      %p884 = scmp.ne.s32.totalorder %s879, %s881
      %p885 = scmp.eq.s32.totalorder %s110, 0
      %p886 = por %p884, %p885
      %p887 = scmp.ne.s32.totalorder %s879, %s881
      %p888 = scmp.eq.s32.totalorder %s115, 1
      %p889 = por %p887, %p888
      %p890 = scmp.ne.s32.totalorder %s881, %s882
      %p891 = scmp.eq.s32.totalorder %s115, 0
      %p892 = por %p890, %p891
      %p893 = scmp.ne.s32.totalorder %s881, %s882
      %p894 = scmp.eq.s32.totalorder %s116, 1
      %p895 = por %p893, %p894
      %p897 = scmp.ne.s32.totalorder %s882, %s896
      %p898 = scmp.eq.s32.totalorder %s116, 0
      %p899 = por %p897, %p898
      %s901 = sadd.s32 %s900, 1
      %p904 = scmp.eq.s32.totalorder %s110, 1
      %p905 = scmp.ne.s32.totalorder %s900, %s902
      %p906 = scmp.eq.s32.totalorder %s110, 0
      %p907 = por %p905, %p906
      %p908 = scmp.ne.s32.totalorder %s900, %s902
      %p909 = scmp.eq.s32.totalorder %s115, 1
      %p910 = por %p908, %p909
      %p911 = scmp.ne.s32.totalorder %s902, %s903
      %p912 = scmp.eq.s32.totalorder %s115, 0
      %p913 = por %p911, %p912
      %p914 = scmp.ne.s32.totalorder %s902, %s903
      %p915 = scmp.eq.s32.totalorder %s116, 1
      %p916 = por %p914, %p915
      %p918 = scmp.ne.s32.totalorder %s903, %s917
      %p919 = scmp.eq.s32.totalorder %s116, 0
      %p920 = por %p918, %p919
      %s922 = sadd.s32 %s921, 1
      %p925 = scmp.eq.s32.totalorder %s110, 1
      %p926 = scmp.ne.s32.totalorder %s921, %s923
      %p927 = scmp.eq.s32.totalorder %s110, 0
      %p928 = por %p926, %p927
      %p929 = scmp.ne.s32.totalorder %s921, %s923
      %p930 = scmp.eq.s32.totalorder %s115, 1
      %p931 = por %p929, %p930
      %p932 = scmp.ne.s32.totalorder %s923, %s924
      %p933 = scmp.eq.s32.totalorder %s115, 0
      %p934 = por %p932, %p933
      %p935 = scmp.ne.s32.totalorder %s923, %s924
      %p936 = scmp.eq.s32.totalorder %s116, 1
      %p937 = por %p935, %p936
      %p939 = scmp.ne.s32.totalorder %s924, %s938
      %p940 = scmp.eq.s32.totalorder %s116, 0
      %p941 = por %p939, %p940
      %s943 = sadd.s32 %s942, 1
      %p946 = scmp.eq.s32.totalorder %s110, 1
      %p947 = scmp.ne.s32.totalorder %s942, %s944
      %p948 = scmp.eq.s32.totalorder %s110, 0
      %p949 = por %p947, %p948
      %p950 = scmp.ne.s32.totalorder %s942, %s944
      %p951 = scmp.eq.s32.totalorder %s115, 1
      %p952 = por %p950, %p951
      %p953 = scmp.ne.s32.totalorder %s944, %s945
      %p954 = scmp.eq.s32.totalorder %s115, 0
      %p955 = por %p953, %p954
      %p956 = scmp.ne.s32.totalorder %s944, %s945
      %p957 = scmp.eq.s32.totalorder %s116, 1
      %p958 = por %p956, %p957
      %p960 = scmp.ne.s32.totalorder %s945, %s959
      %p961 = scmp.eq.s32.totalorder %s116, 0
      %p962 = por %p960, %p961
      %s964 = sadd.s32 %s963, 1
      %p967 = scmp.eq.s32.totalorder %s110, 1
      %p968 = scmp.ne.s32.totalorder %s963, %s965
      %p969 = scmp.eq.s32.totalorder %s110, 0
      %p970 = por %p968, %p969
      %p971 = scmp.ne.s32.totalorder %s963, %s965
      %p972 = scmp.eq.s32.totalorder %s115, 1
      %p973 = por %p971, %p972
      %p974 = scmp.ne.s32.totalorder %s965, %s966
      %p975 = scmp.eq.s32.totalorder %s115, 0
      %p976 = por %p974, %p975
      %p977 = scmp.ne.s32.totalorder %s965, %s966
      %p978 = scmp.eq.s32.totalorder %s116, 1
      %p979 = por %p977, %p978
      %p981 = scmp.ne.s32.totalorder %s966, %s980
      %p982 = scmp.eq.s32.totalorder %s116, 0
      %p983 = por %p981, %p982
      %s984 = ssub.s32 %s110, %s117
      %p985 = scmp.eq.s32.totalorder %s984, 0
      %s987 = sadd.s32 %s986, 1
      %s988 = scalar_select %p985, %s986, %s987
      %p991 = pneg %p985
      %p992 = scmp.eq.s32.totalorder %s110, 1
      %p993 = por %p991, %p992
      %p994 = scmp.ne.s32.totalorder %s986, %s989
      %p995 = scmp.eq.s32.totalorder %s110, 0
      %p996 = por %p994, %p995
      %p997 = scmp.ne.s32.totalorder %s986, %s989
      %p998 = scmp.eq.s32.totalorder %s115, 1
      %p999 = por %p997, %p998
      %p1000 = scmp.ne.s32.totalorder %s989, %s990
      %p1001 = scmp.eq.s32.totalorder %s115, 0
      %p1002 = por %p1000, %p1001
      %p1003 = scmp.ne.s32.totalorder %s989, %s990
      %p1004 = scmp.eq.s32.totalorder %s116, 1
      %p1005 = por %p1003, %p1004
      %p1007 = scmp.ne.s32.totalorder %s990, %s1006
      %p1008 = scmp.eq.s32.totalorder %s116, 0
      %p1009 = por %p1007, %p1008
      %p1010 = scmp.le.s32.totalorder 1, %s110
      %p1011 = scmp.lt.s32.totalorder %s110, 3
      %p1012 = pnand %p1010, %p1011
      %p1013 = pneg %p1012
      // Predicated region
      $region9: #{item_embedder_forward.1} parent=5 // pred_check
        _
      $region10: #{item_embedder_forward.1} parent=5 // pred_check_branch
        %1015 = sbr.rel (%p1012) target = $region12
      $region11: #{item_embedder_forward.1} parent=5 // pred_region
        %s1016 = ssub.s32 %s110, 1
        // Predicated region
        $region13: #{item_embedder_forward.1} parent=11 // pred_check
          %p1017 = pneg %p157
        $region14: #{item_embedder_forward.1} parent=11 // pred_check_branch
          %1019 = sbr.rel (%p1017) target = $region16
        $region15: #{item_embedder_forward.1} parent=11 // pred_region
          _
        $region16: #{item_embedder_forward.1} parent=11 // pred_fallthru
          _
        // Predicated region
        $region17: #{item_embedder_forward.1} parent=11 // pred_check
          %p1020 = pneg %p178
        $region18: #{item_embedder_forward.1} parent=11 // pred_check_branch
          %1022 = sbr.rel (%p1020) target = $region20
        $region19: #{item_embedder_forward.1} parent=11 // pred_region
          %s1024 = ssub.s32 32, 32
          %1025 = vsyncadd [#allocation3], %s1024
          %s1027 = sshll.u32 [#allocation2], 4
          %s1028 = int_to_ptr.vmem [resolvable:$true] %s1027
          %1030 = dma.hbm_to_vmem [thread:$0]  %s5, 32, %s1028, [#allocation3]
        $region20: #{item_embedder_forward.1} parent=11 // pred_fallthru
          _
        // Predicated region
        $region21: #{item_embedder_forward.1} parent=11 // pred_check
          %p1031 = pneg %p199
        $region22: #{item_embedder_forward.1} parent=11 // pred_check_branch
          %1033 = sbr.rel (%p1031) target = $region24
        $region23: #{item_embedder_forward.1} parent=11 // pred_region
          _
        $region24: #{item_embedder_forward.1} parent=11 // pred_fallthru
          _
        // Predicated region
        $region25: #{item_embedder_forward.1} parent=11 // pred_check
          %p1034 = pneg %p220
        $region26: #{item_embedder_forward.1} parent=11 // pred_check_branch
          %1036 = sbr.rel (%p1034) target = $region28
        $region27: #{item_embedder_forward.1} parent=11 // pred_region
          %s1038 = ssub.s32 32, 32
          %1039 = vsyncadd [#allocation6], %s1038
          %s1041 = sshll.u32 [#allocation5], 4
          %s1042 = int_to_ptr.vmem [resolvable:$true] %s1041
          %1044 = dma.hbm_to_vmem [thread:$0]  %s9, 32, %s1042, [#allocation6]
        $region28: #{item_embedder_forward.1} parent=11 // pred_fallthru
          _
        // Predicated region
        $region29: #{item_embedder_forward.1} parent=11 // pred_check
          %p1045 = pneg %p241
        $region30: #{item_embedder_forward.1} parent=11 // pred_check_branch
          %1047 = sbr.rel (%p1045) target = $region32
        $region31: #{item_embedder_forward.1} parent=11 // pred_region
          %s1049 = ssub.s32 32, 32
          %1050 = vsyncadd [#allocation6], %s1049
          %s1052 = sshll.u32 [#allocation7], 4
          %s1053 = int_to_ptr.vmem [resolvable:$true] %s1052
          %1055 = dma.hbm_to_vmem [thread:$0]  %s11, 32, %s1053, [#allocation6]
        $region32: #{item_embedder_forward.1} parent=11 // pred_fallthru
          _
        // Predicated region
        $region33: #{item_embedder_forward.1} parent=11 // pred_check
          %p1056 = pneg %p262
        $region34: #{item_embedder_forward.1} parent=11 // pred_check_branch
          %1058 = sbr.rel (%p1056) target = $region36
        $region35: #{item_embedder_forward.1} parent=11 // pred_region
          %s1060 = ssub.s32 32, 32
          %1061 = vsyncadd [#allocation9], %s1060
          %s1063 = sshll.u32 [#allocation8], 4
          %s1064 = int_to_ptr.vmem [resolvable:$true] %s1063
          %1066 = dma.hbm_to_vmem [thread:$0]  %s13, 32, %s1064, [#allocation9]
        $region36: #{item_embedder_forward.1} parent=11 // pred_fallthru
          _
        // Predicated region
        $region37: #{item_embedder_forward.1} parent=11 // pred_check
          %p1067 = pneg %p283
        $region38: #{item_embedder_forward.1} parent=11 // pred_check_branch
          %1069 = sbr.rel (%p1067) target = $region40
        $region39: #{item_embedder_forward.1} parent=11 // pred_region
          %s1071 = ssub.s32 2048, 2048
          %1072 = vsyncadd [#allocation9], %s1071
          %s1073 = sshll.u32 [#allocation10], 4
          %s1074 = int_to_ptr.vmem [resolvable:$true] %s1073
          %1079 = dma.hbm_to_vmem [thread:$0]  %s15, 2048, %s1074, [#allocation9], 64, 64, 4
        $region40: #{item_embedder_forward.1} parent=11 // pred_fallthru
          _
        // Predicated region
        $region41: #{item_embedder_forward.1} parent=11 // pred_check
          %p1080 = pneg %p304
        $region42: #{item_embedder_forward.1} parent=11 // pred_check_branch
          %1082 = sbr.rel (%p1080) target = $region44
        $region43: #{item_embedder_forward.1} parent=11 // pred_region
          %s1084 = ssub.s32 16, 16
          %1085 = vsyncadd [#allocation12], %s1084
          %s1087 = sshll.u32 [#allocation11], 4
          %s1088 = int_to_ptr.vmem [resolvable:$true] %s1087
          %1090 = dma.hbm_to_vmem [thread:$0]  %s17, 16, %s1088, [#allocation12]
        $region44: #{item_embedder_forward.1} parent=11 // pred_fallthru
          _
        // Predicated region
        $region45: #{item_embedder_forward.1} parent=11 // pred_check
          %p1091 = pneg %p325
        $region46: #{item_embedder_forward.1} parent=11 // pred_check_branch
          %1093 = sbr.rel (%p1091) target = $region48
        $region47: #{item_embedder_forward.1} parent=11 // pred_region
          %s1095 = ssub.s32 16, 16
          %1096 = vsyncadd [#allocation12], %s1095
          %s1098 = sshll.u32 [#allocation13], 4
          %s1099 = int_to_ptr.vmem [resolvable:$true] %s1098
          %1101 = dma.hbm_to_vmem [thread:$0]  %s19, 16, %s1099, [#allocation12]
        $region48: #{item_embedder_forward.1} parent=11 // pred_fallthru
          _
        // Predicated region
        $region49: #{item_embedder_forward.1} parent=11 // pred_check
          %p1102 = pneg %p346
        $region50: #{item_embedder_forward.1} parent=11 // pred_check_branch
          %1104 = sbr.rel (%p1102) target = $region52
        $region51: #{item_embedder_forward.1} parent=11 // pred_region
          %s1106 = ssub.s32 16, 16
          %1107 = vsyncadd [#allocation15], %s1106
          %s1109 = sshll.u32 [#allocation14], 4
          %s1110 = int_to_ptr.vmem [resolvable:$true] %s1109
          %1112 = dma.hbm_to_vmem [thread:$0]  %s21, 16, %s1110, [#allocation15]
        $region52: #{item_embedder_forward.1} parent=11 // pred_fallthru
          _
        // Predicated region
        $region53: #{item_embedder_forward.1} parent=11 // pred_check
          %p1113 = pneg %p367
        $region54: #{item_embedder_forward.1} parent=11 // pred_check_branch
          %1115 = sbr.rel (%p1113) target = $region56
        $region55: #{item_embedder_forward.1} parent=11 // pred_region
          %s1117 = ssub.s32 1024, 1024
          %1118 = vsyncadd [#allocation15], %s1117
          %s1119 = sshll.u32 [#allocation16], 4
          %s1120 = int_to_ptr.vmem [resolvable:$true] %s1119
          %1125 = dma.hbm_to_vmem [thread:$0]  %s23, 1024, %s1120, [#allocation15], 64, 64, 4
        $region56: #{item_embedder_forward.1} parent=11 // pred_fallthru
          _
        // Predicated region
        $region57: #{item_embedder_forward.1} parent=11 // pred_check
          %p1126 = pneg %p388
        $region58: #{item_embedder_forward.1} parent=11 // pred_check_branch
          %1128 = sbr.rel (%p1126) target = $region60
        $region59: #{item_embedder_forward.1} parent=11 // pred_region
          %s1130 = ssub.s32 16, 16
          %1131 = vsyncadd [#allocation18], %s1130
          %s1133 = sshll.u32 [#allocation17], 4
          %s1134 = int_to_ptr.vmem [resolvable:$true] %s1133
          %1136 = dma.hbm_to_vmem [thread:$0]  %s25, 16, %s1134, [#allocation18]
        $region60: #{item_embedder_forward.1} parent=11 // pred_fallthru
          _
        // Predicated region
        $region61: #{item_embedder_forward.1} parent=11 // pred_check
          %p1137 = pneg %p409
        $region62: #{item_embedder_forward.1} parent=11 // pred_check_branch
          %1139 = sbr.rel (%p1137) target = $region64
        $region63: #{item_embedder_forward.1} parent=11 // pred_region
          %s1141 = ssub.s32 16, 16
          %1142 = vsyncadd [#allocation18], %s1141
          %s1144 = sshll.u32 [#allocation19], 4
          %s1145 = int_to_ptr.vmem [resolvable:$true] %s1144
          %1147 = dma.hbm_to_vmem [thread:$0]  %s27, 16, %s1145, [#allocation18]
        $region64: #{item_embedder_forward.1} parent=11 // pred_fallthru
          _
        // Predicated region
        $region65: #{item_embedder_forward.1} parent=11 // pred_check
          %p1148 = pneg %p430
        $region66: #{item_embedder_forward.1} parent=11 // pred_check_branch
          %1150 = sbr.rel (%p1148) target = $region68
        $region67: #{item_embedder_forward.1} parent=11 // pred_region
          %s1152 = ssub.s32 16, 16
          %1153 = vsyncadd [#allocation21], %s1152
          %s1155 = sshll.u32 [#allocation20], 4
          %s1156 = int_to_ptr.vmem [resolvable:$true] %s1155
          %1158 = dma.hbm_to_vmem [thread:$0]  %s29, 16, %s1156, [#allocation21]
        $region68: #{item_embedder_forward.1} parent=11 // pred_fallthru
          _
        // Predicated region
        $region69: #{item_embedder_forward.1} parent=11 // pred_check
          %p1159 = pneg %p451
        $region70: #{item_embedder_forward.1} parent=11 // pred_check_branch
          %1161 = sbr.rel (%p1159) target = $region72
        $region71: #{item_embedder_forward.1} parent=11 // pred_region
          %s1163 = ssub.s32 1024, 1024
          %1164 = vsyncadd [#allocation21], %s1163
          %s1165 = sshll.u32 [#allocation22], 4
          %s1166 = int_to_ptr.vmem [resolvable:$true] %s1165
          %1171 = dma.hbm_to_vmem [thread:$0]  %s31, 1024, %s1166, [#allocation21], 64, 64, 4
        $region72: #{item_embedder_forward.1} parent=11 // pred_fallthru
          _
        // Predicated region
        $region73: #{item_embedder_forward.1} parent=11 // pred_check
          %p1172 = pneg %p472
        $region74: #{item_embedder_forward.1} parent=11 // pred_check_branch
          %1174 = sbr.rel (%p1172) target = $region76
        $region75: #{item_embedder_forward.1} parent=11 // pred_region
          %s1176 = ssub.s32 16, 16
          %1177 = vsyncadd [#allocation24], %s1176
          %s1179 = sshll.u32 [#allocation23], 4
          %s1180 = int_to_ptr.vmem [resolvable:$true] %s1179
          %1182 = dma.hbm_to_vmem [thread:$0]  %s33, 16, %s1180, [#allocation24]
        $region76: #{item_embedder_forward.1} parent=11 // pred_fallthru
          _
        // Predicated region
        $region77: #{item_embedder_forward.1} parent=11 // pred_check
          %p1183 = pneg %p493
        $region78: #{item_embedder_forward.1} parent=11 // pred_check_branch
          %1185 = sbr.rel (%p1183) target = $region80
        $region79: #{item_embedder_forward.1} parent=11 // pred_region
          %s1187 = ssub.s32 16, 16
          %1188 = vsyncadd [#allocation24], %s1187
          %s1190 = sshll.u32 [#allocation25], 4
          %s1191 = int_to_ptr.vmem [resolvable:$true] %s1190
          %1193 = dma.hbm_to_vmem [thread:$0]  %s35, 16, %s1191, [#allocation24]
        $region80: #{item_embedder_forward.1} parent=11 // pred_fallthru
          _
        // Predicated region
        $region81: #{item_embedder_forward.1} parent=11 // pred_check
          %p1194 = pneg %p514
        $region82: #{item_embedder_forward.1} parent=11 // pred_check_branch
          %1196 = sbr.rel (%p1194) target = $region84
        $region83: #{item_embedder_forward.1} parent=11 // pred_region
          %s1198 = ssub.s32 16, 16
          %1199 = vsyncadd [#allocation27], %s1198
          %s1201 = sshll.u32 [#allocation26], 4
          %s1202 = int_to_ptr.vmem [resolvable:$true] %s1201
          %1204 = dma.hbm_to_vmem [thread:$0]  %s37, 16, %s1202, [#allocation27]
        $region84: #{item_embedder_forward.1} parent=11 // pred_fallthru
          _
        // Predicated region
        $region85: #{item_embedder_forward.1} parent=11 // pred_check
          %p1205 = pneg %p535
        $region86: #{item_embedder_forward.1} parent=11 // pred_check_branch
          %1207 = sbr.rel (%p1205) target = $region88
        $region87: #{item_embedder_forward.1} parent=11 // pred_region
          %s1209 = ssub.s32 1024, 1024
          %1210 = vsyncadd [#allocation27], %s1209
          %s1211 = sshll.u32 [#allocation28], 4
          %s1212 = int_to_ptr.vmem [resolvable:$true] %s1211
          %1217 = dma.hbm_to_vmem [thread:$0]  %s39, 1024, %s1212, [#allocation27], 64, 64, 4
        $region88: #{item_embedder_forward.1} parent=11 // pred_fallthru
          _
        // Predicated region
        $region89: #{item_embedder_forward.1} parent=11 // pred_check
          %p1218 = pneg %p556
        $region90: #{item_embedder_forward.1} parent=11 // pred_check_branch
          %1220 = sbr.rel (%p1218) target = $region92
        $region91: #{item_embedder_forward.1} parent=11 // pred_region
          %s1222 = ssub.s32 16, 16
          %1223 = vsyncadd [#allocation30], %s1222
          %s1225 = sshll.u32 [#allocation29], 4
          %s1226 = int_to_ptr.vmem [resolvable:$true] %s1225
          %1228 = dma.hbm_to_vmem [thread:$0]  %s41, 16, %s1226, [#allocation30]
        $region92: #{item_embedder_forward.1} parent=11 // pred_fallthru
          _
        // Predicated region
        $region93: #{item_embedder_forward.1} parent=11 // pred_check
          %p1229 = pneg %p577
        $region94: #{item_embedder_forward.1} parent=11 // pred_check_branch
          %1231 = sbr.rel (%p1229) target = $region96
        $region95: #{item_embedder_forward.1} parent=11 // pred_region
          %s1233 = ssub.s32 16, 16
          %1234 = vsyncadd [#allocation30], %s1233
          %s1236 = sshll.u32 [#allocation31], 4
          %s1237 = int_to_ptr.vmem [resolvable:$true] %s1236
          %1239 = dma.hbm_to_vmem [thread:$0]  %s43, 16, %s1237, [#allocation30]
        $region96: #{item_embedder_forward.1} parent=11 // pred_fallthru
          _
        // Predicated region
        $region97: #{item_embedder_forward.1} parent=11 // pred_check
          %p1240 = pneg %p598
        $region98: #{item_embedder_forward.1} parent=11 // pred_check_branch
          %1242 = sbr.rel (%p1240) target = $region100
        $region99: #{item_embedder_forward.1} parent=11 // pred_region
          %s1244 = ssub.s32 16, 16
          %1245 = vsyncadd [#allocation33], %s1244
          %s1247 = sshll.u32 [#allocation32], 4
          %s1248 = int_to_ptr.vmem [resolvable:$true] %s1247
          %1250 = dma.hbm_to_vmem [thread:$0]  %s45, 16, %s1248, [#allocation33]
        $region100: #{item_embedder_forward.1} parent=11 // pred_fallthru
          _
        // Predicated region
        $region101: #{item_embedder_forward.1} parent=11 // pred_check
          %p1251 = pneg %p619
        $region102: #{item_embedder_forward.1} parent=11 // pred_check_branch
          %1253 = sbr.rel (%p1251) target = $region104
        $region103: #{item_embedder_forward.1} parent=11 // pred_region
          %s1255 = ssub.s32 1024, 1024
          %1256 = vsyncadd [#allocation33], %s1255
          %s1257 = sshll.u32 [#allocation34], 4
          %s1258 = int_to_ptr.vmem [resolvable:$true] %s1257
          %1263 = dma.hbm_to_vmem [thread:$0]  %s47, 1024, %s1258, [#allocation33], 64, 64, 4
        $region104: #{item_embedder_forward.1} parent=11 // pred_fallthru
          _
        // Predicated region
        $region105: #{item_embedder_forward.1} parent=11 // pred_check
          %p1264 = pneg %p640
        $region106: #{item_embedder_forward.1} parent=11 // pred_check_branch
          %1266 = sbr.rel (%p1264) target = $region108
        $region107: #{item_embedder_forward.1} parent=11 // pred_region
          %s1268 = ssub.s32 16, 16
          %1269 = vsyncadd [#allocation36], %s1268
          %s1271 = sshll.u32 [#allocation35], 4
          %s1272 = int_to_ptr.vmem [resolvable:$true] %s1271
          %1274 = dma.hbm_to_vmem [thread:$0]  %s49, 16, %s1272, [#allocation36]
        $region108: #{item_embedder_forward.1} parent=11 // pred_fallthru
          _
        // Predicated region
        $region109: #{item_embedder_forward.1} parent=11 // pred_check
          %p1275 = pneg %p661
        $region110: #{item_embedder_forward.1} parent=11 // pred_check_branch
          %1277 = sbr.rel (%p1275) target = $region112
        $region111: #{item_embedder_forward.1} parent=11 // pred_region
          %s1279 = ssub.s32 16, 16
          %1280 = vsyncadd [#allocation36], %s1279
          %s1282 = sshll.u32 [#allocation37], 4
          %s1283 = int_to_ptr.vmem [resolvable:$true] %s1282
          %1285 = dma.hbm_to_vmem [thread:$0]  %s51, 16, %s1283, [#allocation36]
        $region112: #{item_embedder_forward.1} parent=11 // pred_fallthru
          _
        // Predicated region
        $region113: #{item_embedder_forward.1} parent=11 // pred_check
          %p1286 = pneg %p682
        $region114: #{item_embedder_forward.1} parent=11 // pred_check_branch
          %1288 = sbr.rel (%p1286) target = $region116
        $region115: #{item_embedder_forward.1} parent=11 // pred_region
          %s1290 = ssub.s32 16, 16
          %1291 = vsyncadd [#allocation39], %s1290
          %s1293 = sshll.u32 [#allocation38], 4
          %s1294 = int_to_ptr.vmem [resolvable:$true] %s1293
          %1296 = dma.hbm_to_vmem [thread:$0]  %s53, 16, %s1294, [#allocation39]
        $region116: #{item_embedder_forward.1} parent=11 // pred_fallthru
          _
        // Predicated region
        $region117: #{item_embedder_forward.1} parent=11 // pred_check
          %p1297 = pneg %p703
        $region118: #{item_embedder_forward.1} parent=11 // pred_check_branch
          %1299 = sbr.rel (%p1297) target = $region120
        $region119: #{item_embedder_forward.1} parent=11 // pred_region
          %s1301 = ssub.s32 1024, 1024
          %1302 = vsyncadd [#allocation39], %s1301
          %s1303 = sshll.u32 [#allocation40], 4
          %s1304 = int_to_ptr.vmem [resolvable:$true] %s1303
          %1309 = dma.hbm_to_vmem [thread:$0]  %s55, 1024, %s1304, [#allocation39], 64, 64, 4
        $region120: #{item_embedder_forward.1} parent=11 // pred_fallthru
          _
        // Predicated region
        $region121: #{item_embedder_forward.1} parent=11 // pred_check
          %p1310 = pneg %p724
        $region122: #{item_embedder_forward.1} parent=11 // pred_check_branch
          %1312 = sbr.rel (%p1310) target = $region124
        $region123: #{item_embedder_forward.1} parent=11 // pred_region
          %s1314 = ssub.s32 16, 16
          %1315 = vsyncadd [#allocation42], %s1314
          %s1317 = sshll.u32 [#allocation41], 4
          %s1318 = int_to_ptr.vmem [resolvable:$true] %s1317
          %1320 = dma.hbm_to_vmem [thread:$0]  %s57, 16, %s1318, [#allocation42]
        $region124: #{item_embedder_forward.1} parent=11 // pred_fallthru
          _
        // Predicated region
        $region125: #{item_embedder_forward.1} parent=11 // pred_check
          %p1321 = pneg %p745
        $region126: #{item_embedder_forward.1} parent=11 // pred_check_branch
          %1323 = sbr.rel (%p1321) target = $region128
        $region127: #{item_embedder_forward.1} parent=11 // pred_region
          %s1325 = ssub.s32 16, 16
          %1326 = vsyncadd [#allocation42], %s1325
          %s1328 = sshll.u32 [#allocation43], 4
          %s1329 = int_to_ptr.vmem [resolvable:$true] %s1328
          %1331 = dma.hbm_to_vmem [thread:$0]  %s59, 16, %s1329, [#allocation42]
        $region128: #{item_embedder_forward.1} parent=11 // pred_fallthru
          _
        // Predicated region
        $region129: #{item_embedder_forward.1} parent=11 // pred_check
          %p1332 = pneg %p766
        $region130: #{item_embedder_forward.1} parent=11 // pred_check_branch
          %1334 = sbr.rel (%p1332) target = $region132
        $region131: #{item_embedder_forward.1} parent=11 // pred_region
          %s1336 = ssub.s32 16, 16
          %1337 = vsyncadd [#allocation45], %s1336
          %s1339 = sshll.u32 [#allocation44], 4
          %s1340 = int_to_ptr.vmem [resolvable:$true] %s1339
          %1342 = dma.hbm_to_vmem [thread:$0]  %s61, 16, %s1340, [#allocation45]
        $region132: #{item_embedder_forward.1} parent=11 // pred_fallthru
          _
        // Predicated region
        $region133: #{item_embedder_forward.1} parent=11 // pred_check
          %p1343 = pneg %p787
        $region134: #{item_embedder_forward.1} parent=11 // pred_check_branch
          %1345 = sbr.rel (%p1343) target = $region136
        $region135: #{item_embedder_forward.1} parent=11 // pred_region
          %s1347 = ssub.s32 1024, 1024
          %1348 = vsyncadd [#allocation45], %s1347
          %s1349 = sshll.u32 [#allocation46], 4
          %s1350 = int_to_ptr.vmem [resolvable:$true] %s1349
          %1355 = dma.hbm_to_vmem [thread:$0]  %s63, 1024, %s1350, [#allocation45], 64, 64, 4
        $region136: #{item_embedder_forward.1} parent=11 // pred_fallthru
          _
        // Predicated region
        $region137: #{item_embedder_forward.1} parent=11 // pred_check
          %p1356 = pneg %p808
        $region138: #{item_embedder_forward.1} parent=11 // pred_check_branch
          %1358 = sbr.rel (%p1356) target = $region140
        $region139: #{item_embedder_forward.1} parent=11 // pred_region
          %s1360 = ssub.s32 16, 16
          %1361 = vsyncadd [#allocation48], %s1360
          %s1363 = sshll.u32 [#allocation47], 4
          %s1364 = int_to_ptr.vmem [resolvable:$true] %s1363
          %1366 = dma.hbm_to_vmem [thread:$0]  %s65, 16, %s1364, [#allocation48]
        $region140: #{item_embedder_forward.1} parent=11 // pred_fallthru
          _
        // Predicated region
        $region141: #{item_embedder_forward.1} parent=11 // pred_check
          %p1367 = pneg %p829
        $region142: #{item_embedder_forward.1} parent=11 // pred_check_branch
          %1369 = sbr.rel (%p1367) target = $region144
        $region143: #{item_embedder_forward.1} parent=11 // pred_region
          %s1371 = ssub.s32 16, 16
          %1372 = vsyncadd [#allocation48], %s1371
          %s1374 = sshll.u32 [#allocation49], 4
          %s1375 = int_to_ptr.vmem [resolvable:$true] %s1374
          %1377 = dma.hbm_to_vmem [thread:$0]  %s67, 16, %s1375, [#allocation48]
        $region144: #{item_embedder_forward.1} parent=11 // pred_fallthru
          _
        // Predicated region
        $region145: #{item_embedder_forward.1} parent=11 // pred_check
          %p1378 = pneg %p850
        $region146: #{item_embedder_forward.1} parent=11 // pred_check_branch
          %1380 = sbr.rel (%p1378) target = $region148
        $region147: #{item_embedder_forward.1} parent=11 // pred_region
          %s1382 = ssub.s32 16, 16
          %1383 = vsyncadd [#allocation51], %s1382
          %s1385 = sshll.u32 [#allocation50], 4
          %s1386 = int_to_ptr.vmem [resolvable:$true] %s1385
          %1388 = dma.hbm_to_vmem [thread:$0]  %s69, 16, %s1386, [#allocation51]
        $region148: #{item_embedder_forward.1} parent=11 // pred_fallthru
          _
        // Predicated region
        $region149: #{item_embedder_forward.1} parent=11 // pred_check
          %p1389 = pneg %p871
        $region150: #{item_embedder_forward.1} parent=11 // pred_check_branch
          %1391 = sbr.rel (%p1389) target = $region152
        $region151: #{item_embedder_forward.1} parent=11 // pred_region
          %s1393 = ssub.s32 1024, 1024
          %1394 = vsyncadd [#allocation51], %s1393
          %s1395 = sshll.u32 [#allocation52], 4
          %s1396 = int_to_ptr.vmem [resolvable:$true] %s1395
          %1401 = dma.hbm_to_vmem [thread:$0]  %s71, 1024, %s1396, [#allocation51], 64, 64, 4
        $region152: #{item_embedder_forward.1} parent=11 // pred_fallthru
          _
        // Predicated region
        $region153: #{item_embedder_forward.1} parent=11 // pred_check
          %p1402 = pneg %p892
        $region154: #{item_embedder_forward.1} parent=11 // pred_check_branch
          %1404 = sbr.rel (%p1402) target = $region156
        $region155: #{item_embedder_forward.1} parent=11 // pred_region
          %s1406 = ssub.s32 16, 16
          %1407 = vsyncadd [#allocation54], %s1406
          %s1409 = sshll.u32 [#allocation53], 4
          %s1410 = int_to_ptr.vmem [resolvable:$true] %s1409
          %1412 = dma.hbm_to_vmem [thread:$0]  %s73, 16, %s1410, [#allocation54]
        $region156: #{item_embedder_forward.1} parent=11 // pred_fallthru
          _
        // Predicated region
        $region157: #{item_embedder_forward.1} parent=11 // pred_check
          %p1413 = pneg %p913
        $region158: #{item_embedder_forward.1} parent=11 // pred_check_branch
          %1415 = sbr.rel (%p1413) target = $region160
        $region159: #{item_embedder_forward.1} parent=11 // pred_region
          %s1417 = ssub.s32 16, 16
          %1418 = vsyncadd [#allocation54], %s1417
          %s1420 = sshll.u32 [#allocation55], 4
          %s1421 = int_to_ptr.vmem [resolvable:$true] %s1420
          %1423 = dma.hbm_to_vmem [thread:$0]  %s75, 16, %s1421, [#allocation54]
        $region160: #{item_embedder_forward.1} parent=11 // pred_fallthru
          _
        // Predicated region
        $region161: #{item_embedder_forward.1} parent=11 // pred_check
          %p1424 = pneg %p934
        $region162: #{item_embedder_forward.1} parent=11 // pred_check_branch
          %1426 = sbr.rel (%p1424) target = $region164
        $region163: #{item_embedder_forward.1} parent=11 // pred_region
          _
        $region164: #{item_embedder_forward.1} parent=11 // pred_fallthru
          _
        // Predicated region
        $region165: #{item_embedder_forward.1} parent=11 // pred_check
          %p1427 = pneg %p955
        $region166: #{item_embedder_forward.1} parent=11 // pred_check_branch
          %1429 = sbr.rel (%p1427) target = $region168
        $region167: #{item_embedder_forward.1} parent=11 // pred_region
          _
        $region168: #{item_embedder_forward.1} parent=11 // pred_fallthru
          _
        // Predicated region
        $region169: #{item_embedder_forward.1} parent=11 // pred_check
          %p1430 = pneg %p976
        $region170: #{item_embedder_forward.1} parent=11 // pred_check_branch
          %1432 = sbr.rel (%p1430) target = $region172
        $region171: #{item_embedder_forward.1} parent=11 // pred_region
          _
        $region172: #{item_embedder_forward.1} parent=11 // pred_fallthru
          _
      $region12: #{item_embedder_forward.1} parent=5 // pred_fallthru
        _
      %p1433 = scmp.lt.s32.totalorder %s110, 2
      // Predicated region
      $region173: #{item_embedder_forward.1} parent=5 // pred_check
        %p1434 = pneg %p1433
      $region174: #{item_embedder_forward.1} parent=5 // pred_check_branch
        %1436 = sbr.rel (%p1434) target = $region176
      $region175: #{item_embedder_forward.1} parent=5 // pred_region
        // Predicated region
        $region177: #{item_embedder_forward.1} parent=175 // pred_check
          %p1437 = pneg %p130
        $region178: #{item_embedder_forward.1} parent=175 // pred_check_branch
          %1439 = sbr.rel (%p1437) target = $region180
        $region179: #{item_embedder_forward.1} parent=175 // pred_region
          %s1440 = smul.u32 4, %s110
          %p1441 = scmp.lt.s32.totalorder %s1440, 7
          %s1442 = scalar_select %p1441, %s1440, 7
          %s1443 = smul.addr %s1442, 2
          %s1444 = smul.addr %s1443, 8
          %s1445 = scalar_lea.vmem %s1, %s1444
          %s1446 = smul.u32 4, %s110
        $region180: #{item_embedder_forward.1} parent=175 // pred_fallthru
          _
      $region176: #{item_embedder_forward.1} parent=5 // pred_fallthru
        _
      %p1447 = scmp.le.s32.totalorder 1, %s110
      %p1448 = scmp.lt.s32.totalorder %s110, 3
      %p1449 = pnand %p1447, %p1448
      %p1450 = pneg %p1449
      // Predicated region
      $region181: #{item_embedder_forward.1} parent=5 // pred_check
        _
      $region182: #{item_embedder_forward.1} parent=5 // pred_check_branch
        %1452 = sbr.rel (%p1449) target = $region184
      $region183: #{item_embedder_forward.1} parent=5 // pred_region
        %s1453 = ssub.s32 %s110, 1
        // Predicated region
        $region185: #{item_embedder_forward.1} parent=183 // pred_check
          %p1454 = pneg %p178
        $region186: #{item_embedder_forward.1} parent=183 // pred_check_branch
          %1456 = sbr.rel (%p1454) target = $region188
        $region187: #{item_embedder_forward.1} parent=183 // pred_region
          %1457 = dma.done [#allocation3], 32
        $region188: #{item_embedder_forward.1} parent=183 // pred_fallthru
          _
        // Predicated region
        $region189: #{item_embedder_forward.1} parent=183 // pred_check
          %p1458 = pneg %p220
        $region190: #{item_embedder_forward.1} parent=183 // pred_check_branch
          %1460 = sbr.rel (%p1458) target = $region192
        $region191: #{item_embedder_forward.1} parent=183 // pred_region
          %1461 = dma.done [#allocation6], 32
        $region192: #{item_embedder_forward.1} parent=183 // pred_fallthru
          _
        // Predicated region
        $region193: #{item_embedder_forward.1} parent=183 // pred_check
          %p1462 = pneg %p241
        $region194: #{item_embedder_forward.1} parent=183 // pred_check_branch
          %1464 = sbr.rel (%p1462) target = $region196
        $region195: #{item_embedder_forward.1} parent=183 // pred_region
          %1465 = dma.done [#allocation6], 32
        $region196: #{item_embedder_forward.1} parent=183 // pred_fallthru
          _
        // Predicated region
        $region197: #{item_embedder_forward.1} parent=183 // pred_check
          %p1466 = pneg %p262
        $region198: #{item_embedder_forward.1} parent=183 // pred_check_branch
          %1468 = sbr.rel (%p1466) target = $region200
        $region199: #{item_embedder_forward.1} parent=183 // pred_region
          %1469 = dma.done [#allocation9], 32
        $region200: #{item_embedder_forward.1} parent=183 // pred_fallthru
          _
        // Predicated region
        $region201: #{item_embedder_forward.1} parent=183 // pred_check
          %p1470 = pneg %p283
        $region202: #{item_embedder_forward.1} parent=183 // pred_check_branch
          %1472 = sbr.rel (%p1470) target = $region204
        $region203: #{item_embedder_forward.1} parent=183 // pred_region
          %1473 = dma.done [#allocation9], 2048
        $region204: #{item_embedder_forward.1} parent=183 // pred_fallthru
          _
        // Predicated region
        $region205: #{item_embedder_forward.1} parent=183 // pred_check
          %p1474 = pneg %p304
        $region206: #{item_embedder_forward.1} parent=183 // pred_check_branch
          %1476 = sbr.rel (%p1474) target = $region208
        $region207: #{item_embedder_forward.1} parent=183 // pred_region
          %1477 = dma.done [#allocation12], 16
        $region208: #{item_embedder_forward.1} parent=183 // pred_fallthru
          _
        // Predicated region
        $region209: #{item_embedder_forward.1} parent=183 // pred_check
          %p1478 = pneg %p325
        $region210: #{item_embedder_forward.1} parent=183 // pred_check_branch
          %1480 = sbr.rel (%p1478) target = $region212
        $region211: #{item_embedder_forward.1} parent=183 // pred_region
          %1481 = dma.done [#allocation12], 16
        $region212: #{item_embedder_forward.1} parent=183 // pred_fallthru
          _
        // Predicated region
        $region213: #{item_embedder_forward.1} parent=183 // pred_check
          %p1482 = pneg %p346
        $region214: #{item_embedder_forward.1} parent=183 // pred_check_branch
          %1484 = sbr.rel (%p1482) target = $region216
        $region215: #{item_embedder_forward.1} parent=183 // pred_region
          %1485 = dma.done [#allocation15], 16
        $region216: #{item_embedder_forward.1} parent=183 // pred_fallthru
          _
        // Predicated region
        $region217: #{item_embedder_forward.1} parent=183 // pred_check
          %p1486 = pneg %p367
        $region218: #{item_embedder_forward.1} parent=183 // pred_check_branch
          %1488 = sbr.rel (%p1486) target = $region220
        $region219: #{item_embedder_forward.1} parent=183 // pred_region
          %1489 = dma.done [#allocation15], 1024
        $region220: #{item_embedder_forward.1} parent=183 // pred_fallthru
          _
        // Predicated region
        $region221: #{item_embedder_forward.1} parent=183 // pred_check
          %p1490 = pneg %p388
        $region222: #{item_embedder_forward.1} parent=183 // pred_check_branch
          %1492 = sbr.rel (%p1490) target = $region224
        $region223: #{item_embedder_forward.1} parent=183 // pred_region
          %1493 = dma.done [#allocation18], 16
        $region224: #{item_embedder_forward.1} parent=183 // pred_fallthru
          _
        // Predicated region
        $region225: #{item_embedder_forward.1} parent=183 // pred_check
          %p1494 = pneg %p409
        $region226: #{item_embedder_forward.1} parent=183 // pred_check_branch
          %1496 = sbr.rel (%p1494) target = $region228
        $region227: #{item_embedder_forward.1} parent=183 // pred_region
          %1497 = dma.done [#allocation18], 16
        $region228: #{item_embedder_forward.1} parent=183 // pred_fallthru
          _
        // Predicated region
        $region229: #{item_embedder_forward.1} parent=183 // pred_check
          %p1498 = pneg %p430
        $region230: #{item_embedder_forward.1} parent=183 // pred_check_branch
          %1500 = sbr.rel (%p1498) target = $region232
        $region231: #{item_embedder_forward.1} parent=183 // pred_region
          %1501 = dma.done [#allocation21], 16
        $region232: #{item_embedder_forward.1} parent=183 // pred_fallthru
          _
        // Predicated region
        $region233: #{item_embedder_forward.1} parent=183 // pred_check
          %p1502 = pneg %p451
        $region234: #{item_embedder_forward.1} parent=183 // pred_check_branch
          %1504 = sbr.rel (%p1502) target = $region236
        $region235: #{item_embedder_forward.1} parent=183 // pred_region
          %1505 = dma.done [#allocation21], 1024
        $region236: #{item_embedder_forward.1} parent=183 // pred_fallthru
          _
        // Predicated region
        $region237: #{item_embedder_forward.1} parent=183 // pred_check
          %p1506 = pneg %p472
        $region238: #{item_embedder_forward.1} parent=183 // pred_check_branch
          %1508 = sbr.rel (%p1506) target = $region240
        $region239: #{item_embedder_forward.1} parent=183 // pred_region
          %1509 = dma.done [#allocation24], 16
        $region240: #{item_embedder_forward.1} parent=183 // pred_fallthru
          _
        // Predicated region
        $region241: #{item_embedder_forward.1} parent=183 // pred_check
          %p1510 = pneg %p493
        $region242: #{item_embedder_forward.1} parent=183 // pred_check_branch
          %1512 = sbr.rel (%p1510) target = $region244
        $region243: #{item_embedder_forward.1} parent=183 // pred_region
          %1513 = dma.done [#allocation24], 16
        $region244: #{item_embedder_forward.1} parent=183 // pred_fallthru
          _
        // Predicated region
        $region245: #{item_embedder_forward.1} parent=183 // pred_check
          %p1514 = pneg %p514
        $region246: #{item_embedder_forward.1} parent=183 // pred_check_branch
          %1516 = sbr.rel (%p1514) target = $region248
        $region247: #{item_embedder_forward.1} parent=183 // pred_region
          %1517 = dma.done [#allocation27], 16
        $region248: #{item_embedder_forward.1} parent=183 // pred_fallthru
          _
        // Predicated region
        $region249: #{item_embedder_forward.1} parent=183 // pred_check
          %p1518 = pneg %p535
        $region250: #{item_embedder_forward.1} parent=183 // pred_check_branch
          %1520 = sbr.rel (%p1518) target = $region252
        $region251: #{item_embedder_forward.1} parent=183 // pred_region
          %1521 = dma.done [#allocation27], 1024
        $region252: #{item_embedder_forward.1} parent=183 // pred_fallthru
          _
        // Predicated region
        $region253: #{item_embedder_forward.1} parent=183 // pred_check
          %p1522 = pneg %p556
        $region254: #{item_embedder_forward.1} parent=183 // pred_check_branch
          %1524 = sbr.rel (%p1522) target = $region256
        $region255: #{item_embedder_forward.1} parent=183 // pred_region
          %1525 = dma.done [#allocation30], 16
        $region256: #{item_embedder_forward.1} parent=183 // pred_fallthru
          _
        // Predicated region
        $region257: #{item_embedder_forward.1} parent=183 // pred_check
          %p1526 = pneg %p577
        $region258: #{item_embedder_forward.1} parent=183 // pred_check_branch
          %1528 = sbr.rel (%p1526) target = $region260
        $region259: #{item_embedder_forward.1} parent=183 // pred_region
          %1529 = dma.done [#allocation30], 16
        $region260: #{item_embedder_forward.1} parent=183 // pred_fallthru
          _
        // Predicated region
        $region261: #{item_embedder_forward.1} parent=183 // pred_check
          %p1530 = pneg %p598
        $region262: #{item_embedder_forward.1} parent=183 // pred_check_branch
          %1532 = sbr.rel (%p1530) target = $region264
        $region263: #{item_embedder_forward.1} parent=183 // pred_region
          %1533 = dma.done [#allocation33], 16
        $region264: #{item_embedder_forward.1} parent=183 // pred_fallthru
          _
        // Predicated region
        $region265: #{item_embedder_forward.1} parent=183 // pred_check
          %p1534 = pneg %p619
        $region266: #{item_embedder_forward.1} parent=183 // pred_check_branch
          %1536 = sbr.rel (%p1534) target = $region268
        $region267: #{item_embedder_forward.1} parent=183 // pred_region
          %1537 = dma.done [#allocation33], 1024
        $region268: #{item_embedder_forward.1} parent=183 // pred_fallthru
          _
        // Predicated region
        $region269: #{item_embedder_forward.1} parent=183 // pred_check
          %p1538 = pneg %p640
        $region270: #{item_embedder_forward.1} parent=183 // pred_check_branch
          %1540 = sbr.rel (%p1538) target = $region272
        $region271: #{item_embedder_forward.1} parent=183 // pred_region
          %1541 = dma.done [#allocation36], 16
        $region272: #{item_embedder_forward.1} parent=183 // pred_fallthru
          _
        // Predicated region
        $region273: #{item_embedder_forward.1} parent=183 // pred_check
          %p1542 = pneg %p661
        $region274: #{item_embedder_forward.1} parent=183 // pred_check_branch
          %1544 = sbr.rel (%p1542) target = $region276
        $region275: #{item_embedder_forward.1} parent=183 // pred_region
          %1545 = dma.done [#allocation36], 16
        $region276: #{item_embedder_forward.1} parent=183 // pred_fallthru
          _
        // Predicated region
        $region277: #{item_embedder_forward.1} parent=183 // pred_check
          %p1546 = pneg %p682
        $region278: #{item_embedder_forward.1} parent=183 // pred_check_branch
          %1548 = sbr.rel (%p1546) target = $region280
        $region279: #{item_embedder_forward.1} parent=183 // pred_region
          %1549 = dma.done [#allocation39], 16
        $region280: #{item_embedder_forward.1} parent=183 // pred_fallthru
          _
        // Predicated region
        $region281: #{item_embedder_forward.1} parent=183 // pred_check
          %p1550 = pneg %p703
        $region282: #{item_embedder_forward.1} parent=183 // pred_check_branch
          %1552 = sbr.rel (%p1550) target = $region284
        $region283: #{item_embedder_forward.1} parent=183 // pred_region
          %1553 = dma.done [#allocation39], 1024
        $region284: #{item_embedder_forward.1} parent=183 // pred_fallthru
          _
        // Predicated region
        $region285: #{item_embedder_forward.1} parent=183 // pred_check
          %p1554 = pneg %p724
        $region286: #{item_embedder_forward.1} parent=183 // pred_check_branch
          %1556 = sbr.rel (%p1554) target = $region288
        $region287: #{item_embedder_forward.1} parent=183 // pred_region
          %1557 = dma.done [#allocation42], 16
        $region288: #{item_embedder_forward.1} parent=183 // pred_fallthru
          _
        // Predicated region
        $region289: #{item_embedder_forward.1} parent=183 // pred_check
          %p1558 = pneg %p745
        $region290: #{item_embedder_forward.1} parent=183 // pred_check_branch
          %1560 = sbr.rel (%p1558) target = $region292
        $region291: #{item_embedder_forward.1} parent=183 // pred_region
          %1561 = dma.done [#allocation42], 16
        $region292: #{item_embedder_forward.1} parent=183 // pred_fallthru
          _
        // Predicated region
        $region293: #{item_embedder_forward.1} parent=183 // pred_check
          %p1562 = pneg %p766
        $region294: #{item_embedder_forward.1} parent=183 // pred_check_branch
          %1564 = sbr.rel (%p1562) target = $region296
        $region295: #{item_embedder_forward.1} parent=183 // pred_region
          %1565 = dma.done [#allocation45], 16
        $region296: #{item_embedder_forward.1} parent=183 // pred_fallthru
          _
        // Predicated region
        $region297: #{item_embedder_forward.1} parent=183 // pred_check
          %p1566 = pneg %p787
        $region298: #{item_embedder_forward.1} parent=183 // pred_check_branch
          %1568 = sbr.rel (%p1566) target = $region300
        $region299: #{item_embedder_forward.1} parent=183 // pred_region
          %1569 = dma.done [#allocation45], 1024
        $region300: #{item_embedder_forward.1} parent=183 // pred_fallthru
          _
        // Predicated region
        $region301: #{item_embedder_forward.1} parent=183 // pred_check
          %p1570 = pneg %p808
        $region302: #{item_embedder_forward.1} parent=183 // pred_check_branch
          %1572 = sbr.rel (%p1570) target = $region304
        $region303: #{item_embedder_forward.1} parent=183 // pred_region
          %1573 = dma.done [#allocation48], 16
        $region304: #{item_embedder_forward.1} parent=183 // pred_fallthru
          _
        // Predicated region
        $region305: #{item_embedder_forward.1} parent=183 // pred_check
          %p1574 = pneg %p829
        $region306: #{item_embedder_forward.1} parent=183 // pred_check_branch
          %1576 = sbr.rel (%p1574) target = $region308
        $region307: #{item_embedder_forward.1} parent=183 // pred_region
          %1577 = dma.done [#allocation48], 16
        $region308: #{item_embedder_forward.1} parent=183 // pred_fallthru
          _
        // Predicated region
        $region309: #{item_embedder_forward.1} parent=183 // pred_check
          %p1578 = pneg %p850
        $region310: #{item_embedder_forward.1} parent=183 // pred_check_branch
          %1580 = sbr.rel (%p1578) target = $region312
        $region311: #{item_embedder_forward.1} parent=183 // pred_region
          %1581 = dma.done [#allocation51], 16
        $region312: #{item_embedder_forward.1} parent=183 // pred_fallthru
          _
        // Predicated region
        $region313: #{item_embedder_forward.1} parent=183 // pred_check
          %p1582 = pneg %p871
        $region314: #{item_embedder_forward.1} parent=183 // pred_check_branch
          %1584 = sbr.rel (%p1582) target = $region316
        $region315: #{item_embedder_forward.1} parent=183 // pred_region
          %1585 = dma.done [#allocation51], 1024
        $region316: #{item_embedder_forward.1} parent=183 // pred_fallthru
          _
        // Predicated region
        $region317: #{item_embedder_forward.1} parent=183 // pred_check
          %p1586 = pneg %p892
        $region318: #{item_embedder_forward.1} parent=183 // pred_check_branch
          %1588 = sbr.rel (%p1586) target = $region320
        $region319: #{item_embedder_forward.1} parent=183 // pred_region
          %1589 = dma.done [#allocation54], 16
        $region320: #{item_embedder_forward.1} parent=183 // pred_fallthru
          _
        // Predicated region
        $region321: #{item_embedder_forward.1} parent=183 // pred_check
          %p1590 = pneg %p913
        $region322: #{item_embedder_forward.1} parent=183 // pred_check_branch
          %1592 = sbr.rel (%p1590) target = $region324
        $region323: #{item_embedder_forward.1} parent=183 // pred_region
          %1593 = dma.done [#allocation54], 16
        $region324: #{item_embedder_forward.1} parent=183 // pred_fallthru
          _
        %s1594 = smul.u32 4, %s115
        %p1595 = scmp.lt.s32.totalorder %s1594, 7
        %s1596 = scalar_select %p1595, %s1594, 7
        %s1597 = smul.addr %s1596, 2
        %s1598 = smul.addr %s1597, 8
        %s1599 = scalar_lea.vmem %s1, %s1598
        %p1600 = pneg %p136
        %p1601 = pneg %p133
        %p1602 = pneg %p157
        %p1603 = pneg %p154
        %p1604 = pneg %p178
        %p1605 = pneg %p175
        %p1606 = pneg %p199
        %p1607 = pneg %p196
        %p1608 = pneg %p220
        %p1609 = pneg %p217
        %p1610 = pneg %p241
        %p1611 = pneg %p238
        %p1612 = pneg %p262
        %p1613 = pneg %p259
        %p1614 = pneg %p283
        %p1615 = pneg %p280
        %p1616 = pneg %p304
        %p1617 = pneg %p301
        %p1618 = pneg %p325
        %p1619 = pneg %p322
        %p1620 = pneg %p346
        %p1621 = pneg %p343
        %p1622 = pneg %p367
        %p1623 = pneg %p364
        %p1624 = pneg %p388
        %p1625 = pneg %p385
        %p1626 = pneg %p409
        %p1627 = pneg %p406
        %p1628 = pneg %p430
        %p1629 = pneg %p427
        %p1630 = pneg %p451
        %p1631 = pneg %p448
        %p1632 = pneg %p472
        %p1633 = pneg %p469
        %p1634 = pneg %p493
        %p1635 = pneg %p490
        %p1636 = pneg %p514
        %p1637 = pneg %p511
        %p1638 = pneg %p535
        %p1639 = pneg %p532
        %p1640 = pneg %p556
        %p1641 = pneg %p553
        %p1642 = pneg %p577
        %p1643 = pneg %p574
        %p1644 = pneg %p598
        %p1645 = pneg %p595
        %p1646 = pneg %p619
        %p1647 = pneg %p616
        %p1648 = pneg %p640
        %p1649 = pneg %p637
        %p1650 = pneg %p661
        %p1651 = pneg %p658
        %p1652 = pneg %p682
        %p1653 = pneg %p679
        %p1654 = pneg %p703
        %p1655 = pneg %p700
        %p1656 = pneg %p724
        %p1657 = pneg %p721
        %p1658 = pneg %p745
        %p1659 = pneg %p742
        %p1660 = pneg %p766
        %p1661 = pneg %p763
        %p1662 = pneg %p787
        %p1663 = pneg %p784
        %p1664 = pneg %p808
        %p1665 = pneg %p805
        %p1666 = pneg %p829
        %p1667 = pneg %p826
        %p1668 = pneg %p850
        %p1669 = pneg %p847
        %p1670 = pneg %p871
        %p1671 = pneg %p868
        %p1672 = pneg %p892
        %p1673 = pneg %p889
        %p1674 = pneg %p913
        %p1675 = pneg %p910
        %p1676 = pneg %p934
        %p1677 = pneg %p931
        %p1678 = pneg %p955
        %p1679 = pneg %p952
        %p1680 = pneg %p976
        %p1681 = pneg %p973
        %p1682 = pneg %p1002
        %p1683 = pneg %p999
        %s1684 = sand.u32 %s989, 1
        %s1685 = scalar_lea.sflag [#allocation4], %s1684
        %s1686 = sand.u32 %s989, 1
        %s1687 = smul.addr %s1686, 32
        %s1688 = scalar_lea.vmem [#allocation56], %s1687
        %s1689 = smul.u32 4, %s115
        %p1690 = scmp.lt.s32.totalorder %s1689, 7
        %s1691 = scalar_select %p1690, %s1689, 7
        %s1692 = smul.addr %s1691, 2
        %s1693 = smul.addr %s1692, 8
        %s1694 = scalar_lea.vmem %s1, %s1693
        %s1695 = smul.u32 4, %s115
        %s1696 = smul.u32 4, %s115
        %v1702 = vld [vmem:[%s1694] sm:$0xff]
        %v1703 = vld [vmem:[%s1694 + $0x8] sm:$0xff]
        %v1704 = vld [vmem:[%s1694 + $0x10] sm:$0xff]
        %v1705 = vld [vmem:[%s1694 + $0x18] sm:$0xff]
        %v1706 = vld [vmem:[%s1694 + $0x20] sm:$0xff]
        %v1707 = vld [vmem:[%s1694 + $0x28] sm:$0xff]
        %v1708 = vld [vmem:[%s1694 + $0x30] sm:$0xff]
        %v1709 = vld [vmem:[%s1694 + $0x38] sm:$0xff]
        %v1710 = vpack.c.bf16 %v1704, %v1702
        %v1711 = vpack.c.bf16 %v1705, %v1703
        %v1712 = vpack.c.bf16 %v1708, %v1706
        %v1713 = vpack.c.bf16 %v1709, %v1707
        %v1714 = vld [vmem:[%s3] sm:$0x3]
        %v1715 = vld [vmem:[#allocation2] sm:$0x3]
        %v1716 = vld [vmem:[%s7] sm:$0xff]
        %v1717 = vld [vmem:[%s7 + $0x8] sm:$0xff]
        %v1718 = vld [vmem:[%s7 + $0x10] sm:$0xff]
        %v1719 = vld [vmem:[%s7 + $0x18] sm:$0xff]
        %v1720 = vld [vmem:[%s7 + $0x20] sm:$0xff]
        %v1721 = vld [vmem:[%s7 + $0x28] sm:$0xff]
        %v1722 = vld [vmem:[%s7 + $0x30] sm:$0xff]
        %v1723 = vld [vmem:[%s7 + $0x38] sm:$0xff]
        %v1724 = vld [vmem:[%s7 + $0x40] sm:$0xff]
        %v1725 = vld [vmem:[%s7 + $0x48] sm:$0xff]
        %v1726 = vld [vmem:[%s7 + $0x50] sm:$0xff]
        %v1727 = vld [vmem:[%s7 + $0x58] sm:$0xff]
        %v1728 = vld [vmem:[%s7 + $0x60] sm:$0xff]
        %v1729 = vld [vmem:[%s7 + $0x68] sm:$0xff]
        %v1730 = vld [vmem:[%s7 + $0x70] sm:$0xff]
        %v1731 = vld [vmem:[%s7 + $0x78] sm:$0xff]
        %v1732 = vld [vmem:[%s7 + $0x80] sm:$0xff]
        %v1733 = vld [vmem:[%s7 + $0x88] sm:$0xff]
        %v1734 = vld [vmem:[%s7 + $0x90] sm:$0xff]
        %v1735 = vld [vmem:[%s7 + $0x98] sm:$0xff]
        %v1736 = vld [vmem:[%s7 + $0xa0] sm:$0xff]
        %v1737 = vld [vmem:[%s7 + $0xa8] sm:$0xff]
        %v1738 = vld [vmem:[%s7 + $0xb0] sm:$0xff]
        %v1739 = vld [vmem:[%s7 + $0xb8] sm:$0xff]
        %v1740 = vld [vmem:[%s7 + $0xc0] sm:$0xff]
        %v1741 = vld [vmem:[%s7 + $0xc8] sm:$0xff]
        %v1742 = vld [vmem:[%s7 + $0xd0] sm:$0xff]
        %v1743 = vld [vmem:[%s7 + $0xd8] sm:$0xff]
        %v1744 = vld [vmem:[%s7 + $0xe0] sm:$0xff]
        %v1745 = vld [vmem:[%s7 + $0xe8] sm:$0xff]
        %v1746 = vld [vmem:[%s7 + $0xf0] sm:$0xff]
        %v1747 = vld [vmem:[%s7 + $0xf8] sm:$0xff]
        %v1748 = vld [vmem:[#allocation5] sm:$0x3]
        %v1749 = vld [vmem:[#allocation7] sm:$0x3]
        %v1750 = vld [vmem:[#allocation8] sm:$0x3]
        %v1751 = vld [vmem:[#allocation10] sm:$0xf]
        %v1752 = vld [vmem:[#allocation10 + $0x4] sm:$0xf]
        %v1753 = vld [vmem:[#allocation10 + $0x8] sm:$0xf]
        %v1754 = vld [vmem:[#allocation10 + $0xc] sm:$0xf]
        %v1755 = vld [vmem:[#allocation10 + $0x10] sm:$0xf]
        %v1756 = vld [vmem:[#allocation10 + $0x14] sm:$0xf]
        %v1757 = vld [vmem:[#allocation10 + $0x18] sm:$0xf]
        %v1758 = vld [vmem:[#allocation10 + $0x1c] sm:$0xf]
        %v1759 = vld [vmem:[#allocation10 + $0x20] sm:$0xf]
        %v1760 = vld [vmem:[#allocation10 + $0x24] sm:$0xf]
        %v1761 = vld [vmem:[#allocation10 + $0x28] sm:$0xf]
        %v1762 = vld [vmem:[#allocation10 + $0x2c] sm:$0xf]
        %v1763 = vld [vmem:[#allocation10 + $0x30] sm:$0xf]
        %v1764 = vld [vmem:[#allocation10 + $0x34] sm:$0xf]
        %v1765 = vld [vmem:[#allocation10 + $0x38] sm:$0xf]
        %v1766 = vld [vmem:[#allocation10 + $0x3c] sm:$0xf]
        %v1767 = vld [vmem:[#allocation10 + $0x40] sm:$0xf]
        %v1768 = vld [vmem:[#allocation10 + $0x44] sm:$0xf]
        %v1769 = vld [vmem:[#allocation10 + $0x48] sm:$0xf]
        %v1770 = vld [vmem:[#allocation10 + $0x4c] sm:$0xf]
        %v1771 = vld [vmem:[#allocation10 + $0x50] sm:$0xf]
        %v1772 = vld [vmem:[#allocation10 + $0x54] sm:$0xf]
        %v1773 = vld [vmem:[#allocation10 + $0x58] sm:$0xf]
        %v1774 = vld [vmem:[#allocation10 + $0x5c] sm:$0xf]
        %v1775 = vld [vmem:[#allocation10 + $0x60] sm:$0xf]
        %v1776 = vld [vmem:[#allocation10 + $0x64] sm:$0xf]
        %v1777 = vld [vmem:[#allocation10 + $0x68] sm:$0xf]
        %v1778 = vld [vmem:[#allocation10 + $0x6c] sm:$0xf]
        %v1779 = vld [vmem:[#allocation10 + $0x70] sm:$0xf]
        %v1780 = vld [vmem:[#allocation10 + $0x74] sm:$0xf]
        %v1781 = vld [vmem:[#allocation10 + $0x78] sm:$0xf]
        %v1782 = vld [vmem:[#allocation10 + $0x7c] sm:$0xf]
        %v1783 = vld [vmem:[#allocation11] sm:$0x1]
        %v1785 = vlaneseq
        %v1786 = vshrl.u32 %v1785, 7
        %v1787 = vsub.s32 0, %v1786
        %v1788 = vrot.slane %v1714, %v1787
        %v1789 = vlaneseq
        %v1790 = vshrl.u32 %v1789, 7
        %v1791 = vsub.s32 1, %v1790
        %v1792 = vrot.slane %v1714, %v1791
        %v1795 = vpack.c.bf16 %v1788, %v1788
        %v1796 = vpack.c.bf16 %v1792, %v1792
        %v1798 = vpack.i.b16 %v1795, %v1795
        %v1800 = vlaneseq
        %v1801 = vshrl.u32 %v1800, 7
        %v1802 = vsub.s32 0, %v1801
        %v1803 = vrot.slane %v1798, %v1802
        %v1805 = vpack.i.b16 %v1796, %v1796
        %v1807 = vlaneseq
        %v1808 = vshrl.u32 %v1807, 7
        %v1809 = vsub.s32 0, %v1808
        %v1810 = vrot.slane %v1805, %v1809
        %v1811 = vmul.bf16 %v1710, %v1803
        %v1812 = vmul.bf16 %v1711, %v1810
        %v1813 = vmul.bf16 %v1712, %v1803
        %v1814 = vmul.bf16 %v1713, %v1810
        %v1816 = vlaneseq
        %v1817 = vshrl.u32 %v1816, 7
        %v1818 = vsub.s32 0, %v1817
        %v1819 = vrot.slane %v1715, %v1818
        %v1820 = vlaneseq
        %v1821 = vshrl.u32 %v1820, 7
        %v1822 = vsub.s32 1, %v1821
        %v1823 = vrot.slane %v1715, %v1822
        %v1826 = vpack.c.bf16 %v1819, %v1819
        %v1827 = vpack.c.bf16 %v1823, %v1823
        %v1829 = vpack.i.b16 %v1826, %v1826
        %v1831 = vlaneseq
        %v1832 = vshrl.u32 %v1831, 7
        %v1833 = vsub.s32 0, %v1832
        %v1834 = vrot.slane %v1829, %v1833
        %v1836 = vpack.i.b16 %v1827, %v1827
        %v1838 = vlaneseq
        %v1839 = vshrl.u32 %v1838, 7
        %v1840 = vsub.s32 0, %v1839
        %v1841 = vrot.slane %v1836, %v1840
        %v1842 = vadd.bf16 %v1811, %v1834
        %v1843 = vadd.bf16 %v1812, %v1841
        %v1844 = vadd.bf16 %v1813, %v1834
        %v1845 = vadd.bf16 %v1814, %v1841
        %v1846 = vmul.bf16 %v1842, %v1842
        %v1847 = vmul.bf16 %v1843, %v1843
        %v1848 = vmul.bf16 %v1844, %v1844
        %v1849 = vmul.bf16 %v1845, %v1845
        %v1850 = vmul.bf16 %v1846, 1024605458
        %v1851 = vmul.bf16 %v1847, 1024605458
        %v1852 = vmul.bf16 %v1848, 1024605458
        %v1853 = vmul.bf16 %v1849, 1024605458
        %v1854 = vadd.bf16 %v1850, 1061961548
        %v1855 = vadd.bf16 %v1851, 1061961548
        %v1856 = vadd.bf16 %v1852, 1061961548
        %v1857 = vadd.bf16 %v1853, 1061961548
        %v1858 = vmul.bf16 %v1842, %v1854
        %v1859 = vmul.bf16 %v1843, %v1855
        %v1860 = vmul.bf16 %v1844, %v1856
        %v1861 = vmul.bf16 %v1845, %v1857
        %v1862 = vmul.bf16 %v1842, 1056980736
        %v1863 = vmul.bf16 %v1843, 1056980736
        %v1864 = vmul.bf16 %v1844, 1056980736
        %v1865 = vmul.bf16 %v1845, 1056980736
        %v1866 = vtanh.bf16.pop %v1858
        %v1867 = vtanh.bf16.pop %v1859
        %v1868 = vtanh.bf16.pop %v1860
        %v1869 = vtanh.bf16.pop %v1861
        %v1870 = vadd.bf16 %v1866, 1065369472
        %v1871 = vadd.bf16 %v1867, 1065369472
        %v1872 = vadd.bf16 %v1868, 1065369472
        %v1873 = vadd.bf16 %v1869, 1065369472
        %v1874 = vmul.bf16 %v1862, %v1870
        %v1875 = vmul.bf16 %v1863, %v1871
        %v1876 = vmul.bf16 %v1864, %v1872
        %v1877 = vmul.bf16 %v1865, %v1873
        %v1879 = vlaneseq
        %v1880 = vshrl.u32 %v1879, 7
        %v1881 = vsub.s32 0, %v1880
        %v1882 = vrot.slane %v1748, %v1881
        %v1883 = vlaneseq
        %v1884 = vshrl.u32 %v1883, 7
        %v1885 = vsub.s32 1, %v1884
        %v1886 = vrot.slane %v1748, %v1885
        %v1921 = vunpack.c.l.b16 %v1716
        %v1922 = vunpack.c.h.b16 %v1716
        %v1923 = vunpack.c.l.b16 %v1717
        %v1924 = vunpack.c.h.b16 %v1717
        %v1925 = vunpack.c.l.b16 %v1718
        %v1926 = vunpack.c.h.b16 %v1718
        %v1927 = vunpack.c.l.b16 %v1719
        %v1928 = vunpack.c.h.b16 %v1719
        %v1929 = vunpack.c.l.b16 %v1720
        %v1930 = vunpack.c.h.b16 %v1720
        %v1931 = vunpack.c.l.b16 %v1721
        %v1932 = vunpack.c.h.b16 %v1721
        %v1933 = vunpack.c.l.b16 %v1722
        %v1934 = vunpack.c.h.b16 %v1722
        %v1935 = vunpack.c.l.b16 %v1723
        %v1936 = vunpack.c.h.b16 %v1723
        %v1937 = vunpack.c.l.b16 %v1724
        %v1938 = vunpack.c.h.b16 %v1724
        %v1939 = vunpack.c.l.b16 %v1725
        %v1940 = vunpack.c.h.b16 %v1725
        %v1941 = vunpack.c.l.b16 %v1726
        %v1942 = vunpack.c.h.b16 %v1726
        %v1943 = vunpack.c.l.b16 %v1727
        %v1944 = vunpack.c.h.b16 %v1727
        %v1945 = vunpack.c.l.b16 %v1728
        %v1946 = vunpack.c.h.b16 %v1728
        %v1947 = vunpack.c.l.b16 %v1729
        %v1948 = vunpack.c.h.b16 %v1729
        %v1949 = vunpack.c.l.b16 %v1730
        %v1950 = vunpack.c.h.b16 %v1730
        %v1951 = vunpack.c.l.b16 %v1731
        %v1952 = vunpack.c.h.b16 %v1731
        %v1953 = vunpack.c.l.b16 %v1732
        %v1954 = vunpack.c.h.b16 %v1732
        %v1955 = vunpack.c.l.b16 %v1733
        %v1956 = vunpack.c.h.b16 %v1733
        %v1957 = vunpack.c.l.b16 %v1734
        %v1958 = vunpack.c.h.b16 %v1734
        %v1959 = vunpack.c.l.b16 %v1735
        %v1960 = vunpack.c.h.b16 %v1735
        %v1961 = vunpack.c.l.b16 %v1736
        %v1962 = vunpack.c.h.b16 %v1736
        %v1963 = vunpack.c.l.b16 %v1737
        %v1964 = vunpack.c.h.b16 %v1737
        %v1965 = vunpack.c.l.b16 %v1738
        %v1966 = vunpack.c.h.b16 %v1738
        %v1967 = vunpack.c.l.b16 %v1739
        %v1968 = vunpack.c.h.b16 %v1739
        %v1969 = vunpack.c.l.b16 %v1740
        %v1970 = vunpack.c.h.b16 %v1740
        %v1971 = vunpack.c.l.b16 %v1741
        %v1972 = vunpack.c.h.b16 %v1741
        %v1973 = vunpack.c.l.b16 %v1742
        %v1974 = vunpack.c.h.b16 %v1742
        %v1975 = vunpack.c.l.b16 %v1743
        %v1976 = vunpack.c.h.b16 %v1743
        %v1977 = vunpack.c.l.b16 %v1744
        %v1978 = vunpack.c.h.b16 %v1744
        %v1979 = vunpack.c.l.b16 %v1745
        %v1980 = vunpack.c.h.b16 %v1745
        %v1981 = vunpack.c.l.b16 %v1746
        %v1982 = vunpack.c.h.b16 %v1746
        %v1983 = vunpack.c.l.b16 %v1747
        %v1984 = vunpack.c.h.b16 %v1747
        %v1985 = vpack.c.b16 %v1923, %v1921
        %v1986 = vpack.c.b16 %v1924, %v1922
        %v1987 = vpack.c.b16 %v1927, %v1925
        %v1988 = vpack.c.b16 %v1928, %v1926
        %v1989 = vpack.c.b16 %v1931, %v1929
        %v1990 = vpack.c.b16 %v1932, %v1930
        %v1991 = vpack.c.b16 %v1935, %v1933
        %v1992 = vpack.c.b16 %v1936, %v1934
        %v1993 = vpack.c.b16 %v1939, %v1937
        %v1994 = vpack.c.b16 %v1940, %v1938
        %v1995 = vpack.c.b16 %v1943, %v1941
        %v1996 = vpack.c.b16 %v1944, %v1942
        %v1997 = vpack.c.b16 %v1947, %v1945
        %v1998 = vpack.c.b16 %v1948, %v1946
        %v1999 = vpack.c.b16 %v1951, %v1949
        %v2000 = vpack.c.b16 %v1952, %v1950
        %v2001 = vpack.c.b16 %v1955, %v1953
        %v2002 = vpack.c.b16 %v1956, %v1954
        %v2003 = vpack.c.b16 %v1959, %v1957
        %v2004 = vpack.c.b16 %v1960, %v1958
        %v2005 = vpack.c.b16 %v1963, %v1961
        %v2006 = vpack.c.b16 %v1964, %v1962
        %v2007 = vpack.c.b16 %v1967, %v1965
        %v2008 = vpack.c.b16 %v1968, %v1966
        %v2009 = vpack.c.b16 %v1971, %v1969
        %v2010 = vpack.c.b16 %v1972, %v1970
        %v2011 = vpack.c.b16 %v1975, %v1973
        %v2012 = vpack.c.b16 %v1976, %v1974
        %v2013 = vpack.c.b16 %v1979, %v1977
        %v2014 = vpack.c.b16 %v1980, %v1978
        %v2015 = vpack.c.b16 %v1983, %v1981
        %v2016 = vpack.c.b16 %v1984, %v1982
        %2049 = vmatprep.subr.bf16.mxu0 %v2000
        %2050 = vmatpush1.bf16.msra.mxu0 %v1999
        %2051 = vmatprep.subr.bf16.mxu0 %v1998
        %2052 = vmatpush1.bf16.msra.mxu0 %v1997
        %2053 = vmatprep.subr.bf16.mxu0 %v1996
        %2054 = vmatpush1.bf16.msra.mxu0 %v1995
        %2055 = vmatprep.subr.bf16.mxu0 %v1994
        %2056 = vmatpush1.bf16.msra.mxu0 %v1993
        %2057 = vmatprep.subr.bf16.mxu0 %v1992
        %2058 = vmatpush1.bf16.msra.mxu0 %v1991
        %2059 = vmatprep.subr.bf16.mxu0 %v1990
        %2060 = vmatpush1.bf16.msra.mxu0 %v1989
        %2061 = vmatprep.subr.bf16.mxu0 %v1988
        %2062 = vmatpush1.bf16.msra.mxu0 %v1987
        %2063 = vmatprep.subr.bf16.mxu0 %v1986
        %2064 = vmatpush1.bf16.msra.mxu0 %v1985
        %2065 = vmatprep.subr.bf16.mxu0 %v2016
        %2066 = vmatpush2.bf16.msra.mxu0 %v2015
        %2067 = vmatprep.subr.bf16.mxu0 %v2014
        %2068 = vmatpush2.bf16.msra.mxu0 %v2013
        %2069 = vmatprep.subr.bf16.mxu0 %v2012
        %2070 = vmatpush2.bf16.msra.mxu0 %v2011
        %2071 = vmatprep.subr.bf16.mxu0 %v2010
        %2072 = vmatpush2.bf16.msra.mxu0 %v2009
        %2073 = vmatprep.subr.bf16.mxu0 %v2008
        %2074 = vmatpush2.bf16.msra.mxu0 %v2007
        %2075 = vmatprep.subr.bf16.mxu0 %v2006
        %2076 = vmatpush2.bf16.msra.mxu0 %v2005
        %2077 = vmatprep.subr.bf16.mxu0 %v2004
        %2078 = vmatpush2.bf16.msra.mxu0 %v2003
        %2079 = vmatprep.subr.bf16.mxu0 %v2002
        %2080 = vmatpush2.bf16.msra.mxu0 %v2001
        %2081 = vmatprep.mubr.bf16.mxu0 %v1875
        %2082 = vmatmul.mubr.bf16.gmra.mxu0 %v1874
        %v2083 = vpop.f32.mrf.mxu0
        %v2084 = vadd.f32 %v1882, %v2083
        %v2085 = vpop.f32.mrf.mxu0
        %v2086 = vadd.f32 %v1886, %v2085
        %v2087 = vpop.f32.mrf.mxu0
        %v2088 = vadd.f32 %v1882, %v2087
        %v2089 = vpop.f32.mrf.mxu0
        %v2090 = vadd.f32 %v1886, %v2089
        %2091 = vmatprep.mubr.bf16.mxu0 %v1877
        %2092 = vmatmul.mubr.bf16.gmra.mxu0 %v1876
        %v2093 = vpop.f32.mrf.mxu0
        %v2094 = vadd.f32 %v1882, %v2093
        %v2095 = vpop.f32.mrf.mxu0
        %v2096 = vadd.f32 %v1886, %v2095
        %v2097 = vpop.f32.mrf.mxu0
        %v2098 = vadd.f32 %v1882, %v2097
        %v2099 = vpop.f32.mrf.mxu0
        %v2100 = vadd.f32 %v1886, %v2099
        %2101 = vdwg.mxu0
        %v2102 = vpack.c.bf16 %v2088, %v2084
        %v2103 = vpack.c.bf16 %v2090, %v2086
        %v2104 = vpack.c.bf16 %v2098, %v2094
        %v2105 = vpack.c.bf16 %v2100, %v2096
        %v2106 = vadd.bf16 %v1710, %v2102
        %v2107 = vadd.bf16 %v1711, %v2103
        %v2108 = vadd.bf16 %v1712, %v2104
        %v2109 = vadd.bf16 %v1713, %v2105
        %v2111 = vlaneseq
        %v2112 = vshrl.u32 %v2111, 7
        %v2113 = vsub.s32 0, %v2112
        %v2114 = vrot.slane %v1749, %v2113
        %v2115 = vlaneseq
        %v2116 = vshrl.u32 %v2115, 7
        %v2117 = vsub.s32 1, %v2116
        %v2118 = vrot.slane %v1749, %v2117
        %v2121 = vpack.c.bf16 %v2114, %v2114
        %v2122 = vpack.c.bf16 %v2118, %v2118
        %v2124 = vpack.i.b16 %v2121, %v2121
        %v2126 = vlaneseq
        %v2127 = vshrl.u32 %v2126, 7
        %v2128 = vsub.s32 0, %v2127
        %v2129 = vrot.slane %v2124, %v2128
        %v2131 = vpack.i.b16 %v2122, %v2122
        %v2133 = vlaneseq
        %v2134 = vshrl.u32 %v2133, 7
        %v2135 = vsub.s32 0, %v2134
        %v2136 = vrot.slane %v2131, %v2135
        %v2137 = vmul.bf16 %v2106, %v2129
        %v2138 = vmul.bf16 %v2107, %v2136
        %v2139 = vmul.bf16 %v2108, %v2129
        %v2140 = vmul.bf16 %v2109, %v2136
        %v2142 = vlaneseq
        %v2143 = vshrl.u32 %v2142, 7
        %v2144 = vsub.s32 0, %v2143
        %v2145 = vrot.slane %v1750, %v2144
        %v2146 = vlaneseq
        %v2147 = vshrl.u32 %v2146, 7
        %v2148 = vsub.s32 1, %v2147
        %v2149 = vrot.slane %v1750, %v2148
        %v2152 = vpack.c.bf16 %v2145, %v2145
        %v2153 = vpack.c.bf16 %v2149, %v2149
        %v2155 = vpack.i.b16 %v2152, %v2152
        %v2157 = vlaneseq
        %v2158 = vshrl.u32 %v2157, 7
        %v2159 = vsub.s32 0, %v2158
        %v2160 = vrot.slane %v2155, %v2159
        %v2162 = vpack.i.b16 %v2153, %v2153
        %v2164 = vlaneseq
        %v2165 = vshrl.u32 %v2164, 7
        %v2166 = vsub.s32 0, %v2165
        %v2167 = vrot.slane %v2162, %v2166
        %v2168 = vadd.bf16 %v2137, %v2160
        %v2169 = vadd.bf16 %v2138, %v2167
        %v2170 = vadd.bf16 %v2139, %v2160
        %v2171 = vadd.bf16 %v2140, %v2167
        %v2172 = vmul.bf16 %v2168, %v2168
        %v2173 = vmul.bf16 %v2169, %v2169
        %v2174 = vmul.bf16 %v2170, %v2170
        %v2175 = vmul.bf16 %v2171, %v2171
        %v2176 = vmul.bf16 %v2172, 1024605458
        %v2177 = vmul.bf16 %v2173, 1024605458
        %v2178 = vmul.bf16 %v2174, 1024605458
        %v2179 = vmul.bf16 %v2175, 1024605458
        %v2180 = vadd.bf16 %v2176, 1061961548
        %v2181 = vadd.bf16 %v2177, 1061961548
        %v2182 = vadd.bf16 %v2178, 1061961548
        %v2183 = vadd.bf16 %v2179, 1061961548
        %v2184 = vmul.bf16 %v2168, %v2180
        %v2185 = vmul.bf16 %v2169, %v2181
        %v2186 = vmul.bf16 %v2170, %v2182
        %v2187 = vmul.bf16 %v2171, %v2183
        %v2188 = vmul.bf16 %v2168, 1056980736
        %v2189 = vmul.bf16 %v2169, 1056980736
        %v2190 = vmul.bf16 %v2170, 1056980736
        %v2191 = vmul.bf16 %v2171, 1056980736
        %v2192 = vtanh.bf16.pop %v2184
        %v2193 = vtanh.bf16.pop %v2185
        %v2194 = vtanh.bf16.pop %v2186
        %v2195 = vtanh.bf16.pop %v2187
        %v2196 = vadd.bf16 %v2192, 1065369472
        %v2197 = vadd.bf16 %v2193, 1065369472
        %v2198 = vadd.bf16 %v2194, 1065369472
        %v2199 = vadd.bf16 %v2195, 1065369472
        %v2200 = vmul.bf16 %v2188, %v2196
        %v2201 = vmul.bf16 %v2189, %v2197
        %v2202 = vmul.bf16 %v2190, %v2198
        %v2203 = vmul.bf16 %v2191, %v2199
        %v2205 = vlaneseq
        %v2206 = vshrl.u32 %v2205, 7
        %v2207 = vsub.s32 0, %v2206
        %v2208 = vrot.slane %v1783, %v2207
        %v2242 = vunpack.c.l.b16 %v1751
        %v2243 = vunpack.c.l.b16 %v1752
        %v2244 = vunpack.c.l.b16 %v1753
        %v2245 = vunpack.c.l.b16 %v1754
        %v2246 = vunpack.c.l.b16 %v1755
        %v2247 = vunpack.c.l.b16 %v1756
        %v2248 = vunpack.c.l.b16 %v1757
        %v2249 = vunpack.c.l.b16 %v1758
        %v2250 = vunpack.c.l.b16 %v1759
        %v2251 = vunpack.c.l.b16 %v1760
        %v2252 = vunpack.c.l.b16 %v1761
        %v2253 = vunpack.c.l.b16 %v1762
        %v2254 = vunpack.c.l.b16 %v1763
        %v2255 = vunpack.c.l.b16 %v1764
        %v2256 = vunpack.c.l.b16 %v1765
        %v2257 = vunpack.c.l.b16 %v1766
        %v2258 = vunpack.c.l.b16 %v1767
        %v2259 = vunpack.c.l.b16 %v1768
        %v2260 = vunpack.c.l.b16 %v1769
        %v2261 = vunpack.c.l.b16 %v1770
        %v2262 = vunpack.c.l.b16 %v1771
        %v2263 = vunpack.c.l.b16 %v1772
        %v2264 = vunpack.c.l.b16 %v1773
        %v2265 = vunpack.c.l.b16 %v1774
        %v2266 = vunpack.c.l.b16 %v1775
        %v2267 = vunpack.c.l.b16 %v1776
        %v2268 = vunpack.c.l.b16 %v1777
        %v2269 = vunpack.c.l.b16 %v1778
        %v2270 = vunpack.c.l.b16 %v1779
        %v2271 = vunpack.c.l.b16 %v1780
        %v2272 = vunpack.c.l.b16 %v1781
        %v2273 = vunpack.c.l.b16 %v1782
        %v2274 = vpack.c.b16 %v2243, %v2242
        %v2275 = vpack.c.b16 %v2245, %v2244
        %v2276 = vpack.c.b16 %v2247, %v2246
        %v2277 = vpack.c.b16 %v2249, %v2248
        %v2278 = vpack.c.b16 %v2251, %v2250
        %v2279 = vpack.c.b16 %v2253, %v2252
        %v2280 = vpack.c.b16 %v2255, %v2254
        %v2281 = vpack.c.b16 %v2257, %v2256
        %v2282 = vpack.c.b16 %v2259, %v2258
        %v2283 = vpack.c.b16 %v2261, %v2260
        %v2284 = vpack.c.b16 %v2263, %v2262
        %v2285 = vpack.c.b16 %v2265, %v2264
        %v2286 = vpack.c.b16 %v2267, %v2266
        %v2287 = vpack.c.b16 %v2269, %v2268
        %v2288 = vpack.c.b16 %v2271, %v2270
        %v2289 = vpack.c.b16 %v2273, %v2272
        %2306 = vmatprep.subr.bf16.mxu0 0
        %2307 = vmatpush1.bf16.msra.mxu0 %v2281
        %2308 = vmatprep.subr.bf16.mxu0 0
        %2309 = vmatpush1.bf16.msra.mxu0 %v2280
        %2310 = vmatprep.subr.bf16.mxu0 0
        %2311 = vmatpush1.bf16.msra.mxu0 %v2279
        %2312 = vmatprep.subr.bf16.mxu0 0
        %2313 = vmatpush1.bf16.msra.mxu0 %v2278
        %2314 = vmatprep.subr.bf16.mxu0 0
        %2315 = vmatpush1.bf16.msra.mxu0 %v2277
        %2316 = vmatprep.subr.bf16.mxu0 0
        %2317 = vmatpush1.bf16.msra.mxu0 %v2276
        %2318 = vmatprep.subr.bf16.mxu0 0
        %2319 = vmatpush1.bf16.msra.mxu0 %v2275
        %2320 = vmatprep.subr.bf16.mxu0 0
        %2321 = vmatpush1.bf16.msra.mxu0 %v2274
        %2322 = vmatprep.subr.bf16.mxu0 0
        %2323 = vmatpush2.bf16.msra.mxu0 %v2289
        %2324 = vmatprep.subr.bf16.mxu0 0
        %2325 = vmatpush2.bf16.msra.mxu0 %v2288
        %2326 = vmatprep.subr.bf16.mxu0 0
        %2327 = vmatpush2.bf16.msra.mxu0 %v2287
        %2328 = vmatprep.subr.bf16.mxu0 0
        %2329 = vmatpush2.bf16.msra.mxu0 %v2286
        %2330 = vmatprep.subr.bf16.mxu0 0
        %2331 = vmatpush2.bf16.msra.mxu0 %v2285
        %2332 = vmatprep.subr.bf16.mxu0 0
        %2333 = vmatpush2.bf16.msra.mxu0 %v2284
        %2334 = vmatprep.subr.bf16.mxu0 0
        %2335 = vmatpush2.bf16.msra.mxu0 %v2283
        %2336 = vmatprep.subr.bf16.mxu0 0
        %2337 = vmatpush2.bf16.msra.mxu0 %v2282
        %2338 = vmatprep.mubr.bf16.mxu0 %v2201
        %2339 = vmatmul.mubr.bf16.gmra.mxu0 %v2200
        %v2340 = vpop.f32.mrf.mxu0
        %v2341 = vadd.f32 %v2208, %v2340
        %v2342 = vpop.f32.mrf.mxu0
        %v2343 = vpop.f32.mrf.mxu0
        %v2344 = vadd.f32 %v2208, %v2343
        %v2345 = vpop.f32.mrf.mxu0
        %2346 = vmatprep.mubr.bf16.mxu0 %v2203
        %2347 = vmatmul.mubr.bf16.gmra.mxu0 %v2202
        %v2348 = vpop.f32.mrf.mxu0
        %v2349 = vadd.f32 %v2208, %v2348
        %v2350 = vpop.f32.mrf.mxu0
        %v2351 = vpop.f32.mrf.mxu0
        %v2352 = vadd.f32 %v2208, %v2351
        %v2353 = vpop.f32.mrf.mxu0
        %2354 = vdwg.mxu0
        %v2355 = vpack.c.bf16 %v2344, %v2341
        %v2356 = vpack.c.bf16 %v2352, %v2349
        %v2357 = vld [vmem:[#allocation13] sm:$0x1]
        %v2358 = vld [vmem:[#allocation14] sm:$0x1]
        %v2359 = vld [vmem:[#allocation16] sm:$0xf]
        %v2360 = vld [vmem:[#allocation16 + $0x4] sm:$0xf]
        %v2361 = vld [vmem:[#allocation16 + $0x8] sm:$0xf]
        %v2362 = vld [vmem:[#allocation16 + $0xc] sm:$0xf]
        %v2363 = vld [vmem:[#allocation16 + $0x10] sm:$0xf]
        %v2364 = vld [vmem:[#allocation16 + $0x14] sm:$0xf]
        %v2365 = vld [vmem:[#allocation16 + $0x18] sm:$0xf]
        %v2366 = vld [vmem:[#allocation16 + $0x1c] sm:$0xf]
        %v2367 = vld [vmem:[#allocation16 + $0x20] sm:$0xf]
        %v2368 = vld [vmem:[#allocation16 + $0x24] sm:$0xf]
        %v2369 = vld [vmem:[#allocation16 + $0x28] sm:$0xf]
        %v2370 = vld [vmem:[#allocation16 + $0x2c] sm:$0xf]
        %v2371 = vld [vmem:[#allocation16 + $0x30] sm:$0xf]
        %v2372 = vld [vmem:[#allocation16 + $0x34] sm:$0xf]
        %v2373 = vld [vmem:[#allocation16 + $0x38] sm:$0xf]
        %v2374 = vld [vmem:[#allocation16 + $0x3c] sm:$0xf]
        %v2375 = vld [vmem:[#allocation17] sm:$0x1]
        %v2376 = vld [vmem:[#allocation19] sm:$0x1]
        %v2377 = vld [vmem:[#allocation20] sm:$0x1]
        %v2378 = vld [vmem:[#allocation22] sm:$0xf]
        %v2379 = vld [vmem:[#allocation22 + $0x4] sm:$0xf]
        %v2380 = vld [vmem:[#allocation22 + $0x8] sm:$0xf]
        %v2381 = vld [vmem:[#allocation22 + $0xc] sm:$0xf]
        %v2382 = vld [vmem:[#allocation22 + $0x10] sm:$0xf]
        %v2383 = vld [vmem:[#allocation22 + $0x14] sm:$0xf]
        %v2384 = vld [vmem:[#allocation22 + $0x18] sm:$0xf]
        %v2385 = vld [vmem:[#allocation22 + $0x1c] sm:$0xf]
        %v2386 = vld [vmem:[#allocation22 + $0x20] sm:$0xf]
        %v2387 = vld [vmem:[#allocation22 + $0x24] sm:$0xf]
        %v2388 = vld [vmem:[#allocation22 + $0x28] sm:$0xf]
        %v2389 = vld [vmem:[#allocation22 + $0x2c] sm:$0xf]
        %v2390 = vld [vmem:[#allocation22 + $0x30] sm:$0xf]
        %v2391 = vld [vmem:[#allocation22 + $0x34] sm:$0xf]
        %v2392 = vld [vmem:[#allocation22 + $0x38] sm:$0xf]
        %v2393 = vld [vmem:[#allocation22 + $0x3c] sm:$0xf]
        %v2394 = vld [vmem:[#allocation23] sm:$0x1]
        %v2395 = vpack.c.bf16 %v2357, %v2357
        %v2397 = vpack.i.b16 %v2395, %v2395
        %v2399 = vlaneseq
        %v2400 = vshrl.u32 %v2399, 7
        %v2401 = vsub.s32 0, %v2400
        %v2402 = vrot.slane %v2397, %v2401
        %v2403 = vmul.bf16 %v2355, %v2402
        %v2404 = vmul.bf16 %v2356, %v2402
        %v2405 = vpack.c.bf16 %v2358, %v2358
        %v2407 = vpack.i.b16 %v2405, %v2405
        %v2409 = vlaneseq
        %v2410 = vshrl.u32 %v2409, 7
        %v2411 = vsub.s32 0, %v2410
        %v2412 = vrot.slane %v2407, %v2411
        %v2413 = vadd.bf16 %v2403, %v2412
        %v2414 = vadd.bf16 %v2404, %v2412
        %v2415 = vmul.bf16 %v2413, %v2413
        %v2416 = vmul.bf16 %v2414, %v2414
        %v2417 = vmul.bf16 %v2415, 1024605458
        %v2418 = vmul.bf16 %v2416, 1024605458
        %v2419 = vadd.bf16 %v2417, 1061961548
        %v2420 = vadd.bf16 %v2418, 1061961548
        %v2421 = vmul.bf16 %v2413, %v2419
        %v2422 = vmul.bf16 %v2414, %v2420
        %v2423 = vmul.bf16 %v2413, 1056980736
        %v2424 = vmul.bf16 %v2414, 1056980736
        %v2425 = vtanh.bf16.pop %v2421
        %v2426 = vtanh.bf16.pop %v2422
        %v2427 = vadd.bf16 %v2425, 1065369472
        %v2428 = vadd.bf16 %v2426, 1065369472
        %v2429 = vmul.bf16 %v2423, %v2427
        %v2430 = vmul.bf16 %v2424, %v2428
        %v2432 = vlaneseq
        %v2433 = vshrl.u32 %v2432, 7
        %v2434 = vsub.s32 0, %v2433
        %v2435 = vrot.slane %v2375, %v2434
        %v2453 = vunpack.c.l.b16 %v2359
        %v2454 = vunpack.c.l.b16 %v2360
        %v2455 = vunpack.c.l.b16 %v2361
        %v2456 = vunpack.c.l.b16 %v2362
        %v2457 = vunpack.c.l.b16 %v2363
        %v2458 = vunpack.c.l.b16 %v2364
        %v2459 = vunpack.c.l.b16 %v2365
        %v2460 = vunpack.c.l.b16 %v2366
        %v2461 = vunpack.c.l.b16 %v2367
        %v2462 = vunpack.c.l.b16 %v2368
        %v2463 = vunpack.c.l.b16 %v2369
        %v2464 = vunpack.c.l.b16 %v2370
        %v2465 = vunpack.c.l.b16 %v2371
        %v2466 = vunpack.c.l.b16 %v2372
        %v2467 = vunpack.c.l.b16 %v2373
        %v2468 = vunpack.c.l.b16 %v2374
        %v2469 = vpack.c.b16 %v2454, %v2453
        %v2470 = vpack.c.b16 %v2456, %v2455
        %v2471 = vpack.c.b16 %v2458, %v2457
        %v2472 = vpack.c.b16 %v2460, %v2459
        %v2473 = vpack.c.b16 %v2462, %v2461
        %v2474 = vpack.c.b16 %v2464, %v2463
        %v2475 = vpack.c.b16 %v2466, %v2465
        %v2476 = vpack.c.b16 %v2468, %v2467
        %2485 = vmatprep.subr.bf16.mxu0 0
        %2486 = vmatpush1.bf16.msra.mxu0 %v2476
        %2487 = vmatprep.subr.bf16.mxu0 0
        %2488 = vmatpush1.bf16.msra.mxu0 %v2475
        %2489 = vmatprep.subr.bf16.mxu0 0
        %2490 = vmatpush1.bf16.msra.mxu0 %v2474
        %2491 = vmatprep.subr.bf16.mxu0 0
        %2492 = vmatpush1.bf16.msra.mxu0 %v2473
        %2493 = vmatprep.subr.bf16.mxu0 0
        %2494 = vmatpush1.bf16.msra.mxu0 %v2472
        %2495 = vmatprep.subr.bf16.mxu0 0
        %2496 = vmatpush1.bf16.msra.mxu0 %v2471
        %2497 = vmatprep.subr.bf16.mxu0 0
        %2498 = vmatpush1.bf16.msra.mxu0 %v2470
        %2499 = vmatprep.subr.bf16.mxu0 0
        %2500 = vmatpush1.bf16.msra.mxu0 %v2469
        %2501 = vmatprep.subr.bf16.mxu0 0
        %2502 = vmatpush2.bf16.msra.mxu0 0
        %2503 = vmatprep.subr.bf16.mxu0 0
        %2504 = vmatpush2.bf16.msra.mxu0 0
        %2505 = vmatprep.subr.bf16.mxu0 0
        %2506 = vmatpush2.bf16.msra.mxu0 0
        %2507 = vmatprep.subr.bf16.mxu0 0
        %2508 = vmatpush2.bf16.msra.mxu0 0
        %2509 = vmatprep.subr.bf16.mxu0 0
        %2510 = vmatpush2.bf16.msra.mxu0 0
        %2511 = vmatprep.subr.bf16.mxu0 0
        %2512 = vmatpush2.bf16.msra.mxu0 0
        %2513 = vmatprep.subr.bf16.mxu0 0
        %2514 = vmatpush2.bf16.msra.mxu0 0
        %2515 = vmatprep.subr.bf16.mxu0 0
        %2516 = vmatpush2.bf16.msra.mxu0 0
        %2517 = vmatprep.mubr.bf16.mxu0 0
        %2518 = vmatmul.mubr.bf16.gmra.mxu0 %v2429
        %v2519 = vpop.f32.mrf.mxu0
        %v2520 = vadd.f32 %v2435, %v2519
        %v2521 = vpop.f32.mrf.mxu0
        %v2522 = vpop.f32.mrf.mxu0
        %v2523 = vadd.f32 %v2435, %v2522
        %v2524 = vpop.f32.mrf.mxu0
        %2525 = vmatprep.mubr.bf16.mxu0 0
        %2526 = vmatmul.mubr.bf16.gmra.mxu0 %v2430
        %v2527 = vpop.f32.mrf.mxu0
        %v2528 = vadd.f32 %v2435, %v2527
        %v2529 = vpop.f32.mrf.mxu0
        %v2530 = vpop.f32.mrf.mxu0
        %v2531 = vadd.f32 %v2435, %v2530
        %v2532 = vpop.f32.mrf.mxu0
        %2533 = vdwg.mxu0
        %v2534 = vpack.c.bf16 %v2523, %v2520
        %v2535 = vpack.c.bf16 %v2531, %v2528
        %v2536 = vadd.bf16 %v2355, %v2534
        %v2537 = vadd.bf16 %v2356, %v2535
        %v2538 = vpack.c.bf16 %v2376, %v2376
        %v2540 = vpack.i.b16 %v2538, %v2538
        %v2542 = vlaneseq
        %v2543 = vshrl.u32 %v2542, 7
        %v2544 = vsub.s32 0, %v2543
        %v2545 = vrot.slane %v2540, %v2544
        %v2546 = vmul.bf16 %v2536, %v2545
        %v2547 = vmul.bf16 %v2537, %v2545
        %v2548 = vpack.c.bf16 %v2377, %v2377
        %v2550 = vpack.i.b16 %v2548, %v2548
        %v2552 = vlaneseq
        %v2553 = vshrl.u32 %v2552, 7
        %v2554 = vsub.s32 0, %v2553
        %v2555 = vrot.slane %v2550, %v2554
        %v2556 = vadd.bf16 %v2546, %v2555
        %v2557 = vadd.bf16 %v2547, %v2555
        %v2558 = vmul.bf16 %v2556, %v2556
        %v2559 = vmul.bf16 %v2557, %v2557
        %v2560 = vmul.bf16 %v2558, 1024605458
        %v2561 = vmul.bf16 %v2559, 1024605458
        %v2562 = vadd.bf16 %v2560, 1061961548
        %v2563 = vadd.bf16 %v2561, 1061961548
        %v2564 = vmul.bf16 %v2556, %v2562
        %v2565 = vmul.bf16 %v2557, %v2563
        %v2566 = vmul.bf16 %v2556, 1056980736
        %v2567 = vmul.bf16 %v2557, 1056980736
        %v2568 = vtanh.bf16.pop %v2564
        %v2569 = vtanh.bf16.pop %v2565
        %v2570 = vadd.bf16 %v2568, 1065369472
        %v2571 = vadd.bf16 %v2569, 1065369472
        %v2572 = vmul.bf16 %v2566, %v2570
        %v2573 = vmul.bf16 %v2567, %v2571
        %v2575 = vlaneseq
        %v2576 = vshrl.u32 %v2575, 7
        %v2577 = vsub.s32 0, %v2576
        %v2578 = vrot.slane %v2394, %v2577
        %v2596 = vunpack.c.l.b16 %v2378
        %v2597 = vunpack.c.l.b16 %v2379
        %v2598 = vunpack.c.l.b16 %v2380
        %v2599 = vunpack.c.l.b16 %v2381
        %v2600 = vunpack.c.l.b16 %v2382
        %v2601 = vunpack.c.l.b16 %v2383
        %v2602 = vunpack.c.l.b16 %v2384
        %v2603 = vunpack.c.l.b16 %v2385
        %v2604 = vunpack.c.l.b16 %v2386
        %v2605 = vunpack.c.l.b16 %v2387
        %v2606 = vunpack.c.l.b16 %v2388
        %v2607 = vunpack.c.l.b16 %v2389
        %v2608 = vunpack.c.l.b16 %v2390
        %v2609 = vunpack.c.l.b16 %v2391
        %v2610 = vunpack.c.l.b16 %v2392
        %v2611 = vunpack.c.l.b16 %v2393
        %v2612 = vpack.c.b16 %v2597, %v2596
        %v2613 = vpack.c.b16 %v2599, %v2598
        %v2614 = vpack.c.b16 %v2601, %v2600
        %v2615 = vpack.c.b16 %v2603, %v2602
        %v2616 = vpack.c.b16 %v2605, %v2604
        %v2617 = vpack.c.b16 %v2607, %v2606
        %v2618 = vpack.c.b16 %v2609, %v2608
        %v2619 = vpack.c.b16 %v2611, %v2610
        %2628 = vmatprep.subr.bf16.mxu0 0
        %2629 = vmatpush1.bf16.msra.mxu0 %v2619
        %2630 = vmatprep.subr.bf16.mxu0 0
        %2631 = vmatpush1.bf16.msra.mxu0 %v2618
        %2632 = vmatprep.subr.bf16.mxu0 0
        %2633 = vmatpush1.bf16.msra.mxu0 %v2617
        %2634 = vmatprep.subr.bf16.mxu0 0
        %2635 = vmatpush1.bf16.msra.mxu0 %v2616
        %2636 = vmatprep.subr.bf16.mxu0 0
        %2637 = vmatpush1.bf16.msra.mxu0 %v2615
        %2638 = vmatprep.subr.bf16.mxu0 0
        %2639 = vmatpush1.bf16.msra.mxu0 %v2614
        %2640 = vmatprep.subr.bf16.mxu0 0
        %2641 = vmatpush1.bf16.msra.mxu0 %v2613
        %2642 = vmatprep.subr.bf16.mxu0 0
        %2643 = vmatpush1.bf16.msra.mxu0 %v2612
        %2644 = vmatprep.subr.bf16.mxu0 0
        %2645 = vmatpush2.bf16.msra.mxu0 0
        %2646 = vmatprep.subr.bf16.mxu0 0
        %2647 = vmatpush2.bf16.msra.mxu0 0
        %2648 = vmatprep.subr.bf16.mxu0 0
        %2649 = vmatpush2.bf16.msra.mxu0 0
        %2650 = vmatprep.subr.bf16.mxu0 0
        %2651 = vmatpush2.bf16.msra.mxu0 0
        %2652 = vmatprep.subr.bf16.mxu0 0
        %2653 = vmatpush2.bf16.msra.mxu0 0
        %2654 = vmatprep.subr.bf16.mxu0 0
        %2655 = vmatpush2.bf16.msra.mxu0 0
        %2656 = vmatprep.subr.bf16.mxu0 0
        %2657 = vmatpush2.bf16.msra.mxu0 0
        %2658 = vmatprep.subr.bf16.mxu0 0
        %2659 = vmatpush2.bf16.msra.mxu0 0
        %2660 = vmatprep.mubr.bf16.mxu0 0
        %2661 = vmatmul.mubr.bf16.gmra.mxu0 %v2572
        %v2662 = vpop.f32.mrf.mxu0
        %v2663 = vadd.f32 %v2578, %v2662
        %v2664 = vpop.f32.mrf.mxu0
        %v2665 = vpop.f32.mrf.mxu0
        %v2666 = vadd.f32 %v2578, %v2665
        %v2667 = vpop.f32.mrf.mxu0
        %2668 = vmatprep.mubr.bf16.mxu0 0
        %2669 = vmatmul.mubr.bf16.gmra.mxu0 %v2573
        %v2670 = vpop.f32.mrf.mxu0
        %v2671 = vadd.f32 %v2578, %v2670
        %v2672 = vpop.f32.mrf.mxu0
        %v2673 = vpop.f32.mrf.mxu0
        %v2674 = vadd.f32 %v2578, %v2673
        %v2675 = vpop.f32.mrf.mxu0
        %2676 = vdwg.mxu0
        %v2677 = vpack.c.bf16 %v2666, %v2663
        %v2678 = vpack.c.bf16 %v2674, %v2671
        %v2679 = vld [vmem:[#allocation25] sm:$0x1]
        %v2680 = vld [vmem:[#allocation26] sm:$0x1]
        %v2681 = vld [vmem:[#allocation28] sm:$0xf]
        %v2682 = vld [vmem:[#allocation28 + $0x4] sm:$0xf]
        %v2683 = vld [vmem:[#allocation28 + $0x8] sm:$0xf]
        %v2684 = vld [vmem:[#allocation28 + $0xc] sm:$0xf]
        %v2685 = vld [vmem:[#allocation28 + $0x10] sm:$0xf]
        %v2686 = vld [vmem:[#allocation28 + $0x14] sm:$0xf]
        %v2687 = vld [vmem:[#allocation28 + $0x18] sm:$0xf]
        %v2688 = vld [vmem:[#allocation28 + $0x1c] sm:$0xf]
        %v2689 = vld [vmem:[#allocation28 + $0x20] sm:$0xf]
        %v2690 = vld [vmem:[#allocation28 + $0x24] sm:$0xf]
        %v2691 = vld [vmem:[#allocation28 + $0x28] sm:$0xf]
        %v2692 = vld [vmem:[#allocation28 + $0x2c] sm:$0xf]
        %v2693 = vld [vmem:[#allocation28 + $0x30] sm:$0xf]
        %v2694 = vld [vmem:[#allocation28 + $0x34] sm:$0xf]
        %v2695 = vld [vmem:[#allocation28 + $0x38] sm:$0xf]
        %v2696 = vld [vmem:[#allocation28 + $0x3c] sm:$0xf]
        %v2697 = vld [vmem:[#allocation29] sm:$0x1]
        %v2698 = vld [vmem:[#allocation31] sm:$0x1]
        %v2699 = vld [vmem:[#allocation32] sm:$0x1]
        %v2700 = vld [vmem:[#allocation34] sm:$0xf]
        %v2701 = vld [vmem:[#allocation34 + $0x4] sm:$0xf]
        %v2702 = vld [vmem:[#allocation34 + $0x8] sm:$0xf]
        %v2703 = vld [vmem:[#allocation34 + $0xc] sm:$0xf]
        %v2704 = vld [vmem:[#allocation34 + $0x10] sm:$0xf]
        %v2705 = vld [vmem:[#allocation34 + $0x14] sm:$0xf]
        %v2706 = vld [vmem:[#allocation34 + $0x18] sm:$0xf]
        %v2707 = vld [vmem:[#allocation34 + $0x1c] sm:$0xf]
        %v2708 = vld [vmem:[#allocation34 + $0x20] sm:$0xf]
        %v2709 = vld [vmem:[#allocation34 + $0x24] sm:$0xf]
        %v2710 = vld [vmem:[#allocation34 + $0x28] sm:$0xf]
        %v2711 = vld [vmem:[#allocation34 + $0x2c] sm:$0xf]
        %v2712 = vld [vmem:[#allocation34 + $0x30] sm:$0xf]
        %v2713 = vld [vmem:[#allocation34 + $0x34] sm:$0xf]
        %v2714 = vld [vmem:[#allocation34 + $0x38] sm:$0xf]
        %v2715 = vld [vmem:[#allocation34 + $0x3c] sm:$0xf]
        %v2716 = vld [vmem:[#allocation35] sm:$0x1]
        %v2717 = vpack.c.bf16 %v2679, %v2679
        %v2719 = vpack.i.b16 %v2717, %v2717
        %v2721 = vlaneseq
        %v2722 = vshrl.u32 %v2721, 7
        %v2723 = vsub.s32 0, %v2722
        %v2724 = vrot.slane %v2719, %v2723
        %v2725 = vmul.bf16 %v2677, %v2724
        %v2726 = vmul.bf16 %v2678, %v2724
        %v2727 = vpack.c.bf16 %v2680, %v2680
        %v2729 = vpack.i.b16 %v2727, %v2727
        %v2731 = vlaneseq
        %v2732 = vshrl.u32 %v2731, 7
        %v2733 = vsub.s32 0, %v2732
        %v2734 = vrot.slane %v2729, %v2733
        %v2735 = vadd.bf16 %v2725, %v2734
        %v2736 = vadd.bf16 %v2726, %v2734
        %v2737 = vmul.bf16 %v2735, %v2735
        %v2738 = vmul.bf16 %v2736, %v2736
        %v2739 = vmul.bf16 %v2737, 1024605458
        %v2740 = vmul.bf16 %v2738, 1024605458
        %v2741 = vadd.bf16 %v2739, 1061961548
        %v2742 = vadd.bf16 %v2740, 1061961548
        %v2743 = vmul.bf16 %v2735, %v2741
        %v2744 = vmul.bf16 %v2736, %v2742
        %v2745 = vmul.bf16 %v2735, 1056980736
        %v2746 = vmul.bf16 %v2736, 1056980736
        %v2747 = vtanh.bf16.pop %v2743
        %v2748 = vtanh.bf16.pop %v2744
        %v2749 = vadd.bf16 %v2747, 1065369472
        %v2750 = vadd.bf16 %v2748, 1065369472
        %v2751 = vmul.bf16 %v2745, %v2749
        %v2752 = vmul.bf16 %v2746, %v2750
        %v2754 = vlaneseq
        %v2755 = vshrl.u32 %v2754, 7
        %v2756 = vsub.s32 0, %v2755
        %v2757 = vrot.slane %v2697, %v2756
        %v2775 = vunpack.c.l.b16 %v2681
        %v2776 = vunpack.c.l.b16 %v2682
        %v2777 = vunpack.c.l.b16 %v2683
        %v2778 = vunpack.c.l.b16 %v2684
        %v2779 = vunpack.c.l.b16 %v2685
        %v2780 = vunpack.c.l.b16 %v2686
        %v2781 = vunpack.c.l.b16 %v2687
        %v2782 = vunpack.c.l.b16 %v2688
        %v2783 = vunpack.c.l.b16 %v2689
        %v2784 = vunpack.c.l.b16 %v2690
        %v2785 = vunpack.c.l.b16 %v2691
        %v2786 = vunpack.c.l.b16 %v2692
        %v2787 = vunpack.c.l.b16 %v2693
        %v2788 = vunpack.c.l.b16 %v2694
        %v2789 = vunpack.c.l.b16 %v2695
        %v2790 = vunpack.c.l.b16 %v2696
        %v2791 = vpack.c.b16 %v2776, %v2775
        %v2792 = vpack.c.b16 %v2778, %v2777
        %v2793 = vpack.c.b16 %v2780, %v2779
        %v2794 = vpack.c.b16 %v2782, %v2781
        %v2795 = vpack.c.b16 %v2784, %v2783
        %v2796 = vpack.c.b16 %v2786, %v2785
        %v2797 = vpack.c.b16 %v2788, %v2787
        %v2798 = vpack.c.b16 %v2790, %v2789
        %2807 = vmatprep.subr.bf16.mxu0 0
        %2808 = vmatpush1.bf16.msra.mxu0 %v2798
        %2809 = vmatprep.subr.bf16.mxu0 0
        %2810 = vmatpush1.bf16.msra.mxu0 %v2797
        %2811 = vmatprep.subr.bf16.mxu0 0
        %2812 = vmatpush1.bf16.msra.mxu0 %v2796
        %2813 = vmatprep.subr.bf16.mxu0 0
        %2814 = vmatpush1.bf16.msra.mxu0 %v2795
        %2815 = vmatprep.subr.bf16.mxu0 0
        %2816 = vmatpush1.bf16.msra.mxu0 %v2794
        %2817 = vmatprep.subr.bf16.mxu0 0
        %2818 = vmatpush1.bf16.msra.mxu0 %v2793
        %2819 = vmatprep.subr.bf16.mxu0 0
        %2820 = vmatpush1.bf16.msra.mxu0 %v2792
        %2821 = vmatprep.subr.bf16.mxu0 0
        %2822 = vmatpush1.bf16.msra.mxu0 %v2791
        %2823 = vmatprep.subr.bf16.mxu0 0
        %2824 = vmatpush2.bf16.msra.mxu0 0
        %2825 = vmatprep.subr.bf16.mxu0 0
        %2826 = vmatpush2.bf16.msra.mxu0 0
        %2827 = vmatprep.subr.bf16.mxu0 0
        %2828 = vmatpush2.bf16.msra.mxu0 0
        %2829 = vmatprep.subr.bf16.mxu0 0
        %2830 = vmatpush2.bf16.msra.mxu0 0
        %2831 = vmatprep.subr.bf16.mxu0 0
        %2832 = vmatpush2.bf16.msra.mxu0 0
        %2833 = vmatprep.subr.bf16.mxu0 0
        %2834 = vmatpush2.bf16.msra.mxu0 0
        %2835 = vmatprep.subr.bf16.mxu0 0
        %2836 = vmatpush2.bf16.msra.mxu0 0
        %2837 = vmatprep.subr.bf16.mxu0 0
        %2838 = vmatpush2.bf16.msra.mxu0 0
        %2839 = vmatprep.mubr.bf16.mxu0 0
        %2840 = vmatmul.mubr.bf16.gmra.mxu0 %v2751
        %v2841 = vpop.f32.mrf.mxu0
        %v2842 = vadd.f32 %v2757, %v2841
        %v2843 = vpop.f32.mrf.mxu0
        %v2844 = vpop.f32.mrf.mxu0
        %v2845 = vadd.f32 %v2757, %v2844
        %v2846 = vpop.f32.mrf.mxu0
        %2847 = vmatprep.mubr.bf16.mxu0 0
        %2848 = vmatmul.mubr.bf16.gmra.mxu0 %v2752
        %v2849 = vpop.f32.mrf.mxu0
        %v2850 = vadd.f32 %v2757, %v2849
        %v2851 = vpop.f32.mrf.mxu0
        %v2852 = vpop.f32.mrf.mxu0
        %v2853 = vadd.f32 %v2757, %v2852
        %v2854 = vpop.f32.mrf.mxu0
        %2855 = vdwg.mxu0
        %v2856 = vpack.c.bf16 %v2845, %v2842
        %v2857 = vpack.c.bf16 %v2853, %v2850
        %v2858 = vadd.bf16 %v2677, %v2856
        %v2859 = vadd.bf16 %v2678, %v2857
        %v2860 = vpack.c.bf16 %v2698, %v2698
        %v2862 = vpack.i.b16 %v2860, %v2860
        %v2864 = vlaneseq
        %v2865 = vshrl.u32 %v2864, 7
        %v2866 = vsub.s32 0, %v2865
        %v2867 = vrot.slane %v2862, %v2866
        %v2868 = vmul.bf16 %v2858, %v2867
        %v2869 = vmul.bf16 %v2859, %v2867
        %v2870 = vpack.c.bf16 %v2699, %v2699
        %v2872 = vpack.i.b16 %v2870, %v2870
        %v2874 = vlaneseq
        %v2875 = vshrl.u32 %v2874, 7
        %v2876 = vsub.s32 0, %v2875
        %v2877 = vrot.slane %v2872, %v2876
        %v2878 = vadd.bf16 %v2868, %v2877
        %v2879 = vadd.bf16 %v2869, %v2877
        %v2880 = vmul.bf16 %v2878, %v2878
        %v2881 = vmul.bf16 %v2879, %v2879
        %v2882 = vmul.bf16 %v2880, 1024605458
        %v2883 = vmul.bf16 %v2881, 1024605458
        %v2884 = vadd.bf16 %v2882, 1061961548
        %v2885 = vadd.bf16 %v2883, 1061961548
        %v2886 = vmul.bf16 %v2878, %v2884
        %v2887 = vmul.bf16 %v2879, %v2885
        %v2888 = vmul.bf16 %v2878, 1056980736
        %v2889 = vmul.bf16 %v2879, 1056980736
        %v2890 = vtanh.bf16.pop %v2886
        %v2891 = vtanh.bf16.pop %v2887
        %v2892 = vadd.bf16 %v2890, 1065369472
        %v2893 = vadd.bf16 %v2891, 1065369472
        %v2894 = vmul.bf16 %v2888, %v2892
        %v2895 = vmul.bf16 %v2889, %v2893
        %v2897 = vlaneseq
        %v2898 = vshrl.u32 %v2897, 7
        %v2899 = vsub.s32 0, %v2898
        %v2900 = vrot.slane %v2716, %v2899
        %v2918 = vunpack.c.l.b16 %v2700
        %v2919 = vunpack.c.l.b16 %v2701
        %v2920 = vunpack.c.l.b16 %v2702
        %v2921 = vunpack.c.l.b16 %v2703
        %v2922 = vunpack.c.l.b16 %v2704
        %v2923 = vunpack.c.l.b16 %v2705
        %v2924 = vunpack.c.l.b16 %v2706
        %v2925 = vunpack.c.l.b16 %v2707
        %v2926 = vunpack.c.l.b16 %v2708
        %v2927 = vunpack.c.l.b16 %v2709
        %v2928 = vunpack.c.l.b16 %v2710
        %v2929 = vunpack.c.l.b16 %v2711
        %v2930 = vunpack.c.l.b16 %v2712
        %v2931 = vunpack.c.l.b16 %v2713
        %v2932 = vunpack.c.l.b16 %v2714
        %v2933 = vunpack.c.l.b16 %v2715
        %v2934 = vpack.c.b16 %v2919, %v2918
        %v2935 = vpack.c.b16 %v2921, %v2920
        %v2936 = vpack.c.b16 %v2923, %v2922
        %v2937 = vpack.c.b16 %v2925, %v2924
        %v2938 = vpack.c.b16 %v2927, %v2926
        %v2939 = vpack.c.b16 %v2929, %v2928
        %v2940 = vpack.c.b16 %v2931, %v2930
        %v2941 = vpack.c.b16 %v2933, %v2932
        %2950 = vmatprep.subr.bf16.mxu0 0
        %2951 = vmatpush1.bf16.msra.mxu0 %v2941
        %2952 = vmatprep.subr.bf16.mxu0 0
        %2953 = vmatpush1.bf16.msra.mxu0 %v2940
        %2954 = vmatprep.subr.bf16.mxu0 0
        %2955 = vmatpush1.bf16.msra.mxu0 %v2939
        %2956 = vmatprep.subr.bf16.mxu0 0
        %2957 = vmatpush1.bf16.msra.mxu0 %v2938
        %2958 = vmatprep.subr.bf16.mxu0 0
        %2959 = vmatpush1.bf16.msra.mxu0 %v2937
        %2960 = vmatprep.subr.bf16.mxu0 0
        %2961 = vmatpush1.bf16.msra.mxu0 %v2936
        %2962 = vmatprep.subr.bf16.mxu0 0
        %2963 = vmatpush1.bf16.msra.mxu0 %v2935
        %2964 = vmatprep.subr.bf16.mxu0 0
        %2965 = vmatpush1.bf16.msra.mxu0 %v2934
        %2966 = vmatprep.subr.bf16.mxu0 0
        %2967 = vmatpush2.bf16.msra.mxu0 0
        %2968 = vmatprep.subr.bf16.mxu0 0
        %2969 = vmatpush2.bf16.msra.mxu0 0
        %2970 = vmatprep.subr.bf16.mxu0 0
        %2971 = vmatpush2.bf16.msra.mxu0 0
        %2972 = vmatprep.subr.bf16.mxu0 0
        %2973 = vmatpush2.bf16.msra.mxu0 0
        %2974 = vmatprep.subr.bf16.mxu0 0
        %2975 = vmatpush2.bf16.msra.mxu0 0
        %2976 = vmatprep.subr.bf16.mxu0 0
        %2977 = vmatpush2.bf16.msra.mxu0 0
        %2978 = vmatprep.subr.bf16.mxu0 0
        %2979 = vmatpush2.bf16.msra.mxu0 0
        %2980 = vmatprep.subr.bf16.mxu0 0
        %2981 = vmatpush2.bf16.msra.mxu0 0
        %2982 = vmatprep.mubr.bf16.mxu0 0
        %2983 = vmatmul.mubr.bf16.gmra.mxu0 %v2894
        %v2984 = vpop.f32.mrf.mxu0
        %v2985 = vadd.f32 %v2900, %v2984
        %v2986 = vpop.f32.mrf.mxu0
        %v2987 = vpop.f32.mrf.mxu0
        %v2988 = vadd.f32 %v2900, %v2987
        %v2989 = vpop.f32.mrf.mxu0
        %2990 = vmatprep.mubr.bf16.mxu0 0
        %2991 = vmatmul.mubr.bf16.gmra.mxu0 %v2895
        %v2992 = vpop.f32.mrf.mxu0
        %v2993 = vadd.f32 %v2900, %v2992
        %v2994 = vpop.f32.mrf.mxu0
        %v2995 = vpop.f32.mrf.mxu0
        %v2996 = vadd.f32 %v2900, %v2995
        %v2997 = vpop.f32.mrf.mxu0
        %2998 = vdwg.mxu0
        %v2999 = vpack.c.bf16 %v2988, %v2985
        %v3000 = vpack.c.bf16 %v2996, %v2993
        %v3001 = vld [vmem:[#allocation37] sm:$0x1]
        %v3002 = vld [vmem:[#allocation38] sm:$0x1]
        %v3003 = vld [vmem:[#allocation40] sm:$0xf]
        %v3004 = vld [vmem:[#allocation40 + $0x4] sm:$0xf]
        %v3005 = vld [vmem:[#allocation40 + $0x8] sm:$0xf]
        %v3006 = vld [vmem:[#allocation40 + $0xc] sm:$0xf]
        %v3007 = vld [vmem:[#allocation40 + $0x10] sm:$0xf]
        %v3008 = vld [vmem:[#allocation40 + $0x14] sm:$0xf]
        %v3009 = vld [vmem:[#allocation40 + $0x18] sm:$0xf]
        %v3010 = vld [vmem:[#allocation40 + $0x1c] sm:$0xf]
        %v3011 = vld [vmem:[#allocation40 + $0x20] sm:$0xf]
        %v3012 = vld [vmem:[#allocation40 + $0x24] sm:$0xf]
        %v3013 = vld [vmem:[#allocation40 + $0x28] sm:$0xf]
        %v3014 = vld [vmem:[#allocation40 + $0x2c] sm:$0xf]
        %v3015 = vld [vmem:[#allocation40 + $0x30] sm:$0xf]
        %v3016 = vld [vmem:[#allocation40 + $0x34] sm:$0xf]
        %v3017 = vld [vmem:[#allocation40 + $0x38] sm:$0xf]
        %v3018 = vld [vmem:[#allocation40 + $0x3c] sm:$0xf]
        %v3019 = vld [vmem:[#allocation41] sm:$0x1]
        %v3020 = vld [vmem:[#allocation43] sm:$0x1]
        %v3021 = vld [vmem:[#allocation44] sm:$0x1]
        %v3022 = vld [vmem:[#allocation46] sm:$0xf]
        %v3023 = vld [vmem:[#allocation46 + $0x4] sm:$0xf]
        %v3024 = vld [vmem:[#allocation46 + $0x8] sm:$0xf]
        %v3025 = vld [vmem:[#allocation46 + $0xc] sm:$0xf]
        %v3026 = vld [vmem:[#allocation46 + $0x10] sm:$0xf]
        %v3027 = vld [vmem:[#allocation46 + $0x14] sm:$0xf]
        %v3028 = vld [vmem:[#allocation46 + $0x18] sm:$0xf]
        %v3029 = vld [vmem:[#allocation46 + $0x1c] sm:$0xf]
        %v3030 = vld [vmem:[#allocation46 + $0x20] sm:$0xf]
        %v3031 = vld [vmem:[#allocation46 + $0x24] sm:$0xf]
        %v3032 = vld [vmem:[#allocation46 + $0x28] sm:$0xf]
        %v3033 = vld [vmem:[#allocation46 + $0x2c] sm:$0xf]
        %v3034 = vld [vmem:[#allocation46 + $0x30] sm:$0xf]
        %v3035 = vld [vmem:[#allocation46 + $0x34] sm:$0xf]
        %v3036 = vld [vmem:[#allocation46 + $0x38] sm:$0xf]
        %v3037 = vld [vmem:[#allocation46 + $0x3c] sm:$0xf]
        %v3038 = vld [vmem:[#allocation47] sm:$0x1]
        %v3039 = vpack.c.bf16 %v3001, %v3001
        %v3041 = vpack.i.b16 %v3039, %v3039
        %v3043 = vlaneseq
        %v3044 = vshrl.u32 %v3043, 7
        %v3045 = vsub.s32 0, %v3044
        %v3046 = vrot.slane %v3041, %v3045
        %v3047 = vmul.bf16 %v2999, %v3046
        %v3048 = vmul.bf16 %v3000, %v3046
        %v3049 = vpack.c.bf16 %v3002, %v3002
        %v3051 = vpack.i.b16 %v3049, %v3049
        %v3053 = vlaneseq
        %v3054 = vshrl.u32 %v3053, 7
        %v3055 = vsub.s32 0, %v3054
        %v3056 = vrot.slane %v3051, %v3055
        %v3057 = vadd.bf16 %v3047, %v3056
        %v3058 = vadd.bf16 %v3048, %v3056
        %v3059 = vmul.bf16 %v3057, %v3057
        %v3060 = vmul.bf16 %v3058, %v3058
        %v3061 = vmul.bf16 %v3059, 1024605458
        %v3062 = vmul.bf16 %v3060, 1024605458
        %v3063 = vadd.bf16 %v3061, 1061961548
        %v3064 = vadd.bf16 %v3062, 1061961548
        %v3065 = vmul.bf16 %v3057, %v3063
        %v3066 = vmul.bf16 %v3058, %v3064
        %v3067 = vmul.bf16 %v3057, 1056980736
        %v3068 = vmul.bf16 %v3058, 1056980736
        %v3069 = vtanh.bf16.pop %v3065
        %v3070 = vtanh.bf16.pop %v3066
        %v3071 = vadd.bf16 %v3069, 1065369472
        %v3072 = vadd.bf16 %v3070, 1065369472
        %v3073 = vmul.bf16 %v3067, %v3071
        %v3074 = vmul.bf16 %v3068, %v3072
        %v3076 = vlaneseq
        %v3077 = vshrl.u32 %v3076, 7
        %v3078 = vsub.s32 0, %v3077
        %v3079 = vrot.slane %v3019, %v3078
        %v3097 = vunpack.c.l.b16 %v3003
        %v3098 = vunpack.c.l.b16 %v3004
        %v3099 = vunpack.c.l.b16 %v3005
        %v3100 = vunpack.c.l.b16 %v3006
        %v3101 = vunpack.c.l.b16 %v3007
        %v3102 = vunpack.c.l.b16 %v3008
        %v3103 = vunpack.c.l.b16 %v3009
        %v3104 = vunpack.c.l.b16 %v3010
        %v3105 = vunpack.c.l.b16 %v3011
        %v3106 = vunpack.c.l.b16 %v3012
        %v3107 = vunpack.c.l.b16 %v3013
        %v3108 = vunpack.c.l.b16 %v3014
        %v3109 = vunpack.c.l.b16 %v3015
        %v3110 = vunpack.c.l.b16 %v3016
        %v3111 = vunpack.c.l.b16 %v3017
        %v3112 = vunpack.c.l.b16 %v3018
        %v3113 = vpack.c.b16 %v3098, %v3097
        %v3114 = vpack.c.b16 %v3100, %v3099
        %v3115 = vpack.c.b16 %v3102, %v3101
        %v3116 = vpack.c.b16 %v3104, %v3103
        %v3117 = vpack.c.b16 %v3106, %v3105
        %v3118 = vpack.c.b16 %v3108, %v3107
        %v3119 = vpack.c.b16 %v3110, %v3109
        %v3120 = vpack.c.b16 %v3112, %v3111
        %3129 = vmatprep.subr.bf16.mxu0 0
        %3130 = vmatpush1.bf16.msra.mxu0 %v3120
        %3131 = vmatprep.subr.bf16.mxu0 0
        %3132 = vmatpush1.bf16.msra.mxu0 %v3119
        %3133 = vmatprep.subr.bf16.mxu0 0
        %3134 = vmatpush1.bf16.msra.mxu0 %v3118
        %3135 = vmatprep.subr.bf16.mxu0 0
        %3136 = vmatpush1.bf16.msra.mxu0 %v3117
        %3137 = vmatprep.subr.bf16.mxu0 0
        %3138 = vmatpush1.bf16.msra.mxu0 %v3116
        %3139 = vmatprep.subr.bf16.mxu0 0
        %3140 = vmatpush1.bf16.msra.mxu0 %v3115
        %3141 = vmatprep.subr.bf16.mxu0 0
        %3142 = vmatpush1.bf16.msra.mxu0 %v3114
        %3143 = vmatprep.subr.bf16.mxu0 0
        %3144 = vmatpush1.bf16.msra.mxu0 %v3113
        %3145 = vmatprep.subr.bf16.mxu0 0
        %3146 = vmatpush2.bf16.msra.mxu0 0
        %3147 = vmatprep.subr.bf16.mxu0 0
        %3148 = vmatpush2.bf16.msra.mxu0 0
        %3149 = vmatprep.subr.bf16.mxu0 0
        %3150 = vmatpush2.bf16.msra.mxu0 0
        %3151 = vmatprep.subr.bf16.mxu0 0
        %3152 = vmatpush2.bf16.msra.mxu0 0
        %3153 = vmatprep.subr.bf16.mxu0 0
        %3154 = vmatpush2.bf16.msra.mxu0 0
        %3155 = vmatprep.subr.bf16.mxu0 0
        %3156 = vmatpush2.bf16.msra.mxu0 0
        %3157 = vmatprep.subr.bf16.mxu0 0
        %3158 = vmatpush2.bf16.msra.mxu0 0
        %3159 = vmatprep.subr.bf16.mxu0 0
        %3160 = vmatpush2.bf16.msra.mxu0 0
        %3161 = vmatprep.mubr.bf16.mxu0 0
        %3162 = vmatmul.mubr.bf16.gmra.mxu0 %v3073
        %v3163 = vpop.f32.mrf.mxu0
        %v3164 = vadd.f32 %v3079, %v3163
        %v3165 = vpop.f32.mrf.mxu0
        %v3166 = vpop.f32.mrf.mxu0
        %v3167 = vadd.f32 %v3079, %v3166
        %v3168 = vpop.f32.mrf.mxu0
        %3169 = vmatprep.mubr.bf16.mxu0 0
        %3170 = vmatmul.mubr.bf16.gmra.mxu0 %v3074
        %v3171 = vpop.f32.mrf.mxu0
        %v3172 = vadd.f32 %v3079, %v3171
        %v3173 = vpop.f32.mrf.mxu0
        %v3174 = vpop.f32.mrf.mxu0
        %v3175 = vadd.f32 %v3079, %v3174
        %v3176 = vpop.f32.mrf.mxu0
        %3177 = vdwg.mxu0
        %v3178 = vpack.c.bf16 %v3167, %v3164
        %v3179 = vpack.c.bf16 %v3175, %v3172
        %v3180 = vadd.bf16 %v2999, %v3178
        %v3181 = vadd.bf16 %v3000, %v3179
        %v3182 = vpack.c.bf16 %v3020, %v3020
        %v3184 = vpack.i.b16 %v3182, %v3182
        %v3186 = vlaneseq
        %v3187 = vshrl.u32 %v3186, 7
        %v3188 = vsub.s32 0, %v3187
        %v3189 = vrot.slane %v3184, %v3188
        %v3190 = vmul.bf16 %v3180, %v3189
        %v3191 = vmul.bf16 %v3181, %v3189
        %v3192 = vpack.c.bf16 %v3021, %v3021
        %v3194 = vpack.i.b16 %v3192, %v3192
        %v3196 = vlaneseq
        %v3197 = vshrl.u32 %v3196, 7
        %v3198 = vsub.s32 0, %v3197
        %v3199 = vrot.slane %v3194, %v3198
        %v3200 = vadd.bf16 %v3190, %v3199
        %v3201 = vadd.bf16 %v3191, %v3199
        %v3202 = vmul.bf16 %v3200, %v3200
        %v3203 = vmul.bf16 %v3201, %v3201
        %v3204 = vmul.bf16 %v3202, 1024605458
        %v3205 = vmul.bf16 %v3203, 1024605458
        %v3206 = vadd.bf16 %v3204, 1061961548
        %v3207 = vadd.bf16 %v3205, 1061961548
        %v3208 = vmul.bf16 %v3200, %v3206
        %v3209 = vmul.bf16 %v3201, %v3207
        %v3210 = vmul.bf16 %v3200, 1056980736
        %v3211 = vmul.bf16 %v3201, 1056980736
        %v3212 = vtanh.bf16.pop %v3208
        %v3213 = vtanh.bf16.pop %v3209
        %v3214 = vadd.bf16 %v3212, 1065369472
        %v3215 = vadd.bf16 %v3213, 1065369472
        %v3216 = vmul.bf16 %v3210, %v3214
        %v3217 = vmul.bf16 %v3211, %v3215
        %v3219 = vlaneseq
        %v3220 = vshrl.u32 %v3219, 7
        %v3221 = vsub.s32 0, %v3220
        %v3222 = vrot.slane %v3038, %v3221
        %v3240 = vunpack.c.l.b16 %v3022
        %v3241 = vunpack.c.l.b16 %v3023
        %v3242 = vunpack.c.l.b16 %v3024
        %v3243 = vunpack.c.l.b16 %v3025
        %v3244 = vunpack.c.l.b16 %v3026
        %v3245 = vunpack.c.l.b16 %v3027
        %v3246 = vunpack.c.l.b16 %v3028
        %v3247 = vunpack.c.l.b16 %v3029
        %v3248 = vunpack.c.l.b16 %v3030
        %v3249 = vunpack.c.l.b16 %v3031
        %v3250 = vunpack.c.l.b16 %v3032
        %v3251 = vunpack.c.l.b16 %v3033
        %v3252 = vunpack.c.l.b16 %v3034
        %v3253 = vunpack.c.l.b16 %v3035
        %v3254 = vunpack.c.l.b16 %v3036
        %v3255 = vunpack.c.l.b16 %v3037
        %v3256 = vpack.c.b16 %v3241, %v3240
        %v3257 = vpack.c.b16 %v3243, %v3242
        %v3258 = vpack.c.b16 %v3245, %v3244
        %v3259 = vpack.c.b16 %v3247, %v3246
        %v3260 = vpack.c.b16 %v3249, %v3248
        %v3261 = vpack.c.b16 %v3251, %v3250
        %v3262 = vpack.c.b16 %v3253, %v3252
        %v3263 = vpack.c.b16 %v3255, %v3254
        %3272 = vmatprep.subr.bf16.mxu0 0
        %3273 = vmatpush1.bf16.msra.mxu0 %v3263
        %3274 = vmatprep.subr.bf16.mxu0 0
        %3275 = vmatpush1.bf16.msra.mxu0 %v3262
        %3276 = vmatprep.subr.bf16.mxu0 0
        %3277 = vmatpush1.bf16.msra.mxu0 %v3261
        %3278 = vmatprep.subr.bf16.mxu0 0
        %3279 = vmatpush1.bf16.msra.mxu0 %v3260
        %3280 = vmatprep.subr.bf16.mxu0 0
        %3281 = vmatpush1.bf16.msra.mxu0 %v3259
        %3282 = vmatprep.subr.bf16.mxu0 0
        %3283 = vmatpush1.bf16.msra.mxu0 %v3258
        %3284 = vmatprep.subr.bf16.mxu0 0
        %3285 = vmatpush1.bf16.msra.mxu0 %v3257
        %3286 = vmatprep.subr.bf16.mxu0 0
        %3287 = vmatpush1.bf16.msra.mxu0 %v3256
        %3288 = vmatprep.subr.bf16.mxu0 0
        %3289 = vmatpush2.bf16.msra.mxu0 0
        %3290 = vmatprep.subr.bf16.mxu0 0
        %3291 = vmatpush2.bf16.msra.mxu0 0
        %3292 = vmatprep.subr.bf16.mxu0 0
        %3293 = vmatpush2.bf16.msra.mxu0 0
        %3294 = vmatprep.subr.bf16.mxu0 0
        %3295 = vmatpush2.bf16.msra.mxu0 0
        %3296 = vmatprep.subr.bf16.mxu0 0
        %3297 = vmatpush2.bf16.msra.mxu0 0
        %3298 = vmatprep.subr.bf16.mxu0 0
        %3299 = vmatpush2.bf16.msra.mxu0 0
        %3300 = vmatprep.subr.bf16.mxu0 0
        %3301 = vmatpush2.bf16.msra.mxu0 0
        %3302 = vmatprep.subr.bf16.mxu0 0
        %3303 = vmatpush2.bf16.msra.mxu0 0
        %3304 = vmatprep.mubr.bf16.mxu0 0
        %3305 = vmatmul.mubr.bf16.gmra.mxu0 %v3216
        %v3306 = vpop.f32.mrf.mxu0
        %v3307 = vadd.f32 %v3222, %v3306
        %v3308 = vpop.f32.mrf.mxu0
        %v3309 = vpop.f32.mrf.mxu0
        %v3310 = vadd.f32 %v3222, %v3309
        %v3311 = vpop.f32.mrf.mxu0
        %3312 = vmatprep.mubr.bf16.mxu0 0
        %3313 = vmatmul.mubr.bf16.gmra.mxu0 %v3217
        %v3314 = vpop.f32.mrf.mxu0
        %v3315 = vadd.f32 %v3222, %v3314
        %v3316 = vpop.f32.mrf.mxu0
        %v3317 = vpop.f32.mrf.mxu0
        %v3318 = vadd.f32 %v3222, %v3317
        %v3319 = vpop.f32.mrf.mxu0
        %3320 = vdwg.mxu0
        %v3321 = vpack.c.bf16 %v3310, %v3307
        %v3322 = vpack.c.bf16 %v3318, %v3315
        %v3323 = vld [vmem:[#allocation49] sm:$0x1]
        %v3324 = vld [vmem:[#allocation50] sm:$0x1]
        %v3325 = vld [vmem:[#allocation52] sm:$0xf]
        %v3326 = vld [vmem:[#allocation52 + $0x4] sm:$0xf]
        %v3327 = vld [vmem:[#allocation52 + $0x8] sm:$0xf]
        %v3328 = vld [vmem:[#allocation52 + $0xc] sm:$0xf]
        %v3329 = vld [vmem:[#allocation52 + $0x10] sm:$0xf]
        %v3330 = vld [vmem:[#allocation52 + $0x14] sm:$0xf]
        %v3331 = vld [vmem:[#allocation52 + $0x18] sm:$0xf]
        %v3332 = vld [vmem:[#allocation52 + $0x1c] sm:$0xf]
        %v3333 = vld [vmem:[#allocation52 + $0x20] sm:$0xf]
        %v3334 = vld [vmem:[#allocation52 + $0x24] sm:$0xf]
        %v3335 = vld [vmem:[#allocation52 + $0x28] sm:$0xf]
        %v3336 = vld [vmem:[#allocation52 + $0x2c] sm:$0xf]
        %v3337 = vld [vmem:[#allocation52 + $0x30] sm:$0xf]
        %v3338 = vld [vmem:[#allocation52 + $0x34] sm:$0xf]
        %v3339 = vld [vmem:[#allocation52 + $0x38] sm:$0xf]
        %v3340 = vld [vmem:[#allocation52 + $0x3c] sm:$0xf]
        %v3341 = vld [vmem:[#allocation53] sm:$0x1]
        %v3342 = vld [vmem:[#allocation55] sm:$0x1]
        %v3343 = vld [vmem:[%s77] sm:$0x1]
        %v3344 = vld [vmem:[%s79] sm:$0xf]
        %v3345 = vld [vmem:[%s79 + $0x4] sm:$0xf]
        %v3346 = vld [vmem:[%s79 + $0x8] sm:$0xf]
        %v3347 = vld [vmem:[%s79 + $0xc] sm:$0xf]
        %v3348 = vld [vmem:[%s79 + $0x10] sm:$0xf]
        %v3349 = vld [vmem:[%s79 + $0x14] sm:$0xf]
        %v3350 = vld [vmem:[%s79 + $0x18] sm:$0xf]
        %v3351 = vld [vmem:[%s79 + $0x1c] sm:$0xf]
        %v3352 = vld [vmem:[%s79 + $0x20] sm:$0xf]
        %v3353 = vld [vmem:[%s79 + $0x24] sm:$0xf]
        %v3354 = vld [vmem:[%s79 + $0x28] sm:$0xf]
        %v3355 = vld [vmem:[%s79 + $0x2c] sm:$0xf]
        %v3356 = vld [vmem:[%s79 + $0x30] sm:$0xf]
        %v3357 = vld [vmem:[%s79 + $0x34] sm:$0xf]
        %v3358 = vld [vmem:[%s79 + $0x38] sm:$0xf]
        %v3359 = vld [vmem:[%s79 + $0x3c] sm:$0xf]
        %v3360 = vld [vmem:[%s81] sm:$0x1]
        %v3361 = vpack.c.bf16 %v3323, %v3323
        %v3363 = vpack.i.b16 %v3361, %v3361
        %v3365 = vlaneseq
        %v3366 = vshrl.u32 %v3365, 7
        %v3367 = vsub.s32 0, %v3366
        %v3368 = vrot.slane %v3363, %v3367
        %v3369 = vmul.bf16 %v3321, %v3368
        %v3370 = vmul.bf16 %v3322, %v3368
        %v3371 = vpack.c.bf16 %v3324, %v3324
        %v3373 = vpack.i.b16 %v3371, %v3371
        %v3375 = vlaneseq
        %v3376 = vshrl.u32 %v3375, 7
        %v3377 = vsub.s32 0, %v3376
        %v3378 = vrot.slane %v3373, %v3377
        %v3379 = vadd.bf16 %v3369, %v3378
        %v3380 = vadd.bf16 %v3370, %v3378
        %v3381 = vmul.bf16 %v3379, %v3379
        %v3382 = vmul.bf16 %v3380, %v3380
        %v3383 = vmul.bf16 %v3381, 1024605458
        %v3384 = vmul.bf16 %v3382, 1024605458
        %v3385 = vadd.bf16 %v3383, 1061961548
        %v3386 = vadd.bf16 %v3384, 1061961548
        %v3387 = vmul.bf16 %v3379, %v3385
        %v3388 = vmul.bf16 %v3380, %v3386
        %v3389 = vmul.bf16 %v3379, 1056980736
        %v3390 = vmul.bf16 %v3380, 1056980736
        %v3391 = vtanh.bf16.pop %v3387
        %v3392 = vtanh.bf16.pop %v3388
        %v3393 = vadd.bf16 %v3391, 1065369472
        %v3394 = vadd.bf16 %v3392, 1065369472
        %v3395 = vmul.bf16 %v3389, %v3393
        %v3396 = vmul.bf16 %v3390, %v3394
        %v3398 = vlaneseq
        %v3399 = vshrl.u32 %v3398, 7
        %v3400 = vsub.s32 0, %v3399
        %v3401 = vrot.slane %v3341, %v3400
        %v3419 = vunpack.c.l.b16 %v3325
        %v3420 = vunpack.c.l.b16 %v3326
        %v3421 = vunpack.c.l.b16 %v3327
        %v3422 = vunpack.c.l.b16 %v3328
        %v3423 = vunpack.c.l.b16 %v3329
        %v3424 = vunpack.c.l.b16 %v3330
        %v3425 = vunpack.c.l.b16 %v3331
        %v3426 = vunpack.c.l.b16 %v3332
        %v3427 = vunpack.c.l.b16 %v3333
        %v3428 = vunpack.c.l.b16 %v3334
        %v3429 = vunpack.c.l.b16 %v3335
        %v3430 = vunpack.c.l.b16 %v3336
        %v3431 = vunpack.c.l.b16 %v3337
        %v3432 = vunpack.c.l.b16 %v3338
        %v3433 = vunpack.c.l.b16 %v3339
        %v3434 = vunpack.c.l.b16 %v3340
        %v3435 = vpack.c.b16 %v3420, %v3419
        %v3436 = vpack.c.b16 %v3422, %v3421
        %v3437 = vpack.c.b16 %v3424, %v3423
        %v3438 = vpack.c.b16 %v3426, %v3425
        %v3439 = vpack.c.b16 %v3428, %v3427
        %v3440 = vpack.c.b16 %v3430, %v3429
        %v3441 = vpack.c.b16 %v3432, %v3431
        %v3442 = vpack.c.b16 %v3434, %v3433
        %3451 = vmatprep.subr.bf16.mxu0 0
        %3452 = vmatpush1.bf16.msra.mxu0 %v3442
        %3453 = vmatprep.subr.bf16.mxu0 0
        %3454 = vmatpush1.bf16.msra.mxu0 %v3441
        %3455 = vmatprep.subr.bf16.mxu0 0
        %3456 = vmatpush1.bf16.msra.mxu0 %v3440
        %3457 = vmatprep.subr.bf16.mxu0 0
        %3458 = vmatpush1.bf16.msra.mxu0 %v3439
        %3459 = vmatprep.subr.bf16.mxu0 0
        %3460 = vmatpush1.bf16.msra.mxu0 %v3438
        %3461 = vmatprep.subr.bf16.mxu0 0
        %3462 = vmatpush1.bf16.msra.mxu0 %v3437
        %3463 = vmatprep.subr.bf16.mxu0 0
        %3464 = vmatpush1.bf16.msra.mxu0 %v3436
        %3465 = vmatprep.subr.bf16.mxu0 0
        %3466 = vmatpush1.bf16.msra.mxu0 %v3435
        %3467 = vmatprep.subr.bf16.mxu0 0
        %3468 = vmatpush2.bf16.msra.mxu0 0
        %3469 = vmatprep.subr.bf16.mxu0 0
        %3470 = vmatpush2.bf16.msra.mxu0 0
        %3471 = vmatprep.subr.bf16.mxu0 0
        %3472 = vmatpush2.bf16.msra.mxu0 0
        %3473 = vmatprep.subr.bf16.mxu0 0
        %3474 = vmatpush2.bf16.msra.mxu0 0
        %3475 = vmatprep.subr.bf16.mxu0 0
        %3476 = vmatpush2.bf16.msra.mxu0 0
        %3477 = vmatprep.subr.bf16.mxu0 0
        %3478 = vmatpush2.bf16.msra.mxu0 0
        %3479 = vmatprep.subr.bf16.mxu0 0
        %3480 = vmatpush2.bf16.msra.mxu0 0
        %3481 = vmatprep.subr.bf16.mxu0 0
        %3482 = vmatpush2.bf16.msra.mxu0 0
        %3483 = vmatprep.mubr.bf16.mxu0 0
        %3484 = vmatmul.mubr.bf16.gmra.mxu0 %v3395
        %v3485 = vpop.f32.mrf.mxu0
        %v3486 = vadd.f32 %v3401, %v3485
        %v3487 = vpop.f32.mrf.mxu0
        %v3488 = vpop.f32.mrf.mxu0
        %v3489 = vadd.f32 %v3401, %v3488
        %v3490 = vpop.f32.mrf.mxu0
        %3491 = vmatprep.mubr.bf16.mxu0 0
        %3492 = vmatmul.mubr.bf16.gmra.mxu0 %v3396
        %v3493 = vpop.f32.mrf.mxu0
        %v3494 = vadd.f32 %v3401, %v3493
        %v3495 = vpop.f32.mrf.mxu0
        %v3496 = vpop.f32.mrf.mxu0
        %v3497 = vadd.f32 %v3401, %v3496
        %v3498 = vpop.f32.mrf.mxu0
        %3499 = vdwg.mxu0
        %v3500 = vpack.c.bf16 %v3489, %v3486
        %v3501 = vpack.c.bf16 %v3497, %v3494
        %v3502 = vadd.bf16 %v3321, %v3500
        %v3503 = vadd.bf16 %v3322, %v3501
        %v3504 = vpack.c.bf16 %v3342, %v3342
        %v3506 = vpack.i.b16 %v3504, %v3504
        %v3508 = vlaneseq
        %v3509 = vshrl.u32 %v3508, 7
        %v3510 = vsub.s32 0, %v3509
        %v3511 = vrot.slane %v3506, %v3510
        %v3512 = vmul.bf16 %v3502, %v3511
        %v3513 = vmul.bf16 %v3503, %v3511
        %v3514 = vpack.c.bf16 %v3343, %v3343
        %v3516 = vpack.i.b16 %v3514, %v3514
        %v3518 = vlaneseq
        %v3519 = vshrl.u32 %v3518, 7
        %v3520 = vsub.s32 0, %v3519
        %v3521 = vrot.slane %v3516, %v3520
        %v3522 = vadd.bf16 %v3512, %v3521
        %v3523 = vadd.bf16 %v3513, %v3521
        %v3524 = vmul.bf16 %v3522, %v3522
        %v3525 = vmul.bf16 %v3523, %v3523
        %v3526 = vmul.bf16 %v3524, 1024605458
        %v3527 = vmul.bf16 %v3525, 1024605458
        %v3528 = vadd.bf16 %v3526, 1061961548
        %v3529 = vadd.bf16 %v3527, 1061961548
        %v3530 = vmul.bf16 %v3522, %v3528
        %v3531 = vmul.bf16 %v3523, %v3529
        %v3532 = vmul.bf16 %v3522, 1056980736
        %v3533 = vmul.bf16 %v3523, 1056980736
        %v3534 = vtanh.bf16.pop %v3530
        %v3535 = vtanh.bf16.pop %v3531
        %v3536 = vadd.bf16 %v3534, 1065369472
        %v3537 = vadd.bf16 %v3535, 1065369472
        %v3538 = vmul.bf16 %v3532, %v3536
        %v3539 = vmul.bf16 %v3533, %v3537
        %v3541 = vlaneseq
        %v3542 = vshrl.u32 %v3541, 7
        %v3543 = vsub.s32 0, %v3542
        %v3544 = vrot.slane %v3360, %v3543
        %v3562 = vunpack.c.l.b16 %v3344
        %v3563 = vunpack.c.l.b16 %v3345
        %v3564 = vunpack.c.l.b16 %v3346
        %v3565 = vunpack.c.l.b16 %v3347
        %v3566 = vunpack.c.l.b16 %v3348
        %v3567 = vunpack.c.l.b16 %v3349
        %v3568 = vunpack.c.l.b16 %v3350
        %v3569 = vunpack.c.l.b16 %v3351
        %v3570 = vunpack.c.l.b16 %v3352
        %v3571 = vunpack.c.l.b16 %v3353
        %v3572 = vunpack.c.l.b16 %v3354
        %v3573 = vunpack.c.l.b16 %v3355
        %v3574 = vunpack.c.l.b16 %v3356
        %v3575 = vunpack.c.l.b16 %v3357
        %v3576 = vunpack.c.l.b16 %v3358
        %v3577 = vunpack.c.l.b16 %v3359
        %v3578 = vpack.c.b16 %v3563, %v3562
        %v3579 = vpack.c.b16 %v3565, %v3564
        %v3580 = vpack.c.b16 %v3567, %v3566
        %v3581 = vpack.c.b16 %v3569, %v3568
        %v3582 = vpack.c.b16 %v3571, %v3570
        %v3583 = vpack.c.b16 %v3573, %v3572
        %v3584 = vpack.c.b16 %v3575, %v3574
        %v3585 = vpack.c.b16 %v3577, %v3576
        %3594 = vmatprep.subr.bf16.mxu0 0
        %3595 = vmatpush1.bf16.msra.mxu0 %v3585
        %3596 = vmatprep.subr.bf16.mxu0 0
        %3597 = vmatpush1.bf16.msra.mxu0 %v3584
        %3598 = vmatprep.subr.bf16.mxu0 0
        %3599 = vmatpush1.bf16.msra.mxu0 %v3583
        %3600 = vmatprep.subr.bf16.mxu0 0
        %3601 = vmatpush1.bf16.msra.mxu0 %v3582
        %3602 = vmatprep.subr.bf16.mxu0 0
        %3603 = vmatpush1.bf16.msra.mxu0 %v3581
        %3604 = vmatprep.subr.bf16.mxu0 0
        %3605 = vmatpush1.bf16.msra.mxu0 %v3580
        %3606 = vmatprep.subr.bf16.mxu0 0
        %3607 = vmatpush1.bf16.msra.mxu0 %v3579
        %3608 = vmatprep.subr.bf16.mxu0 0
        %3609 = vmatpush1.bf16.msra.mxu0 %v3578
        %3610 = vmatprep.subr.bf16.mxu0 0
        %3611 = vmatpush2.bf16.msra.mxu0 0
        %3612 = vmatprep.subr.bf16.mxu0 0
        %3613 = vmatpush2.bf16.msra.mxu0 0
        %3614 = vmatprep.subr.bf16.mxu0 0
        %3615 = vmatpush2.bf16.msra.mxu0 0
        %3616 = vmatprep.subr.bf16.mxu0 0
        %3617 = vmatpush2.bf16.msra.mxu0 0
        %3618 = vmatprep.subr.bf16.mxu0 0
        %3619 = vmatpush2.bf16.msra.mxu0 0
        %3620 = vmatprep.subr.bf16.mxu0 0
        %3621 = vmatpush2.bf16.msra.mxu0 0
        %3622 = vmatprep.subr.bf16.mxu0 0
        %3623 = vmatpush2.bf16.msra.mxu0 0
        %3624 = vmatprep.subr.bf16.mxu0 0
        %3625 = vmatpush2.bf16.msra.mxu0 0
        %3626 = vmatprep.mubr.bf16.mxu0 0
        %3627 = vmatmul.mubr.bf16.gmra.mxu0 %v3538
        %v3628 = vpop.f32.mrf.mxu0
        %v3629 = vadd.f32 %v3544, %v3628
        %v3630 = vpop.f32.mrf.mxu0
        %v3631 = vpop.f32.mrf.mxu0
        %v3632 = vadd.f32 %v3544, %v3631
        %v3633 = vpop.f32.mrf.mxu0
        %3634 = vmatprep.mubr.bf16.mxu0 0
        %3635 = vmatmul.mubr.bf16.gmra.mxu0 %v3539
        %v3636 = vpop.f32.mrf.mxu0
        %v3637 = vadd.f32 %v3544, %v3636
        %v3638 = vpop.f32.mrf.mxu0
        %v3639 = vpop.f32.mrf.mxu0
        %v3640 = vadd.f32 %v3544, %v3639
        %v3641 = vpop.f32.mrf.mxu0
        %3642 = vdwg.mxu0
        %v3643 = vpack.c.bf16 %v3632, %v3629
        %v3644 = vpack.c.bf16 %v3640, %v3637
        %v3645 = vunpack.c.l.bf16 %v3643
        %v3646 = vunpack.c.h.bf16 %v3643
        %v3647 = vunpack.c.l.bf16 %v3644
        %v3648 = vunpack.c.h.bf16 %v3644
        %3649 = vst [vmem:[%s1688] sm:$0xff] %v3645
        %3650 = vst [vmem:[%s1688 + $0x8] sm:$0xff] %v3646
        %3651 = vst [vmem:[%s1688 + $0x10] sm:$0xff] %v3647
        %3652 = vst [vmem:[%s1688 + $0x18] sm:$0xff] %v3648
        %s3653 = sand.u32 %s989, 1
        %s3654 = scalar_lea.sflag [#allocation4], %s3653
        %s3655 = sand.u32 %s989, 1
        %s3656 = smul.addr %s3655, 32
        %s3657 = scalar_lea.vmem [#allocation56], %s3656
        // Predicated region
        $region325: #{item_embedder_forward.1} parent=183 // pred_check
          %p3658 = pneg %p999
        $region326: #{item_embedder_forward.1} parent=183 // pred_check_branch
          %3660 = sbr.rel (%p3658) target = $region328
        $region327: #{item_embedder_forward.1} parent=183 // pred_region
          %s3661 = smul.u32 4, %s115
          %s3663 = ssub.s32 512, 512
          %3664 = vsyncadd %s3654, %s3663
          %s3665 = smul.addr %s3661, 128
          %s3666 = scalar_lea.hbm %s83, %s3665
          %s3667 = sshll.u32 %s3657, 4
          %s3668 = int_to_ptr.vmem [resolvable:$true] %s3667
          %3673 = dma.vmem_to_hbm [thread:$0]  %s3668, 512, %s3666, %s3654, 128, 128, 8
        $region328: #{item_embedder_forward.1} parent=183 // pred_fallthru
          _
      $region184: #{item_embedder_forward.1} parent=5 // pred_fallthru
        _
      %p3674 = scmp.le.s32.totalorder 2, %s110
      // Predicated region
      $region329: #{item_embedder_forward.1} parent=5 // pred_check
        %p3675 = pneg %p3674
      $region330: #{item_embedder_forward.1} parent=5 // pred_check_branch
        %3677 = sbr.rel (%p3675) target = $region332
      $region331: #{item_embedder_forward.1} parent=5 // pred_region
        %s3678 = ssub.s32 %s110, 2
        // Predicated region
        $region333: #{item_embedder_forward.1} parent=331 // pred_check
          %p3679 = pneg %p1005
        $region334: #{item_embedder_forward.1} parent=331 // pred_check_branch
          %3681 = sbr.rel (%p3679) target = $region336
        $region335: #{item_embedder_forward.1} parent=331 // pred_region
          %s3682 = sand.u32 %s990, 1
          %s3683 = scalar_lea.sflag [#allocation4], %s3682
          %s3684 = sand.u32 %s990, 1
          %s3685 = smul.addr %s3684, 32
          %s3686 = scalar_lea.vmem [#allocation56], %s3685
          %3687 = dma.done %s3683, 512
        $region336: #{item_embedder_forward.1} parent=331 // pred_fallthru
          _
      $region332: #{item_embedder_forward.1} parent=5 // pred_fallthru
        _
    $region6: #{item_embedder_forward.1} parent=1 // loop_footer
      %s114 = sadd.s32 1, %s110
    $region7: #{item_embedder_forward.1} parent=1 // loop_footer_branch
      %109 = sbr.rel target = $region3
    $region8: #{item_embedder_forward.1} parent=1 // loop_exit
      _
    %3688 = vsyncpa [#allocation3], 1
    %s3689 = scalar_lea.sflag [#allocation3], 1
    %3690 = vsyncpa %s3689, 1
    %3691 = vsyncpa [#allocation6], 1
    %3692 = vsyncpa [#allocation9], 1
    %3693 = vsyncpa [#allocation12], 1
    %3694 = vsyncpa [#allocation15], 1
    %3695 = vsyncpa [#allocation18], 1
    %3696 = vsyncpa [#allocation21], 1
    %3697 = vsyncpa [#allocation24], 1
    %3698 = vsyncpa [#allocation27], 1
    %3699 = vsyncpa [#allocation30], 1
    %3700 = vsyncpa [#allocation33], 1
    %3701 = vsyncpa [#allocation36], 1
    %3702 = vsyncpa [#allocation39], 1
    %3703 = vsyncpa [#allocation42], 1
    %3704 = vsyncpa [#allocation45], 1
    %3705 = vsyncpa [#allocation48], 1
    %3706 = vsyncpa [#allocation51], 1
    %3707 = vsyncpa [#allocation54], 1
    %3708 = vsyncpa [#allocation4], 1
    %s3709 = scalar_lea.sflag [#allocation4], 1
    %3710 = vsyncpa %s3709, 1

</llo_original>
